<compile_context>
chip_gen: v5e
topology: v5e:2x2
jax: 0.10.0
libtpu: 0.0.40
codegen_flags: <defaults>
</compile_context>

<pallas_src>
import functools

import jax
import jax.numpy as jnp
from jax.experimental import pallas as pl
from jax.experimental.pallas import tpu as pltpu

MIN_F32 = float(jnp.finfo(jnp.float32).min)
MIN_BF16 = float(jnp.finfo(jnp.bfloat16).min)   # finite: keeps 0 * pooled == 0 in matmul
NEG_INF = float("-inf")


def _round_up(x, m):
    return ((x + m - 1) // m) * m


def _block_vmem_bytes(shape, dtype):
    """Layout-padded VMEM bytes for ONE buffer of a 2-D block."""
    itemsize = jnp.dtype(dtype).itemsize
    sublane = 8 * max(1, 4 // itemsize)          # f32/int32: 8 rows, bf16: 16 rows
    s, l = shape
    return _round_up(s, sublane) * _round_up(l, 128) * itemsize


def _global_emd_kernel(ids_ref, x_ref,
                       w1_ref, b1_ref, w2_ref, b2_ref, w3_ref, b3_ref,
                       w4a_ref, w4b_ref, b4_ref, w5_ref, b5_ref,
                       out_ref, pooled_ref, *, num_segments, seg_pad, n_valid):
    phase = pl.program_id(0)   # 0: mlp1 + segment max   1: gather + mlp2 + segment max
    tile = pl.program_id(1)

    tn = x_ref.shape[0]
    d3 = pooled_ref.shape[1]

    # ---- shared, hoisted per-(phase, tile) work -------------------------------
    x = x_ref[...].astype(jnp.bfloat16)                                # [TN, Cin]
    ids = ids_ref[...]                                                 # [TN, 1] int32

    # Tail-validity mask (padding rows of the last, partial tile hold garbage).
    row = jax.lax.broadcasted_iota(jnp.int32, (tn, 1), 0) + tile * tn
    valid = row < n_valid                                              # [TN, 1] bool

    # One-hot segment membership, built ONCE and reused by gather + segment max.
    seg_lane = jax.lax.broadcasted_iota(jnp.int32, (tn, seg_pad), 1)
    onehot = jnp.logical_and(ids == seg_lane, valid)                   # [TN, SEG_PAD]

    def segment_max(h, min_val, rows_out):
        """Dense [rows_out, D] per-segment max of h; absent/padded rows -> min_val."""
        cols = []
        for b in range(num_segments):                                  # B small & static
            m = onehot[:, b:b + 1]                                     # [TN, 1] bool
            cols.append(jnp.max(jnp.where(m, h, min_val), axis=0, keepdims=True))
        if rows_out > num_segments:
            cols.append(jnp.full((rows_out - num_segments, h.shape[1]),
                                 min_val, h.dtype))
        return jnp.concatenate(cols, axis=0)

    # ---------------- phase 0: mlp1 + running segment max ----------------------
    @pl.when(phase == 0)
    def _mlp1_and_pool():
        @pl.when(tile == 0)
        def _init():
            pooled_ref[...] = jnp.full(pooled_ref.shape, MIN_BF16, pooled_ref.dtype)

        h = jnp.maximum(
            jnp.dot(x, w1_ref[...], preferred_element_type=jnp.float32) + b1_ref[...],
            0.0)
        h = jnp.maximum(
            jnp.dot(h.astype(jnp.bfloat16), w2_ref[...],
                    preferred_element_type=jnp.float32) + b2_ref[...], 0.0)
        h = jnp.dot(h.astype(jnp.bfloat16), w3_ref[...],
                    preferred_element_type=jnp.float32) + b3_ref[...]  # [TN, D3] f32

        pooled_ref[...] = jnp.maximum(pooled_ref[...],
                                      segment_max(h, MIN_BF16, seg_pad))

    # ------------ phase 1: MXU gather + mlp2 + final segment max ---------------
    @pl.when(phase == 1)
    def _mlp2_and_pool():
        @pl.when(tile == 0)
        def _init():
            out_ref[...] = jnp.full(out_ref.shape, NEG_INF, out_ref.dtype)

        # g[r] = pooled[ids[r]] via one-hot matmul (invalid rows -> 0, exact since
        # the one-hot picks a single bf16 row; padded segments contribute 0*finite).
        g = jnp.dot(onehot.astype(jnp.bfloat16),
                    pooled_ref[...].astype(jnp.bfloat16),
                    preferred_element_type=jnp.float32)                # [TN, D3] f32

        # mlp2 on concat([x, g]) folded into two matmuls with the split weight.
        h2 = jnp.maximum(
            jnp.dot(x, w4a_ref[...], preferred_element_type=jnp.float32)
            + jnp.dot(g.astype(jnp.bfloat16), w4b_ref[...],
                      preferred_element_type=jnp.float32)
            + b4_ref[...], 0.0)
        h2 = jnp.dot(h2.astype(jnp.bfloat16), w5_ref[...],
                     preferred_element_type=jnp.float32) + b5_ref[...]  # [TN, Cout]

        out_ref[...] = jnp.maximum(out_ref[...],
                                   segment_max(h2, NEG_INF, out_ref.shape[0]))


def prepare_params(params):
    """One-time prep: cast matmul weights to bf16 (keeps biases f32). Hoists the
    per-call casts out of the forward."""
    out = dict(params)
    for k in ("w1", "w2", "w3", "w4a", "w4b", "w5"):
        out[k] = params[k].astype(jnp.bfloat16)
    return out


def global_emd_forward(pos_emd, radius_p_batch, params, num_segments, tile_n=1024):
    """pos_emd: [N, input_c] f32; radius_p_batch: [N] int segment ids in [0, B)."""
    n, cin = pos_emd.shape
    d1 = params["w1"].shape[1]
    d2 = params["w2"].shape[1]
    d3 = params["w3"].shape[1]
    cout = params["w5"].shape[1]
    seg_pad = _round_up(max(num_segments, 1), 8)

    # Big tiles amortise per-grid-step overhead; clamp so a single tile covers small N.
    tile_n = max(8, min(_round_up(tile_n, 8), _round_up(n, 8)))
    num_tiles = int(pl.cdiv(n, tile_n))

    ids2d = radius_p_batch.astype(jnp.int32).reshape(n, 1)
    wb = lambda k: (params[k] if params[k].dtype == jnp.bfloat16
                    else params[k].astype(jnp.bfloat16))   # no-op if prepare_params()
    args = (ids2d, pos_emd,
            wb("w1"), params["b1"], wb("w2"), params["b2"], wb("w3"), params["b3"],
            wb("w4a"), wb("w4b"), params["b4"], wb("w5"), params["b5"])

    def tiled_spec(shape):
        return pl.BlockSpec(shape, lambda p, t: (t, 0))

    def const_spec(shape):    # fetched once, VMEM resident across the whole grid
        return pl.BlockSpec(shape, lambda p, t: (0, 0))

    in_specs = [tiled_spec((tile_n, 1)), tiled_spec((tile_n, cin))]
    in_specs += [const_spec(tuple(a.shape)) for a in args[2:]]
    out_spec = const_spec((num_segments, cout))

    # Explicit VMEM budget from layout-padded, double-buffered block sizes.
    block_list = [((tile_n, 1), jnp.int32), ((tile_n, cin), pos_emd.dtype)]
    block_list += [(tuple(a.shape), a.dtype) for a in args[2:]]
    vmem_bytes = 2 * sum(_block_vmem_bytes(s, d) for s, d in block_list)
    vmem_bytes += 2 * _block_vmem_bytes((num_segments, cout), jnp.float32)
    vmem_bytes += _block_vmem_bytes((seg_pad, d3), jnp.float32)
    vmem_limit = int(min(64 * 1024 * 1024, vmem_bytes + 16 * 1024 * 1024))

    flops = 2 * n * (cin * d1 + d1 * d2 + d2 * d3            # mlp1
                     + seg_pad * d3                          # one-hot gather matmul
                     + cin * cout + d3 * cout + cout * cout)  # mlp2
    bytes_accessed = (2 * n * cin * pos_emd.dtype.itemsize    # x streamed in both phases
                      + 2 * n * 4                             # ids in both phases
                      + sum(int(a.size) * a.dtype.itemsize for a in args[2:])
                      + num_segments * cout * 4)

    kernel = functools.partial(_global_emd_kernel, num_segments=num_segments,
                               seg_pad=seg_pad, n_valid=n)
    return pl.pallas_call(
        kernel,
        out_shape=jax.ShapeDtypeStruct((num_segments, cout), jnp.float32),
        grid=(2, num_tiles),                     # (phase, N-tile); phase-major order
        in_specs=in_specs,
        out_specs=out_spec,
        scratch_shapes=[pltpu.VMEM((seg_pad, d3), jnp.float32)],
        compiler_params=pltpu.CompilerParams(
            # Both axes sequential: phase 1 consumes the phase-0 accumulator and the
            # pooled/out accumulators span tiles. TODO(synk): v7x megacore would need
            # per-core partial segment maxes + a combine step.
            dimension_semantics=("arbitrary", "arbitrary"),
            vmem_limit_bytes=vmem_limit),
        cost_estimate=pl.CostEstimate(flops=int(flops), transcendentals=0,
                                      bytes_accessed=int(bytes_accessed)),
    )(*args)


def reference_forward(pos_emd, radius_p_batch, params, num_segments,
                      op_dtype=jnp.float32):
    """Pure-JAX reference mirroring the torch module (optionally bf16 matmul operands)."""
    def mm(a, w):
        return jnp.dot(a.astype(op_dtype), w.astype(op_dtype),
                       preferred_element_type=jnp.float32)

    x = pos_emd.astype(jnp.float32)
    h = jax.nn.relu(mm(x, params["w1"]) + params["b1"])
    h = jax.nn.relu(mm(h, params["w2"]) + params["b2"])
    h = mm(h, params["w3"]) + params["b3"]
    pooled = jax.ops.segment_max(h, radius_p_batch, num_segments=num_segments)
    g = pooled[radius_p_batch]
    h2 = jax.nn.relu(mm(x, params["w4a"]) + mm(g, params["w4b"]) + params["b4"])
    h2 = mm(h2, params["w5"]) + params["b5"]
    return jax.ops.segment_max(h2, radius_p_batch, num_segments=num_segments)


def make_params(key, input_c, inter_c, output_c):
    ks = jax.random.split(key, 11)

    def w(k, fan_in, fan_out):
        return (jax.random.normal(k, (fan_in, fan_out), jnp.float32)
                / jnp.sqrt(jnp.float32(fan_in)))

    def b(k, fan_out):
        return 0.01 * jax.random.normal(k, (1, fan_out), jnp.float32)

    return {
        # mlp1
        "w1": w(ks[0], input_c, inter_c[0]),     "b1": b(ks[1], inter_c[0]),
        "w2": w(ks[2], inter_c[0], inter_c[1]),  "b2": b(ks[3], inter_c[1]),
        "w3": w(ks[4], inter_c[1], inter_c[2]),  "b3": b(ks[5], inter_c[2]),
        # mlp2 (first Linear split across the concat boundary)
        "w4a": w(ks[6], input_c, output_c),
        "w4b": w(ks[7], inter_c[2], output_c),   "b4": b(ks[8], output_c),
        "w5": w(ks[9], output_c, output_c),      "b5": b(ks[10], output_c),
    }


if __name__ == "__main__":
    # Small shapes consistent with the module structure.
    input_c, inter_c, output_c = 32, (64, 128, 128), 128
    seg_sizes = (200, 253, 150)            # 3 segments, sorted ids (PyG-style batch)
    num_segments = len(seg_sizes)
    n = sum(seg_sizes)                     # 603 points (not a tile multiple)

    key = jax.random.PRNGKey(0)
    k_params, k_x = jax.random.split(key)
    params_f32 = make_params(k_params, input_c, inter_c, output_c)
    params = prepare_params(params_f32)    # one-time bf16 weight cast (hoisted)

    pos_emd = jax.random.normal(k_x, (n, input_c), jnp.float32)
    radius_p_batch = jnp.concatenate(
        [jnp.full((s,), i, jnp.int32) for i, s in enumerate(seg_sizes)])

    ref_bf16 = reference_forward(pos_emd, radius_p_batch, params, num_segments,
                                 op_dtype=jnp.bfloat16)
    ref_f32 = reference_forward(pos_emd, radius_p_batch, params_f32, num_segments,
                                op_dtype=jnp.float32)

    # Default (large-tile) configuration: one tile covers all points.
    out = jax.block_until_ready(
        global_emd_forward(pos_emd, radius_p_batch, params, num_segments))
    assert out.shape == (num_segments, output_c) and out.dtype == jnp.float32
    assert jnp.allclose(out, ref_bf16, rtol=2e-2, atol=2e-2), "mismatch vs bf16 reference"
    assert jnp.allclose(out, ref_f32, rtol=1e-1, atol=1e-1), "mismatch vs f32 reference"

    # Small tile: exercises multi-tile streaming, cross-tile accumulators and the
    # in-kernel tail mask (603 % 256 != 0).
    out_small = jax.block_until_ready(
        global_emd_forward(pos_emd, radius_p_batch, params, num_segments, tile_n=256))
    assert jnp.allclose(out_small, ref_bf16, rtol=2e-2, atol=2e-2), \
        "mismatch (multi-tile) vs bf16 reference"

    print("KERNEL_OK")
</pallas_src>

<mosaic_0001>
module attributes {stable_mosaic.version = 11 : i64} {
  func.func @_global_emd_kernel(%arg0: i32, %arg1: i32, %arg2: memref<608x1xi32, #tpu.memory_space<vmem>>, %arg3: memref<608x32xf32, #tpu.memory_space<vmem>>, %arg4: memref<32x64xbf16, #tpu.memory_space<vmem>>, %arg5: memref<1x64xf32, #tpu.memory_space<vmem>>, %arg6: memref<64x128xbf16, #tpu.memory_space<vmem>>, %arg7: memref<1x128xf32, #tpu.memory_space<vmem>>, %arg8: memref<128x128xbf16, #tpu.memory_space<vmem>>, %arg9: memref<1x128xf32, #tpu.memory_space<vmem>>, %arg10: memref<32x128xbf16, #tpu.memory_space<vmem>>, %arg11: memref<128x128xbf16, #tpu.memory_space<vmem>>, %arg12: memref<1x128xf32, #tpu.memory_space<vmem>>, %arg13: memref<128x128xbf16, #tpu.memory_space<vmem>>, %arg14: memref<1x128xf32, #tpu.memory_space<vmem>>, %arg15: memref<3x128xf32, #tpu.memory_space<vmem>>, %arg16: memref<8x128xf32, #tpu.memory_space<vmem>>) attributes {dimension_semantics = [#tpu.dimension_semantics<arbitrary>, #tpu.dimension_semantics<arbitrary>], iteration_bounds = array<i64: 2, 1>, scalar_prefetch = 0 : i64, scratch_operands = 1 : i64, tpu.core_type = #tpu.core_type<tc>, window_params = [{transform_indices = @transform_0, window_bounds = array<i64: 608, 1>}, {transform_indices = @transform_1, window_bounds = array<i64: 608, 32>}, {pipeline_mode = #tpu.pipeline_mode<synchronous>, transform_indices = @transform_2, window_bounds = array<i64: 32, 64>}, {pipeline_mode = #tpu.pipeline_mode<synchronous>, transform_indices = @transform_3, window_bounds = array<i64: 1, 64>}, {pipeline_mode = #tpu.pipeline_mode<synchronous>, transform_indices = @transform_4, window_bounds = array<i64: 64, 128>}, {pipeline_mode = #tpu.pipeline_mode<synchronous>, transform_indices = @transform_5, window_bounds = array<i64: 1, 128>}, {pipeline_mode = #tpu.pipeline_mode<synchronous>, transform_indices = @transform_6, window_bounds = array<i64: 128, 128>}, {pipeline_mode = #tpu.pipeline_mode<synchronous>, transform_indices = @transform_7, window_bounds = array<i64: 1, 128>}, {pipeline_mode = #tpu.pipeline_mode<synchronous>, transform_indices = @transform_8, window_bounds = array<i64: 32, 128>}, {pipeline_mode = #tpu.pipeline_mode<synchronous>, transform_indices = @transform_9, window_bounds = array<i64: 128, 128>}, {pipeline_mode = #tpu.pipeline_mode<synchronous>, transform_indices = @transform_10, window_bounds = array<i64: 1, 128>}, {pipeline_mode = #tpu.pipeline_mode<synchronous>, transform_indices = @transform_11, window_bounds = array<i64: 128, 128>}, {pipeline_mode = #tpu.pipeline_mode<synchronous>, transform_indices = @transform_12, window_bounds = array<i64: 1, 128>}, {pipeline_mode = #tpu.pipeline_mode<synchronous>, transform_indices = @transform_13, window_bounds = array<i64: 3, 128>}]} {
    %c0 = arith.constant 0 : index
    %c0_0 = arith.constant 0 : index
    %0 = vector.load %arg3[%c0, %c0_0] : memref<608x32xf32, #tpu.memory_space<vmem>>, vector<608x32xf32>
    %1 = arith.truncf %0 : vector<608x32xf32> to vector<608x32xbf16>
    %c0_1 = arith.constant 0 : index
    %c0_2 = arith.constant 0 : index
    %2 = vector.load %arg2[%c0_1, %c0_2] : memref<608x1xi32, #tpu.memory_space<vmem>>, vector<608x1xi32>
    %3 = tpu.iota {dimensions = array<i32: 0>} : vector<608x1xi32>
    %c608_i32 = arith.constant 608 : i32
    %4 = arith.muli %arg1, %c608_i32 : i32
    %5 = vector.broadcast %4 : i32 to vector<608x1xi32>
    %6 = arith.addi %3, %5 : vector<608x1xi32>
    %c603_i32 = arith.constant 603 : i32
    %7 = vector.broadcast %c603_i32 : i32 to vector<608x1xi32>
    %8 = arith.cmpi slt, %6, %7 : vector<608x1xi32>
    %9 = tpu.iota {dimensions = array<i32: 1>} : vector<608x8xi32>
    %10 = vector.broadcast %2 : vector<608x1xi32> to vector<608x8xi32>
    %11 = arith.cmpi eq, %10, %9 : vector<608x8xi32>
    %12 = vector.broadcast %8 : vector<608x1xi1> to vector<608x8xi1>
    %13 = arith.andi %11, %12 : vector<608x8xi1>
    %c0_i32 = arith.constant 0 : i32
    %14 = arith.cmpi eq, %arg0, %c0_i32 : i32
    %15 = arith.extui %14 : i1 to i32
    %c0_i32_3 = arith.constant 0 : i32
    %16 = arith.cmpi ne, %15, %c0_i32_3 : i32
    scf.if %16 {
      %c0_i32_5 = arith.constant 0 : i32
      %20 = arith.cmpi eq, %arg1, %c0_i32_5 : i32
      %21 = arith.extui %20 : i1 to i32
      %c0_i32_6 = arith.constant 0 : i32
      %22 = arith.cmpi ne, %21, %c0_i32_6 : i32
      scf.if %22 {
        %cst_34 = arith.constant -3.38953139E+38 : f32
        %70 = vector.broadcast %cst_34 : f32 to vector<8x128xf32>
        %c0_35 = arith.constant 0 : index
        %c0_36 = arith.constant 0 : index
        %71 = vector.load %arg16[%c0_35, %c0_36] : memref<8x128xf32, #tpu.memory_space<vmem>>, vector<8x128xf32>
        tpu.vector_store %arg16[%c0_35, %c0_36], %70 {strides = array<i32>} : memref<8x128xf32, #tpu.memory_space<vmem>>, vector<8x128xf32>,
      } else {
      }
      %c0_7 = arith.constant 0 : index
      %c0_8 = arith.constant 0 : index
      %23 = vector.load %arg4[%c0_7, %c0_8] : memref<32x64xbf16, #tpu.memory_space<vmem>>, vector<32x64xbf16>
      %cst = arith.constant dense<0.000000e+00> : vector<608x64xf32>
      %24 = tpu.matmul %1, %23, %cst {dimension_numbers = #tpu.dot_dimension_numbers<[1], [0], [0], [1], [0, 0, 1, 1], [], []>} : vector<608x32xbf16>, vector<32x64xbf16>, vector<608x64xf32> -> vector<608x64xf32>
      %c0_9 = arith.constant 0 : index
      %c0_10 = arith.constant 0 : index
      %25 = vector.load %arg5[%c0_9, %c0_10] : memref<1x64xf32, #tpu.memory_space<vmem>>, vector<1x64xf32>
      %26 = vector.broadcast %25 : vector<1x64xf32> to vector<608x64xf32>
      %27 = arith.addf %24, %26 : vector<608x64xf32>
      %cst_11 = arith.constant 0.000000e+00 : f32
      %28 = vector.broadcast %cst_11 : f32 to vector<608x64xf32>
      %29 = arith.maximumf %27, %28 : vector<608x64xf32>
      %30 = arith.truncf %29 : vector<608x64xf32> to vector<608x64xbf16>
      %c0_12 = arith.constant 0 : index
      %c0_13 = arith.constant 0 : index
      %31 = vector.load %arg6[%c0_12, %c0_13] : memref<64x128xbf16, #tpu.memory_space<vmem>>, vector<64x128xbf16>
      %cst_14 = arith.constant dense<0.000000e+00> : vector<608x128xf32>
      %32 = tpu.matmul %30, %31, %cst_14 {dimension_numbers = #tpu.dot_dimension_numbers<[1], [0], [0], [1], [0, 0, 1, 1], [], []>} : vector<608x64xbf16>, vector<64x128xbf16>, vector<608x128xf32> -> vector<608x128xf32>
      %c0_15 = arith.constant 0 : index
      %c0_16 = arith.constant 0 : index
      %33 = vector.load %arg7[%c0_15, %c0_16] : memref<1x128xf32, #tpu.memory_space<vmem>>, vector<1x128xf32>
      %34 = vector.broadcast %33 : vector<1x128xf32> to vector<608x128xf32>
      %35 = arith.addf %32, %34 : vector<608x128xf32>
      %cst_17 = arith.constant 0.000000e+00 : f32
      %36 = vector.broadcast %cst_17 : f32 to vector<608x128xf32>
      %37 = arith.maximumf %35, %36 : vector<608x128xf32>
      %38 = arith.truncf %37 : vector<608x128xf32> to vector<608x128xbf16>
      %c0_18 = arith.constant 0 : index
      %c0_19 = arith.constant 0 : index
      %39 = vector.load %arg8[%c0_18, %c0_19] : memref<128x128xbf16, #tpu.memory_space<vmem>>, vector<128x128xbf16>
      %cst_20 = arith.constant dense<0.000000e+00> : vector<608x128xf32>
      %40 = tpu.matmul %38, %39, %cst_20 {dimension_numbers = #tpu.dot_dimension_numbers<[1], [0], [0], [1], [0, 0, 1, 1], [], []>} : vector<608x128xbf16>, vector<128x128xbf16>, vector<608x128xf32> -> vector<608x128xf32>
      %c0_21 = arith.constant 0 : index
      %c0_22 = arith.constant 0 : index
      %41 = vector.load %arg9[%c0_21, %c0_22] : memref<1x128xf32, #tpu.memory_space<vmem>>, vector<1x128xf32>
      %42 = vector.broadcast %41 : vector<1x128xf32> to vector<608x128xf32>
      %43 = arith.addf %40, %42 : vector<608x128xf32>
      %c0_23 = arith.constant 0 : index
      %c0_24 = arith.constant 0 : index
      %44 = vector.load %arg16[%c0_23, %c0_24] : memref<8x128xf32, #tpu.memory_space<vmem>>, vector<8x128xf32>
      %45 = vector.extract_strided_slice %13 {offsets = [0, 0], sizes = [608, 1], strides = [1, 1]} : vector<608x8xi1> to vector<608x1xi1>
      %cst_25 = arith.constant -3.38953139E+38 : f32
      %46 = vector.shape_cast %45 : vector<608x1xi1> to vector<608x1xi1>
      %47 = vector.broadcast %46 : vector<608x1xi1> to vector<608x128xi1>
      %48 = vector.broadcast %cst_25 : f32 to vector<608x128xf32>
      %49 = arith.select %47, %43, %48 : vector<608x128xi1>, vector<608x128xf32>
      %cst_26 = arith.constant dense<0xFF800000> : vector<128xf32>
      %50 = vector.multi_reduction <maximumf>, %49, %cst_26 [0] : vector<608x128xf32> to vector<128xf32>
      %51 = vector.shape_cast %50 : vector<128xf32> to vector<1x128xf32>
      %52 = vector.extract_strided_slice %13 {offsets = [0, 1], sizes = [608, 1], strides = [1, 1]} : vector<608x8xi1> to vector<608x1xi1>
      %cst_27 = arith.constant -3.38953139E+38 : f32
      %53 = vector.shape_cast %52 : vector<608x1xi1> to vector<608x1xi1>
      %54 = vector.broadcast %53 : vector<608x1xi1> to vector<608x128xi1>
      %55 = vector.broadcast %cst_27 : f32 to vector<608x128xf32>
      %56 = arith.select %54, %43, %55 : vector<608x128xi1>, vector<608x128xf32>
      %cst_28 = arith.constant dense<0xFF800000> : vector<128xf32>
      %57 = vector.multi_reduction <maximumf>, %56, %cst_28 [0] : vector<608x128xf32> to vector<128xf32>
      %58 = vector.shape_cast %57 : vector<128xf32> to vector<1x128xf32>
      %59 = vector.extract_strided_slice %13 {offsets = [0, 2], sizes = [608, 1], strides = [1, 1]} : vector<608x8xi1> to vector<608x1xi1>
      %cst_29 = arith.constant -3.38953139E+38 : f32
      %60 = vector.shape_cast %59 : vector<608x1xi1> to vector<608x1xi1>
      %61 = vector.broadcast %60 : vector<608x1xi1> to vector<608x128xi1>
      %62 = vector.broadcast %cst_29 : f32 to vector<608x128xf32>
      %63 = arith.select %61, %43, %62 : vector<608x128xi1>, vector<608x128xf32>
      %cst_30 = arith.constant dense<0xFF800000> : vector<128xf32>
      %64 = vector.multi_reduction <maximumf>, %63, %cst_30 [0] : vector<608x128xf32> to vector<128xf32>
      %65 = vector.shape_cast %64 : vector<128xf32> to vector<1x128xf32>
      %cst_31 = arith.constant -3.38953139E+38 : f32
      %66 = vector.broadcast %cst_31 : f32 to vector<5x128xf32>
      %67 = tpu.concatenate %51, %58, %65, %66 in 0 : vector<1x128xf32>, vector<1x128xf32>, vector<1x128xf32>, vector<5x128xf32> -> vector<8x128xf32>
      %68 = arith.maximumf %44, %67 : vector<8x128xf32>
      %c0_32 = arith.constant 0 : index
      %c0_33 = arith.constant 0 : index
      %69 = vector.load %arg16[%c0_32, %c0_33] : memref<8x128xf32, #tpu.memory_space<vmem>>, vector<8x128xf32>
      tpu.vector_store %arg16[%c0_32, %c0_33], %68 {strides = array<i32>} : memref<8x128xf32, #tpu.memory_space<vmem>>, vector<8x128xf32>,
    } else {
    }
    %c1_i32 = arith.constant 1 : i32
    %17 = arith.cmpi eq, %arg0, %c1_i32 : i32
    %18 = arith.extui %17 : i1 to i32
    %c0_i32_4 = arith.constant 0 : i32
    %19 = arith.cmpi ne, %18, %c0_i32_4 : i32
    scf.if %19 {
      %c0_i32_5 = arith.constant 0 : i32
      %20 = arith.cmpi eq, %arg1, %c0_i32_5 : i32
      %21 = arith.extui %20 : i1 to i32
      %c0_i32_6 = arith.constant 0 : i32
      %22 = arith.cmpi ne, %21, %c0_i32_6 : i32
      scf.if %22 {
        %cst_33 = arith.constant 0xFF800000 : f32
        %71 = vector.broadcast %cst_33 : f32 to vector<3x128xf32>
        %c0_34 = arith.constant 0 : index
        %c0_35 = arith.constant 0 : index
        %72 = vector.load %arg15[%c0_34, %c0_35] : memref<3x128xf32, #tpu.memory_space<vmem>>, vector<3x128xf32>
        tpu.vector_store %arg15[%c0_34, %c0_35], %71 {strides = array<i32>} : memref<3x128xf32, #tpu.memory_space<vmem>>, vector<3x128xf32>,
      } else {
      }
      %23 = arith.extui %13 : vector<608x8xi1> to vector<608x8xi32>
      %24 = arith.sitofp %23 : vector<608x8xi32> to vector<608x8xf32>
      %25 = arith.truncf %24 : vector<608x8xf32> to vector<608x8xbf16>
      %c0_7 = arith.constant 0 : index
      %c0_8 = arith.constant 0 : index
      %26 = vector.load %arg16[%c0_7, %c0_8] : memref<8x128xf32, #tpu.memory_space<vmem>>, vector<8x128xf32>
      %27 = arith.truncf %26 : vector<8x128xf32> to vector<8x128xbf16>
      %cst = arith.constant dense<0.000000e+00> : vector<608x128xf32>
      %28 = tpu.matmul %25, %27, %cst {dimension_numbers = #tpu.dot_dimension_numbers<[1], [0], [0], [1], [0, 0, 1, 1], [], []>} : vector<608x8xbf16>, vector<8x128xbf16>, vector<608x128xf32> -> vector<608x128xf32>
      %c0_9 = arith.constant 0 : index
      %c0_10 = arith.constant 0 : index
      %29 = vector.load %arg10[%c0_9, %c0_10] : memref<32x128xbf16, #tpu.memory_space<vmem>>, vector<32x128xbf16>
      %cst_11 = arith.constant dense<0.000000e+00> : vector<608x128xf32>
      %30 = tpu.matmul %1, %29, %cst_11 {dimension_numbers = #tpu.dot_dimension_numbers<[1], [0], [0], [1], [0, 0, 1, 1], [], []>} : vector<608x32xbf16>, vector<32x128xbf16>, vector<608x128xf32> -> vector<608x128xf32>
      %31 = arith.truncf %28 : vector<608x128xf32> to vector<608x128xbf16>
      %c0_12 = arith.constant 0 : index
      %c0_13 = arith.constant 0 : index
      %32 = vector.load %arg11[%c0_12, %c0_13] : memref<128x128xbf16, #tpu.memory_space<vmem>>, vector<128x128xbf16>
      %cst_14 = arith.constant dense<0.000000e+00> : vector<608x128xf32>
      %33 = tpu.matmul %31, %32, %cst_14 {dimension_numbers = #tpu.dot_dimension_numbers<[1], [0], [0], [1], [0, 0, 1, 1], [], []>} : vector<608x128xbf16>, vector<128x128xbf16>, vector<608x128xf32> -> vector<608x128xf32>
      %34 = arith.addf %30, %33 : vector<608x128xf32>
      %c0_15 = arith.constant 0 : index
      %c0_16 = arith.constant 0 : index
      %35 = vector.load %arg12[%c0_15, %c0_16] : memref<1x128xf32, #tpu.memory_space<vmem>>, vector<1x128xf32>
      %36 = vector.broadcast %35 : vector<1x128xf32> to vector<608x128xf32>
      %37 = arith.addf %34, %36 : vector<608x128xf32>
      %cst_17 = arith.constant 0.000000e+00 : f32
      %38 = vector.broadcast %cst_17 : f32 to vector<608x128xf32>
      %39 = arith.maximumf %37, %38 : vector<608x128xf32>
      %40 = arith.truncf %39 : vector<608x128xf32> to vector<608x128xbf16>
      %c0_18 = arith.constant 0 : index
      %c0_19 = arith.constant 0 : index
      %41 = vector.load %arg13[%c0_18, %c0_19] : memref<128x128xbf16, #tpu.memory_space<vmem>>, vector<128x128xbf16>
      %cst_20 = arith.constant dense<0.000000e+00> : vector<608x128xf32>
      %42 = tpu.matmul %40, %41, %cst_20 {dimension_numbers = #tpu.dot_dimension_numbers<[1], [0], [0], [1], [0, 0, 1, 1], [], []>} : vector<608x128xbf16>, vector<128x128xbf16>, vector<608x128xf32> -> vector<608x128xf32>
      %c0_21 = arith.constant 0 : index
      %c0_22 = arith.constant 0 : index
      %43 = vector.load %arg14[%c0_21, %c0_22] : memref<1x128xf32, #tpu.memory_space<vmem>>, vector<1x128xf32>
      %44 = vector.broadcast %43 : vector<1x128xf32> to vector<608x128xf32>
      %45 = arith.addf %42, %44 : vector<608x128xf32>
      %c0_23 = arith.constant 0 : index
      %c0_24 = arith.constant 0 : index
      %46 = vector.load %arg15[%c0_23, %c0_24] : memref<3x128xf32, #tpu.memory_space<vmem>>, vector<3x128xf32>
      %47 = vector.extract_strided_slice %13 {offsets = [0, 0], sizes = [608, 1], strides = [1, 1]} : vector<608x8xi1> to vector<608x1xi1>
      %cst_25 = arith.constant 0xFF800000 : f32
      %48 = vector.shape_cast %47 : vector<608x1xi1> to vector<608x1xi1>
      %49 = vector.broadcast %48 : vector<608x1xi1> to vector<608x128xi1>
      %50 = vector.broadcast %cst_25 : f32 to vector<608x128xf32>
      %51 = arith.select %49, %45, %50 : vector<608x128xi1>, vector<608x128xf32>
      %cst_26 = arith.constant dense<0xFF800000> : vector<128xf32>
      %52 = vector.multi_reduction <maximumf>, %51, %cst_26 [0] : vector<608x128xf32> to vector<128xf32>
      %53 = vector.shape_cast %52 : vector<128xf32> to vector<1x128xf32>
      %54 = vector.extract_strided_slice %13 {offsets = [0, 1], sizes = [608, 1], strides = [1, 1]} : vector<608x8xi1> to vector<608x1xi1>
      %cst_27 = arith.constant 0xFF800000 : f32
      %55 = vector.shape_cast %54 : vector<608x1xi1> to vector<608x1xi1>
      %56 = vector.broadcast %55 : vector<608x1xi1> to vector<608x128xi1>
      %57 = vector.broadcast %cst_27 : f32 to vector<608x128xf32>
      %58 = arith.select %56, %45, %57 : vector<608x128xi1>, vector<608x128xf32>
      %cst_28 = arith.constant dense<0xFF800000> : vector<128xf32>
      %59 = vector.multi_reduction <maximumf>, %58, %cst_28 [0] : vector<608x128xf32> to vector<128xf32>
      %60 = vector.shape_cast %59 : vector<128xf32> to vector<1x128xf32>
      %61 = vector.extract_strided_slice %13 {offsets = [0, 2], sizes = [608, 1], strides = [1, 1]} : vector<608x8xi1> to vector<608x1xi1>
      %cst_29 = arith.constant 0xFF800000 : f32
      %62 = vector.shape_cast %61 : vector<608x1xi1> to vector<608x1xi1>
      %63 = vector.broadcast %62 : vector<608x1xi1> to vector<608x128xi1>
      %64 = vector.broadcast %cst_29 : f32 to vector<608x128xf32>
      %65 = arith.select %63, %45, %64 : vector<608x128xi1>, vector<608x128xf32>
      %cst_30 = arith.constant dense<0xFF800000> : vector<128xf32>
      %66 = vector.multi_reduction <maximumf>, %65, %cst_30 [0] : vector<608x128xf32> to vector<128xf32>
      %67 = vector.shape_cast %66 : vector<128xf32> to vector<1x128xf32>
      %68 = tpu.concatenate %53, %60, %67 in 0 : vector<1x128xf32>, vector<1x128xf32>, vector<1x128xf32> -> vector<3x128xf32>
      %69 = arith.maximumf %46, %68 : vector<3x128xf32>
      %c0_31 = arith.constant 0 : index
      %c0_32 = arith.constant 0 : index
      %70 = vector.load %arg15[%c0_31, %c0_32] : memref<3x128xf32, #tpu.memory_space<vmem>>, vector<3x128xf32>
      tpu.vector_store %arg15[%c0_31, %c0_32], %69 {strides = array<i32>} : memref<3x128xf32, #tpu.memory_space<vmem>>, vector<3x128xf32>,
    } else {
    }
    return
  }
  func.func @transform_0(%arg0: i32, %arg1: i32) -> (i32, i32) {
    %c0_i32 = arith.constant 0 : i32
    %c0_i32_0 = arith.constant 0 : i32
    return %arg1, %c0_i32 : i32, i32
  }
  func.func @transform_1(%arg0: i32, %arg1: i32) -> (i32, i32) {
    %c0_i32 = arith.constant 0 : i32
    %c0_i32_0 = arith.constant 0 : i32
    return %arg1, %c0_i32 : i32, i32
  }
  func.func @transform_2(%arg0: i32, %arg1: i32) -> (i32, i32) {
    %c0_i32 = arith.constant 0 : i32
    %c0_i32_0 = arith.constant 0 : i32
    %c0_i32_1 = arith.constant 0 : i32
    return %c0_i32, %c0_i32_0 : i32, i32
  }
  func.func @transform_3(%arg0: i32, %arg1: i32) -> (i32, i32) {
    %c0_i32 = arith.constant 0 : i32
    %c0_i32_0 = arith.constant 0 : i32
    %c0_i32_1 = arith.constant 0 : i32
    return %c0_i32, %c0_i32_0 : i32, i32
  }
  func.func @transform_4(%arg0: i32, %arg1: i32) -> (i32, i32) {
    %c0_i32 = arith.constant 0 : i32
    %c0_i32_0 = arith.constant 0 : i32
    %c0_i32_1 = arith.constant 0 : i32
    return %c0_i32, %c0_i32_0 : i32, i32
  }
  func.func @transform_5(%arg0: i32, %arg1: i32) -> (i32, i32) {
    %c0_i32 = arith.constant 0 : i32
    %c0_i32_0 = arith.constant 0 : i32
    %c0_i32_1 = arith.constant 0 : i32
    return %c0_i32, %c0_i32_0 : i32, i32
  }
  func.func @transform_6(%arg0: i32, %arg1: i32) -> (i32, i32) {
    %c0_i32 = arith.constant 0 : i32
    %c0_i32_0 = arith.constant 0 : i32
    %c0_i32_1 = arith.constant 0 : i32
    return %c0_i32, %c0_i32_0 : i32, i32
  }
  func.func @transform_7(%arg0: i32, %arg1: i32) -> (i32, i32) {
    %c0_i32 = arith.constant 0 : i32
    %c0_i32_0 = arith.constant 0 : i32
    %c0_i32_1 = arith.constant 0 : i32
    return %c0_i32, %c0_i32_0 : i32, i32
  }
  func.func @transform_8(%arg0: i32, %arg1: i32) -> (i32, i32) {
    %c0_i32 = arith.constant 0 : i32
    %c0_i32_0 = arith.constant 0 : i32
    %c0_i32_1 = arith.constant 0 : i32
    return %c0_i32, %c0_i32_0 : i32, i32
  }
  func.func @transform_9(%arg0: i32, %arg1: i32) -> (i32, i32) {
    %c0_i32 = arith.constant 0 : i32
    %c0_i32_0 = arith.constant 0 : i32
    %c0_i32_1 = arith.constant 0 : i32
    return %c0_i32, %c0_i32_0 : i32, i32
  }
  func.func @transform_10(%arg0: i32, %arg1: i32) -> (i32, i32) {
    %c0_i32 = arith.constant 0 : i32
    %c0_i32_0 = arith.constant 0 : i32
    %c0_i32_1 = arith.constant 0 : i32
    return %c0_i32, %c0_i32_0 : i32, i32
  }
  func.func @transform_11(%arg0: i32, %arg1: i32) -> (i32, i32) {
    %c0_i32 = arith.constant 0 : i32
    %c0_i32_0 = arith.constant 0 : i32
    %c0_i32_1 = arith.constant 0 : i32
    return %c0_i32, %c0_i32_0 : i32, i32
  }
  func.func @transform_12(%arg0: i32, %arg1: i32) -> (i32, i32) {
    %c0_i32 = arith.constant 0 : i32
    %c0_i32_0 = arith.constant 0 : i32
    %c0_i32_1 = arith.constant 0 : i32
    return %c0_i32, %c0_i32_0 : i32, i32
  }
  func.func @transform_13(%arg0: i32, %arg1: i32) -> (i32, i32) {
    %c0_i32 = arith.constant 0 : i32
    %c0_i32_0 = arith.constant 0 : i32
    %c0_i32_1 = arith.constant 0 : i32
    return %c0_i32, %c0_i32_0 : i32, i32
  }
}

</mosaic_0001>

<llo_original>
// kernel: tpu_custom_call.1
$region0: #{tpu_custom_call.1}
  #allocation0 [shape = 'u32[]', space=smem, size = 0x4, offset = 0x4, fixed_abs, tag = 'smem constant byte address 0x4 - core index']
  #allocation1 [shape = 'u32[72,128]{1,0:T(1,128)}', space=vmem, size = 0x9000, scoped, tag = 'internal scratch']
  #allocation2 [shape = 'f32[8,128]{1,0:T(8,128)}', space=vmem, size = 0x1000, scoped, tag = 'scratch operand']
  %s0 = inlined_call_operand.vmem [shape: s32[603,1], index: 0, kind: input, shape index: {}]
  %s1 = inlined_call_operand.vmem [shape: f32[603,32], index: 1, kind: input, shape index: {}]
  %s2 = inlined_call_operand.vmem [shape: bf16[32,64], index: 2, kind: input, shape index: {}]
  %s3 = inlined_call_operand.vmem [shape: f32[1,64], index: 3, kind: input, shape index: {}]
  %s4 = inlined_call_operand.vmem [shape: bf16[64,128], index: 4, kind: input, shape index: {}]
  %s5 = inlined_call_operand.vmem [shape: f32[1,128], index: 5, kind: input, shape index: {}]
  %s6 = inlined_call_operand.vmem [shape: bf16[128,128], index: 6, kind: input, shape index: {}]
  %s7 = inlined_call_operand.vmem [shape: f32[1,128], index: 7, kind: input, shape index: {}]
  %s8 = inlined_call_operand.vmem [shape: bf16[32,128], index: 8, kind: input, shape index: {}]
  %s9 = inlined_call_operand.vmem [shape: bf16[128,128], index: 9, kind: input, shape index: {}]
  %s10 = inlined_call_operand.vmem [shape: f32[1,128], index: 10, kind: input, shape index: {}]
  %s11 = inlined_call_operand.vmem [shape: bf16[128,128], index: 11, kind: input, shape index: {}]
  %s12 = inlined_call_operand.vmem [shape: f32[1,128], index: 12, kind: input, shape index: {}]
  %s13 = inlined_call_operand.hbm [shape: f32[3,128], index: 13, kind: output, shape index: {}]
  %s14 = sld [smem:[#allocation0]]
  $region101: #{tpu_custom_call.1} parent=0
    _
  %s16 = ssub.s32 1, %s14
  %s17 = scalar_select 0, %s16, %s14
  $region1: #{tpu_custom_call.1} parent=0
    #allocation3 [shape = 'u8[2048]{0}', space=vmem, size = 0x800, scoped, tag = 'output window, operand 0, single buffered']
    #allocation4 [shape = 's32[2]{0}', space=sflag, size = 0x8, scoped, tag = 'scoped memory for tpu_custom_call.1']
    %18 = vsyncpa [#allocation4], 0
    loop: start=0, step=1, limit=4
    $region2: #{tpu_custom_call.1} parent=1 // loop_pre_header
      _
    $region3: #{tpu_custom_call.1} parent=1 // loop_header
      %s20 = sphi 0, %s24
      %p21 = scmp.ge.s32.totalorder %s20, 4
      %s27 = sphi 0, %s39
      %s28 = sphi 0, %s35
      %s29 = sphi 0, %s27
      %s30 = sphi 0, %s28
      %s31 = sphi 0, %s29
      %s32 = sphi 0, %s30
      %s42 = sphi 0, %s44
      %s45 = sphi 0, %s42
      %s46 = sphi 0, %s45
      %s62 = sphi 0, %s46
      %s68 = sphi 0, %s70
      %s71 = sphi 0, %s68
      %s72 = sphi 0, %s71
      %s88 = sphi 0, %s72
      %s92 = sphi 0, %s92
      %s94 = sphi 0, %s92
      %s95 = sphi 0, %s94
      %s109 = sphi 0, %s95
      %s113 = sphi 0, %s113
      %s115 = sphi 0, %s113
      %s116 = sphi 0, %s115
      %s130 = sphi 0, %s116
      %s134 = sphi 0, %s134
      %s136 = sphi 0, %s134
      %s137 = sphi 0, %s136
      %s151 = sphi 0, %s137
      %s155 = sphi 0, %s155
      %s157 = sphi 0, %s155
      %s158 = sphi 0, %s157
      %s172 = sphi 0, %s158
      %s176 = sphi 0, %s176
      %s178 = sphi 0, %s176
      %s179 = sphi 0, %s178
      %s193 = sphi 0, %s179
      %s197 = sphi 0, %s197
      %s199 = sphi 0, %s197
      %s200 = sphi 0, %s199
      %s214 = sphi 0, %s200
      %s218 = sphi 0, %s218
      %s220 = sphi 0, %s218
      %s221 = sphi 0, %s220
      %s235 = sphi 0, %s221
      %s239 = sphi 0, %s239
      %s241 = sphi 0, %s239
      %s242 = sphi 0, %s241
      %s256 = sphi 0, %s242
      %s260 = sphi 0, %s260
      %s262 = sphi 0, %s260
      %s263 = sphi 0, %s262
      %s277 = sphi 0, %s263
      %s281 = sphi 0, %s281
      %s283 = sphi 0, %s281
      %s284 = sphi 0, %s283
      %s298 = sphi 0, %s284
      %s302 = sphi 0, %s302
      %s304 = sphi 0, %s302
      %s305 = sphi 0, %s304
      %s319 = sphi 0, %s305
      %s323 = sphi 0, %s323
      %s325 = sphi 0, %s323
      %s326 = sphi 0, %s325
      %s340 = sphi 0, %s326
    $region4: #{tpu_custom_call.1} parent=1 // loop_header_branch
      %23 = sbr.rel (%p21) target = $region8
    $region5: #{tpu_custom_call.1} parent=1 // loop_body
      %s25 = ssub.s32 %s20, 1
      %s26 = ssub.s32 %s20, 2
      %s33 = sadd.s32 1, %s28
      %p34 = scmp.ge.s32.totalorder %s33, 1
      %s35 = scalar_select %p34, 0, %s33
      %s36 = sadd.s32 1, %s27
      %s37 = scalar_select %p34, %s36, %s27
      %p38 = scmp.ge.s32.totalorder %s37, 2
      %s39 = scalar_select %p38, 0, %s37
      %s40 = ssub.s32 %s28, %s35
      %p41 = scmp.eq.s32.totalorder %s40, 0
      %s43 = sadd.s32 %s42, 1
      %s44 = scalar_select %p41, %s42, %s43
      %p47 = pneg %p41
      %p48 = scmp.eq.s32.totalorder %s20, 1
      %p49 = por %p47, %p48
      %p50 = scmp.ne.s32.totalorder %s42, %s45
      %p51 = scmp.eq.s32.totalorder %s20, 0
      %p52 = por %p50, %p51
      %p53 = scmp.ne.s32.totalorder %s42, %s45
      %p54 = scmp.eq.s32.totalorder %s25, 1
      %p55 = por %p53, %p54
      %p56 = scmp.ne.s32.totalorder %s45, %s46
      %p57 = scmp.eq.s32.totalorder %s25, 0
      %p58 = por %p56, %p57
      %p59 = scmp.ne.s32.totalorder %s45, %s46
      %p60 = scmp.eq.s32.totalorder %s26, 1
      %p61 = por %p59, %p60
      %p63 = scmp.ne.s32.totalorder %s46, %s62
      %p64 = scmp.eq.s32.totalorder %s26, 0
      %p65 = por %p63, %p64
      %s66 = ssub.s32 %s28, %s35
      %p67 = scmp.eq.s32.totalorder %s66, 0
      %s69 = sadd.s32 %s68, 1
      %s70 = scalar_select %p67, %s68, %s69
      %p73 = pneg %p67
      %p74 = scmp.eq.s32.totalorder %s20, 1
      %p75 = por %p73, %p74
      %p76 = scmp.ne.s32.totalorder %s68, %s71
      %p77 = scmp.eq.s32.totalorder %s20, 0
      %p78 = por %p76, %p77
      %p79 = scmp.ne.s32.totalorder %s68, %s71
      %p80 = scmp.eq.s32.totalorder %s25, 1
      %p81 = por %p79, %p80
      %p82 = scmp.ne.s32.totalorder %s71, %s72
      %p83 = scmp.eq.s32.totalorder %s25, 0
      %p84 = por %p82, %p83
      %p85 = scmp.ne.s32.totalorder %s71, %s72
      %p86 = scmp.eq.s32.totalorder %s26, 1
      %p87 = por %p85, %p86
      %p89 = scmp.ne.s32.totalorder %s72, %s88
      %p90 = scmp.eq.s32.totalorder %s26, 0
      %p91 = por %p89, %p90
      %s93 = sadd.s32 %s92, 1
      %p96 = scmp.eq.s32.totalorder %s20, 1
      %p97 = scmp.ne.s32.totalorder %s92, %s94
      %p98 = scmp.eq.s32.totalorder %s20, 0
      %p99 = por %p97, %p98
      %p100 = scmp.ne.s32.totalorder %s92, %s94
      %p101 = scmp.eq.s32.totalorder %s25, 1
      %p102 = por %p100, %p101
      %p103 = scmp.ne.s32.totalorder %s94, %s95
      %p104 = scmp.eq.s32.totalorder %s25, 0
      %p105 = por %p103, %p104
      %p106 = scmp.ne.s32.totalorder %s94, %s95
      %p107 = scmp.eq.s32.totalorder %s26, 1
      %p108 = por %p106, %p107
      %p110 = scmp.ne.s32.totalorder %s95, %s109
      %p111 = scmp.eq.s32.totalorder %s26, 0
      %p112 = por %p110, %p111
      %s114 = sadd.s32 %s113, 1
      %p117 = scmp.eq.s32.totalorder %s20, 1
      %p118 = scmp.ne.s32.totalorder %s113, %s115
      %p119 = scmp.eq.s32.totalorder %s20, 0
      %p120 = por %p118, %p119
      %p121 = scmp.ne.s32.totalorder %s113, %s115
      %p122 = scmp.eq.s32.totalorder %s25, 1
      %p123 = por %p121, %p122
      %p124 = scmp.ne.s32.totalorder %s115, %s116
      %p125 = scmp.eq.s32.totalorder %s25, 0
      %p126 = por %p124, %p125
      %p127 = scmp.ne.s32.totalorder %s115, %s116
      %p128 = scmp.eq.s32.totalorder %s26, 1
      %p129 = por %p127, %p128
      %p131 = scmp.ne.s32.totalorder %s116, %s130
      %p132 = scmp.eq.s32.totalorder %s26, 0
      %p133 = por %p131, %p132
      %s135 = sadd.s32 %s134, 1
      %p138 = scmp.eq.s32.totalorder %s20, 1
      %p139 = scmp.ne.s32.totalorder %s134, %s136
      %p140 = scmp.eq.s32.totalorder %s20, 0
      %p141 = por %p139, %p140
      %p142 = scmp.ne.s32.totalorder %s134, %s136
      %p143 = scmp.eq.s32.totalorder %s25, 1
      %p144 = por %p142, %p143
      %p145 = scmp.ne.s32.totalorder %s136, %s137
      %p146 = scmp.eq.s32.totalorder %s25, 0
      %p147 = por %p145, %p146
      %p148 = scmp.ne.s32.totalorder %s136, %s137
      %p149 = scmp.eq.s32.totalorder %s26, 1
      %p150 = por %p148, %p149
      %p152 = scmp.ne.s32.totalorder %s137, %s151
      %p153 = scmp.eq.s32.totalorder %s26, 0
      %p154 = por %p152, %p153
      %s156 = sadd.s32 %s155, 1
      %p159 = scmp.eq.s32.totalorder %s20, 1
      %p160 = scmp.ne.s32.totalorder %s155, %s157
      %p161 = scmp.eq.s32.totalorder %s20, 0
      %p162 = por %p160, %p161
      %p163 = scmp.ne.s32.totalorder %s155, %s157
      %p164 = scmp.eq.s32.totalorder %s25, 1
      %p165 = por %p163, %p164
      %p166 = scmp.ne.s32.totalorder %s157, %s158
      %p167 = scmp.eq.s32.totalorder %s25, 0
      %p168 = por %p166, %p167
      %p169 = scmp.ne.s32.totalorder %s157, %s158
      %p170 = scmp.eq.s32.totalorder %s26, 1
      %p171 = por %p169, %p170
      %p173 = scmp.ne.s32.totalorder %s158, %s172
      %p174 = scmp.eq.s32.totalorder %s26, 0
      %p175 = por %p173, %p174
      %s177 = sadd.s32 %s176, 1
      %p180 = scmp.eq.s32.totalorder %s20, 1
      %p181 = scmp.ne.s32.totalorder %s176, %s178
      %p182 = scmp.eq.s32.totalorder %s20, 0
      %p183 = por %p181, %p182
      %p184 = scmp.ne.s32.totalorder %s176, %s178
      %p185 = scmp.eq.s32.totalorder %s25, 1
      %p186 = por %p184, %p185
      %p187 = scmp.ne.s32.totalorder %s178, %s179
      %p188 = scmp.eq.s32.totalorder %s25, 0
      %p189 = por %p187, %p188
      %p190 = scmp.ne.s32.totalorder %s178, %s179
      %p191 = scmp.eq.s32.totalorder %s26, 1
      %p192 = por %p190, %p191
      %p194 = scmp.ne.s32.totalorder %s179, %s193
      %p195 = scmp.eq.s32.totalorder %s26, 0
      %p196 = por %p194, %p195
      %s198 = sadd.s32 %s197, 1
      %p201 = scmp.eq.s32.totalorder %s20, 1
      %p202 = scmp.ne.s32.totalorder %s197, %s199
      %p203 = scmp.eq.s32.totalorder %s20, 0
      %p204 = por %p202, %p203
      %p205 = scmp.ne.s32.totalorder %s197, %s199
      %p206 = scmp.eq.s32.totalorder %s25, 1
      %p207 = por %p205, %p206
      %p208 = scmp.ne.s32.totalorder %s199, %s200
      %p209 = scmp.eq.s32.totalorder %s25, 0
      %p210 = por %p208, %p209
      %p211 = scmp.ne.s32.totalorder %s199, %s200
      %p212 = scmp.eq.s32.totalorder %s26, 1
      %p213 = por %p211, %p212
      %p215 = scmp.ne.s32.totalorder %s200, %s214
      %p216 = scmp.eq.s32.totalorder %s26, 0
      %p217 = por %p215, %p216
      %s219 = sadd.s32 %s218, 1
      %p222 = scmp.eq.s32.totalorder %s20, 1
      %p223 = scmp.ne.s32.totalorder %s218, %s220
      %p224 = scmp.eq.s32.totalorder %s20, 0
      %p225 = por %p223, %p224
      %p226 = scmp.ne.s32.totalorder %s218, %s220
      %p227 = scmp.eq.s32.totalorder %s25, 1
      %p228 = por %p226, %p227
      %p229 = scmp.ne.s32.totalorder %s220, %s221
      %p230 = scmp.eq.s32.totalorder %s25, 0
      %p231 = por %p229, %p230
      %p232 = scmp.ne.s32.totalorder %s220, %s221
      %p233 = scmp.eq.s32.totalorder %s26, 1
      %p234 = por %p232, %p233
      %p236 = scmp.ne.s32.totalorder %s221, %s235
      %p237 = scmp.eq.s32.totalorder %s26, 0
      %p238 = por %p236, %p237
      %s240 = sadd.s32 %s239, 1
      %p243 = scmp.eq.s32.totalorder %s20, 1
      %p244 = scmp.ne.s32.totalorder %s239, %s241
      %p245 = scmp.eq.s32.totalorder %s20, 0
      %p246 = por %p244, %p245
      %p247 = scmp.ne.s32.totalorder %s239, %s241
      %p248 = scmp.eq.s32.totalorder %s25, 1
      %p249 = por %p247, %p248
      %p250 = scmp.ne.s32.totalorder %s241, %s242
      %p251 = scmp.eq.s32.totalorder %s25, 0
      %p252 = por %p250, %p251
      %p253 = scmp.ne.s32.totalorder %s241, %s242
      %p254 = scmp.eq.s32.totalorder %s26, 1
      %p255 = por %p253, %p254
      %p257 = scmp.ne.s32.totalorder %s242, %s256
      %p258 = scmp.eq.s32.totalorder %s26, 0
      %p259 = por %p257, %p258
      %s261 = sadd.s32 %s260, 1
      %p264 = scmp.eq.s32.totalorder %s20, 1
      %p265 = scmp.ne.s32.totalorder %s260, %s262
      %p266 = scmp.eq.s32.totalorder %s20, 0
      %p267 = por %p265, %p266
      %p268 = scmp.ne.s32.totalorder %s260, %s262
      %p269 = scmp.eq.s32.totalorder %s25, 1
      %p270 = por %p268, %p269
      %p271 = scmp.ne.s32.totalorder %s262, %s263
      %p272 = scmp.eq.s32.totalorder %s25, 0
      %p273 = por %p271, %p272
      %p274 = scmp.ne.s32.totalorder %s262, %s263
      %p275 = scmp.eq.s32.totalorder %s26, 1
      %p276 = por %p274, %p275
      %p278 = scmp.ne.s32.totalorder %s263, %s277
      %p279 = scmp.eq.s32.totalorder %s26, 0
      %p280 = por %p278, %p279
      %s282 = sadd.s32 %s281, 1
      %p285 = scmp.eq.s32.totalorder %s20, 1
      %p286 = scmp.ne.s32.totalorder %s281, %s283
      %p287 = scmp.eq.s32.totalorder %s20, 0
      %p288 = por %p286, %p287
      %p289 = scmp.ne.s32.totalorder %s281, %s283
      %p290 = scmp.eq.s32.totalorder %s25, 1
      %p291 = por %p289, %p290
      %p292 = scmp.ne.s32.totalorder %s283, %s284
      %p293 = scmp.eq.s32.totalorder %s25, 0
      %p294 = por %p292, %p293
      %p295 = scmp.ne.s32.totalorder %s283, %s284
      %p296 = scmp.eq.s32.totalorder %s26, 1
      %p297 = por %p295, %p296
      %p299 = scmp.ne.s32.totalorder %s284, %s298
      %p300 = scmp.eq.s32.totalorder %s26, 0
      %p301 = por %p299, %p300
      %s303 = sadd.s32 %s302, 1
      %p306 = scmp.eq.s32.totalorder %s20, 1
      %p307 = scmp.ne.s32.totalorder %s302, %s304
      %p308 = scmp.eq.s32.totalorder %s20, 0
      %p309 = por %p307, %p308
      %p310 = scmp.ne.s32.totalorder %s302, %s304
      %p311 = scmp.eq.s32.totalorder %s25, 1
      %p312 = por %p310, %p311
      %p313 = scmp.ne.s32.totalorder %s304, %s305
      %p314 = scmp.eq.s32.totalorder %s25, 0
      %p315 = por %p313, %p314
      %p316 = scmp.ne.s32.totalorder %s304, %s305
      %p317 = scmp.eq.s32.totalorder %s26, 1
      %p318 = por %p316, %p317
      %p320 = scmp.ne.s32.totalorder %s305, %s319
      %p321 = scmp.eq.s32.totalorder %s26, 0
      %p322 = por %p320, %p321
      %s324 = sadd.s32 %s323, 1
      %p327 = scmp.eq.s32.totalorder %s20, 1
      %p328 = scmp.ne.s32.totalorder %s323, %s325
      %p329 = scmp.eq.s32.totalorder %s20, 0
      %p330 = por %p328, %p329
      %p331 = scmp.ne.s32.totalorder %s323, %s325
      %p332 = scmp.eq.s32.totalorder %s25, 1
      %p333 = por %p331, %p332
      %p334 = scmp.ne.s32.totalorder %s325, %s326
      %p335 = scmp.eq.s32.totalorder %s25, 0
      %p336 = por %p334, %p335
      %p337 = scmp.ne.s32.totalorder %s325, %s326
      %p338 = scmp.eq.s32.totalorder %s26, 1
      %p339 = por %p337, %p338
      %p341 = scmp.ne.s32.totalorder %s326, %s340
      %p342 = scmp.eq.s32.totalorder %s26, 0
      %p343 = por %p341, %p342
      %p344 = scmp.le.s32.totalorder 1, %s20
      %p345 = scmp.lt.s32.totalorder %s20, 3
      %p346 = pnand %p344, %p345
      %p347 = pneg %p346
      // Predicated region
      $region9: #{tpu_custom_call.1} parent=5 // pred_check
        _
      $region10: #{tpu_custom_call.1} parent=5 // pred_check_branch
        %349 = sbr.rel (%p346) target = $region12
      $region11: #{tpu_custom_call.1} parent=5 // pred_region
        %s350 = ssub.s32 %s20, 1
        // Predicated region
        $region13: #{tpu_custom_call.1} parent=11 // pred_check
          %p351 = pneg %p58
        $region14: #{tpu_custom_call.1} parent=11 // pred_check_branch
          %353 = sbr.rel (%p351) target = $region16
        $region15: #{tpu_custom_call.1} parent=11 // pred_region
          %s354 = smul.u32 76, %s30
          %p355 = scmp.lt.s32.totalorder %s354, 75
          %s356 = scalar_select %p355, %s354, 75
          %s357 = smul.addr %s356, 8
          %s358 = scalar_lea.vmem %s0, %s357
          %s359 = smul.u32 76, %s30
        $region16: #{tpu_custom_call.1} parent=11 // pred_fallthru
          _
        // Predicated region
        $region17: #{tpu_custom_call.1} parent=11 // pred_check
          %p360 = pneg %p84
        $region18: #{tpu_custom_call.1} parent=11 // pred_check_branch
          %362 = sbr.rel (%p360) target = $region20
        $region19: #{tpu_custom_call.1} parent=11 // pred_region
          %s363 = smul.u32 76, %s30
          %p364 = scmp.lt.s32.totalorder %s363, 75
          %s365 = scalar_select %p364, %s363, 75
          %s366 = smul.addr %s365, 8
          %s367 = scalar_lea.vmem %s1, %s366
          %s368 = smul.u32 76, %s30
        $region20: #{tpu_custom_call.1} parent=11 // pred_fallthru
          _
        // Predicated region
        $region21: #{tpu_custom_call.1} parent=11 // pred_check
          %p369 = pneg %p105
        $region22: #{tpu_custom_call.1} parent=11 // pred_check_branch
          %371 = sbr.rel (%p369) target = $region24
        $region23: #{tpu_custom_call.1} parent=11 // pred_region
          _
        $region24: #{tpu_custom_call.1} parent=11 // pred_fallthru
          _
        // Predicated region
        $region25: #{tpu_custom_call.1} parent=11 // pred_check
          %p372 = pneg %p126
        $region26: #{tpu_custom_call.1} parent=11 // pred_check_branch
          %374 = sbr.rel (%p372) target = $region28
        $region27: #{tpu_custom_call.1} parent=11 // pred_region
          _
        $region28: #{tpu_custom_call.1} parent=11 // pred_fallthru
          _
        // Predicated region
        $region29: #{tpu_custom_call.1} parent=11 // pred_check
          %p375 = pneg %p147
        $region30: #{tpu_custom_call.1} parent=11 // pred_check_branch
          %377 = sbr.rel (%p375) target = $region32
        $region31: #{tpu_custom_call.1} parent=11 // pred_region
          _
        $region32: #{tpu_custom_call.1} parent=11 // pred_fallthru
          _
        // Predicated region
        $region33: #{tpu_custom_call.1} parent=11 // pred_check
          %p378 = pneg %p168
        $region34: #{tpu_custom_call.1} parent=11 // pred_check_branch
          %380 = sbr.rel (%p378) target = $region36
        $region35: #{tpu_custom_call.1} parent=11 // pred_region
          _
        $region36: #{tpu_custom_call.1} parent=11 // pred_fallthru
          _
        // Predicated region
        $region37: #{tpu_custom_call.1} parent=11 // pred_check
          %p381 = pneg %p189
        $region38: #{tpu_custom_call.1} parent=11 // pred_check_branch
          %383 = sbr.rel (%p381) target = $region40
        $region39: #{tpu_custom_call.1} parent=11 // pred_region
          _
        $region40: #{tpu_custom_call.1} parent=11 // pred_fallthru
          _
        // Predicated region
        $region41: #{tpu_custom_call.1} parent=11 // pred_check
          %p384 = pneg %p210
        $region42: #{tpu_custom_call.1} parent=11 // pred_check_branch
          %386 = sbr.rel (%p384) target = $region44
        $region43: #{tpu_custom_call.1} parent=11 // pred_region
          _
        $region44: #{tpu_custom_call.1} parent=11 // pred_fallthru
          _
        // Predicated region
        $region45: #{tpu_custom_call.1} parent=11 // pred_check
          %p387 = pneg %p231
        $region46: #{tpu_custom_call.1} parent=11 // pred_check_branch
          %389 = sbr.rel (%p387) target = $region48
        $region47: #{tpu_custom_call.1} parent=11 // pred_region
          _
        $region48: #{tpu_custom_call.1} parent=11 // pred_fallthru
          _
        // Predicated region
        $region49: #{tpu_custom_call.1} parent=11 // pred_check
          %p390 = pneg %p252
        $region50: #{tpu_custom_call.1} parent=11 // pred_check_branch
          %392 = sbr.rel (%p390) target = $region52
        $region51: #{tpu_custom_call.1} parent=11 // pred_region
          _
        $region52: #{tpu_custom_call.1} parent=11 // pred_fallthru
          _
        // Predicated region
        $region53: #{tpu_custom_call.1} parent=11 // pred_check
          %p393 = pneg %p273
        $region54: #{tpu_custom_call.1} parent=11 // pred_check_branch
          %395 = sbr.rel (%p393) target = $region56
        $region55: #{tpu_custom_call.1} parent=11 // pred_region
          _
        $region56: #{tpu_custom_call.1} parent=11 // pred_fallthru
          _
        // Predicated region
        $region57: #{tpu_custom_call.1} parent=11 // pred_check
          %p396 = pneg %p294
        $region58: #{tpu_custom_call.1} parent=11 // pred_check_branch
          %398 = sbr.rel (%p396) target = $region60
        $region59: #{tpu_custom_call.1} parent=11 // pred_region
          _
        $region60: #{tpu_custom_call.1} parent=11 // pred_fallthru
          _
        // Predicated region
        $region61: #{tpu_custom_call.1} parent=11 // pred_check
          %p399 = pneg %p315
        $region62: #{tpu_custom_call.1} parent=11 // pred_check_branch
          %401 = sbr.rel (%p399) target = $region64
        $region63: #{tpu_custom_call.1} parent=11 // pred_region
          _
        $region64: #{tpu_custom_call.1} parent=11 // pred_fallthru
          _
      $region12: #{tpu_custom_call.1} parent=5 // pred_fallthru
        _
      %p402 = scmp.lt.s32.totalorder %s20, 2
      // Predicated region
      $region65: #{tpu_custom_call.1} parent=5 // pred_check
        %p403 = pneg %p402
      $region66: #{tpu_custom_call.1} parent=5 // pred_check_branch
        %405 = sbr.rel (%p403) target = $region68
      $region67: #{tpu_custom_call.1} parent=5 // pred_region
        _
      $region68: #{tpu_custom_call.1} parent=5 // pred_fallthru
        _
      %p406 = scmp.le.s32.totalorder 1, %s20
      %p407 = scmp.lt.s32.totalorder %s20, 3
      %p408 = pnand %p406, %p407
      %p409 = pneg %p408
      // Predicated region
      $region69: #{tpu_custom_call.1} parent=5 // pred_check
        _
      $region70: #{tpu_custom_call.1} parent=5 // pred_check_branch
        %411 = sbr.rel (%p408) target = $region72
      $region71: #{tpu_custom_call.1} parent=5 // pred_region
        %s412 = ssub.s32 %s20, 1
        %s413 = smul.u32 76, %s30
        %p414 = scmp.lt.s32.totalorder %s413, 75
        %s415 = scalar_select %p414, %s413, 75
        %s416 = smul.addr %s415, 8
        %s417 = scalar_lea.vmem %s0, %s416
        %p418 = pneg %p58
        %p419 = pneg %p55
        %s420 = smul.u32 76, %s30
        %p421 = scmp.lt.s32.totalorder %s420, 75
        %s422 = scalar_select %p421, %s420, 75
        %s423 = smul.addr %s422, 8
        %s424 = scalar_lea.vmem %s1, %s423
        %p425 = pneg %p84
        %p426 = pneg %p81
        %p427 = pneg %p105
        %p428 = pneg %p102
        %p429 = pneg %p126
        %p430 = pneg %p123
        %p431 = pneg %p147
        %p432 = pneg %p144
        %p433 = pneg %p168
        %p434 = pneg %p165
        %p435 = pneg %p189
        %p436 = pneg %p186
        %p437 = pneg %p210
        %p438 = pneg %p207
        %p439 = pneg %p231
        %p440 = pneg %p228
        %p441 = pneg %p252
        %p442 = pneg %p249
        %p443 = pneg %p273
        %p444 = pneg %p270
        %p445 = pneg %p294
        %p446 = pneg %p291
        %p447 = pneg %p315
        %p448 = pneg %p312
        %p449 = pneg %p336
        %p450 = pneg %p333
        %s451 = smul.u32 76, %s30
        %p452 = scmp.lt.s32.totalorder %s451, 75
        %s453 = scalar_select %p452, %s451, 75
        %s454 = smul.addr %s453, 8
        %s455 = scalar_lea.vmem %s0, %s454
        %s456 = smul.u32 76, %s30
        %s457 = smul.u32 76, %s30
        %p458 = scmp.lt.s32.totalorder %s457, 75
        %s459 = scalar_select %p458, %s457, 75
        %s460 = smul.addr %s459, 8
        %s461 = scalar_lea.vmem %s1, %s460
        %s462 = smul.u32 76, %s30
        %v464 = vld [vmem:[%s461] sm:$0xff]
        %v465 = vld [vmem:[%s461 + $0x8] sm:$0xff]
        %v466 = vld [vmem:[%s461 + $0x10] sm:$0xff]
        %v467 = vld [vmem:[%s461 + $0x18] sm:$0xff]
        %v468 = vld [vmem:[%s461 + $0x20] sm:$0xff]
        %v469 = vld [vmem:[%s461 + $0x28] sm:$0xff]
        %v470 = vld [vmem:[%s461 + $0x30] sm:$0xff]
        %v471 = vld [vmem:[%s461 + $0x38] sm:$0xff]
        %v472 = vld [vmem:[%s461 + $0x40] sm:$0xff]
        %v473 = vld [vmem:[%s461 + $0x48] sm:$0xff]
        %v474 = vld [vmem:[%s461 + $0x50] sm:$0xff]
        %v475 = vld [vmem:[%s461 + $0x58] sm:$0xff]
        %v476 = vld [vmem:[%s461 + $0x60] sm:$0xff]
        %v477 = vld [vmem:[%s461 + $0x68] sm:$0xff]
        %v478 = vld [vmem:[%s461 + $0x70] sm:$0xff]
        %v479 = vld [vmem:[%s461 + $0x78] sm:$0xff]
        %v480 = vld [vmem:[%s461 + $0x80] sm:$0xff]
        %v481 = vld [vmem:[%s461 + $0x88] sm:$0xff]
        %v482 = vld [vmem:[%s461 + $0x90] sm:$0xff]
        %v483 = vld [vmem:[%s461 + $0x98] sm:$0xff]
        %v484 = vld [vmem:[%s461 + $0xa0] sm:$0xff]
        %v485 = vld [vmem:[%s461 + $0xa8] sm:$0xff]
        %v486 = vld [vmem:[%s461 + $0xb0] sm:$0xff]
        %v487 = vld [vmem:[%s461 + $0xb8] sm:$0xff]
        %v488 = vld [vmem:[%s461 + $0xc0] sm:$0xff]
        %v489 = vld [vmem:[%s461 + $0xc8] sm:$0xff]
        %v490 = vld [vmem:[%s461 + $0xd0] sm:$0xff]
        %v491 = vld [vmem:[%s461 + $0xd8] sm:$0xff]
        %v492 = vld [vmem:[%s461 + $0xe0] sm:$0xff]
        %v493 = vld [vmem:[%s461 + $0xe8] sm:$0xff]
        %v494 = vld [vmem:[%s461 + $0xf0] sm:$0xff]
        %v495 = vld [vmem:[%s461 + $0xf8] sm:$0xff]
        %v496 = vld [vmem:[%s461 + $0x100] sm:$0xff]
        %v497 = vld [vmem:[%s461 + $0x108] sm:$0xff]
        %v498 = vld [vmem:[%s461 + $0x110] sm:$0xff]
        %v499 = vld [vmem:[%s461 + $0x118] sm:$0xff]
        %v500 = vld [vmem:[%s461 + $0x120] sm:$0xff]
        %v501 = vld [vmem:[%s461 + $0x128] sm:$0xff]
        %v502 = vld [vmem:[%s461 + $0x130] sm:$0xff]
        %v503 = vld [vmem:[%s461 + $0x138] sm:$0xff]
        %v504 = vld [vmem:[%s461 + $0x140] sm:$0xff]
        %v505 = vld [vmem:[%s461 + $0x148] sm:$0xff]
        %v506 = vld [vmem:[%s461 + $0x150] sm:$0xff]
        %v507 = vld [vmem:[%s461 + $0x158] sm:$0xff]
        %v508 = vld [vmem:[%s461 + $0x160] sm:$0xff]
        %v509 = vld [vmem:[%s461 + $0x168] sm:$0xff]
        %v510 = vld [vmem:[%s461 + $0x170] sm:$0xff]
        %v511 = vld [vmem:[%s461 + $0x178] sm:$0xff]
        %v512 = vld [vmem:[%s461 + $0x180] sm:$0xff]
        %v513 = vld [vmem:[%s461 + $0x188] sm:$0xff]
        %v514 = vld [vmem:[%s461 + $0x190] sm:$0xff]
        %v515 = vld [vmem:[%s461 + $0x198] sm:$0xff]
        %v516 = vld [vmem:[%s461 + $0x1a0] sm:$0xff]
        %v517 = vld [vmem:[%s461 + $0x1a8] sm:$0xff]
        %v518 = vld [vmem:[%s461 + $0x1b0] sm:$0xff]
        %v519 = vld [vmem:[%s461 + $0x1b8] sm:$0xff]
        %v520 = vld [vmem:[%s461 + $0x1c0] sm:$0xff]
        %v521 = vld [vmem:[%s461 + $0x1c8] sm:$0xff]
        %v522 = vld [vmem:[%s461 + $0x1d0] sm:$0xff]
        %v523 = vld [vmem:[%s461 + $0x1d8] sm:$0xff]
        %v524 = vld [vmem:[%s461 + $0x1e0] sm:$0xff]
        %v525 = vld [vmem:[%s461 + $0x1e8] sm:$0xff]
        %v526 = vld [vmem:[%s461 + $0x1f0] sm:$0xff]
        %v527 = vld [vmem:[%s461 + $0x1f8] sm:$0xff]
        %v528 = vld [vmem:[%s461 + $0x200] sm:$0xff]
        %v529 = vld [vmem:[%s461 + $0x208] sm:$0xff]
        %v530 = vld [vmem:[%s461 + $0x210] sm:$0xff]
        %v531 = vld [vmem:[%s461 + $0x218] sm:$0xff]
        %v532 = vld [vmem:[%s461 + $0x220] sm:$0xff]
        %v533 = vld [vmem:[%s461 + $0x228] sm:$0xff]
        %v534 = vld [vmem:[%s461 + $0x230] sm:$0xff]
        %v535 = vld [vmem:[%s461 + $0x238] sm:$0xff]
        %v536 = vld [vmem:[%s461 + $0x240] sm:$0xff]
        %v537 = vld [vmem:[%s461 + $0x248] sm:$0xff]
        %v538 = vld [vmem:[%s461 + $0x250] sm:$0xff]
        %v539 = vld [vmem:[%s461 + $0x258] sm:$0xff]
        %v540 = vpack.c.bf16 %v465, %v464
        %v541 = vpack.c.bf16 %v467, %v466
        %v542 = vpack.c.bf16 %v469, %v468
        %v543 = vpack.c.bf16 %v471, %v470
        %v544 = vpack.c.bf16 %v473, %v472
        %v545 = vpack.c.bf16 %v475, %v474
        %v546 = vpack.c.bf16 %v477, %v476
        %v547 = vpack.c.bf16 %v479, %v478
        %v548 = vpack.c.bf16 %v481, %v480
        %v549 = vpack.c.bf16 %v483, %v482
        %v550 = vpack.c.bf16 %v485, %v484
        %v551 = vpack.c.bf16 %v487, %v486
        %v552 = vpack.c.bf16 %v489, %v488
        %v553 = vpack.c.bf16 %v491, %v490
        %v554 = vpack.c.bf16 %v493, %v492
        %v555 = vpack.c.bf16 %v495, %v494
        %v556 = vpack.c.bf16 %v497, %v496
        %v557 = vpack.c.bf16 %v499, %v498
        %v558 = vpack.c.bf16 %v501, %v500
        %v559 = vpack.c.bf16 %v503, %v502
        %v560 = vpack.c.bf16 %v505, %v504
        %v561 = vpack.c.bf16 %v507, %v506
        %v562 = vpack.c.bf16 %v509, %v508
        %v563 = vpack.c.bf16 %v511, %v510
        %v564 = vpack.c.bf16 %v513, %v512
        %v565 = vpack.c.bf16 %v515, %v514
        %v566 = vpack.c.bf16 %v517, %v516
        %v567 = vpack.c.bf16 %v519, %v518
        %v568 = vpack.c.bf16 %v521, %v520
        %v569 = vpack.c.bf16 %v523, %v522
        %v570 = vpack.c.bf16 %v525, %v524
        %v571 = vpack.c.bf16 %v527, %v526
        %v572 = vpack.c.bf16 %v529, %v528
        %v573 = vpack.c.bf16 %v531, %v530
        %v574 = vpack.c.bf16 %v533, %v532
        %v575 = vpack.c.bf16 %v535, %v534
        %v576 = vpack.c.bf16 %v537, %v536
        %v577 = vpack.c.bf16 %v539, %v538
        %v578 = vld [vmem:[%s455] sm:$0xff]
        %v579 = vld [vmem:[%s455 + $0x8] sm:$0xff]
        %v580 = vld [vmem:[%s455 + $0x10] sm:$0xff]
        %v581 = vld [vmem:[%s455 + $0x18] sm:$0xff]
        %v582 = vld [vmem:[%s455 + $0x20] sm:$0xff]
        %v583 = vld [vmem:[%s455 + $0x28] sm:$0xff]
        %v584 = vld [vmem:[%s455 + $0x30] sm:$0xff]
        %v585 = vld [vmem:[%s455 + $0x38] sm:$0xff]
        %v586 = vld [vmem:[%s455 + $0x40] sm:$0xff]
        %v587 = vld [vmem:[%s455 + $0x48] sm:$0xff]
        %v588 = vld [vmem:[%s455 + $0x50] sm:$0xff]
        %v589 = vld [vmem:[%s455 + $0x58] sm:$0xff]
        %v590 = vld [vmem:[%s455 + $0x60] sm:$0xff]
        %v591 = vld [vmem:[%s455 + $0x68] sm:$0xff]
        %v592 = vld [vmem:[%s455 + $0x70] sm:$0xff]
        %v593 = vld [vmem:[%s455 + $0x78] sm:$0xff]
        %v594 = vld [vmem:[%s455 + $0x80] sm:$0xff]
        %v595 = vld [vmem:[%s455 + $0x88] sm:$0xff]
        %v596 = vld [vmem:[%s455 + $0x90] sm:$0xff]
        %v597 = vld [vmem:[%s455 + $0x98] sm:$0xff]
        %v598 = vld [vmem:[%s455 + $0xa0] sm:$0xff]
        %v599 = vld [vmem:[%s455 + $0xa8] sm:$0xff]
        %v600 = vld [vmem:[%s455 + $0xb0] sm:$0xff]
        %v601 = vld [vmem:[%s455 + $0xb8] sm:$0xff]
        %v602 = vld [vmem:[%s455 + $0xc0] sm:$0xff]
        %v603 = vld [vmem:[%s455 + $0xc8] sm:$0xff]
        %v604 = vld [vmem:[%s455 + $0xd0] sm:$0xff]
        %v605 = vld [vmem:[%s455 + $0xd8] sm:$0xff]
        %v606 = vld [vmem:[%s455 + $0xe0] sm:$0xff]
        %v607 = vld [vmem:[%s455 + $0xe8] sm:$0xff]
        %v608 = vld [vmem:[%s455 + $0xf0] sm:$0xff]
        %v609 = vld [vmem:[%s455 + $0xf8] sm:$0xff]
        %v610 = vld [vmem:[%s455 + $0x100] sm:$0xff]
        %v611 = vld [vmem:[%s455 + $0x108] sm:$0xff]
        %v612 = vld [vmem:[%s455 + $0x110] sm:$0xff]
        %v613 = vld [vmem:[%s455 + $0x118] sm:$0xff]
        %v614 = vld [vmem:[%s455 + $0x120] sm:$0xff]
        %v615 = vld [vmem:[%s455 + $0x128] sm:$0xff]
        %v616 = vld [vmem:[%s455 + $0x130] sm:$0xff]
        %v617 = vld [vmem:[%s455 + $0x138] sm:$0xff]
        %v618 = vld [vmem:[%s455 + $0x140] sm:$0xff]
        %v619 = vld [vmem:[%s455 + $0x148] sm:$0xff]
        %v620 = vld [vmem:[%s455 + $0x150] sm:$0xff]
        %v621 = vld [vmem:[%s455 + $0x158] sm:$0xff]
        %v622 = vld [vmem:[%s455 + $0x160] sm:$0xff]
        %v623 = vld [vmem:[%s455 + $0x168] sm:$0xff]
        %v624 = vld [vmem:[%s455 + $0x170] sm:$0xff]
        %v625 = vld [vmem:[%s455 + $0x178] sm:$0xff]
        %v626 = vld [vmem:[%s455 + $0x180] sm:$0xff]
        %v627 = vld [vmem:[%s455 + $0x188] sm:$0xff]
        %v628 = vld [vmem:[%s455 + $0x190] sm:$0xff]
        %v629 = vld [vmem:[%s455 + $0x198] sm:$0xff]
        %v630 = vld [vmem:[%s455 + $0x1a0] sm:$0xff]
        %v631 = vld [vmem:[%s455 + $0x1a8] sm:$0xff]
        %v632 = vld [vmem:[%s455 + $0x1b0] sm:$0xff]
        %v633 = vld [vmem:[%s455 + $0x1b8] sm:$0xff]
        %v634 = vld [vmem:[%s455 + $0x1c0] sm:$0xff]
        %v635 = vld [vmem:[%s455 + $0x1c8] sm:$0xff]
        %v636 = vld [vmem:[%s455 + $0x1d0] sm:$0xff]
        %v637 = vld [vmem:[%s455 + $0x1d8] sm:$0xff]
        %v638 = vld [vmem:[%s455 + $0x1e0] sm:$0xff]
        %v639 = vld [vmem:[%s455 + $0x1e8] sm:$0xff]
        %v640 = vld [vmem:[%s455 + $0x1f0] sm:$0xff]
        %v641 = vld [vmem:[%s455 + $0x1f8] sm:$0xff]
        %v642 = vld [vmem:[%s455 + $0x200] sm:$0xff]
        %v643 = vld [vmem:[%s455 + $0x208] sm:$0xff]
        %v644 = vld [vmem:[%s455 + $0x210] sm:$0xff]
        %v645 = vld [vmem:[%s455 + $0x218] sm:$0xff]
        %v646 = vld [vmem:[%s455 + $0x220] sm:$0xff]
        %v647 = vld [vmem:[%s455 + $0x228] sm:$0xff]
        %v648 = vld [vmem:[%s455 + $0x230] sm:$0xff]
        %v649 = vld [vmem:[%s455 + $0x238] sm:$0xff]
        %v650 = vld [vmem:[%s455 + $0x240] sm:$0xff]
        %v651 = vld [vmem:[%s455 + $0x248] sm:$0xff]
        %v652 = vld [vmem:[%s455 + $0x250] sm:$0xff]
        %v653 = vld [vmem:[%s455 + $0x258] sm:$0xff]
        %v654 = vlaneseq
        %v655 = vshrl.u32 %v654, 7
        %v656 = vadd.s32 %v655, 8
        %v657 = vadd.s32 %v655, 16
        %v658 = vadd.s32 %v655, 24
        %v659 = vadd.s32 %v655, 32
        %v660 = vadd.s32 %v655, 40
        %v661 = vadd.s32 %v655, 48
        %v662 = vadd.s32 %v655, 56
        %v663 = vadd.s32 %v655, 64
        %v664 = vadd.s32 %v655, 72
        %v665 = vadd.s32 %v655, 80
        %v666 = vadd.s32 %v655, 88
        %v667 = vadd.s32 %v655, 96
        %v668 = vadd.s32 %v655, 104
        %v669 = vadd.s32 %v655, 112
        %v670 = vadd.s32 %v655, 120
        %v671 = vadd.s32 %v655, 128
        %v672 = vadd.s32 %v655, 136
        %v673 = vadd.s32 %v655, 144
        %v674 = vadd.s32 %v655, 152
        %v675 = vadd.s32 %v655, 160
        %v676 = vadd.s32 %v655, 168
        %v677 = vadd.s32 %v655, 176
        %v678 = vadd.s32 %v655, 184
        %v679 = vadd.s32 %v655, 192
        %v680 = vadd.s32 %v655, 200
        %v681 = vadd.s32 %v655, 208
        %v682 = vadd.s32 %v655, 216
        %v683 = vadd.s32 %v655, 224
        %v684 = vadd.s32 %v655, 232
        %v685 = vadd.s32 %v655, 240
        %v686 = vadd.s32 %v655, 248
        %v687 = vadd.s32 %v655, 256
        %v688 = vadd.s32 %v655, 264
        %v689 = vadd.s32 %v655, 272
        %v690 = vadd.s32 %v655, 280
        %v691 = vadd.s32 %v655, 288
        %v692 = vadd.s32 %v655, 296
        %v693 = vadd.s32 %v655, 304
        %v694 = vadd.s32 %v655, 312
        %v695 = vadd.s32 %v655, 320
        %v696 = vadd.s32 %v655, 328
        %v697 = vadd.s32 %v655, 336
        %v698 = vadd.s32 %v655, 344
        %v699 = vadd.s32 %v655, 352
        %v700 = vadd.s32 %v655, 360
        %v701 = vadd.s32 %v655, 368
        %v702 = vadd.s32 %v655, 376
        %v703 = vadd.s32 %v655, 384
        %v704 = vadd.s32 %v655, 392
        %v705 = vadd.s32 %v655, 400
        %v706 = vadd.s32 %v655, 408
        %v707 = vadd.s32 %v655, 416
        %v708 = vadd.s32 %v655, 424
        %v709 = vadd.s32 %v655, 432
        %v710 = vadd.s32 %v655, 440
        %v711 = vadd.s32 %v655, 448
        %v712 = vadd.s32 %v655, 456
        %v713 = vadd.s32 %v655, 464
        %v714 = vadd.s32 %v655, 472
        %v715 = vadd.s32 %v655, 480
        %v716 = vadd.s32 %v655, 488
        %v717 = vadd.s32 %v655, 496
        %v718 = vadd.s32 %v655, 504
        %v719 = vadd.s32 %v655, 512
        %v720 = vadd.s32 %v655, 520
        %v721 = vadd.s32 %v655, 528
        %v722 = vadd.s32 %v655, 536
        %v723 = vadd.s32 %v655, 544
        %v724 = vadd.s32 %v655, 552
        %v725 = vadd.s32 %v655, 560
        %v726 = vadd.s32 %v655, 568
        %v727 = vadd.s32 %v655, 576
        %v728 = vadd.s32 %v655, 584
        %v729 = vadd.s32 %v655, 592
        %v730 = vadd.s32 %v655, 600
        %s731 = smul.u32 %s30, 608
        %v732 = vstv %s731
        %v733 = vadd.s32 %v655, %v732
        %v734 = vadd.s32 %v656, %v732
        %v735 = vadd.s32 %v657, %v732
        %v736 = vadd.s32 %v658, %v732
        %v737 = vadd.s32 %v659, %v732
        %v738 = vadd.s32 %v660, %v732
        %v739 = vadd.s32 %v661, %v732
        %v740 = vadd.s32 %v662, %v732
        %v741 = vadd.s32 %v663, %v732
        %v742 = vadd.s32 %v664, %v732
        %v743 = vadd.s32 %v665, %v732
        %v744 = vadd.s32 %v666, %v732
        %v745 = vadd.s32 %v667, %v732
        %v746 = vadd.s32 %v668, %v732
        %v747 = vadd.s32 %v669, %v732
        %v748 = vadd.s32 %v670, %v732
        %v749 = vadd.s32 %v671, %v732
        %v750 = vadd.s32 %v672, %v732
        %v751 = vadd.s32 %v673, %v732
        %v752 = vadd.s32 %v674, %v732
        %v753 = vadd.s32 %v675, %v732
        %v754 = vadd.s32 %v676, %v732
        %v755 = vadd.s32 %v677, %v732
        %v756 = vadd.s32 %v678, %v732
        %v757 = vadd.s32 %v679, %v732
        %v758 = vadd.s32 %v680, %v732
        %v759 = vadd.s32 %v681, %v732
        %v760 = vadd.s32 %v682, %v732
        %v761 = vadd.s32 %v683, %v732
        %v762 = vadd.s32 %v684, %v732
        %v763 = vadd.s32 %v685, %v732
        %v764 = vadd.s32 %v686, %v732
        %v765 = vadd.s32 %v687, %v732
        %v766 = vadd.s32 %v688, %v732
        %v767 = vadd.s32 %v689, %v732
        %v768 = vadd.s32 %v690, %v732
        %v769 = vadd.s32 %v691, %v732
        %v770 = vadd.s32 %v692, %v732
        %v771 = vadd.s32 %v693, %v732
        %v772 = vadd.s32 %v694, %v732
        %v773 = vadd.s32 %v695, %v732
        %v774 = vadd.s32 %v696, %v732
        %v775 = vadd.s32 %v697, %v732
        %v776 = vadd.s32 %v698, %v732
        %v777 = vadd.s32 %v699, %v732
        %v778 = vadd.s32 %v700, %v732
        %v779 = vadd.s32 %v701, %v732
        %v780 = vadd.s32 %v702, %v732
        %v781 = vadd.s32 %v703, %v732
        %v782 = vadd.s32 %v704, %v732
        %v783 = vadd.s32 %v705, %v732
        %v784 = vadd.s32 %v706, %v732
        %v785 = vadd.s32 %v707, %v732
        %v786 = vadd.s32 %v708, %v732
        %v787 = vadd.s32 %v709, %v732
        %v788 = vadd.s32 %v710, %v732
        %v789 = vadd.s32 %v711, %v732
        %v790 = vadd.s32 %v712, %v732
        %v791 = vadd.s32 %v713, %v732
        %v792 = vadd.s32 %v714, %v732
        %v793 = vadd.s32 %v715, %v732
        %v794 = vadd.s32 %v716, %v732
        %v795 = vadd.s32 %v717, %v732
        %v796 = vadd.s32 %v718, %v732
        %v797 = vadd.s32 %v719, %v732
        %v798 = vadd.s32 %v720, %v732
        %v799 = vadd.s32 %v721, %v732
        %v800 = vadd.s32 %v722, %v732
        %v801 = vadd.s32 %v723, %v732
        %v802 = vadd.s32 %v724, %v732
        %v803 = vadd.s32 %v725, %v732
        %v804 = vadd.s32 %v726, %v732
        %v805 = vadd.s32 %v727, %v732
        %v806 = vadd.s32 %v728, %v732
        %v807 = vadd.s32 %v729, %v732
        %v808 = vadd.s32 %v730, %v732
        %vm809 = vcmp.lt.s32.totalorder %v733, 603
        %vm810 = vcmp.lt.s32.totalorder %v734, 603
        %vm811 = vcmp.lt.s32.totalorder %v735, 603
        %vm812 = vcmp.lt.s32.totalorder %v736, 603
        %vm813 = vcmp.lt.s32.totalorder %v737, 603
        %vm814 = vcmp.lt.s32.totalorder %v738, 603
        %vm815 = vcmp.lt.s32.totalorder %v739, 603
        %vm816 = vcmp.lt.s32.totalorder %v740, 603
        %vm817 = vcmp.lt.s32.totalorder %v741, 603
        %vm818 = vcmp.lt.s32.totalorder %v742, 603
        %vm819 = vcmp.lt.s32.totalorder %v743, 603
        %vm820 = vcmp.lt.s32.totalorder %v744, 603
        %vm821 = vcmp.lt.s32.totalorder %v745, 603
        %vm822 = vcmp.lt.s32.totalorder %v746, 603
        %vm823 = vcmp.lt.s32.totalorder %v747, 603
        %vm824 = vcmp.lt.s32.totalorder %v748, 603
        %vm825 = vcmp.lt.s32.totalorder %v749, 603
        %vm826 = vcmp.lt.s32.totalorder %v750, 603
        %vm827 = vcmp.lt.s32.totalorder %v751, 603
        %vm828 = vcmp.lt.s32.totalorder %v752, 603
        %vm829 = vcmp.lt.s32.totalorder %v753, 603
        %vm830 = vcmp.lt.s32.totalorder %v754, 603
        %vm831 = vcmp.lt.s32.totalorder %v755, 603
        %vm832 = vcmp.lt.s32.totalorder %v756, 603
        %vm833 = vcmp.lt.s32.totalorder %v757, 603
        %vm834 = vcmp.lt.s32.totalorder %v758, 603
        %vm835 = vcmp.lt.s32.totalorder %v759, 603
        %vm836 = vcmp.lt.s32.totalorder %v760, 603
        %vm837 = vcmp.lt.s32.totalorder %v761, 603
        %vm838 = vcmp.lt.s32.totalorder %v762, 603
        %vm839 = vcmp.lt.s32.totalorder %v763, 603
        %vm840 = vcmp.lt.s32.totalorder %v764, 603
        %vm841 = vcmp.lt.s32.totalorder %v765, 603
        %vm842 = vcmp.lt.s32.totalorder %v766, 603
        %vm843 = vcmp.lt.s32.totalorder %v767, 603
        %vm844 = vcmp.lt.s32.totalorder %v768, 603
        %vm845 = vcmp.lt.s32.totalorder %v769, 603
        %vm846 = vcmp.lt.s32.totalorder %v770, 603
        %vm847 = vcmp.lt.s32.totalorder %v771, 603
        %vm848 = vcmp.lt.s32.totalorder %v772, 603
        %vm849 = vcmp.lt.s32.totalorder %v773, 603
        %vm850 = vcmp.lt.s32.totalorder %v774, 603
        %vm851 = vcmp.lt.s32.totalorder %v775, 603
        %vm852 = vcmp.lt.s32.totalorder %v776, 603
        %vm853 = vcmp.lt.s32.totalorder %v777, 603
        %vm854 = vcmp.lt.s32.totalorder %v778, 603
        %vm855 = vcmp.lt.s32.totalorder %v779, 603
        %vm856 = vcmp.lt.s32.totalorder %v780, 603
        %vm857 = vcmp.lt.s32.totalorder %v781, 603
        %vm858 = vcmp.lt.s32.totalorder %v782, 603
        %vm859 = vcmp.lt.s32.totalorder %v783, 603
        %vm860 = vcmp.lt.s32.totalorder %v784, 603
        %vm861 = vcmp.lt.s32.totalorder %v785, 603
        %vm862 = vcmp.lt.s32.totalorder %v786, 603
        %vm863 = vcmp.lt.s32.totalorder %v787, 603
        %vm864 = vcmp.lt.s32.totalorder %v788, 603
        %vm865 = vcmp.lt.s32.totalorder %v789, 603
        %vm866 = vcmp.lt.s32.totalorder %v790, 603
        %vm867 = vcmp.lt.s32.totalorder %v791, 603
        %vm868 = vcmp.lt.s32.totalorder %v792, 603
        %vm869 = vcmp.lt.s32.totalorder %v793, 603
        %vm870 = vcmp.lt.s32.totalorder %v794, 603
        %vm871 = vcmp.lt.s32.totalorder %v795, 603
        %vm872 = vcmp.lt.s32.totalorder %v796, 603
        %vm873 = vcmp.lt.s32.totalorder %v797, 603
        %vm874 = vcmp.lt.s32.totalorder %v798, 603
        %vm875 = vcmp.lt.s32.totalorder %v799, 603
        %vm876 = vcmp.lt.s32.totalorder %v800, 603
        %vm877 = vcmp.lt.s32.totalorder %v801, 603
        %vm878 = vcmp.lt.s32.totalorder %v802, 603
        %vm879 = vcmp.lt.s32.totalorder %v803, 603
        %vm880 = vcmp.lt.s32.totalorder %v804, 603
        %vm881 = vcmp.lt.s32.totalorder %v805, 603
        %vm882 = vcmp.lt.s32.totalorder %v806, 603
        %vm883 = vcmp.lt.s32.totalorder %v807, 603
        %vm884 = vcmp.lt.s32.totalorder %v808, 603
        %v885 = vlaneseq
        %v886 = vand.u32 %v885, 127
        %887 = vset.pattern.permute.xlu0 0
        %888 = vperm.xlu0 %887, %v578
        %v889 = vpop.permute.xlu0 %888
        %890 = vset.pattern.permute.xlu0 0
        %891 = vperm.xlu0 %890, %v579
        %v892 = vpop.permute.xlu0 %891
        %893 = vset.pattern.permute.xlu0 0
        %894 = vperm.xlu0 %893, %v580
        %v895 = vpop.permute.xlu0 %894
        %896 = vset.pattern.permute.xlu0 0
        %897 = vperm.xlu0 %896, %v581
        %v898 = vpop.permute.xlu0 %897
        %899 = vset.pattern.permute.xlu0 0
        %900 = vperm.xlu0 %899, %v582
        %v901 = vpop.permute.xlu0 %900
        %902 = vset.pattern.permute.xlu0 0
        %903 = vperm.xlu0 %902, %v583
        %v904 = vpop.permute.xlu0 %903
        %905 = vset.pattern.permute.xlu0 0
        %906 = vperm.xlu0 %905, %v584
        %v907 = vpop.permute.xlu0 %906
        %908 = vset.pattern.permute.xlu0 0
        %909 = vperm.xlu0 %908, %v585
        %v910 = vpop.permute.xlu0 %909
        %911 = vset.pattern.permute.xlu0 0
        %912 = vperm.xlu0 %911, %v586
        %v913 = vpop.permute.xlu0 %912
        %914 = vset.pattern.permute.xlu0 0
        %915 = vperm.xlu0 %914, %v587
        %v916 = vpop.permute.xlu0 %915
        %917 = vset.pattern.permute.xlu0 0
        %918 = vperm.xlu0 %917, %v588
        %v919 = vpop.permute.xlu0 %918
        %920 = vset.pattern.permute.xlu0 0
        %921 = vperm.xlu0 %920, %v589
        %v922 = vpop.permute.xlu0 %921
        %923 = vset.pattern.permute.xlu0 0
        %924 = vperm.xlu0 %923, %v590
        %v925 = vpop.permute.xlu0 %924
        %926 = vset.pattern.permute.xlu0 0
        %927 = vperm.xlu0 %926, %v591
        %v928 = vpop.permute.xlu0 %927
        %929 = vset.pattern.permute.xlu0 0
        %930 = vperm.xlu0 %929, %v592
        %v931 = vpop.permute.xlu0 %930
        %932 = vset.pattern.permute.xlu0 0
        %933 = vperm.xlu0 %932, %v593
        %v934 = vpop.permute.xlu0 %933
        %935 = vset.pattern.permute.xlu0 0
        %936 = vperm.xlu0 %935, %v594
        %v937 = vpop.permute.xlu0 %936
        %938 = vset.pattern.permute.xlu0 0
        %939 = vperm.xlu0 %938, %v595
        %v940 = vpop.permute.xlu0 %939
        %941 = vset.pattern.permute.xlu0 0
        %942 = vperm.xlu0 %941, %v596
        %v943 = vpop.permute.xlu0 %942
        %944 = vset.pattern.permute.xlu0 0
        %945 = vperm.xlu0 %944, %v597
        %v946 = vpop.permute.xlu0 %945
        %947 = vset.pattern.permute.xlu0 0
        %948 = vperm.xlu0 %947, %v598
        %v949 = vpop.permute.xlu0 %948
        %950 = vset.pattern.permute.xlu0 0
        %951 = vperm.xlu0 %950, %v599
        %v952 = vpop.permute.xlu0 %951
        %953 = vset.pattern.permute.xlu0 0
        %954 = vperm.xlu0 %953, %v600
        %v955 = vpop.permute.xlu0 %954
        %956 = vset.pattern.permute.xlu0 0
        %957 = vperm.xlu0 %956, %v601
        %v958 = vpop.permute.xlu0 %957
        %959 = vset.pattern.permute.xlu0 0
        %960 = vperm.xlu0 %959, %v602
        %v961 = vpop.permute.xlu0 %960
        %962 = vset.pattern.permute.xlu0 0
        %963 = vperm.xlu0 %962, %v603
        %v964 = vpop.permute.xlu0 %963
        %965 = vset.pattern.permute.xlu0 0
        %966 = vperm.xlu0 %965, %v604
        %v967 = vpop.permute.xlu0 %966
        %968 = vset.pattern.permute.xlu0 0
        %969 = vperm.xlu0 %968, %v605
        %v970 = vpop.permute.xlu0 %969
        %971 = vset.pattern.permute.xlu0 0
        %972 = vperm.xlu0 %971, %v606
        %v973 = vpop.permute.xlu0 %972
        %974 = vset.pattern.permute.xlu0 0
        %975 = vperm.xlu0 %974, %v607
        %v976 = vpop.permute.xlu0 %975
        %977 = vset.pattern.permute.xlu0 0
        %978 = vperm.xlu0 %977, %v608
        %v979 = vpop.permute.xlu0 %978
        %980 = vset.pattern.permute.xlu0 0
        %981 = vperm.xlu0 %980, %v609
        %v982 = vpop.permute.xlu0 %981
        %983 = vset.pattern.permute.xlu0 0
        %984 = vperm.xlu0 %983, %v610
        %v985 = vpop.permute.xlu0 %984
        %986 = vset.pattern.permute.xlu0 0
        %987 = vperm.xlu0 %986, %v611
        %v988 = vpop.permute.xlu0 %987
        %989 = vset.pattern.permute.xlu0 0
        %990 = vperm.xlu0 %989, %v612
        %v991 = vpop.permute.xlu0 %990
        %992 = vset.pattern.permute.xlu0 0
        %993 = vperm.xlu0 %992, %v613
        %v994 = vpop.permute.xlu0 %993
        %995 = vset.pattern.permute.xlu0 0
        %996 = vperm.xlu0 %995, %v614
        %v997 = vpop.permute.xlu0 %996
        %998 = vset.pattern.permute.xlu0 0
        %999 = vperm.xlu0 %998, %v615
        %v1000 = vpop.permute.xlu0 %999
        %1001 = vset.pattern.permute.xlu0 0
        %1002 = vperm.xlu0 %1001, %v616
        %v1003 = vpop.permute.xlu0 %1002
        %1004 = vset.pattern.permute.xlu0 0
        %1005 = vperm.xlu0 %1004, %v617
        %v1006 = vpop.permute.xlu0 %1005
        %1007 = vset.pattern.permute.xlu0 0
        %1008 = vperm.xlu0 %1007, %v618
        %v1009 = vpop.permute.xlu0 %1008
        %1010 = vset.pattern.permute.xlu0 0
        %1011 = vperm.xlu0 %1010, %v619
        %v1012 = vpop.permute.xlu0 %1011
        %1013 = vset.pattern.permute.xlu0 0
        %1014 = vperm.xlu0 %1013, %v620
        %v1015 = vpop.permute.xlu0 %1014
        %1016 = vset.pattern.permute.xlu0 0
        %1017 = vperm.xlu0 %1016, %v621
        %v1018 = vpop.permute.xlu0 %1017
        %1019 = vset.pattern.permute.xlu0 0
        %1020 = vperm.xlu0 %1019, %v622
        %v1021 = vpop.permute.xlu0 %1020
        %1022 = vset.pattern.permute.xlu0 0
        %1023 = vperm.xlu0 %1022, %v623
        %v1024 = vpop.permute.xlu0 %1023
        %1025 = vset.pattern.permute.xlu0 0
        %1026 = vperm.xlu0 %1025, %v624
        %v1027 = vpop.permute.xlu0 %1026
        %1028 = vset.pattern.permute.xlu0 0
        %1029 = vperm.xlu0 %1028, %v625
        %v1030 = vpop.permute.xlu0 %1029
        %1031 = vset.pattern.permute.xlu0 0
        %1032 = vperm.xlu0 %1031, %v626
        %v1033 = vpop.permute.xlu0 %1032
        %1034 = vset.pattern.permute.xlu0 0
        %1035 = vperm.xlu0 %1034, %v627
        %v1036 = vpop.permute.xlu0 %1035
        %1037 = vset.pattern.permute.xlu0 0
        %1038 = vperm.xlu0 %1037, %v628
        %v1039 = vpop.permute.xlu0 %1038
        %1040 = vset.pattern.permute.xlu0 0
        %1041 = vperm.xlu0 %1040, %v629
        %v1042 = vpop.permute.xlu0 %1041
        %1043 = vset.pattern.permute.xlu0 0
        %1044 = vperm.xlu0 %1043, %v630
        %v1045 = vpop.permute.xlu0 %1044
        %1046 = vset.pattern.permute.xlu0 0
        %1047 = vperm.xlu0 %1046, %v631
        %v1048 = vpop.permute.xlu0 %1047
        %1049 = vset.pattern.permute.xlu0 0
        %1050 = vperm.xlu0 %1049, %v632
        %v1051 = vpop.permute.xlu0 %1050
        %1052 = vset.pattern.permute.xlu0 0
        %1053 = vperm.xlu0 %1052, %v633
        %v1054 = vpop.permute.xlu0 %1053
        %1055 = vset.pattern.permute.xlu0 0
        %1056 = vperm.xlu0 %1055, %v634
        %v1057 = vpop.permute.xlu0 %1056
        %1058 = vset.pattern.permute.xlu0 0
        %1059 = vperm.xlu0 %1058, %v635
        %v1060 = vpop.permute.xlu0 %1059
        %1061 = vset.pattern.permute.xlu0 0
        %1062 = vperm.xlu0 %1061, %v636
        %v1063 = vpop.permute.xlu0 %1062
        %1064 = vset.pattern.permute.xlu0 0
        %1065 = vperm.xlu0 %1064, %v637
        %v1066 = vpop.permute.xlu0 %1065
        %1067 = vset.pattern.permute.xlu0 0
        %1068 = vperm.xlu0 %1067, %v638
        %v1069 = vpop.permute.xlu0 %1068
        %1070 = vset.pattern.permute.xlu0 0
        %1071 = vperm.xlu0 %1070, %v639
        %v1072 = vpop.permute.xlu0 %1071
        %1073 = vset.pattern.permute.xlu0 0
        %1074 = vperm.xlu0 %1073, %v640
        %v1075 = vpop.permute.xlu0 %1074
        %1076 = vset.pattern.permute.xlu0 0
        %1077 = vperm.xlu0 %1076, %v641
        %v1078 = vpop.permute.xlu0 %1077
        %1079 = vset.pattern.permute.xlu0 0
        %1080 = vperm.xlu0 %1079, %v642
        %v1081 = vpop.permute.xlu0 %1080
        %1082 = vset.pattern.permute.xlu0 0
        %1083 = vperm.xlu0 %1082, %v643
        %v1084 = vpop.permute.xlu0 %1083
        %1085 = vset.pattern.permute.xlu0 0
        %1086 = vperm.xlu0 %1085, %v644
        %v1087 = vpop.permute.xlu0 %1086
        %1088 = vset.pattern.permute.xlu0 0
        %1089 = vperm.xlu0 %1088, %v645
        %v1090 = vpop.permute.xlu0 %1089
        %1091 = vset.pattern.permute.xlu0 0
        %1092 = vperm.xlu0 %1091, %v646
        %v1093 = vpop.permute.xlu0 %1092
        %1094 = vset.pattern.permute.xlu0 0
        %1095 = vperm.xlu0 %1094, %v647
        %v1096 = vpop.permute.xlu0 %1095
        %1097 = vset.pattern.permute.xlu0 0
        %1098 = vperm.xlu0 %1097, %v648
        %v1099 = vpop.permute.xlu0 %1098
        %1100 = vset.pattern.permute.xlu0 0
        %1101 = vperm.xlu0 %1100, %v649
        %v1102 = vpop.permute.xlu0 %1101
        %1103 = vset.pattern.permute.xlu0 0
        %1104 = vperm.xlu0 %1103, %v650
        %v1105 = vpop.permute.xlu0 %1104
        %1106 = vset.pattern.permute.xlu0 0
        %1107 = vperm.xlu0 %1106, %v651
        %v1108 = vpop.permute.xlu0 %1107
        %1109 = vset.pattern.permute.xlu0 0
        %1110 = vperm.xlu0 %1109, %v652
        %v1111 = vpop.permute.xlu0 %1110
        %1112 = vset.pattern.permute.xlu0 0
        %1113 = vperm.xlu0 %1112, %v653
        %v1114 = vpop.permute.xlu0 %1113
        %vm1115 = vcmp.eq.s32.totalorder %v889, %v886
        %vm1116 = vcmp.eq.s32.totalorder %v892, %v886
        %vm1117 = vcmp.eq.s32.totalorder %v895, %v886
        %vm1118 = vcmp.eq.s32.totalorder %v898, %v886
        %vm1119 = vcmp.eq.s32.totalorder %v901, %v886
        %vm1120 = vcmp.eq.s32.totalorder %v904, %v886
        %vm1121 = vcmp.eq.s32.totalorder %v907, %v886
        %vm1122 = vcmp.eq.s32.totalorder %v910, %v886
        %vm1123 = vcmp.eq.s32.totalorder %v913, %v886
        %vm1124 = vcmp.eq.s32.totalorder %v916, %v886
        %vm1125 = vcmp.eq.s32.totalorder %v919, %v886
        %vm1126 = vcmp.eq.s32.totalorder %v922, %v886
        %vm1127 = vcmp.eq.s32.totalorder %v925, %v886
        %vm1128 = vcmp.eq.s32.totalorder %v928, %v886
        %vm1129 = vcmp.eq.s32.totalorder %v931, %v886
        %vm1130 = vcmp.eq.s32.totalorder %v934, %v886
        %vm1131 = vcmp.eq.s32.totalorder %v937, %v886
        %vm1132 = vcmp.eq.s32.totalorder %v940, %v886
        %vm1133 = vcmp.eq.s32.totalorder %v943, %v886
        %vm1134 = vcmp.eq.s32.totalorder %v946, %v886
        %vm1135 = vcmp.eq.s32.totalorder %v949, %v886
        %vm1136 = vcmp.eq.s32.totalorder %v952, %v886
        %vm1137 = vcmp.eq.s32.totalorder %v955, %v886
        %vm1138 = vcmp.eq.s32.totalorder %v958, %v886
        %vm1139 = vcmp.eq.s32.totalorder %v961, %v886
        %vm1140 = vcmp.eq.s32.totalorder %v964, %v886
        %vm1141 = vcmp.eq.s32.totalorder %v967, %v886
        %vm1142 = vcmp.eq.s32.totalorder %v970, %v886
        %vm1143 = vcmp.eq.s32.totalorder %v973, %v886
        %vm1144 = vcmp.eq.s32.totalorder %v976, %v886
        %vm1145 = vcmp.eq.s32.totalorder %v979, %v886
        %vm1146 = vcmp.eq.s32.totalorder %v982, %v886
        %vm1147 = vcmp.eq.s32.totalorder %v985, %v886
        %vm1148 = vcmp.eq.s32.totalorder %v988, %v886
        %vm1149 = vcmp.eq.s32.totalorder %v991, %v886
        %vm1150 = vcmp.eq.s32.totalorder %v994, %v886
        %vm1151 = vcmp.eq.s32.totalorder %v997, %v886
        %vm1152 = vcmp.eq.s32.totalorder %v1000, %v886
        %vm1153 = vcmp.eq.s32.totalorder %v1003, %v886
        %vm1154 = vcmp.eq.s32.totalorder %v1006, %v886
        %vm1155 = vcmp.eq.s32.totalorder %v1009, %v886
        %vm1156 = vcmp.eq.s32.totalorder %v1012, %v886
        %vm1157 = vcmp.eq.s32.totalorder %v1015, %v886
        %vm1158 = vcmp.eq.s32.totalorder %v1018, %v886
        %vm1159 = vcmp.eq.s32.totalorder %v1021, %v886
        %vm1160 = vcmp.eq.s32.totalorder %v1024, %v886
        %vm1161 = vcmp.eq.s32.totalorder %v1027, %v886
        %vm1162 = vcmp.eq.s32.totalorder %v1030, %v886
        %vm1163 = vcmp.eq.s32.totalorder %v1033, %v886
        %vm1164 = vcmp.eq.s32.totalorder %v1036, %v886
        %vm1165 = vcmp.eq.s32.totalorder %v1039, %v886
        %vm1166 = vcmp.eq.s32.totalorder %v1042, %v886
        %vm1167 = vcmp.eq.s32.totalorder %v1045, %v886
        %vm1168 = vcmp.eq.s32.totalorder %v1048, %v886
        %vm1169 = vcmp.eq.s32.totalorder %v1051, %v886
        %vm1170 = vcmp.eq.s32.totalorder %v1054, %v886
        %vm1171 = vcmp.eq.s32.totalorder %v1057, %v886
        %vm1172 = vcmp.eq.s32.totalorder %v1060, %v886
        %vm1173 = vcmp.eq.s32.totalorder %v1063, %v886
        %vm1174 = vcmp.eq.s32.totalorder %v1066, %v886
        %vm1175 = vcmp.eq.s32.totalorder %v1069, %v886
        %vm1176 = vcmp.eq.s32.totalorder %v1072, %v886
        %vm1177 = vcmp.eq.s32.totalorder %v1075, %v886
        %vm1178 = vcmp.eq.s32.totalorder %v1078, %v886
        %vm1179 = vcmp.eq.s32.totalorder %v1081, %v886
        %vm1180 = vcmp.eq.s32.totalorder %v1084, %v886
        %vm1181 = vcmp.eq.s32.totalorder %v1087, %v886
        %vm1182 = vcmp.eq.s32.totalorder %v1090, %v886
        %vm1183 = vcmp.eq.s32.totalorder %v1093, %v886
        %vm1184 = vcmp.eq.s32.totalorder %v1096, %v886
        %vm1185 = vcmp.eq.s32.totalorder %v1099, %v886
        %vm1186 = vcmp.eq.s32.totalorder %v1102, %v886
        %vm1187 = vcmp.eq.s32.totalorder %v1105, %v886
        %vm1188 = vcmp.eq.s32.totalorder %v1108, %v886
        %vm1189 = vcmp.eq.s32.totalorder %v1111, %v886
        %vm1190 = vcmp.eq.s32.totalorder %v1114, %v886
        %v1191 = vsel %vm809, 1, 0
        %v1192 = vsel %vm810, 1, 0
        %v1193 = vsel %vm811, 1, 0
        %v1194 = vsel %vm812, 1, 0
        %v1195 = vsel %vm813, 1, 0
        %v1196 = vsel %vm814, 1, 0
        %v1197 = vsel %vm815, 1, 0
        %v1198 = vsel %vm816, 1, 0
        %v1199 = vsel %vm817, 1, 0
        %v1200 = vsel %vm818, 1, 0
        %v1201 = vsel %vm819, 1, 0
        %v1202 = vsel %vm820, 1, 0
        %v1203 = vsel %vm821, 1, 0
        %v1204 = vsel %vm822, 1, 0
        %v1205 = vsel %vm823, 1, 0
        %v1206 = vsel %vm824, 1, 0
        %v1207 = vsel %vm825, 1, 0
        %v1208 = vsel %vm826, 1, 0
        %v1209 = vsel %vm827, 1, 0
        %v1210 = vsel %vm828, 1, 0
        %v1211 = vsel %vm829, 1, 0
        %v1212 = vsel %vm830, 1, 0
        %v1213 = vsel %vm831, 1, 0
        %v1214 = vsel %vm832, 1, 0
        %v1215 = vsel %vm833, 1, 0
        %v1216 = vsel %vm834, 1, 0
        %v1217 = vsel %vm835, 1, 0
        %v1218 = vsel %vm836, 1, 0
        %v1219 = vsel %vm837, 1, 0
        %v1220 = vsel %vm838, 1, 0
        %v1221 = vsel %vm839, 1, 0
        %v1222 = vsel %vm840, 1, 0
        %v1223 = vsel %vm841, 1, 0
        %v1224 = vsel %vm842, 1, 0
        %v1225 = vsel %vm843, 1, 0
        %v1226 = vsel %vm844, 1, 0
        %v1227 = vsel %vm845, 1, 0
        %v1228 = vsel %vm846, 1, 0
        %v1229 = vsel %vm847, 1, 0
        %v1230 = vsel %vm848, 1, 0
        %v1231 = vsel %vm849, 1, 0
        %v1232 = vsel %vm850, 1, 0
        %v1233 = vsel %vm851, 1, 0
        %v1234 = vsel %vm852, 1, 0
        %v1235 = vsel %vm853, 1, 0
        %v1236 = vsel %vm854, 1, 0
        %v1237 = vsel %vm855, 1, 0
        %v1238 = vsel %vm856, 1, 0
        %v1239 = vsel %vm857, 1, 0
        %v1240 = vsel %vm858, 1, 0
        %v1241 = vsel %vm859, 1, 0
        %v1242 = vsel %vm860, 1, 0
        %v1243 = vsel %vm861, 1, 0
        %v1244 = vsel %vm862, 1, 0
        %v1245 = vsel %vm863, 1, 0
        %v1246 = vsel %vm864, 1, 0
        %v1247 = vsel %vm865, 1, 0
        %v1248 = vsel %vm866, 1, 0
        %v1249 = vsel %vm867, 1, 0
        %v1250 = vsel %vm868, 1, 0
        %v1251 = vsel %vm869, 1, 0
        %v1252 = vsel %vm870, 1, 0
        %v1253 = vsel %vm871, 1, 0
        %v1254 = vsel %vm872, 1, 0
        %v1255 = vsel %vm873, 1, 0
        %v1256 = vsel %vm874, 1, 0
        %v1257 = vsel %vm875, 1, 0
        %v1258 = vsel %vm876, 1, 0
        %v1259 = vsel %vm877, 1, 0
        %v1260 = vsel %vm878, 1, 0
        %v1261 = vsel %vm879, 1, 0
        %v1262 = vsel %vm880, 1, 0
        %v1263 = vsel %vm881, 1, 0
        %v1264 = vsel %vm882, 1, 0
        %v1265 = vsel %vm883, 1, 0
        %v1266 = vsel %vm884, 1, 0
        %vm1267 = vcmp.eq.s32.totalorder %v1191, 1
        %vm1268 = vcmp.eq.s32.totalorder %v1192, 1
        %vm1269 = vcmp.eq.s32.totalorder %v1193, 1
        %vm1270 = vcmp.eq.s32.totalorder %v1194, 1
        %vm1271 = vcmp.eq.s32.totalorder %v1195, 1
        %vm1272 = vcmp.eq.s32.totalorder %v1196, 1
        %vm1273 = vcmp.eq.s32.totalorder %v1197, 1
        %vm1274 = vcmp.eq.s32.totalorder %v1198, 1
        %vm1275 = vcmp.eq.s32.totalorder %v1199, 1
        %vm1276 = vcmp.eq.s32.totalorder %v1200, 1
        %vm1277 = vcmp.eq.s32.totalorder %v1201, 1
        %vm1278 = vcmp.eq.s32.totalorder %v1202, 1
        %vm1279 = vcmp.eq.s32.totalorder %v1203, 1
        %vm1280 = vcmp.eq.s32.totalorder %v1204, 1
        %vm1281 = vcmp.eq.s32.totalorder %v1205, 1
        %vm1282 = vcmp.eq.s32.totalorder %v1206, 1
        %vm1283 = vcmp.eq.s32.totalorder %v1207, 1
        %vm1284 = vcmp.eq.s32.totalorder %v1208, 1
        %vm1285 = vcmp.eq.s32.totalorder %v1209, 1
        %vm1286 = vcmp.eq.s32.totalorder %v1210, 1
        %vm1287 = vcmp.eq.s32.totalorder %v1211, 1
        %vm1288 = vcmp.eq.s32.totalorder %v1212, 1
        %vm1289 = vcmp.eq.s32.totalorder %v1213, 1
        %vm1290 = vcmp.eq.s32.totalorder %v1214, 1
        %vm1291 = vcmp.eq.s32.totalorder %v1215, 1
        %vm1292 = vcmp.eq.s32.totalorder %v1216, 1
        %vm1293 = vcmp.eq.s32.totalorder %v1217, 1
        %vm1294 = vcmp.eq.s32.totalorder %v1218, 1
        %vm1295 = vcmp.eq.s32.totalorder %v1219, 1
        %vm1296 = vcmp.eq.s32.totalorder %v1220, 1
        %vm1297 = vcmp.eq.s32.totalorder %v1221, 1
        %vm1298 = vcmp.eq.s32.totalorder %v1222, 1
        %vm1299 = vcmp.eq.s32.totalorder %v1223, 1
        %vm1300 = vcmp.eq.s32.totalorder %v1224, 1
        %vm1301 = vcmp.eq.s32.totalorder %v1225, 1
        %vm1302 = vcmp.eq.s32.totalorder %v1226, 1
        %vm1303 = vcmp.eq.s32.totalorder %v1227, 1
        %vm1304 = vcmp.eq.s32.totalorder %v1228, 1
        %vm1305 = vcmp.eq.s32.totalorder %v1229, 1
        %vm1306 = vcmp.eq.s32.totalorder %v1230, 1
        %vm1307 = vcmp.eq.s32.totalorder %v1231, 1
        %vm1308 = vcmp.eq.s32.totalorder %v1232, 1
        %vm1309 = vcmp.eq.s32.totalorder %v1233, 1
        %vm1310 = vcmp.eq.s32.totalorder %v1234, 1
        %vm1311 = vcmp.eq.s32.totalorder %v1235, 1
        %vm1312 = vcmp.eq.s32.totalorder %v1236, 1
        %vm1313 = vcmp.eq.s32.totalorder %v1237, 1
        %vm1314 = vcmp.eq.s32.totalorder %v1238, 1
        %vm1315 = vcmp.eq.s32.totalorder %v1239, 1
        %vm1316 = vcmp.eq.s32.totalorder %v1240, 1
        %vm1317 = vcmp.eq.s32.totalorder %v1241, 1
        %vm1318 = vcmp.eq.s32.totalorder %v1242, 1
        %vm1319 = vcmp.eq.s32.totalorder %v1243, 1
        %vm1320 = vcmp.eq.s32.totalorder %v1244, 1
        %vm1321 = vcmp.eq.s32.totalorder %v1245, 1
        %vm1322 = vcmp.eq.s32.totalorder %v1246, 1
        %vm1323 = vcmp.eq.s32.totalorder %v1247, 1
        %vm1324 = vcmp.eq.s32.totalorder %v1248, 1
        %vm1325 = vcmp.eq.s32.totalorder %v1249, 1
        %vm1326 = vcmp.eq.s32.totalorder %v1250, 1
        %vm1327 = vcmp.eq.s32.totalorder %v1251, 1
        %vm1328 = vcmp.eq.s32.totalorder %v1252, 1
        %vm1329 = vcmp.eq.s32.totalorder %v1253, 1
        %vm1330 = vcmp.eq.s32.totalorder %v1254, 1
        %vm1331 = vcmp.eq.s32.totalorder %v1255, 1
        %vm1332 = vcmp.eq.s32.totalorder %v1256, 1
        %vm1333 = vcmp.eq.s32.totalorder %v1257, 1
        %vm1334 = vcmp.eq.s32.totalorder %v1258, 1
        %vm1335 = vcmp.eq.s32.totalorder %v1259, 1
        %vm1336 = vcmp.eq.s32.totalorder %v1260, 1
        %vm1337 = vcmp.eq.s32.totalorder %v1261, 1
        %vm1338 = vcmp.eq.s32.totalorder %v1262, 1
        %vm1339 = vcmp.eq.s32.totalorder %v1263, 1
        %vm1340 = vcmp.eq.s32.totalorder %v1264, 1
        %vm1341 = vcmp.eq.s32.totalorder %v1265, 1
        %vm1342 = vcmp.eq.s32.totalorder %v1266, 1
        %vm1343 = vmand %vm1115, %vm1267
        %vm1344 = vmand %vm1116, %vm1268
        %vm1345 = vmand %vm1117, %vm1269
        %vm1346 = vmand %vm1118, %vm1270
        %vm1347 = vmand %vm1119, %vm1271
        %vm1348 = vmand %vm1120, %vm1272
        %vm1349 = vmand %vm1121, %vm1273
        %vm1350 = vmand %vm1122, %vm1274
        %vm1351 = vmand %vm1123, %vm1275
        %vm1352 = vmand %vm1124, %vm1276
        %vm1353 = vmand %vm1125, %vm1277
        %vm1354 = vmand %vm1126, %vm1278
        %vm1355 = vmand %vm1127, %vm1279
        %vm1356 = vmand %vm1128, %vm1280
        %vm1357 = vmand %vm1129, %vm1281
        %vm1358 = vmand %vm1130, %vm1282
        %vm1359 = vmand %vm1131, %vm1283
        %vm1360 = vmand %vm1132, %vm1284
        %vm1361 = vmand %vm1133, %vm1285
        %vm1362 = vmand %vm1134, %vm1286
        %vm1363 = vmand %vm1135, %vm1287
        %vm1364 = vmand %vm1136, %vm1288
        %vm1365 = vmand %vm1137, %vm1289
        %vm1366 = vmand %vm1138, %vm1290
        %vm1367 = vmand %vm1139, %vm1291
        %vm1368 = vmand %vm1140, %vm1292
        %vm1369 = vmand %vm1141, %vm1293
        %vm1370 = vmand %vm1142, %vm1294
        %vm1371 = vmand %vm1143, %vm1295
        %vm1372 = vmand %vm1144, %vm1296
        %vm1373 = vmand %vm1145, %vm1297
        %vm1374 = vmand %vm1146, %vm1298
        %vm1375 = vmand %vm1147, %vm1299
        %vm1376 = vmand %vm1148, %vm1300
        %vm1377 = vmand %vm1149, %vm1301
        %vm1378 = vmand %vm1150, %vm1302
        %vm1379 = vmand %vm1151, %vm1303
        %vm1380 = vmand %vm1152, %vm1304
        %vm1381 = vmand %vm1153, %vm1305
        %vm1382 = vmand %vm1154, %vm1306
        %vm1383 = vmand %vm1155, %vm1307
        %vm1384 = vmand %vm1156, %vm1308
        %vm1385 = vmand %vm1157, %vm1309
        %vm1386 = vmand %vm1158, %vm1310
        %vm1387 = vmand %vm1159, %vm1311
        %vm1388 = vmand %vm1160, %vm1312
        %vm1389 = vmand %vm1161, %vm1313
        %vm1390 = vmand %vm1162, %vm1314
        %vm1391 = vmand %vm1163, %vm1315
        %vm1392 = vmand %vm1164, %vm1316
        %vm1393 = vmand %vm1165, %vm1317
        %vm1394 = vmand %vm1166, %vm1318
        %vm1395 = vmand %vm1167, %vm1319
        %vm1396 = vmand %vm1168, %vm1320
        %vm1397 = vmand %vm1169, %vm1321
        %vm1398 = vmand %vm1170, %vm1322
        %vm1399 = vmand %vm1171, %vm1323
        %vm1400 = vmand %vm1172, %vm1324
        %vm1401 = vmand %vm1173, %vm1325
        %vm1402 = vmand %vm1174, %vm1326
        %vm1403 = vmand %vm1175, %vm1327
        %vm1404 = vmand %vm1176, %vm1328
        %vm1405 = vmand %vm1177, %vm1329
        %vm1406 = vmand %vm1178, %vm1330
        %vm1407 = vmand %vm1179, %vm1331
        %vm1408 = vmand %vm1180, %vm1332
        %vm1409 = vmand %vm1181, %vm1333
        %vm1410 = vmand %vm1182, %vm1334
        %vm1411 = vmand %vm1183, %vm1335
        %vm1412 = vmand %vm1184, %vm1336
        %vm1413 = vmand %vm1185, %vm1337
        %vm1414 = vmand %vm1186, %vm1338
        %vm1415 = vmand %vm1187, %vm1339
        %vm1416 = vmand %vm1188, %vm1340
        %vm1417 = vmand %vm1189, %vm1341
        %vm1418 = vmand %vm1190, %vm1342
        %p1419 = scmp.eq.s32.totalorder %s29, 0
        // Predicated region
        $region73: #{tpu_custom_call.1} parent=71 // pred_check
          %p1420 = pneg %p1419
        $region74: #{tpu_custom_call.1} parent=71 // pred_check_branch
          %1422 = sbr.rel (%p1420) target = $region76
        $region75: #{tpu_custom_call.1} parent=71 // pred_region
          %p1423 = scmp.eq.s32.totalorder %s30, 0
          // Predicated region
          $region77: #{tpu_custom_call.1} parent=75 // pred_check
            %p1424 = pneg %p1423
          $region78: #{tpu_custom_call.1} parent=75 // pred_check_branch
            %1426 = sbr.rel (%p1424) target = $region80
          $region79: #{tpu_custom_call.1} parent=75 // pred_region
            %1427 = vst [vmem:[#allocation2] sm:$0xff] -3.3895314e+38
          $region80: #{tpu_custom_call.1} parent=75 // pred_fallthru
            _
          %v1428 = vld [vmem:[%s2] sm:$0xf]
          %v1429 = vld [vmem:[%s2 + $0x4] sm:$0xf]
          %v1430 = vld [vmem:[%s2 + $0x8] sm:$0xf]
          %v1431 = vld [vmem:[%s2 + $0xc] sm:$0xf]
          %v1432 = vld [vmem:[%s3] sm:$0x1]
          %v1434 = vperm.slane %v1432, 0
          %v1440 = vunpack.c.l.b16 %v1428
          %v1441 = vunpack.c.l.b16 %v1429
          %v1442 = vunpack.c.l.b16 %v1430
          %v1443 = vunpack.c.l.b16 %v1431
          %v1444 = vpack.c.b16 %v1441, %v1440
          %v1445 = vpack.c.b16 %v1443, %v1442
          %vm1448 = vcmask 261120
          %v1450 = vsel %vm1448, %v540, 0
          %v1453 = vsel %vm1448, %v541, 0
          %v1456 = vsel %vm1448, %v542, 0
          %v1459 = vsel %vm1448, %v543, 0
          %v1462 = vsel %vm1448, %v544, 0
          %v1465 = vsel %vm1448, %v545, 0
          %v1468 = vsel %vm1448, %v546, 0
          %v1471 = vsel %vm1448, %v547, 0
          %v1474 = vsel %vm1448, %v548, 0
          %v1477 = vsel %vm1448, %v549, 0
          %v1480 = vsel %vm1448, %v550, 0
          %v1483 = vsel %vm1448, %v551, 0
          %v1486 = vsel %vm1448, %v552, 0
          %v1489 = vsel %vm1448, %v553, 0
          %v1492 = vsel %vm1448, %v554, 0
          %v1495 = vsel %vm1448, %v555, 0
          %v1498 = vsel %vm1448, %v556, 0
          %v1501 = vsel %vm1448, %v557, 0
          %v1504 = vsel %vm1448, %v558, 0
          %v1507 = vsel %vm1448, %v559, 0
          %v1510 = vsel %vm1448, %v560, 0
          %v1513 = vsel %vm1448, %v561, 0
          %v1516 = vsel %vm1448, %v562, 0
          %v1519 = vsel %vm1448, %v563, 0
          %v1522 = vsel %vm1448, %v564, 0
          %v1525 = vsel %vm1448, %v565, 0
          %v1528 = vsel %vm1448, %v566, 0
          %v1531 = vsel %vm1448, %v567, 0
          %v1534 = vsel %vm1448, %v568, 0
          %v1537 = vsel %vm1448, %v569, 0
          %v1540 = vsel %vm1448, %v570, 0
          %v1543 = vsel %vm1448, %v571, 0
          %v1546 = vsel %vm1448, %v572, 0
          %v1549 = vsel %vm1448, %v573, 0
          %v1552 = vsel %vm1448, %v574, 0
          %v1555 = vsel %vm1448, %v575, 0
          %v1558 = vsel %vm1448, %v576, 0
          %v1561 = vsel %vm1448, %v577, 0
          %1563 = vmatpush.bf16.msra.mxu0 0
          %1564 = vmatpush.bf16.msra.mxu0 0
          %1565 = vmatpush.bf16.msra.mxu0 0
          %1566 = vmatpush.bf16.msra.mxu0 0
          %1567 = vmatpush.bf16.msra.mxu0 0
          %1568 = vmatpush.bf16.msra.mxu0 0
          %1569 = vmatpush.bf16.msra.mxu0 %v1445
          %1570 = vmatpush.bf16.msra.mxu0 %v1444
          %1571 = vmatmul.bf16.gmra.mxu0 %v1450
          %v1572 = vpop.f32.mrf.mxu0
          %v1573 = vadd.f32 %v1434, %v1572
          %v1574 = vpop.f32.mrf.mxu0
          %v1575 = vadd.f32 %v1434, %v1574
          %1576 = vmatmul.bf16.gmra.mxu0 %v1453
          %v1577 = vpop.f32.mrf.mxu0
          %v1578 = vadd.f32 %v1434, %v1577
          %v1579 = vpop.f32.mrf.mxu0
          %v1580 = vadd.f32 %v1434, %v1579
          %1581 = vmatmul.bf16.gmra.mxu0 %v1456
          %v1582 = vpop.f32.mrf.mxu0
          %v1583 = vadd.f32 %v1434, %v1582
          %v1584 = vpop.f32.mrf.mxu0
          %v1585 = vadd.f32 %v1434, %v1584
          %1586 = vmatmul.bf16.gmra.mxu0 %v1459
          %v1587 = vpop.f32.mrf.mxu0
          %v1588 = vadd.f32 %v1434, %v1587
          %v1589 = vpop.f32.mrf.mxu0
          %v1590 = vadd.f32 %v1434, %v1589
          %1591 = vmatmul.bf16.gmra.mxu0 %v1462
          %v1592 = vpop.f32.mrf.mxu0
          %v1593 = vadd.f32 %v1434, %v1592
          %v1594 = vpop.f32.mrf.mxu0
          %v1595 = vadd.f32 %v1434, %v1594
          %1596 = vmatmul.bf16.gmra.mxu0 %v1465
          %v1597 = vpop.f32.mrf.mxu0
          %v1598 = vadd.f32 %v1434, %v1597
          %v1599 = vpop.f32.mrf.mxu0
          %v1600 = vadd.f32 %v1434, %v1599
          %1601 = vmatmul.bf16.gmra.mxu0 %v1468
          %v1602 = vpop.f32.mrf.mxu0
          %v1603 = vadd.f32 %v1434, %v1602
          %v1604 = vpop.f32.mrf.mxu0
          %v1605 = vadd.f32 %v1434, %v1604
          %1606 = vmatmul.bf16.gmra.mxu0 %v1471
          %v1607 = vpop.f32.mrf.mxu0
          %v1608 = vadd.f32 %v1434, %v1607
          %v1609 = vpop.f32.mrf.mxu0
          %v1610 = vadd.f32 %v1434, %v1609
          %1611 = vmatmul.bf16.gmra.mxu0 %v1474
          %v1612 = vpop.f32.mrf.mxu0
          %v1613 = vadd.f32 %v1434, %v1612
          %v1614 = vpop.f32.mrf.mxu0
          %v1615 = vadd.f32 %v1434, %v1614
          %1616 = vmatmul.bf16.gmra.mxu0 %v1477
          %v1617 = vpop.f32.mrf.mxu0
          %v1618 = vadd.f32 %v1434, %v1617
          %v1619 = vpop.f32.mrf.mxu0
          %v1620 = vadd.f32 %v1434, %v1619
          %1621 = vmatmul.bf16.gmra.mxu0 %v1480
          %v1622 = vpop.f32.mrf.mxu0
          %v1623 = vadd.f32 %v1434, %v1622
          %v1624 = vpop.f32.mrf.mxu0
          %v1625 = vadd.f32 %v1434, %v1624
          %1626 = vmatmul.bf16.gmra.mxu0 %v1483
          %v1627 = vpop.f32.mrf.mxu0
          %v1628 = vadd.f32 %v1434, %v1627
          %v1629 = vpop.f32.mrf.mxu0
          %v1630 = vadd.f32 %v1434, %v1629
          %1631 = vmatmul.bf16.gmra.mxu0 %v1486
          %v1632 = vpop.f32.mrf.mxu0
          %v1633 = vadd.f32 %v1434, %v1632
          %v1634 = vpop.f32.mrf.mxu0
          %v1635 = vadd.f32 %v1434, %v1634
          %1636 = vmatmul.bf16.gmra.mxu0 %v1489
          %v1637 = vpop.f32.mrf.mxu0
          %v1638 = vadd.f32 %v1434, %v1637
          %v1639 = vpop.f32.mrf.mxu0
          %v1640 = vadd.f32 %v1434, %v1639
          %1641 = vmatmul.bf16.gmra.mxu0 %v1492
          %v1642 = vpop.f32.mrf.mxu0
          %v1643 = vadd.f32 %v1434, %v1642
          %v1644 = vpop.f32.mrf.mxu0
          %v1645 = vadd.f32 %v1434, %v1644
          %1646 = vmatmul.bf16.gmra.mxu0 %v1495
          %v1647 = vpop.f32.mrf.mxu0
          %v1648 = vadd.f32 %v1434, %v1647
          %v1649 = vpop.f32.mrf.mxu0
          %v1650 = vadd.f32 %v1434, %v1649
          %1651 = vmatmul.bf16.gmra.mxu0 %v1498
          %v1652 = vpop.f32.mrf.mxu0
          %v1653 = vadd.f32 %v1434, %v1652
          %v1654 = vpop.f32.mrf.mxu0
          %v1655 = vadd.f32 %v1434, %v1654
          %1656 = vmatmul.bf16.gmra.mxu0 %v1501
          %v1657 = vpop.f32.mrf.mxu0
          %v1658 = vadd.f32 %v1434, %v1657
          %v1659 = vpop.f32.mrf.mxu0
          %v1660 = vadd.f32 %v1434, %v1659
          %1661 = vmatmul.bf16.gmra.mxu0 %v1504
          %v1662 = vpop.f32.mrf.mxu0
          %v1663 = vadd.f32 %v1434, %v1662
          %v1664 = vpop.f32.mrf.mxu0
          %v1665 = vadd.f32 %v1434, %v1664
          %1666 = vmatmul.bf16.gmra.mxu0 %v1507
          %v1667 = vpop.f32.mrf.mxu0
          %v1668 = vadd.f32 %v1434, %v1667
          %v1669 = vpop.f32.mrf.mxu0
          %v1670 = vadd.f32 %v1434, %v1669
          %1671 = vmatmul.bf16.gmra.mxu0 %v1510
          %v1672 = vpop.f32.mrf.mxu0
          %v1673 = vadd.f32 %v1434, %v1672
          %v1674 = vpop.f32.mrf.mxu0
          %v1675 = vadd.f32 %v1434, %v1674
          %1676 = vmatmul.bf16.gmra.mxu0 %v1513
          %v1677 = vpop.f32.mrf.mxu0
          %v1678 = vadd.f32 %v1434, %v1677
          %v1679 = vpop.f32.mrf.mxu0
          %v1680 = vadd.f32 %v1434, %v1679
          %1681 = vmatmul.bf16.gmra.mxu0 %v1516
          %v1682 = vpop.f32.mrf.mxu0
          %v1683 = vadd.f32 %v1434, %v1682
          %v1684 = vpop.f32.mrf.mxu0
          %v1685 = vadd.f32 %v1434, %v1684
          %1686 = vmatmul.bf16.gmra.mxu0 %v1519
          %v1687 = vpop.f32.mrf.mxu0
          %v1688 = vadd.f32 %v1434, %v1687
          %v1689 = vpop.f32.mrf.mxu0
          %v1690 = vadd.f32 %v1434, %v1689
          %1691 = vmatmul.bf16.gmra.mxu0 %v1522
          %v1692 = vpop.f32.mrf.mxu0
          %v1693 = vadd.f32 %v1434, %v1692
          %v1694 = vpop.f32.mrf.mxu0
          %v1695 = vadd.f32 %v1434, %v1694
          %1696 = vmatmul.bf16.gmra.mxu0 %v1525
          %v1697 = vpop.f32.mrf.mxu0
          %v1698 = vadd.f32 %v1434, %v1697
          %v1699 = vpop.f32.mrf.mxu0
          %v1700 = vadd.f32 %v1434, %v1699
          %1701 = vmatmul.bf16.gmra.mxu0 %v1528
          %v1702 = vpop.f32.mrf.mxu0
          %v1703 = vadd.f32 %v1434, %v1702
          %v1704 = vpop.f32.mrf.mxu0
          %v1705 = vadd.f32 %v1434, %v1704
          %1706 = vmatmul.bf16.gmra.mxu0 %v1531
          %v1707 = vpop.f32.mrf.mxu0
          %v1708 = vadd.f32 %v1434, %v1707
          %v1709 = vpop.f32.mrf.mxu0
          %v1710 = vadd.f32 %v1434, %v1709
          %1711 = vmatmul.bf16.gmra.mxu0 %v1534
          %v1712 = vpop.f32.mrf.mxu0
          %v1713 = vadd.f32 %v1434, %v1712
          %v1714 = vpop.f32.mrf.mxu0
          %v1715 = vadd.f32 %v1434, %v1714
          %1716 = vmatmul.bf16.gmra.mxu0 %v1537
          %v1717 = vpop.f32.mrf.mxu0
          %v1718 = vadd.f32 %v1434, %v1717
          %v1719 = vpop.f32.mrf.mxu0
          %v1720 = vadd.f32 %v1434, %v1719
          %1721 = vmatmul.bf16.gmra.mxu0 %v1540
          %v1722 = vpop.f32.mrf.mxu0
          %v1723 = vadd.f32 %v1434, %v1722
          %v1724 = vpop.f32.mrf.mxu0
          %v1725 = vadd.f32 %v1434, %v1724
          %1726 = vmatmul.bf16.gmra.mxu0 %v1543
          %v1727 = vpop.f32.mrf.mxu0
          %v1728 = vadd.f32 %v1434, %v1727
          %v1729 = vpop.f32.mrf.mxu0
          %v1730 = vadd.f32 %v1434, %v1729
          %1731 = vmatmul.bf16.gmra.mxu0 %v1546
          %v1732 = vpop.f32.mrf.mxu0
          %v1733 = vadd.f32 %v1434, %v1732
          %v1734 = vpop.f32.mrf.mxu0
          %v1735 = vadd.f32 %v1434, %v1734
          %1736 = vmatmul.bf16.gmra.mxu0 %v1549
          %v1737 = vpop.f32.mrf.mxu0
          %v1738 = vadd.f32 %v1434, %v1737
          %v1739 = vpop.f32.mrf.mxu0
          %v1740 = vadd.f32 %v1434, %v1739
          %1741 = vmatmul.bf16.gmra.mxu0 %v1552
          %v1742 = vpop.f32.mrf.mxu0
          %v1743 = vadd.f32 %v1434, %v1742
          %v1744 = vpop.f32.mrf.mxu0
          %v1745 = vadd.f32 %v1434, %v1744
          %1746 = vmatmul.bf16.gmra.mxu0 %v1555
          %v1747 = vpop.f32.mrf.mxu0
          %v1748 = vadd.f32 %v1434, %v1747
          %v1749 = vpop.f32.mrf.mxu0
          %v1750 = vadd.f32 %v1434, %v1749
          %1751 = vmatmul.bf16.gmra.mxu0 %v1558
          %v1752 = vpop.f32.mrf.mxu0
          %v1753 = vadd.f32 %v1434, %v1752
          %v1754 = vpop.f32.mrf.mxu0
          %v1755 = vadd.f32 %v1434, %v1754
          %1756 = vmatmul.bf16.gmra.mxu0 %v1561
          %v1757 = vpop.f32.mrf.mxu0
          %v1758 = vadd.f32 %v1434, %v1757
          %v1759 = vpop.f32.mrf.mxu0
          %v1760 = vadd.f32 %v1434, %v1759
          %1761 = vdwg.mxu0
          %v1762 = vmax.f32 %v1573, 0.0
          %v1763 = vmax.f32 %v1575, 0.0
          %v1764 = vmax.f32 %v1578, 0.0
          %v1765 = vmax.f32 %v1580, 0.0
          %v1766 = vmax.f32 %v1583, 0.0
          %v1767 = vmax.f32 %v1585, 0.0
          %v1768 = vmax.f32 %v1588, 0.0
          %v1769 = vmax.f32 %v1590, 0.0
          %v1770 = vmax.f32 %v1593, 0.0
          %v1771 = vmax.f32 %v1595, 0.0
          %v1772 = vmax.f32 %v1598, 0.0
          %v1773 = vmax.f32 %v1600, 0.0
          %v1774 = vmax.f32 %v1603, 0.0
          %v1775 = vmax.f32 %v1605, 0.0
          %v1776 = vmax.f32 %v1608, 0.0
          %v1777 = vmax.f32 %v1610, 0.0
          %v1778 = vmax.f32 %v1613, 0.0
          %v1779 = vmax.f32 %v1615, 0.0
          %v1780 = vmax.f32 %v1618, 0.0
          %v1781 = vmax.f32 %v1620, 0.0
          %v1782 = vmax.f32 %v1623, 0.0
          %v1783 = vmax.f32 %v1625, 0.0
          %v1784 = vmax.f32 %v1628, 0.0
          %v1785 = vmax.f32 %v1630, 0.0
          %v1786 = vmax.f32 %v1633, 0.0
          %v1787 = vmax.f32 %v1635, 0.0
          %v1788 = vmax.f32 %v1638, 0.0
          %v1789 = vmax.f32 %v1640, 0.0
          %v1790 = vmax.f32 %v1643, 0.0
          %v1791 = vmax.f32 %v1645, 0.0
          %v1792 = vmax.f32 %v1648, 0.0
          %v1793 = vmax.f32 %v1650, 0.0
          %v1794 = vmax.f32 %v1653, 0.0
          %v1795 = vmax.f32 %v1655, 0.0
          %v1796 = vmax.f32 %v1658, 0.0
          %v1797 = vmax.f32 %v1660, 0.0
          %v1798 = vmax.f32 %v1663, 0.0
          %v1799 = vmax.f32 %v1665, 0.0
          %v1800 = vmax.f32 %v1668, 0.0
          %v1801 = vmax.f32 %v1670, 0.0
          %v1802 = vmax.f32 %v1673, 0.0
          %v1803 = vmax.f32 %v1675, 0.0
          %v1804 = vmax.f32 %v1678, 0.0
          %v1805 = vmax.f32 %v1680, 0.0
          %v1806 = vmax.f32 %v1683, 0.0
          %v1807 = vmax.f32 %v1685, 0.0
          %v1808 = vmax.f32 %v1688, 0.0
          %v1809 = vmax.f32 %v1690, 0.0
          %v1810 = vmax.f32 %v1693, 0.0
          %v1811 = vmax.f32 %v1695, 0.0
          %v1812 = vmax.f32 %v1698, 0.0
          %v1813 = vmax.f32 %v1700, 0.0
          %v1814 = vmax.f32 %v1703, 0.0
          %v1815 = vmax.f32 %v1705, 0.0
          %v1816 = vmax.f32 %v1708, 0.0
          %v1817 = vmax.f32 %v1710, 0.0
          %v1818 = vmax.f32 %v1713, 0.0
          %v1819 = vmax.f32 %v1715, 0.0
          %v1820 = vmax.f32 %v1718, 0.0
          %v1821 = vmax.f32 %v1720, 0.0
          %v1822 = vmax.f32 %v1723, 0.0
          %v1823 = vmax.f32 %v1725, 0.0
          %v1824 = vmax.f32 %v1728, 0.0
          %v1825 = vmax.f32 %v1730, 0.0
          %v1826 = vmax.f32 %v1733, 0.0
          %v1827 = vmax.f32 %v1735, 0.0
          %v1828 = vmax.f32 %v1738, 0.0
          %v1829 = vmax.f32 %v1740, 0.0
          %v1830 = vmax.f32 %v1743, 0.0
          %v1831 = vmax.f32 %v1745, 0.0
          %v1832 = vmax.f32 %v1748, 0.0
          %v1833 = vmax.f32 %v1750, 0.0
          %v1834 = vmax.f32 %v1753, 0.0
          %v1835 = vmax.f32 %v1755, 0.0
          %v1836 = vmax.f32 %v1758, 0.0
          %v1837 = vmax.f32 %v1760, 0.0
          %v1838 = vpack.c.bf16 %v1763, %v1762
          %v1839 = vpack.c.bf16 %v1765, %v1764
          %v1840 = vpack.c.bf16 %v1767, %v1766
          %v1841 = vpack.c.bf16 %v1769, %v1768
          %v1842 = vpack.c.bf16 %v1771, %v1770
          %v1843 = vpack.c.bf16 %v1773, %v1772
          %v1844 = vpack.c.bf16 %v1775, %v1774
          %v1845 = vpack.c.bf16 %v1777, %v1776
          %v1846 = vpack.c.bf16 %v1779, %v1778
          %v1847 = vpack.c.bf16 %v1781, %v1780
          %v1848 = vpack.c.bf16 %v1783, %v1782
          %v1849 = vpack.c.bf16 %v1785, %v1784
          %v1850 = vpack.c.bf16 %v1787, %v1786
          %v1851 = vpack.c.bf16 %v1789, %v1788
          %v1852 = vpack.c.bf16 %v1791, %v1790
          %v1853 = vpack.c.bf16 %v1793, %v1792
          %v1854 = vpack.c.bf16 %v1795, %v1794
          %v1855 = vpack.c.bf16 %v1797, %v1796
          %v1856 = vpack.c.bf16 %v1799, %v1798
          %v1857 = vpack.c.bf16 %v1801, %v1800
          %v1858 = vpack.c.bf16 %v1803, %v1802
          %v1859 = vpack.c.bf16 %v1805, %v1804
          %v1860 = vpack.c.bf16 %v1807, %v1806
          %v1861 = vpack.c.bf16 %v1809, %v1808
          %v1862 = vpack.c.bf16 %v1811, %v1810
          %v1863 = vpack.c.bf16 %v1813, %v1812
          %v1864 = vpack.c.bf16 %v1815, %v1814
          %v1865 = vpack.c.bf16 %v1817, %v1816
          %v1866 = vpack.c.bf16 %v1819, %v1818
          %v1867 = vpack.c.bf16 %v1821, %v1820
          %v1868 = vpack.c.bf16 %v1823, %v1822
          %v1869 = vpack.c.bf16 %v1825, %v1824
          %v1870 = vpack.c.bf16 %v1827, %v1826
          %v1871 = vpack.c.bf16 %v1829, %v1828
          %v1872 = vpack.c.bf16 %v1831, %v1830
          %v1873 = vpack.c.bf16 %v1833, %v1832
          %v1874 = vpack.c.bf16 %v1835, %v1834
          %v1875 = vpack.c.bf16 %v1837, %v1836
          %v1876 = vld [vmem:[%s4] sm:$0xf]
          %v1877 = vld [vmem:[%s4 + $0x4] sm:$0xf]
          %v1878 = vld [vmem:[%s4 + $0x8] sm:$0xf]
          %v1879 = vld [vmem:[%s4 + $0xc] sm:$0xf]
          %v1880 = vld [vmem:[%s4 + $0x10] sm:$0xf]
          %v1881 = vld [vmem:[%s4 + $0x14] sm:$0xf]
          %v1882 = vld [vmem:[%s4 + $0x18] sm:$0xf]
          %v1883 = vld [vmem:[%s4 + $0x1c] sm:$0xf]
          %v1884 = vld [vmem:[%s5] sm:$0x1]
          %v1886 = vperm.slane %v1884, 0
          %v1896 = vunpack.c.l.b16 %v1876
          %v1897 = vunpack.c.l.b16 %v1877
          %v1898 = vunpack.c.l.b16 %v1878
          %v1899 = vunpack.c.l.b16 %v1879
          %v1900 = vunpack.c.l.b16 %v1880
          %v1901 = vunpack.c.l.b16 %v1881
          %v1902 = vunpack.c.l.b16 %v1882
          %v1903 = vunpack.c.l.b16 %v1883
          %v1904 = vpack.c.b16 %v1897, %v1896
          %v1905 = vpack.c.b16 %v1899, %v1898
          %v1906 = vpack.c.b16 %v1901, %v1900
          %v1907 = vpack.c.b16 %v1903, %v1902
          %vm1912 = vcmask 523264
          %v1914 = vsel %vm1912, %v1838, 0
          %v1917 = vsel %vm1912, %v1839, 0
          %v1920 = vsel %vm1912, %v1840, 0
          %v1923 = vsel %vm1912, %v1841, 0
          %v1926 = vsel %vm1912, %v1842, 0
          %v1929 = vsel %vm1912, %v1843, 0
          %v1932 = vsel %vm1912, %v1844, 0
          %v1935 = vsel %vm1912, %v1845, 0
          %v1938 = vsel %vm1912, %v1846, 0
          %v1941 = vsel %vm1912, %v1847, 0
          %v1944 = vsel %vm1912, %v1848, 0
          %v1947 = vsel %vm1912, %v1849, 0
          %v1950 = vsel %vm1912, %v1850, 0
          %v1953 = vsel %vm1912, %v1851, 0
          %v1956 = vsel %vm1912, %v1852, 0
          %v1959 = vsel %vm1912, %v1853, 0
          %v1962 = vsel %vm1912, %v1854, 0
          %v1965 = vsel %vm1912, %v1855, 0
          %v1968 = vsel %vm1912, %v1856, 0
          %v1971 = vsel %vm1912, %v1857, 0
          %v1974 = vsel %vm1912, %v1858, 0
          %v1977 = vsel %vm1912, %v1859, 0
          %v1980 = vsel %vm1912, %v1860, 0
          %v1983 = vsel %vm1912, %v1861, 0
          %v1986 = vsel %vm1912, %v1862, 0
          %v1989 = vsel %vm1912, %v1863, 0
          %v1992 = vsel %vm1912, %v1864, 0
          %v1995 = vsel %vm1912, %v1865, 0
          %v1998 = vsel %vm1912, %v1866, 0
          %v2001 = vsel %vm1912, %v1867, 0
          %v2004 = vsel %vm1912, %v1868, 0
          %v2007 = vsel %vm1912, %v1869, 0
          %v2010 = vsel %vm1912, %v1870, 0
          %v2013 = vsel %vm1912, %v1871, 0
          %v2016 = vsel %vm1912, %v1872, 0
          %v2019 = vsel %vm1912, %v1873, 0
          %v2022 = vsel %vm1912, %v1874, 0
          %v2025 = vsel %vm1912, %v1875, 0
          %2027 = vmatpush.bf16.msra.mxu0 0
          %2028 = vmatpush.bf16.msra.mxu0 0
          %2029 = vmatpush.bf16.msra.mxu0 0
          %2030 = vmatpush.bf16.msra.mxu0 0
          %2031 = vmatpush.bf16.msra.mxu0 %v1907
          %2032 = vmatpush.bf16.msra.mxu0 %v1906
          %2033 = vmatpush.bf16.msra.mxu0 %v1905
          %2034 = vmatpush.bf16.msra.mxu0 %v1904
          %2035 = vmatmul.bf16.gmra.mxu0 %v1914
          %v2036 = vpop.f32.mrf.mxu0
          %v2037 = vadd.f32 %v1886, %v2036
          %v2038 = vpop.f32.mrf.mxu0
          %v2039 = vadd.f32 %v1886, %v2038
          %2040 = vmatmul.bf16.gmra.mxu0 %v1917
          %v2041 = vpop.f32.mrf.mxu0
          %v2042 = vadd.f32 %v1886, %v2041
          %v2043 = vpop.f32.mrf.mxu0
          %v2044 = vadd.f32 %v1886, %v2043
          %2045 = vmatmul.bf16.gmra.mxu0 %v1920
          %v2046 = vpop.f32.mrf.mxu0
          %v2047 = vadd.f32 %v1886, %v2046
          %v2048 = vpop.f32.mrf.mxu0
          %v2049 = vadd.f32 %v1886, %v2048
          %2050 = vmatmul.bf16.gmra.mxu0 %v1923
          %v2051 = vpop.f32.mrf.mxu0
          %v2052 = vadd.f32 %v1886, %v2051
          %v2053 = vpop.f32.mrf.mxu0
          %v2054 = vadd.f32 %v1886, %v2053
          %2055 = vmatmul.bf16.gmra.mxu0 %v1926
          %v2056 = vpop.f32.mrf.mxu0
          %v2057 = vadd.f32 %v1886, %v2056
          %v2058 = vpop.f32.mrf.mxu0
          %v2059 = vadd.f32 %v1886, %v2058
          %2060 = vmatmul.bf16.gmra.mxu0 %v1929
          %v2061 = vpop.f32.mrf.mxu0
          %v2062 = vadd.f32 %v1886, %v2061
          %v2063 = vpop.f32.mrf.mxu0
          %v2064 = vadd.f32 %v1886, %v2063
          %2065 = vmatmul.bf16.gmra.mxu0 %v1932
          %v2066 = vpop.f32.mrf.mxu0
          %v2067 = vadd.f32 %v1886, %v2066
          %v2068 = vpop.f32.mrf.mxu0
          %v2069 = vadd.f32 %v1886, %v2068
          %2070 = vmatmul.bf16.gmra.mxu0 %v1935
          %v2071 = vpop.f32.mrf.mxu0
          %v2072 = vadd.f32 %v1886, %v2071
          %v2073 = vpop.f32.mrf.mxu0
          %v2074 = vadd.f32 %v1886, %v2073
          %2075 = vmatmul.bf16.gmra.mxu0 %v1938
          %v2076 = vpop.f32.mrf.mxu0
          %v2077 = vadd.f32 %v1886, %v2076
          %v2078 = vpop.f32.mrf.mxu0
          %v2079 = vadd.f32 %v1886, %v2078
          %2080 = vmatmul.bf16.gmra.mxu0 %v1941
          %v2081 = vpop.f32.mrf.mxu0
          %v2082 = vadd.f32 %v1886, %v2081
          %v2083 = vpop.f32.mrf.mxu0
          %v2084 = vadd.f32 %v1886, %v2083
          %2085 = vmatmul.bf16.gmra.mxu0 %v1944
          %v2086 = vpop.f32.mrf.mxu0
          %v2087 = vadd.f32 %v1886, %v2086
          %v2088 = vpop.f32.mrf.mxu0
          %v2089 = vadd.f32 %v1886, %v2088
          %2090 = vmatmul.bf16.gmra.mxu0 %v1947
          %v2091 = vpop.f32.mrf.mxu0
          %v2092 = vadd.f32 %v1886, %v2091
          %v2093 = vpop.f32.mrf.mxu0
          %v2094 = vadd.f32 %v1886, %v2093
          %2095 = vmatmul.bf16.gmra.mxu0 %v1950
          %v2096 = vpop.f32.mrf.mxu0
          %v2097 = vadd.f32 %v1886, %v2096
          %v2098 = vpop.f32.mrf.mxu0
          %v2099 = vadd.f32 %v1886, %v2098
          %2100 = vmatmul.bf16.gmra.mxu0 %v1953
          %v2101 = vpop.f32.mrf.mxu0
          %v2102 = vadd.f32 %v1886, %v2101
          %v2103 = vpop.f32.mrf.mxu0
          %v2104 = vadd.f32 %v1886, %v2103
          %2105 = vmatmul.bf16.gmra.mxu0 %v1956
          %v2106 = vpop.f32.mrf.mxu0
          %v2107 = vadd.f32 %v1886, %v2106
          %v2108 = vpop.f32.mrf.mxu0
          %v2109 = vadd.f32 %v1886, %v2108
          %2110 = vmatmul.bf16.gmra.mxu0 %v1959
          %v2111 = vpop.f32.mrf.mxu0
          %v2112 = vadd.f32 %v1886, %v2111
          %v2113 = vpop.f32.mrf.mxu0
          %v2114 = vadd.f32 %v1886, %v2113
          %2115 = vmatmul.bf16.gmra.mxu0 %v1962
          %v2116 = vpop.f32.mrf.mxu0
          %v2117 = vadd.f32 %v1886, %v2116
          %v2118 = vpop.f32.mrf.mxu0
          %v2119 = vadd.f32 %v1886, %v2118
          %2120 = vmatmul.bf16.gmra.mxu0 %v1965
          %v2121 = vpop.f32.mrf.mxu0
          %v2122 = vadd.f32 %v1886, %v2121
          %v2123 = vpop.f32.mrf.mxu0
          %v2124 = vadd.f32 %v1886, %v2123
          %2125 = vmatmul.bf16.gmra.mxu0 %v1968
          %v2126 = vpop.f32.mrf.mxu0
          %v2127 = vadd.f32 %v1886, %v2126
          %v2128 = vpop.f32.mrf.mxu0
          %v2129 = vadd.f32 %v1886, %v2128
          %2130 = vmatmul.bf16.gmra.mxu0 %v1971
          %v2131 = vpop.f32.mrf.mxu0
          %v2132 = vadd.f32 %v1886, %v2131
          %v2133 = vpop.f32.mrf.mxu0
          %v2134 = vadd.f32 %v1886, %v2133
          %2135 = vmatmul.bf16.gmra.mxu0 %v1974
          %v2136 = vpop.f32.mrf.mxu0
          %v2137 = vadd.f32 %v1886, %v2136
          %v2138 = vpop.f32.mrf.mxu0
          %v2139 = vadd.f32 %v1886, %v2138
          %2140 = vmatmul.bf16.gmra.mxu0 %v1977
          %v2141 = vpop.f32.mrf.mxu0
          %v2142 = vadd.f32 %v1886, %v2141
          %v2143 = vpop.f32.mrf.mxu0
          %v2144 = vadd.f32 %v1886, %v2143
          %2145 = vmatmul.bf16.gmra.mxu0 %v1980
          %v2146 = vpop.f32.mrf.mxu0
          %v2147 = vadd.f32 %v1886, %v2146
          %v2148 = vpop.f32.mrf.mxu0
          %v2149 = vadd.f32 %v1886, %v2148
          %2150 = vmatmul.bf16.gmra.mxu0 %v1983
          %v2151 = vpop.f32.mrf.mxu0
          %v2152 = vadd.f32 %v1886, %v2151
          %v2153 = vpop.f32.mrf.mxu0
          %v2154 = vadd.f32 %v1886, %v2153
          %2155 = vmatmul.bf16.gmra.mxu0 %v1986
          %v2156 = vpop.f32.mrf.mxu0
          %v2157 = vadd.f32 %v1886, %v2156
          %v2158 = vpop.f32.mrf.mxu0
          %v2159 = vadd.f32 %v1886, %v2158
          %2160 = vmatmul.bf16.gmra.mxu0 %v1989
          %v2161 = vpop.f32.mrf.mxu0
          %v2162 = vadd.f32 %v1886, %v2161
          %v2163 = vpop.f32.mrf.mxu0
          %v2164 = vadd.f32 %v1886, %v2163
          %2165 = vmatmul.bf16.gmra.mxu0 %v1992
          %v2166 = vpop.f32.mrf.mxu0
          %v2167 = vadd.f32 %v1886, %v2166
          %v2168 = vpop.f32.mrf.mxu0
          %v2169 = vadd.f32 %v1886, %v2168
          %2170 = vmatmul.bf16.gmra.mxu0 %v1995
          %v2171 = vpop.f32.mrf.mxu0
          %v2172 = vadd.f32 %v1886, %v2171
          %v2173 = vpop.f32.mrf.mxu0
          %v2174 = vadd.f32 %v1886, %v2173
          %2175 = vmatmul.bf16.gmra.mxu0 %v1998
          %v2176 = vpop.f32.mrf.mxu0
          %v2177 = vadd.f32 %v1886, %v2176
          %v2178 = vpop.f32.mrf.mxu0
          %v2179 = vadd.f32 %v1886, %v2178
          %2180 = vmatmul.bf16.gmra.mxu0 %v2001
          %v2181 = vpop.f32.mrf.mxu0
          %v2182 = vadd.f32 %v1886, %v2181
          %v2183 = vpop.f32.mrf.mxu0
          %v2184 = vadd.f32 %v1886, %v2183
          %2185 = vmatmul.bf16.gmra.mxu0 %v2004
          %v2186 = vpop.f32.mrf.mxu0
          %v2187 = vadd.f32 %v1886, %v2186
          %v2188 = vpop.f32.mrf.mxu0
          %v2189 = vadd.f32 %v1886, %v2188
          %2190 = vmatmul.bf16.gmra.mxu0 %v2007
          %v2191 = vpop.f32.mrf.mxu0
          %v2192 = vadd.f32 %v1886, %v2191
          %v2193 = vpop.f32.mrf.mxu0
          %v2194 = vadd.f32 %v1886, %v2193
          %2195 = vmatmul.bf16.gmra.mxu0 %v2010
          %v2196 = vpop.f32.mrf.mxu0
          %v2197 = vadd.f32 %v1886, %v2196
          %v2198 = vpop.f32.mrf.mxu0
          %v2199 = vadd.f32 %v1886, %v2198
          %2200 = vmatmul.bf16.gmra.mxu0 %v2013
          %v2201 = vpop.f32.mrf.mxu0
          %v2202 = vadd.f32 %v1886, %v2201
          %v2203 = vpop.f32.mrf.mxu0
          %v2204 = vadd.f32 %v1886, %v2203
          %2205 = vmatmul.bf16.gmra.mxu0 %v2016
          %v2206 = vpop.f32.mrf.mxu0
          %v2207 = vadd.f32 %v1886, %v2206
          %v2208 = vpop.f32.mrf.mxu0
          %v2209 = vadd.f32 %v1886, %v2208
          %2210 = vmatmul.bf16.gmra.mxu0 %v2019
          %v2211 = vpop.f32.mrf.mxu0
          %v2212 = vadd.f32 %v1886, %v2211
          %v2213 = vpop.f32.mrf.mxu0
          %v2214 = vadd.f32 %v1886, %v2213
          %2215 = vmatmul.bf16.gmra.mxu0 %v2022
          %v2216 = vpop.f32.mrf.mxu0
          %v2217 = vadd.f32 %v1886, %v2216
          %v2218 = vpop.f32.mrf.mxu0
          %v2219 = vadd.f32 %v1886, %v2218
          %2220 = vmatmul.bf16.gmra.mxu0 %v2025
          %v2221 = vpop.f32.mrf.mxu0
          %v2222 = vadd.f32 %v1886, %v2221
          %v2223 = vpop.f32.mrf.mxu0
          %v2224 = vadd.f32 %v1886, %v2223
          %2225 = vdwg.mxu0
          %v2226 = vmax.f32 %v2037, 0.0
          %v2227 = vmax.f32 %v2039, 0.0
          %v2228 = vmax.f32 %v2042, 0.0
          %v2229 = vmax.f32 %v2044, 0.0
          %v2230 = vmax.f32 %v2047, 0.0
          %v2231 = vmax.f32 %v2049, 0.0
          %v2232 = vmax.f32 %v2052, 0.0
          %v2233 = vmax.f32 %v2054, 0.0
          %v2234 = vmax.f32 %v2057, 0.0
          %v2235 = vmax.f32 %v2059, 0.0
          %v2236 = vmax.f32 %v2062, 0.0
          %v2237 = vmax.f32 %v2064, 0.0
          %v2238 = vmax.f32 %v2067, 0.0
          %v2239 = vmax.f32 %v2069, 0.0
          %v2240 = vmax.f32 %v2072, 0.0
          %v2241 = vmax.f32 %v2074, 0.0
          %v2242 = vmax.f32 %v2077, 0.0
          %v2243 = vmax.f32 %v2079, 0.0
          %v2244 = vmax.f32 %v2082, 0.0
          %v2245 = vmax.f32 %v2084, 0.0
          %v2246 = vmax.f32 %v2087, 0.0
          %v2247 = vmax.f32 %v2089, 0.0
          %v2248 = vmax.f32 %v2092, 0.0
          %v2249 = vmax.f32 %v2094, 0.0
          %v2250 = vmax.f32 %v2097, 0.0
          %v2251 = vmax.f32 %v2099, 0.0
          %v2252 = vmax.f32 %v2102, 0.0
          %v2253 = vmax.f32 %v2104, 0.0
          %v2254 = vmax.f32 %v2107, 0.0
          %v2255 = vmax.f32 %v2109, 0.0
          %v2256 = vmax.f32 %v2112, 0.0
          %v2257 = vmax.f32 %v2114, 0.0
          %v2258 = vmax.f32 %v2117, 0.0
          %v2259 = vmax.f32 %v2119, 0.0
          %v2260 = vmax.f32 %v2122, 0.0
          %v2261 = vmax.f32 %v2124, 0.0
          %v2262 = vmax.f32 %v2127, 0.0
          %v2263 = vmax.f32 %v2129, 0.0
          %v2264 = vmax.f32 %v2132, 0.0
          %v2265 = vmax.f32 %v2134, 0.0
          %v2266 = vmax.f32 %v2137, 0.0
          %v2267 = vmax.f32 %v2139, 0.0
          %v2268 = vmax.f32 %v2142, 0.0
          %v2269 = vmax.f32 %v2144, 0.0
          %v2270 = vmax.f32 %v2147, 0.0
          %v2271 = vmax.f32 %v2149, 0.0
          %v2272 = vmax.f32 %v2152, 0.0
          %v2273 = vmax.f32 %v2154, 0.0
          %v2274 = vmax.f32 %v2157, 0.0
          %v2275 = vmax.f32 %v2159, 0.0
          %v2276 = vmax.f32 %v2162, 0.0
          %v2277 = vmax.f32 %v2164, 0.0
          %v2278 = vmax.f32 %v2167, 0.0
          %v2279 = vmax.f32 %v2169, 0.0
          %v2280 = vmax.f32 %v2172, 0.0
          %v2281 = vmax.f32 %v2174, 0.0
          %v2282 = vmax.f32 %v2177, 0.0
          %v2283 = vmax.f32 %v2179, 0.0
          %v2284 = vmax.f32 %v2182, 0.0
          %v2285 = vmax.f32 %v2184, 0.0
          %v2286 = vmax.f32 %v2187, 0.0
          %v2287 = vmax.f32 %v2189, 0.0
          %v2288 = vmax.f32 %v2192, 0.0
          %v2289 = vmax.f32 %v2194, 0.0
          %v2290 = vmax.f32 %v2197, 0.0
          %v2291 = vmax.f32 %v2199, 0.0
          %v2292 = vmax.f32 %v2202, 0.0
          %v2293 = vmax.f32 %v2204, 0.0
          %v2294 = vmax.f32 %v2207, 0.0
          %v2295 = vmax.f32 %v2209, 0.0
          %v2296 = vmax.f32 %v2212, 0.0
          %v2297 = vmax.f32 %v2214, 0.0
          %v2298 = vmax.f32 %v2217, 0.0
          %v2299 = vmax.f32 %v2219, 0.0
          %v2300 = vmax.f32 %v2222, 0.0
          %v2301 = vmax.f32 %v2224, 0.0
          %v2302 = vpack.c.bf16 %v2227, %v2226
          %v2303 = vpack.c.bf16 %v2229, %v2228
          %v2304 = vpack.c.bf16 %v2231, %v2230
          %v2305 = vpack.c.bf16 %v2233, %v2232
          %v2306 = vpack.c.bf16 %v2235, %v2234
          %v2307 = vpack.c.bf16 %v2237, %v2236
          %v2308 = vpack.c.bf16 %v2239, %v2238
          %v2309 = vpack.c.bf16 %v2241, %v2240
          %v2310 = vpack.c.bf16 %v2243, %v2242
          %v2311 = vpack.c.bf16 %v2245, %v2244
          %v2312 = vpack.c.bf16 %v2247, %v2246
          %v2313 = vpack.c.bf16 %v2249, %v2248
          %v2314 = vpack.c.bf16 %v2251, %v2250
          %v2315 = vpack.c.bf16 %v2253, %v2252
          %v2316 = vpack.c.bf16 %v2255, %v2254
          %v2317 = vpack.c.bf16 %v2257, %v2256
          %v2318 = vpack.c.bf16 %v2259, %v2258
          %v2319 = vpack.c.bf16 %v2261, %v2260
          %v2320 = vpack.c.bf16 %v2263, %v2262
          %v2321 = vpack.c.bf16 %v2265, %v2264
          %v2322 = vpack.c.bf16 %v2267, %v2266
          %v2323 = vpack.c.bf16 %v2269, %v2268
          %v2324 = vpack.c.bf16 %v2271, %v2270
          %v2325 = vpack.c.bf16 %v2273, %v2272
          %v2326 = vpack.c.bf16 %v2275, %v2274
          %v2327 = vpack.c.bf16 %v2277, %v2276
          %v2328 = vpack.c.bf16 %v2279, %v2278
          %v2329 = vpack.c.bf16 %v2281, %v2280
          %v2330 = vpack.c.bf16 %v2283, %v2282
          %v2331 = vpack.c.bf16 %v2285, %v2284
          %v2332 = vpack.c.bf16 %v2287, %v2286
          %v2333 = vpack.c.bf16 %v2289, %v2288
          %v2334 = vpack.c.bf16 %v2291, %v2290
          %v2335 = vpack.c.bf16 %v2293, %v2292
          %v2336 = vpack.c.bf16 %v2295, %v2294
          %v2337 = vpack.c.bf16 %v2297, %v2296
          %v2338 = vpack.c.bf16 %v2299, %v2298
          %v2339 = vpack.c.bf16 %v2301, %v2300
          %v2340 = vld [vmem:[%s6] sm:$0xf]
          %v2341 = vld [vmem:[%s6 + $0x4] sm:$0xf]
          %v2342 = vld [vmem:[%s6 + $0x8] sm:$0xf]
          %v2343 = vld [vmem:[%s6 + $0xc] sm:$0xf]
          %v2344 = vld [vmem:[%s6 + $0x10] sm:$0xf]
          %v2345 = vld [vmem:[%s6 + $0x14] sm:$0xf]
          %v2346 = vld [vmem:[%s6 + $0x18] sm:$0xf]
          %v2347 = vld [vmem:[%s6 + $0x1c] sm:$0xf]
          %v2348 = vld [vmem:[%s6 + $0x20] sm:$0xf]
          %v2349 = vld [vmem:[%s6 + $0x24] sm:$0xf]
          %v2350 = vld [vmem:[%s6 + $0x28] sm:$0xf]
          %v2351 = vld [vmem:[%s6 + $0x2c] sm:$0xf]
          %v2352 = vld [vmem:[%s6 + $0x30] sm:$0xf]
          %v2353 = vld [vmem:[%s6 + $0x34] sm:$0xf]
          %v2354 = vld [vmem:[%s6 + $0x38] sm:$0xf]
          %v2355 = vld [vmem:[%s6 + $0x3c] sm:$0xf]
          %v2356 = vld [vmem:[%s7] sm:$0x1]
          %v2358 = vperm.slane %v2356, 0
          %v2376 = vunpack.c.l.b16 %v2340
          %v2377 = vunpack.c.l.b16 %v2341
          %v2378 = vunpack.c.l.b16 %v2342
          %v2379 = vunpack.c.l.b16 %v2343
          %v2380 = vunpack.c.l.b16 %v2344
          %v2381 = vunpack.c.l.b16 %v2345
          %v2382 = vunpack.c.l.b16 %v2346
          %v2383 = vunpack.c.l.b16 %v2347
          %v2384 = vunpack.c.l.b16 %v2348
          %v2385 = vunpack.c.l.b16 %v2349
          %v2386 = vunpack.c.l.b16 %v2350
          %v2387 = vunpack.c.l.b16 %v2351
          %v2388 = vunpack.c.l.b16 %v2352
          %v2389 = vunpack.c.l.b16 %v2353
          %v2390 = vunpack.c.l.b16 %v2354
          %v2391 = vunpack.c.l.b16 %v2355
          %v2392 = vpack.c.b16 %v2377, %v2376
          %v2393 = vpack.c.b16 %v2379, %v2378
          %v2394 = vpack.c.b16 %v2381, %v2380
          %v2395 = vpack.c.b16 %v2383, %v2382
          %v2396 = vpack.c.b16 %v2385, %v2384
          %v2397 = vpack.c.b16 %v2387, %v2386
          %v2398 = vpack.c.b16 %v2389, %v2388
          %v2399 = vpack.c.b16 %v2391, %v2390
          %2408 = vmatpush.bf16.msra.mxu0 %v2399
          %2409 = vmatpush.bf16.msra.mxu0 %v2398
          %2410 = vmatpush.bf16.msra.mxu0 %v2397
          %2411 = vmatpush.bf16.msra.mxu0 %v2396
          %2412 = vmatpush.bf16.msra.mxu0 %v2395
          %2413 = vmatpush.bf16.msra.mxu0 %v2394
          %2414 = vmatpush.bf16.msra.mxu0 %v2393
          %2415 = vmatpush.bf16.msra.mxu0 %v2392
          %2416 = vmatmul.bf16.gmra.mxu0 %v2302
          %v2417 = vpop.f32.mrf.mxu0
          %v2418 = vadd.f32 %v2358, %v2417
          %v2419 = vpop.f32.mrf.mxu0
          %v2420 = vadd.f32 %v2358, %v2419
          %2421 = vmatmul.bf16.gmra.mxu0 %v2303
          %v2422 = vpop.f32.mrf.mxu0
          %v2423 = vadd.f32 %v2358, %v2422
          %v2424 = vpop.f32.mrf.mxu0
          %v2425 = vadd.f32 %v2358, %v2424
          %2426 = vmatmul.bf16.gmra.mxu0 %v2304
          %v2427 = vpop.f32.mrf.mxu0
          %v2428 = vadd.f32 %v2358, %v2427
          %v2429 = vpop.f32.mrf.mxu0
          %v2430 = vadd.f32 %v2358, %v2429
          %2431 = vmatmul.bf16.gmra.mxu0 %v2305
          %v2432 = vpop.f32.mrf.mxu0
          %v2433 = vadd.f32 %v2358, %v2432
          %v2434 = vpop.f32.mrf.mxu0
          %v2435 = vadd.f32 %v2358, %v2434
          %2436 = vmatmul.bf16.gmra.mxu0 %v2306
          %v2437 = vpop.f32.mrf.mxu0
          %v2438 = vadd.f32 %v2358, %v2437
          %v2439 = vpop.f32.mrf.mxu0
          %v2440 = vadd.f32 %v2358, %v2439
          %2441 = vmatmul.bf16.gmra.mxu0 %v2307
          %v2442 = vpop.f32.mrf.mxu0
          %v2443 = vadd.f32 %v2358, %v2442
          %v2444 = vpop.f32.mrf.mxu0
          %v2445 = vadd.f32 %v2358, %v2444
          %2446 = vmatmul.bf16.gmra.mxu0 %v2308
          %v2447 = vpop.f32.mrf.mxu0
          %v2448 = vadd.f32 %v2358, %v2447
          %v2449 = vpop.f32.mrf.mxu0
          %v2450 = vadd.f32 %v2358, %v2449
          %2451 = vmatmul.bf16.gmra.mxu0 %v2309
          %v2452 = vpop.f32.mrf.mxu0
          %v2453 = vadd.f32 %v2358, %v2452
          %v2454 = vpop.f32.mrf.mxu0
          %v2455 = vadd.f32 %v2358, %v2454
          %2456 = vmatmul.bf16.gmra.mxu0 %v2310
          %v2457 = vpop.f32.mrf.mxu0
          %v2458 = vadd.f32 %v2358, %v2457
          %v2459 = vpop.f32.mrf.mxu0
          %v2460 = vadd.f32 %v2358, %v2459
          %2461 = vmatmul.bf16.gmra.mxu0 %v2311
          %v2462 = vpop.f32.mrf.mxu0
          %v2463 = vadd.f32 %v2358, %v2462
          %v2464 = vpop.f32.mrf.mxu0
          %v2465 = vadd.f32 %v2358, %v2464
          %2466 = vmatmul.bf16.gmra.mxu0 %v2312
          %v2467 = vpop.f32.mrf.mxu0
          %v2468 = vadd.f32 %v2358, %v2467
          %v2469 = vpop.f32.mrf.mxu0
          %v2470 = vadd.f32 %v2358, %v2469
          %2471 = vmatmul.bf16.gmra.mxu0 %v2313
          %v2472 = vpop.f32.mrf.mxu0
          %v2473 = vadd.f32 %v2358, %v2472
          %v2474 = vpop.f32.mrf.mxu0
          %v2475 = vadd.f32 %v2358, %v2474
          %2476 = vmatmul.bf16.gmra.mxu0 %v2314
          %v2477 = vpop.f32.mrf.mxu0
          %v2478 = vadd.f32 %v2358, %v2477
          %v2479 = vpop.f32.mrf.mxu0
          %v2480 = vadd.f32 %v2358, %v2479
          %2481 = vmatmul.bf16.gmra.mxu0 %v2315
          %v2482 = vpop.f32.mrf.mxu0
          %v2483 = vadd.f32 %v2358, %v2482
          %v2484 = vpop.f32.mrf.mxu0
          %v2485 = vadd.f32 %v2358, %v2484
          %2486 = vmatmul.bf16.gmra.mxu0 %v2316
          %v2487 = vpop.f32.mrf.mxu0
          %v2488 = vadd.f32 %v2358, %v2487
          %v2489 = vpop.f32.mrf.mxu0
          %v2490 = vadd.f32 %v2358, %v2489
          %2491 = vmatmul.bf16.gmra.mxu0 %v2317
          %v2492 = vpop.f32.mrf.mxu0
          %v2493 = vadd.f32 %v2358, %v2492
          %v2494 = vpop.f32.mrf.mxu0
          %v2495 = vadd.f32 %v2358, %v2494
          %2496 = vmatmul.bf16.gmra.mxu0 %v2318
          %v2497 = vpop.f32.mrf.mxu0
          %v2498 = vadd.f32 %v2358, %v2497
          %v2499 = vpop.f32.mrf.mxu0
          %v2500 = vadd.f32 %v2358, %v2499
          %2501 = vmatmul.bf16.gmra.mxu0 %v2319
          %v2502 = vpop.f32.mrf.mxu0
          %v2503 = vadd.f32 %v2358, %v2502
          %v2504 = vpop.f32.mrf.mxu0
          %v2505 = vadd.f32 %v2358, %v2504
          %2506 = vmatmul.bf16.gmra.mxu0 %v2320
          %v2507 = vpop.f32.mrf.mxu0
          %v2508 = vadd.f32 %v2358, %v2507
          %v2509 = vpop.f32.mrf.mxu0
          %v2510 = vadd.f32 %v2358, %v2509
          %2511 = vmatmul.bf16.gmra.mxu0 %v2321
          %v2512 = vpop.f32.mrf.mxu0
          %v2513 = vadd.f32 %v2358, %v2512
          %v2514 = vpop.f32.mrf.mxu0
          %v2515 = vadd.f32 %v2358, %v2514
          %2516 = vmatmul.bf16.gmra.mxu0 %v2322
          %v2517 = vpop.f32.mrf.mxu0
          %v2518 = vadd.f32 %v2358, %v2517
          %v2519 = vpop.f32.mrf.mxu0
          %v2520 = vadd.f32 %v2358, %v2519
          %2521 = vmatmul.bf16.gmra.mxu0 %v2323
          %v2522 = vpop.f32.mrf.mxu0
          %v2523 = vadd.f32 %v2358, %v2522
          %v2524 = vpop.f32.mrf.mxu0
          %v2525 = vadd.f32 %v2358, %v2524
          %2526 = vmatmul.bf16.gmra.mxu0 %v2324
          %v2527 = vpop.f32.mrf.mxu0
          %v2528 = vadd.f32 %v2358, %v2527
          %v2529 = vpop.f32.mrf.mxu0
          %v2530 = vadd.f32 %v2358, %v2529
          %2531 = vmatmul.bf16.gmra.mxu0 %v2325
          %v2532 = vpop.f32.mrf.mxu0
          %v2533 = vadd.f32 %v2358, %v2532
          %v2534 = vpop.f32.mrf.mxu0
          %v2535 = vadd.f32 %v2358, %v2534
          %2536 = vmatmul.bf16.gmra.mxu0 %v2326
          %v2537 = vpop.f32.mrf.mxu0
          %v2538 = vadd.f32 %v2358, %v2537
          %v2539 = vpop.f32.mrf.mxu0
          %v2540 = vadd.f32 %v2358, %v2539
          %2541 = vmatmul.bf16.gmra.mxu0 %v2327
          %v2542 = vpop.f32.mrf.mxu0
          %v2543 = vadd.f32 %v2358, %v2542
          %v2544 = vpop.f32.mrf.mxu0
          %v2545 = vadd.f32 %v2358, %v2544
          %2546 = vmatmul.bf16.gmra.mxu0 %v2328
          %v2547 = vpop.f32.mrf.mxu0
          %v2548 = vadd.f32 %v2358, %v2547
          %v2549 = vpop.f32.mrf.mxu0
          %v2550 = vadd.f32 %v2358, %v2549
          %2551 = vmatmul.bf16.gmra.mxu0 %v2329
          %v2552 = vpop.f32.mrf.mxu0
          %v2553 = vadd.f32 %v2358, %v2552
          %v2554 = vpop.f32.mrf.mxu0
          %v2555 = vadd.f32 %v2358, %v2554
          %2556 = vmatmul.bf16.gmra.mxu0 %v2330
          %v2557 = vpop.f32.mrf.mxu0
          %v2558 = vadd.f32 %v2358, %v2557
          %v2559 = vpop.f32.mrf.mxu0
          %v2560 = vadd.f32 %v2358, %v2559
          %2561 = vmatmul.bf16.gmra.mxu0 %v2331
          %v2562 = vpop.f32.mrf.mxu0
          %v2563 = vadd.f32 %v2358, %v2562
          %v2564 = vpop.f32.mrf.mxu0
          %v2565 = vadd.f32 %v2358, %v2564
          %2566 = vmatmul.bf16.gmra.mxu0 %v2332
          %v2567 = vpop.f32.mrf.mxu0
          %v2568 = vadd.f32 %v2358, %v2567
          %v2569 = vpop.f32.mrf.mxu0
          %v2570 = vadd.f32 %v2358, %v2569
          %2571 = vmatmul.bf16.gmra.mxu0 %v2333
          %v2572 = vpop.f32.mrf.mxu0
          %v2573 = vadd.f32 %v2358, %v2572
          %v2574 = vpop.f32.mrf.mxu0
          %v2575 = vadd.f32 %v2358, %v2574
          %2576 = vmatmul.bf16.gmra.mxu0 %v2334
          %v2577 = vpop.f32.mrf.mxu0
          %v2578 = vadd.f32 %v2358, %v2577
          %v2579 = vpop.f32.mrf.mxu0
          %v2580 = vadd.f32 %v2358, %v2579
          %2581 = vmatmul.bf16.gmra.mxu0 %v2335
          %v2582 = vpop.f32.mrf.mxu0
          %v2583 = vadd.f32 %v2358, %v2582
          %v2584 = vpop.f32.mrf.mxu0
          %v2585 = vadd.f32 %v2358, %v2584
          %2586 = vmatmul.bf16.gmra.mxu0 %v2336
          %v2587 = vpop.f32.mrf.mxu0
          %v2588 = vadd.f32 %v2358, %v2587
          %v2589 = vpop.f32.mrf.mxu0
          %v2590 = vadd.f32 %v2358, %v2589
          %2591 = vmatmul.bf16.gmra.mxu0 %v2337
          %v2592 = vpop.f32.mrf.mxu0
          %v2593 = vadd.f32 %v2358, %v2592
          %v2594 = vpop.f32.mrf.mxu0
          %v2595 = vadd.f32 %v2358, %v2594
          %2596 = vmatmul.bf16.gmra.mxu0 %v2338
          %v2597 = vpop.f32.mrf.mxu0
          %v2598 = vadd.f32 %v2358, %v2597
          %v2599 = vpop.f32.mrf.mxu0
          %v2600 = vadd.f32 %v2358, %v2599
          %2601 = vmatmul.bf16.gmra.mxu0 %v2339
          %v2602 = vpop.f32.mrf.mxu0
          %v2603 = vadd.f32 %v2358, %v2602
          %v2604 = vpop.f32.mrf.mxu0
          %v2605 = vadd.f32 %v2358, %v2604
          %2606 = vdwg.mxu0
          %v2607 = vld [vmem:[#allocation2] sm:$0xff]
          %v2608 = vsel %vm1343, 1, 0
          %v2609 = vsel %vm1344, 1, 0
          %v2610 = vsel %vm1345, 1, 0
          %v2611 = vsel %vm1346, 1, 0
          %v2612 = vsel %vm1347, 1, 0
          %v2613 = vsel %vm1348, 1, 0
          %v2614 = vsel %vm1349, 1, 0
          %v2615 = vsel %vm1350, 1, 0
          %v2616 = vsel %vm1351, 1, 0
          %v2617 = vsel %vm1352, 1, 0
          %v2618 = vsel %vm1353, 1, 0
          %v2619 = vsel %vm1354, 1, 0
          %v2620 = vsel %vm1355, 1, 0
          %v2621 = vsel %vm1356, 1, 0
          %v2622 = vsel %vm1357, 1, 0
          %v2623 = vsel %vm1358, 1, 0
          %v2624 = vsel %vm1359, 1, 0
          %v2625 = vsel %vm1360, 1, 0
          %v2626 = vsel %vm1361, 1, 0
          %v2627 = vsel %vm1362, 1, 0
          %v2628 = vsel %vm1363, 1, 0
          %v2629 = vsel %vm1364, 1, 0
          %v2630 = vsel %vm1365, 1, 0
          %v2631 = vsel %vm1366, 1, 0
          %v2632 = vsel %vm1367, 1, 0
          %v2633 = vsel %vm1368, 1, 0
          %v2634 = vsel %vm1369, 1, 0
          %v2635 = vsel %vm1370, 1, 0
          %v2636 = vsel %vm1371, 1, 0
          %v2637 = vsel %vm1372, 1, 0
          %v2638 = vsel %vm1373, 1, 0
          %v2639 = vsel %vm1374, 1, 0
          %v2640 = vsel %vm1375, 1, 0
          %v2641 = vsel %vm1376, 1, 0
          %v2642 = vsel %vm1377, 1, 0
          %v2643 = vsel %vm1378, 1, 0
          %v2644 = vsel %vm1379, 1, 0
          %v2645 = vsel %vm1380, 1, 0
          %v2646 = vsel %vm1381, 1, 0
          %v2647 = vsel %vm1382, 1, 0
          %v2648 = vsel %vm1383, 1, 0
          %v2649 = vsel %vm1384, 1, 0
          %v2650 = vsel %vm1385, 1, 0
          %v2651 = vsel %vm1386, 1, 0
          %v2652 = vsel %vm1387, 1, 0
          %v2653 = vsel %vm1388, 1, 0
          %v2654 = vsel %vm1389, 1, 0
          %v2655 = vsel %vm1390, 1, 0
          %v2656 = vsel %vm1391, 1, 0
          %v2657 = vsel %vm1392, 1, 0
          %v2658 = vsel %vm1393, 1, 0
          %v2659 = vsel %vm1394, 1, 0
          %v2660 = vsel %vm1395, 1, 0
          %v2661 = vsel %vm1396, 1, 0
          %v2662 = vsel %vm1397, 1, 0
          %v2663 = vsel %vm1398, 1, 0
          %v2664 = vsel %vm1399, 1, 0
          %v2665 = vsel %vm1400, 1, 0
          %v2666 = vsel %vm1401, 1, 0
          %v2667 = vsel %vm1402, 1, 0
          %v2668 = vsel %vm1403, 1, 0
          %v2669 = vsel %vm1404, 1, 0
          %v2670 = vsel %vm1405, 1, 0
          %v2671 = vsel %vm1406, 1, 0
          %v2672 = vsel %vm1407, 1, 0
          %v2673 = vsel %vm1408, 1, 0
          %v2674 = vsel %vm1409, 1, 0
          %v2675 = vsel %vm1410, 1, 0
          %v2676 = vsel %vm1411, 1, 0
          %v2677 = vsel %vm1412, 1, 0
          %v2678 = vsel %vm1413, 1, 0
          %v2679 = vsel %vm1414, 1, 0
          %v2680 = vsel %vm1415, 1, 0
          %v2681 = vsel %vm1416, 1, 0
          %v2682 = vsel %vm1417, 1, 0
          %v2683 = vsel %vm1418, 1, 0
          %2684 = vset.pattern.permute.xlu0 0
          %2685 = vperm.xlu0 %2684, %v2608
          %v2686 = vpop.permute.xlu0 %2685
          %2687 = vset.pattern.permute.xlu0 0
          %2688 = vperm.xlu0 %2687, %v2609
          %v2689 = vpop.permute.xlu0 %2688
          %2690 = vset.pattern.permute.xlu0 0
          %2691 = vperm.xlu0 %2690, %v2610
          %v2692 = vpop.permute.xlu0 %2691
          %2693 = vset.pattern.permute.xlu0 0
          %2694 = vperm.xlu0 %2693, %v2611
          %v2695 = vpop.permute.xlu0 %2694
          %2696 = vset.pattern.permute.xlu0 0
          %2697 = vperm.xlu0 %2696, %v2612
          %v2698 = vpop.permute.xlu0 %2697
          %2699 = vset.pattern.permute.xlu0 0
          %2700 = vperm.xlu0 %2699, %v2613
          %v2701 = vpop.permute.xlu0 %2700
          %2702 = vset.pattern.permute.xlu0 0
          %2703 = vperm.xlu0 %2702, %v2614
          %v2704 = vpop.permute.xlu0 %2703
          %2705 = vset.pattern.permute.xlu0 0
          %2706 = vperm.xlu0 %2705, %v2615
          %v2707 = vpop.permute.xlu0 %2706
          %2708 = vset.pattern.permute.xlu0 0
          %2709 = vperm.xlu0 %2708, %v2616
          %v2710 = vpop.permute.xlu0 %2709
          %2711 = vset.pattern.permute.xlu0 0
          %2712 = vperm.xlu0 %2711, %v2617
          %v2713 = vpop.permute.xlu0 %2712
          %2714 = vset.pattern.permute.xlu0 0
          %2715 = vperm.xlu0 %2714, %v2618
          %v2716 = vpop.permute.xlu0 %2715
          %2717 = vset.pattern.permute.xlu0 0
          %2718 = vperm.xlu0 %2717, %v2619
          %v2719 = vpop.permute.xlu0 %2718
          %2720 = vset.pattern.permute.xlu0 0
          %2721 = vperm.xlu0 %2720, %v2620
          %v2722 = vpop.permute.xlu0 %2721
          %2723 = vset.pattern.permute.xlu0 0
          %2724 = vperm.xlu0 %2723, %v2621
          %v2725 = vpop.permute.xlu0 %2724
          %2726 = vset.pattern.permute.xlu0 0
          %2727 = vperm.xlu0 %2726, %v2622
          %v2728 = vpop.permute.xlu0 %2727
          %2729 = vset.pattern.permute.xlu0 0
          %2730 = vperm.xlu0 %2729, %v2623
          %v2731 = vpop.permute.xlu0 %2730
          %2732 = vset.pattern.permute.xlu0 0
          %2733 = vperm.xlu0 %2732, %v2624
          %v2734 = vpop.permute.xlu0 %2733
          %2735 = vset.pattern.permute.xlu0 0
          %2736 = vperm.xlu0 %2735, %v2625
          %v2737 = vpop.permute.xlu0 %2736
          %2738 = vset.pattern.permute.xlu0 0
          %2739 = vperm.xlu0 %2738, %v2626
          %v2740 = vpop.permute.xlu0 %2739
          %2741 = vset.pattern.permute.xlu0 0
          %2742 = vperm.xlu0 %2741, %v2627
          %v2743 = vpop.permute.xlu0 %2742
          %2744 = vset.pattern.permute.xlu0 0
          %2745 = vperm.xlu0 %2744, %v2628
          %v2746 = vpop.permute.xlu0 %2745
          %2747 = vset.pattern.permute.xlu0 0
          %2748 = vperm.xlu0 %2747, %v2629
          %v2749 = vpop.permute.xlu0 %2748
          %2750 = vset.pattern.permute.xlu0 0
          %2751 = vperm.xlu0 %2750, %v2630
          %v2752 = vpop.permute.xlu0 %2751
          %2753 = vset.pattern.permute.xlu0 0
          %2754 = vperm.xlu0 %2753, %v2631
          %v2755 = vpop.permute.xlu0 %2754
          %2756 = vset.pattern.permute.xlu0 0
          %2757 = vperm.xlu0 %2756, %v2632
          %v2758 = vpop.permute.xlu0 %2757
          %2759 = vset.pattern.permute.xlu0 0
          %2760 = vperm.xlu0 %2759, %v2633
          %v2761 = vpop.permute.xlu0 %2760
          %2762 = vset.pattern.permute.xlu0 0
          %2763 = vperm.xlu0 %2762, %v2634
          %v2764 = vpop.permute.xlu0 %2763
          %2765 = vset.pattern.permute.xlu0 0
          %2766 = vperm.xlu0 %2765, %v2635
          %v2767 = vpop.permute.xlu0 %2766
          %2768 = vset.pattern.permute.xlu0 0
          %2769 = vperm.xlu0 %2768, %v2636
          %v2770 = vpop.permute.xlu0 %2769
          %2771 = vset.pattern.permute.xlu0 0
          %2772 = vperm.xlu0 %2771, %v2637
          %v2773 = vpop.permute.xlu0 %2772
          %2774 = vset.pattern.permute.xlu0 0
          %2775 = vperm.xlu0 %2774, %v2638
          %v2776 = vpop.permute.xlu0 %2775
          %2777 = vset.pattern.permute.xlu0 0
          %2778 = vperm.xlu0 %2777, %v2639
          %v2779 = vpop.permute.xlu0 %2778
          %2780 = vset.pattern.permute.xlu0 0
          %2781 = vperm.xlu0 %2780, %v2640
          %v2782 = vpop.permute.xlu0 %2781
          %2783 = vset.pattern.permute.xlu0 0
          %2784 = vperm.xlu0 %2783, %v2641
          %v2785 = vpop.permute.xlu0 %2784
          %2786 = vset.pattern.permute.xlu0 0
          %2787 = vperm.xlu0 %2786, %v2642
          %v2788 = vpop.permute.xlu0 %2787
          %2789 = vset.pattern.permute.xlu0 0
          %2790 = vperm.xlu0 %2789, %v2643
          %v2791 = vpop.permute.xlu0 %2790
          %2792 = vset.pattern.permute.xlu0 0
          %2793 = vperm.xlu0 %2792, %v2644
          %v2794 = vpop.permute.xlu0 %2793
          %2795 = vset.pattern.permute.xlu0 0
          %2796 = vperm.xlu0 %2795, %v2645
          %v2797 = vpop.permute.xlu0 %2796
          %2798 = vset.pattern.permute.xlu0 0
          %2799 = vperm.xlu0 %2798, %v2646
          %v2800 = vpop.permute.xlu0 %2799
          %2801 = vset.pattern.permute.xlu0 0
          %2802 = vperm.xlu0 %2801, %v2647
          %v2803 = vpop.permute.xlu0 %2802
          %2804 = vset.pattern.permute.xlu0 0
          %2805 = vperm.xlu0 %2804, %v2648
          %v2806 = vpop.permute.xlu0 %2805
          %2807 = vset.pattern.permute.xlu0 0
          %2808 = vperm.xlu0 %2807, %v2649
          %v2809 = vpop.permute.xlu0 %2808
          %2810 = vset.pattern.permute.xlu0 0
          %2811 = vperm.xlu0 %2810, %v2650
          %v2812 = vpop.permute.xlu0 %2811
          %2813 = vset.pattern.permute.xlu0 0
          %2814 = vperm.xlu0 %2813, %v2651
          %v2815 = vpop.permute.xlu0 %2814
          %2816 = vset.pattern.permute.xlu0 0
          %2817 = vperm.xlu0 %2816, %v2652
          %v2818 = vpop.permute.xlu0 %2817
          %2819 = vset.pattern.permute.xlu0 0
          %2820 = vperm.xlu0 %2819, %v2653
          %v2821 = vpop.permute.xlu0 %2820
          %2822 = vset.pattern.permute.xlu0 0
          %2823 = vperm.xlu0 %2822, %v2654
          %v2824 = vpop.permute.xlu0 %2823
          %2825 = vset.pattern.permute.xlu0 0
          %2826 = vperm.xlu0 %2825, %v2655
          %v2827 = vpop.permute.xlu0 %2826
          %2828 = vset.pattern.permute.xlu0 0
          %2829 = vperm.xlu0 %2828, %v2656
          %v2830 = vpop.permute.xlu0 %2829
          %2831 = vset.pattern.permute.xlu0 0
          %2832 = vperm.xlu0 %2831, %v2657
          %v2833 = vpop.permute.xlu0 %2832
          %2834 = vset.pattern.permute.xlu0 0
          %2835 = vperm.xlu0 %2834, %v2658
          %v2836 = vpop.permute.xlu0 %2835
          %2837 = vset.pattern.permute.xlu0 0
          %2838 = vperm.xlu0 %2837, %v2659
          %v2839 = vpop.permute.xlu0 %2838
          %2840 = vset.pattern.permute.xlu0 0
          %2841 = vperm.xlu0 %2840, %v2660
          %v2842 = vpop.permute.xlu0 %2841
          %2843 = vset.pattern.permute.xlu0 0
          %2844 = vperm.xlu0 %2843, %v2661
          %v2845 = vpop.permute.xlu0 %2844
          %2846 = vset.pattern.permute.xlu0 0
          %2847 = vperm.xlu0 %2846, %v2662
          %v2848 = vpop.permute.xlu0 %2847
          %2849 = vset.pattern.permute.xlu0 0
          %2850 = vperm.xlu0 %2849, %v2663
          %v2851 = vpop.permute.xlu0 %2850
          %2852 = vset.pattern.permute.xlu0 0
          %2853 = vperm.xlu0 %2852, %v2664
          %v2854 = vpop.permute.xlu0 %2853
          %2855 = vset.pattern.permute.xlu0 0
          %2856 = vperm.xlu0 %2855, %v2665
          %v2857 = vpop.permute.xlu0 %2856
          %2858 = vset.pattern.permute.xlu0 0
          %2859 = vperm.xlu0 %2858, %v2666
          %v2860 = vpop.permute.xlu0 %2859
          %2861 = vset.pattern.permute.xlu0 0
          %2862 = vperm.xlu0 %2861, %v2667
          %v2863 = vpop.permute.xlu0 %2862
          %2864 = vset.pattern.permute.xlu0 0
          %2865 = vperm.xlu0 %2864, %v2668
          %v2866 = vpop.permute.xlu0 %2865
          %2867 = vset.pattern.permute.xlu0 0
          %2868 = vperm.xlu0 %2867, %v2669
          %v2869 = vpop.permute.xlu0 %2868
          %2870 = vset.pattern.permute.xlu0 0
          %2871 = vperm.xlu0 %2870, %v2670
          %v2872 = vpop.permute.xlu0 %2871
          %2873 = vset.pattern.permute.xlu0 0
          %2874 = vperm.xlu0 %2873, %v2671
          %v2875 = vpop.permute.xlu0 %2874
          %2876 = vset.pattern.permute.xlu0 0
          %2877 = vperm.xlu0 %2876, %v2672
          %v2878 = vpop.permute.xlu0 %2877
          %2879 = vset.pattern.permute.xlu0 0
          %2880 = vperm.xlu0 %2879, %v2673
          %v2881 = vpop.permute.xlu0 %2880
          %2882 = vset.pattern.permute.xlu0 0
          %2883 = vperm.xlu0 %2882, %v2674
          %v2884 = vpop.permute.xlu0 %2883
          %2885 = vset.pattern.permute.xlu0 0
          %2886 = vperm.xlu0 %2885, %v2675
          %v2887 = vpop.permute.xlu0 %2886
          %2888 = vset.pattern.permute.xlu0 0
          %2889 = vperm.xlu0 %2888, %v2676
          %v2890 = vpop.permute.xlu0 %2889
          %2891 = vset.pattern.permute.xlu0 0
          %2892 = vperm.xlu0 %2891, %v2677
          %v2893 = vpop.permute.xlu0 %2892
          %2894 = vset.pattern.permute.xlu0 0
          %2895 = vperm.xlu0 %2894, %v2678
          %v2896 = vpop.permute.xlu0 %2895
          %2897 = vset.pattern.permute.xlu0 0
          %2898 = vperm.xlu0 %2897, %v2679
          %v2899 = vpop.permute.xlu0 %2898
          %2900 = vset.pattern.permute.xlu0 0
          %2901 = vperm.xlu0 %2900, %v2680
          %v2902 = vpop.permute.xlu0 %2901
          %2903 = vset.pattern.permute.xlu0 0
          %2904 = vperm.xlu0 %2903, %v2681
          %v2905 = vpop.permute.xlu0 %2904
          %2906 = vset.pattern.permute.xlu0 0
          %2907 = vperm.xlu0 %2906, %v2682
          %v2908 = vpop.permute.xlu0 %2907
          %2909 = vset.pattern.permute.xlu0 0
          %2910 = vperm.xlu0 %2909, %v2683
          %v2911 = vpop.permute.xlu0 %2910
          %vm2912 = vcmp.eq.s32.totalorder %v2686, 1
          %vm2913 = vcmp.eq.s32.totalorder %v2689, 1
          %vm2914 = vcmp.eq.s32.totalorder %v2692, 1
          %vm2915 = vcmp.eq.s32.totalorder %v2695, 1
          %vm2916 = vcmp.eq.s32.totalorder %v2698, 1
          %vm2917 = vcmp.eq.s32.totalorder %v2701, 1
          %vm2918 = vcmp.eq.s32.totalorder %v2704, 1
          %vm2919 = vcmp.eq.s32.totalorder %v2707, 1
          %vm2920 = vcmp.eq.s32.totalorder %v2710, 1
          %vm2921 = vcmp.eq.s32.totalorder %v2713, 1
          %vm2922 = vcmp.eq.s32.totalorder %v2716, 1
          %vm2923 = vcmp.eq.s32.totalorder %v2719, 1
          %vm2924 = vcmp.eq.s32.totalorder %v2722, 1
          %vm2925 = vcmp.eq.s32.totalorder %v2725, 1
          %vm2926 = vcmp.eq.s32.totalorder %v2728, 1
          %vm2927 = vcmp.eq.s32.totalorder %v2731, 1
          %vm2928 = vcmp.eq.s32.totalorder %v2734, 1
          %vm2929 = vcmp.eq.s32.totalorder %v2737, 1
          %vm2930 = vcmp.eq.s32.totalorder %v2740, 1
          %vm2931 = vcmp.eq.s32.totalorder %v2743, 1
          %vm2932 = vcmp.eq.s32.totalorder %v2746, 1
          %vm2933 = vcmp.eq.s32.totalorder %v2749, 1
          %vm2934 = vcmp.eq.s32.totalorder %v2752, 1
          %vm2935 = vcmp.eq.s32.totalorder %v2755, 1
          %vm2936 = vcmp.eq.s32.totalorder %v2758, 1
          %vm2937 = vcmp.eq.s32.totalorder %v2761, 1
          %vm2938 = vcmp.eq.s32.totalorder %v2764, 1
          %vm2939 = vcmp.eq.s32.totalorder %v2767, 1
          %vm2940 = vcmp.eq.s32.totalorder %v2770, 1
          %vm2941 = vcmp.eq.s32.totalorder %v2773, 1
          %vm2942 = vcmp.eq.s32.totalorder %v2776, 1
          %vm2943 = vcmp.eq.s32.totalorder %v2779, 1
          %vm2944 = vcmp.eq.s32.totalorder %v2782, 1
          %vm2945 = vcmp.eq.s32.totalorder %v2785, 1
          %vm2946 = vcmp.eq.s32.totalorder %v2788, 1
          %vm2947 = vcmp.eq.s32.totalorder %v2791, 1
          %vm2948 = vcmp.eq.s32.totalorder %v2794, 1
          %vm2949 = vcmp.eq.s32.totalorder %v2797, 1
          %vm2950 = vcmp.eq.s32.totalorder %v2800, 1
          %vm2951 = vcmp.eq.s32.totalorder %v2803, 1
          %vm2952 = vcmp.eq.s32.totalorder %v2806, 1
          %vm2953 = vcmp.eq.s32.totalorder %v2809, 1
          %vm2954 = vcmp.eq.s32.totalorder %v2812, 1
          %vm2955 = vcmp.eq.s32.totalorder %v2815, 1
          %vm2956 = vcmp.eq.s32.totalorder %v2818, 1
          %vm2957 = vcmp.eq.s32.totalorder %v2821, 1
          %vm2958 = vcmp.eq.s32.totalorder %v2824, 1
          %vm2959 = vcmp.eq.s32.totalorder %v2827, 1
          %vm2960 = vcmp.eq.s32.totalorder %v2830, 1
          %vm2961 = vcmp.eq.s32.totalorder %v2833, 1
          %vm2962 = vcmp.eq.s32.totalorder %v2836, 1
          %vm2963 = vcmp.eq.s32.totalorder %v2839, 1
          %vm2964 = vcmp.eq.s32.totalorder %v2842, 1
          %vm2965 = vcmp.eq.s32.totalorder %v2845, 1
          %vm2966 = vcmp.eq.s32.totalorder %v2848, 1
          %vm2967 = vcmp.eq.s32.totalorder %v2851, 1
          %vm2968 = vcmp.eq.s32.totalorder %v2854, 1
          %vm2969 = vcmp.eq.s32.totalorder %v2857, 1
          %vm2970 = vcmp.eq.s32.totalorder %v2860, 1
          %vm2971 = vcmp.eq.s32.totalorder %v2863, 1
          %vm2972 = vcmp.eq.s32.totalorder %v2866, 1
          %vm2973 = vcmp.eq.s32.totalorder %v2869, 1
          %vm2974 = vcmp.eq.s32.totalorder %v2872, 1
          %vm2975 = vcmp.eq.s32.totalorder %v2875, 1
          %vm2976 = vcmp.eq.s32.totalorder %v2878, 1
          %vm2977 = vcmp.eq.s32.totalorder %v2881, 1
          %vm2978 = vcmp.eq.s32.totalorder %v2884, 1
          %vm2979 = vcmp.eq.s32.totalorder %v2887, 1
          %vm2980 = vcmp.eq.s32.totalorder %v2890, 1
          %vm2981 = vcmp.eq.s32.totalorder %v2893, 1
          %vm2982 = vcmp.eq.s32.totalorder %v2896, 1
          %vm2983 = vcmp.eq.s32.totalorder %v2899, 1
          %vm2984 = vcmp.eq.s32.totalorder %v2902, 1
          %vm2985 = vcmp.eq.s32.totalorder %v2905, 1
          %vm2986 = vcmp.eq.s32.totalorder %v2908, 1
          %vm2987 = vcmp.eq.s32.totalorder %v2911, 1
          %v2988 = vsel %vm2912, %v2418, -3.3895314e+38
          %v2989 = vsel %vm2913, %v2420, -3.3895314e+38
          %v2990 = vsel %vm2914, %v2423, -3.3895314e+38
          %v2991 = vsel %vm2915, %v2425, -3.3895314e+38
          %v2992 = vsel %vm2916, %v2428, -3.3895314e+38
          %v2993 = vsel %vm2917, %v2430, -3.3895314e+38
          %v2994 = vsel %vm2918, %v2433, -3.3895314e+38
          %v2995 = vsel %vm2919, %v2435, -3.3895314e+38
          %v2996 = vsel %vm2920, %v2438, -3.3895314e+38
          %v2997 = vsel %vm2921, %v2440, -3.3895314e+38
          %v2998 = vsel %vm2922, %v2443, -3.3895314e+38
          %v2999 = vsel %vm2923, %v2445, -3.3895314e+38
          %v3000 = vsel %vm2924, %v2448, -3.3895314e+38
          %v3001 = vsel %vm2925, %v2450, -3.3895314e+38
          %v3002 = vsel %vm2926, %v2453, -3.3895314e+38
          %v3003 = vsel %vm2927, %v2455, -3.3895314e+38
          %v3004 = vsel %vm2928, %v2458, -3.3895314e+38
          %v3005 = vsel %vm2929, %v2460, -3.3895314e+38
          %v3006 = vsel %vm2930, %v2463, -3.3895314e+38
          %v3007 = vsel %vm2931, %v2465, -3.3895314e+38
          %v3008 = vsel %vm2932, %v2468, -3.3895314e+38
          %v3009 = vsel %vm2933, %v2470, -3.3895314e+38
          %v3010 = vsel %vm2934, %v2473, -3.3895314e+38
          %v3011 = vsel %vm2935, %v2475, -3.3895314e+38
          %v3012 = vsel %vm2936, %v2478, -3.3895314e+38
          %v3013 = vsel %vm2937, %v2480, -3.3895314e+38
          %v3014 = vsel %vm2938, %v2483, -3.3895314e+38
          %v3015 = vsel %vm2939, %v2485, -3.3895314e+38
          %v3016 = vsel %vm2940, %v2488, -3.3895314e+38
          %v3017 = vsel %vm2941, %v2490, -3.3895314e+38
          %v3018 = vsel %vm2942, %v2493, -3.3895314e+38
          %v3019 = vsel %vm2943, %v2495, -3.3895314e+38
          %v3020 = vsel %vm2944, %v2498, -3.3895314e+38
          %v3021 = vsel %vm2945, %v2500, -3.3895314e+38
          %v3022 = vsel %vm2946, %v2503, -3.3895314e+38
          %v3023 = vsel %vm2947, %v2505, -3.3895314e+38
          %v3024 = vsel %vm2948, %v2508, -3.3895314e+38
          %v3025 = vsel %vm2949, %v2510, -3.3895314e+38
          %v3026 = vsel %vm2950, %v2513, -3.3895314e+38
          %v3027 = vsel %vm2951, %v2515, -3.3895314e+38
          %v3028 = vsel %vm2952, %v2518, -3.3895314e+38
          %v3029 = vsel %vm2953, %v2520, -3.3895314e+38
          %v3030 = vsel %vm2954, %v2523, -3.3895314e+38
          %v3031 = vsel %vm2955, %v2525, -3.3895314e+38
          %v3032 = vsel %vm2956, %v2528, -3.3895314e+38
          %v3033 = vsel %vm2957, %v2530, -3.3895314e+38
          %v3034 = vsel %vm2958, %v2533, -3.3895314e+38
          %v3035 = vsel %vm2959, %v2535, -3.3895314e+38
          %v3036 = vsel %vm2960, %v2538, -3.3895314e+38
          %v3037 = vsel %vm2961, %v2540, -3.3895314e+38
          %v3038 = vsel %vm2962, %v2543, -3.3895314e+38
          %v3039 = vsel %vm2963, %v2545, -3.3895314e+38
          %v3040 = vsel %vm2964, %v2548, -3.3895314e+38
          %v3041 = vsel %vm2965, %v2550, -3.3895314e+38
          %v3042 = vsel %vm2966, %v2553, -3.3895314e+38
          %v3043 = vsel %vm2967, %v2555, -3.3895314e+38
          %v3044 = vsel %vm2968, %v2558, -3.3895314e+38
          %v3045 = vsel %vm2969, %v2560, -3.3895314e+38
          %v3046 = vsel %vm2970, %v2563, -3.3895314e+38
          %v3047 = vsel %vm2971, %v2565, -3.3895314e+38
          %v3048 = vsel %vm2972, %v2568, -3.3895314e+38
          %v3049 = vsel %vm2973, %v2570, -3.3895314e+38
          %v3050 = vsel %vm2974, %v2573, -3.3895314e+38
          %v3051 = vsel %vm2975, %v2575, -3.3895314e+38
          %v3052 = vsel %vm2976, %v2578, -3.3895314e+38
          %v3053 = vsel %vm2977, %v2580, -3.3895314e+38
          %v3054 = vsel %vm2978, %v2583, -3.3895314e+38
          %v3055 = vsel %vm2979, %v2585, -3.3895314e+38
          %v3056 = vsel %vm2980, %v2588, -3.3895314e+38
          %v3057 = vsel %vm2981, %v2590, -3.3895314e+38
          %v3058 = vsel %vm2982, %v2593, -3.3895314e+38
          %v3059 = vsel %vm2983, %v2595, -3.3895314e+38
          %v3060 = vsel %vm2984, %v2598, -3.3895314e+38
          %v3061 = vsel %vm2985, %v2600, -3.3895314e+38
          %v3062 = vsel %vm2986, %v2603, -3.3895314e+38
          %v3063 = vsel %vm2987, %v2605, -3.3895314e+38
          %v3064 = vmax.f32 %v2988, %v2992
          %v3065 = vmax.f32 %v2989, %v2993
          %v3066 = vmax.f32 %v2990, %v2994
          %v3067 = vmax.f32 %v2991, %v2995
          %v3068 = vmax.f32 %v3064, %v2996
          %v3069 = vmax.f32 %v3065, %v2997
          %v3070 = vmax.f32 %v3066, %v2998
          %v3071 = vmax.f32 %v3067, %v2999
          %v3072 = vmax.f32 %v3068, %v3000
          %v3073 = vmax.f32 %v3069, %v3001
          %v3074 = vmax.f32 %v3070, %v3002
          %v3075 = vmax.f32 %v3071, %v3003
          %v3076 = vmax.f32 %v3072, %v3004
          %v3077 = vmax.f32 %v3073, %v3005
          %v3078 = vmax.f32 %v3074, %v3006
          %v3079 = vmax.f32 %v3075, %v3007
          %v3080 = vmax.f32 %v3076, %v3008
          %v3081 = vmax.f32 %v3077, %v3009
          %v3082 = vmax.f32 %v3078, %v3010
          %v3083 = vmax.f32 %v3079, %v3011
          %v3084 = vmax.f32 %v3080, %v3012
          %v3085 = vmax.f32 %v3081, %v3013
          %v3086 = vmax.f32 %v3082, %v3014
          %v3087 = vmax.f32 %v3083, %v3015
          %v3088 = vmax.f32 %v3084, %v3016
          %v3089 = vmax.f32 %v3085, %v3017
          %v3090 = vmax.f32 %v3086, %v3018
          %v3091 = vmax.f32 %v3087, %v3019
          %v3092 = vmax.f32 %v3088, %v3020
          %v3093 = vmax.f32 %v3089, %v3021
          %v3094 = vmax.f32 %v3090, %v3022
          %v3095 = vmax.f32 %v3091, %v3023
          %v3096 = vmax.f32 %v3092, %v3024
          %v3097 = vmax.f32 %v3093, %v3025
          %v3098 = vmax.f32 %v3094, %v3026
          %v3099 = vmax.f32 %v3095, %v3027
          %v3100 = vmax.f32 %v3096, %v3028
          %v3101 = vmax.f32 %v3097, %v3029
          %v3102 = vmax.f32 %v3098, %v3030
          %v3103 = vmax.f32 %v3099, %v3031
          %v3104 = vmax.f32 %v3100, %v3032
          %v3105 = vmax.f32 %v3101, %v3033
          %v3106 = vmax.f32 %v3102, %v3034
          %v3107 = vmax.f32 %v3103, %v3035
          %v3108 = vmax.f32 %v3104, %v3036
          %v3109 = vmax.f32 %v3105, %v3037
          %v3110 = vmax.f32 %v3106, %v3038
          %v3111 = vmax.f32 %v3107, %v3039
          %v3112 = vmax.f32 %v3108, %v3040
          %v3113 = vmax.f32 %v3109, %v3041
          %v3114 = vmax.f32 %v3110, %v3042
          %v3115 = vmax.f32 %v3111, %v3043
          %v3116 = vmax.f32 %v3112, %v3044
          %v3117 = vmax.f32 %v3113, %v3045
          %v3118 = vmax.f32 %v3114, %v3046
          %v3119 = vmax.f32 %v3115, %v3047
          %v3120 = vmax.f32 %v3116, %v3048
          %v3121 = vmax.f32 %v3117, %v3049
          %v3122 = vmax.f32 %v3118, %v3050
          %v3123 = vmax.f32 %v3119, %v3051
          %v3124 = vmax.f32 %v3120, %v3052
          %v3125 = vmax.f32 %v3121, %v3053
          %v3126 = vmax.f32 %v3122, %v3054
          %v3127 = vmax.f32 %v3123, %v3055
          %v3128 = vmax.f32 %v3124, %v3056
          %v3129 = vmax.f32 %v3125, %v3057
          %v3130 = vmax.f32 %v3126, %v3058
          %v3131 = vmax.f32 %v3127, %v3059
          %v3132 = vmax.f32 %v3128, %v3060
          %v3133 = vmax.f32 %v3129, %v3061
          %v3134 = vmax.f32 %v3130, %v3062
          %v3135 = vmax.f32 %v3131, %v3063
          %v3136 = vmax.f32 %v3132, %v3133
          %v3137 = vmax.f32 %v3134, %v3135
          %v3138 = vmax.f32 %v3136, %v3137
          %v3139 = vrot.slane %v3138, 4
          %v3140 = vmax.f32 %v3138, %v3139
          %v3141 = vrot.slane %v3140, 2
          %v3142 = vmax.f32 %v3140, %v3141
          %v3143 = vrot.slane %v3142, 1
          %v3144 = vmax.f32 %v3142, %v3143
          %3145 = vset.pattern.permute.xlu0 1
          %3146 = vperm.xlu0 %3145, %v2608
          %v3147 = vpop.permute.xlu0 %3146
          %3148 = vset.pattern.permute.xlu0 1
          %3149 = vperm.xlu0 %3148, %v2609
          %v3150 = vpop.permute.xlu0 %3149
          %3151 = vset.pattern.permute.xlu0 1
          %3152 = vperm.xlu0 %3151, %v2610
          %v3153 = vpop.permute.xlu0 %3152
          %3154 = vset.pattern.permute.xlu0 1
          %3155 = vperm.xlu0 %3154, %v2611
          %v3156 = vpop.permute.xlu0 %3155
          %3157 = vset.pattern.permute.xlu0 1
          %3158 = vperm.xlu0 %3157, %v2612
          %v3159 = vpop.permute.xlu0 %3158
          %3160 = vset.pattern.permute.xlu0 1
          %3161 = vperm.xlu0 %3160, %v2613
          %v3162 = vpop.permute.xlu0 %3161
          %3163 = vset.pattern.permute.xlu0 1
          %3164 = vperm.xlu0 %3163, %v2614
          %v3165 = vpop.permute.xlu0 %3164
          %3166 = vset.pattern.permute.xlu0 1
          %3167 = vperm.xlu0 %3166, %v2615
          %v3168 = vpop.permute.xlu0 %3167
          %3169 = vset.pattern.permute.xlu0 1
          %3170 = vperm.xlu0 %3169, %v2616
          %v3171 = vpop.permute.xlu0 %3170
          %3172 = vset.pattern.permute.xlu0 1
          %3173 = vperm.xlu0 %3172, %v2617
          %v3174 = vpop.permute.xlu0 %3173
          %3175 = vset.pattern.permute.xlu0 1
          %3176 = vperm.xlu0 %3175, %v2618
          %v3177 = vpop.permute.xlu0 %3176
          %3178 = vset.pattern.permute.xlu0 1
          %3179 = vperm.xlu0 %3178, %v2619
          %v3180 = vpop.permute.xlu0 %3179
          %3181 = vset.pattern.permute.xlu0 1
          %3182 = vperm.xlu0 %3181, %v2620
          %v3183 = vpop.permute.xlu0 %3182
          %3184 = vset.pattern.permute.xlu0 1
          %3185 = vperm.xlu0 %3184, %v2621
          %v3186 = vpop.permute.xlu0 %3185
          %3187 = vset.pattern.permute.xlu0 1
          %3188 = vperm.xlu0 %3187, %v2622
          %v3189 = vpop.permute.xlu0 %3188
          %3190 = vset.pattern.permute.xlu0 1
          %3191 = vperm.xlu0 %3190, %v2623
          %v3192 = vpop.permute.xlu0 %3191
          %3193 = vset.pattern.permute.xlu0 1
          %3194 = vperm.xlu0 %3193, %v2624
          %v3195 = vpop.permute.xlu0 %3194
          %3196 = vset.pattern.permute.xlu0 1
          %3197 = vperm.xlu0 %3196, %v2625
          %v3198 = vpop.permute.xlu0 %3197
          %3199 = vset.pattern.permute.xlu0 1
          %3200 = vperm.xlu0 %3199, %v2626
          %v3201 = vpop.permute.xlu0 %3200
          %3202 = vset.pattern.permute.xlu0 1
          %3203 = vperm.xlu0 %3202, %v2627
          %v3204 = vpop.permute.xlu0 %3203
          %3205 = vset.pattern.permute.xlu0 1
          %3206 = vperm.xlu0 %3205, %v2628
          %v3207 = vpop.permute.xlu0 %3206
          %3208 = vset.pattern.permute.xlu0 1
          %3209 = vperm.xlu0 %3208, %v2629
          %v3210 = vpop.permute.xlu0 %3209
          %3211 = vset.pattern.permute.xlu0 1
          %3212 = vperm.xlu0 %3211, %v2630
          %v3213 = vpop.permute.xlu0 %3212
          %3214 = vset.pattern.permute.xlu0 1
          %3215 = vperm.xlu0 %3214, %v2631
          %v3216 = vpop.permute.xlu0 %3215
          %3217 = vset.pattern.permute.xlu0 1
          %3218 = vperm.xlu0 %3217, %v2632
          %v3219 = vpop.permute.xlu0 %3218
          %3220 = vset.pattern.permute.xlu0 1
          %3221 = vperm.xlu0 %3220, %v2633
          %v3222 = vpop.permute.xlu0 %3221
          %3223 = vset.pattern.permute.xlu0 1
          %3224 = vperm.xlu0 %3223, %v2634
          %v3225 = vpop.permute.xlu0 %3224
          %3226 = vset.pattern.permute.xlu0 1
          %3227 = vperm.xlu0 %3226, %v2635
          %v3228 = vpop.permute.xlu0 %3227
          %3229 = vset.pattern.permute.xlu0 1
          %3230 = vperm.xlu0 %3229, %v2636
          %v3231 = vpop.permute.xlu0 %3230
          %3232 = vset.pattern.permute.xlu0 1
          %3233 = vperm.xlu0 %3232, %v2637
          %v3234 = vpop.permute.xlu0 %3233
          %3235 = vset.pattern.permute.xlu0 1
          %3236 = vperm.xlu0 %3235, %v2638
          %v3237 = vpop.permute.xlu0 %3236
          %3238 = vset.pattern.permute.xlu0 1
          %3239 = vperm.xlu0 %3238, %v2639
          %v3240 = vpop.permute.xlu0 %3239
          %3241 = vset.pattern.permute.xlu0 1
          %3242 = vperm.xlu0 %3241, %v2640
          %v3243 = vpop.permute.xlu0 %3242
          %3244 = vset.pattern.permute.xlu0 1
          %3245 = vperm.xlu0 %3244, %v2641
          %v3246 = vpop.permute.xlu0 %3245
          %3247 = vset.pattern.permute.xlu0 1
          %3248 = vperm.xlu0 %3247, %v2642
          %v3249 = vpop.permute.xlu0 %3248
          %3250 = vset.pattern.permute.xlu0 1
          %3251 = vperm.xlu0 %3250, %v2643
          %v3252 = vpop.permute.xlu0 %3251
          %3253 = vset.pattern.permute.xlu0 1
          %3254 = vperm.xlu0 %3253, %v2644
          %v3255 = vpop.permute.xlu0 %3254
          %3256 = vset.pattern.permute.xlu0 1
          %3257 = vperm.xlu0 %3256, %v2645
          %v3258 = vpop.permute.xlu0 %3257
          %3259 = vset.pattern.permute.xlu0 1
          %3260 = vperm.xlu0 %3259, %v2646
          %v3261 = vpop.permute.xlu0 %3260
          %3262 = vset.pattern.permute.xlu0 1
          %3263 = vperm.xlu0 %3262, %v2647
          %v3264 = vpop.permute.xlu0 %3263
          %3265 = vset.pattern.permute.xlu0 1
          %3266 = vperm.xlu0 %3265, %v2648
          %v3267 = vpop.permute.xlu0 %3266
          %3268 = vset.pattern.permute.xlu0 1
          %3269 = vperm.xlu0 %3268, %v2649
          %v3270 = vpop.permute.xlu0 %3269
          %3271 = vset.pattern.permute.xlu0 1
          %3272 = vperm.xlu0 %3271, %v2650
          %v3273 = vpop.permute.xlu0 %3272
          %3274 = vset.pattern.permute.xlu0 1
          %3275 = vperm.xlu0 %3274, %v2651
          %v3276 = vpop.permute.xlu0 %3275
          %3277 = vset.pattern.permute.xlu0 1
          %3278 = vperm.xlu0 %3277, %v2652
          %v3279 = vpop.permute.xlu0 %3278
          %3280 = vset.pattern.permute.xlu0 1
          %3281 = vperm.xlu0 %3280, %v2653
          %v3282 = vpop.permute.xlu0 %3281
          %3283 = vset.pattern.permute.xlu0 1
          %3284 = vperm.xlu0 %3283, %v2654
          %v3285 = vpop.permute.xlu0 %3284
          %3286 = vset.pattern.permute.xlu0 1
          %3287 = vperm.xlu0 %3286, %v2655
          %v3288 = vpop.permute.xlu0 %3287
          %3289 = vset.pattern.permute.xlu0 1
          %3290 = vperm.xlu0 %3289, %v2656
          %v3291 = vpop.permute.xlu0 %3290
          %3292 = vset.pattern.permute.xlu0 1
          %3293 = vperm.xlu0 %3292, %v2657
          %v3294 = vpop.permute.xlu0 %3293
          %3295 = vset.pattern.permute.xlu0 1
          %3296 = vperm.xlu0 %3295, %v2658
          %v3297 = vpop.permute.xlu0 %3296
          %3298 = vset.pattern.permute.xlu0 1
          %3299 = vperm.xlu0 %3298, %v2659
          %v3300 = vpop.permute.xlu0 %3299
          %3301 = vset.pattern.permute.xlu0 1
          %3302 = vperm.xlu0 %3301, %v2660
          %v3303 = vpop.permute.xlu0 %3302
          %3304 = vset.pattern.permute.xlu0 1
          %3305 = vperm.xlu0 %3304, %v2661
          %v3306 = vpop.permute.xlu0 %3305
          %3307 = vset.pattern.permute.xlu0 1
          %3308 = vperm.xlu0 %3307, %v2662
          %v3309 = vpop.permute.xlu0 %3308
          %3310 = vset.pattern.permute.xlu0 1
          %3311 = vperm.xlu0 %3310, %v2663
          %v3312 = vpop.permute.xlu0 %3311
          %3313 = vset.pattern.permute.xlu0 1
          %3314 = vperm.xlu0 %3313, %v2664
          %v3315 = vpop.permute.xlu0 %3314
          %3316 = vset.pattern.permute.xlu0 1
          %3317 = vperm.xlu0 %3316, %v2665
          %v3318 = vpop.permute.xlu0 %3317
          %3319 = vset.pattern.permute.xlu0 1
          %3320 = vperm.xlu0 %3319, %v2666
          %v3321 = vpop.permute.xlu0 %3320
          %3322 = vset.pattern.permute.xlu0 1
          %3323 = vperm.xlu0 %3322, %v2667
          %v3324 = vpop.permute.xlu0 %3323
          %3325 = vset.pattern.permute.xlu0 1
          %3326 = vperm.xlu0 %3325, %v2668
          %v3327 = vpop.permute.xlu0 %3326
          %3328 = vset.pattern.permute.xlu0 1
          %3329 = vperm.xlu0 %3328, %v2669
          %v3330 = vpop.permute.xlu0 %3329
          %3331 = vset.pattern.permute.xlu0 1
          %3332 = vperm.xlu0 %3331, %v2670
          %v3333 = vpop.permute.xlu0 %3332
          %3334 = vset.pattern.permute.xlu0 1
          %3335 = vperm.xlu0 %3334, %v2671
          %v3336 = vpop.permute.xlu0 %3335
          %3337 = vset.pattern.permute.xlu0 1
          %3338 = vperm.xlu0 %3337, %v2672
          %v3339 = vpop.permute.xlu0 %3338
          %3340 = vset.pattern.permute.xlu0 1
          %3341 = vperm.xlu0 %3340, %v2673
          %v3342 = vpop.permute.xlu0 %3341
          %3343 = vset.pattern.permute.xlu0 1
          %3344 = vperm.xlu0 %3343, %v2674
          %v3345 = vpop.permute.xlu0 %3344
          %3346 = vset.pattern.permute.xlu0 1
          %3347 = vperm.xlu0 %3346, %v2675
          %v3348 = vpop.permute.xlu0 %3347
          %3349 = vset.pattern.permute.xlu0 1
          %3350 = vperm.xlu0 %3349, %v2676
          %v3351 = vpop.permute.xlu0 %3350
          %3352 = vset.pattern.permute.xlu0 1
          %3353 = vperm.xlu0 %3352, %v2677
          %v3354 = vpop.permute.xlu0 %3353
          %3355 = vset.pattern.permute.xlu0 1
          %3356 = vperm.xlu0 %3355, %v2678
          %v3357 = vpop.permute.xlu0 %3356
          %3358 = vset.pattern.permute.xlu0 1
          %3359 = vperm.xlu0 %3358, %v2679
          %v3360 = vpop.permute.xlu0 %3359
          %3361 = vset.pattern.permute.xlu0 1
          %3362 = vperm.xlu0 %3361, %v2680
          %v3363 = vpop.permute.xlu0 %3362
          %3364 = vset.pattern.permute.xlu0 1
          %3365 = vperm.xlu0 %3364, %v2681
          %v3366 = vpop.permute.xlu0 %3365
          %3367 = vset.pattern.permute.xlu0 1
          %3368 = vperm.xlu0 %3367, %v2682
          %v3369 = vpop.permute.xlu0 %3368
          %3370 = vset.pattern.permute.xlu0 1
          %3371 = vperm.xlu0 %3370, %v2683
          %v3372 = vpop.permute.xlu0 %3371
          %vm3373 = vcmp.eq.s32.totalorder %v3147, 1
          %vm3374 = vcmp.eq.s32.totalorder %v3150, 1
          %vm3375 = vcmp.eq.s32.totalorder %v3153, 1
          %vm3376 = vcmp.eq.s32.totalorder %v3156, 1
          %vm3377 = vcmp.eq.s32.totalorder %v3159, 1
          %vm3378 = vcmp.eq.s32.totalorder %v3162, 1
          %vm3379 = vcmp.eq.s32.totalorder %v3165, 1
          %vm3380 = vcmp.eq.s32.totalorder %v3168, 1
          %vm3381 = vcmp.eq.s32.totalorder %v3171, 1
          %vm3382 = vcmp.eq.s32.totalorder %v3174, 1
          %vm3383 = vcmp.eq.s32.totalorder %v3177, 1
          %vm3384 = vcmp.eq.s32.totalorder %v3180, 1
          %vm3385 = vcmp.eq.s32.totalorder %v3183, 1
          %vm3386 = vcmp.eq.s32.totalorder %v3186, 1
          %vm3387 = vcmp.eq.s32.totalorder %v3189, 1
          %vm3388 = vcmp.eq.s32.totalorder %v3192, 1
          %vm3389 = vcmp.eq.s32.totalorder %v3195, 1
          %vm3390 = vcmp.eq.s32.totalorder %v3198, 1
          %vm3391 = vcmp.eq.s32.totalorder %v3201, 1
          %vm3392 = vcmp.eq.s32.totalorder %v3204, 1
          %vm3393 = vcmp.eq.s32.totalorder %v3207, 1
          %vm3394 = vcmp.eq.s32.totalorder %v3210, 1
          %vm3395 = vcmp.eq.s32.totalorder %v3213, 1
          %vm3396 = vcmp.eq.s32.totalorder %v3216, 1
          %vm3397 = vcmp.eq.s32.totalorder %v3219, 1
          %vm3398 = vcmp.eq.s32.totalorder %v3222, 1
          %vm3399 = vcmp.eq.s32.totalorder %v3225, 1
          %vm3400 = vcmp.eq.s32.totalorder %v3228, 1
          %vm3401 = vcmp.eq.s32.totalorder %v3231, 1
          %vm3402 = vcmp.eq.s32.totalorder %v3234, 1
          %vm3403 = vcmp.eq.s32.totalorder %v3237, 1
          %vm3404 = vcmp.eq.s32.totalorder %v3240, 1
          %vm3405 = vcmp.eq.s32.totalorder %v3243, 1
          %vm3406 = vcmp.eq.s32.totalorder %v3246, 1
          %vm3407 = vcmp.eq.s32.totalorder %v3249, 1
          %vm3408 = vcmp.eq.s32.totalorder %v3252, 1
          %vm3409 = vcmp.eq.s32.totalorder %v3255, 1
          %vm3410 = vcmp.eq.s32.totalorder %v3258, 1
          %vm3411 = vcmp.eq.s32.totalorder %v3261, 1
          %vm3412 = vcmp.eq.s32.totalorder %v3264, 1
          %vm3413 = vcmp.eq.s32.totalorder %v3267, 1
          %vm3414 = vcmp.eq.s32.totalorder %v3270, 1
          %vm3415 = vcmp.eq.s32.totalorder %v3273, 1
          %vm3416 = vcmp.eq.s32.totalorder %v3276, 1
          %vm3417 = vcmp.eq.s32.totalorder %v3279, 1
          %vm3418 = vcmp.eq.s32.totalorder %v3282, 1
          %vm3419 = vcmp.eq.s32.totalorder %v3285, 1
          %vm3420 = vcmp.eq.s32.totalorder %v3288, 1
          %vm3421 = vcmp.eq.s32.totalorder %v3291, 1
          %vm3422 = vcmp.eq.s32.totalorder %v3294, 1
          %vm3423 = vcmp.eq.s32.totalorder %v3297, 1
          %vm3424 = vcmp.eq.s32.totalorder %v3300, 1
          %vm3425 = vcmp.eq.s32.totalorder %v3303, 1
          %vm3426 = vcmp.eq.s32.totalorder %v3306, 1
          %vm3427 = vcmp.eq.s32.totalorder %v3309, 1
          %vm3428 = vcmp.eq.s32.totalorder %v3312, 1
          %vm3429 = vcmp.eq.s32.totalorder %v3315, 1
          %vm3430 = vcmp.eq.s32.totalorder %v3318, 1
          %vm3431 = vcmp.eq.s32.totalorder %v3321, 1
          %vm3432 = vcmp.eq.s32.totalorder %v3324, 1
          %vm3433 = vcmp.eq.s32.totalorder %v3327, 1
          %vm3434 = vcmp.eq.s32.totalorder %v3330, 1
          %vm3435 = vcmp.eq.s32.totalorder %v3333, 1
          %vm3436 = vcmp.eq.s32.totalorder %v3336, 1
          %vm3437 = vcmp.eq.s32.totalorder %v3339, 1
          %vm3438 = vcmp.eq.s32.totalorder %v3342, 1
          %vm3439 = vcmp.eq.s32.totalorder %v3345, 1
          %vm3440 = vcmp.eq.s32.totalorder %v3348, 1
          %vm3441 = vcmp.eq.s32.totalorder %v3351, 1
          %vm3442 = vcmp.eq.s32.totalorder %v3354, 1
          %vm3443 = vcmp.eq.s32.totalorder %v3357, 1
          %vm3444 = vcmp.eq.s32.totalorder %v3360, 1
          %vm3445 = vcmp.eq.s32.totalorder %v3363, 1
          %vm3446 = vcmp.eq.s32.totalorder %v3366, 1
          %vm3447 = vcmp.eq.s32.totalorder %v3369, 1
          %vm3448 = vcmp.eq.s32.totalorder %v3372, 1
          %v3449 = vsel %vm3373, %v2418, -3.3895314e+38
          %v3450 = vsel %vm3374, %v2420, -3.3895314e+38
          %v3451 = vsel %vm3375, %v2423, -3.3895314e+38
          %v3452 = vsel %vm3376, %v2425, -3.3895314e+38
          %v3453 = vsel %vm3377, %v2428, -3.3895314e+38
          %v3454 = vsel %vm3378, %v2430, -3.3895314e+38
          %v3455 = vsel %vm3379, %v2433, -3.3895314e+38
          %v3456 = vsel %vm3380, %v2435, -3.3895314e+38
          %v3457 = vsel %vm3381, %v2438, -3.3895314e+38
          %v3458 = vsel %vm3382, %v2440, -3.3895314e+38
          %v3459 = vsel %vm3383, %v2443, -3.3895314e+38
          %v3460 = vsel %vm3384, %v2445, -3.3895314e+38
          %v3461 = vsel %vm3385, %v2448, -3.3895314e+38
          %v3462 = vsel %vm3386, %v2450, -3.3895314e+38
          %v3463 = vsel %vm3387, %v2453, -3.3895314e+38
          %v3464 = vsel %vm3388, %v2455, -3.3895314e+38
          %v3465 = vsel %vm3389, %v2458, -3.3895314e+38
          %v3466 = vsel %vm3390, %v2460, -3.3895314e+38
          %v3467 = vsel %vm3391, %v2463, -3.3895314e+38
          %v3468 = vsel %vm3392, %v2465, -3.3895314e+38
          %v3469 = vsel %vm3393, %v2468, -3.3895314e+38
          %v3470 = vsel %vm3394, %v2470, -3.3895314e+38
          %v3471 = vsel %vm3395, %v2473, -3.3895314e+38
          %v3472 = vsel %vm3396, %v2475, -3.3895314e+38
          %v3473 = vsel %vm3397, %v2478, -3.3895314e+38
          %v3474 = vsel %vm3398, %v2480, -3.3895314e+38
          %v3475 = vsel %vm3399, %v2483, -3.3895314e+38
          %v3476 = vsel %vm3400, %v2485, -3.3895314e+38
          %v3477 = vsel %vm3401, %v2488, -3.3895314e+38
          %v3478 = vsel %vm3402, %v2490, -3.3895314e+38
          %v3479 = vsel %vm3403, %v2493, -3.3895314e+38
          %v3480 = vsel %vm3404, %v2495, -3.3895314e+38
          %v3481 = vsel %vm3405, %v2498, -3.3895314e+38
          %v3482 = vsel %vm3406, %v2500, -3.3895314e+38
          %v3483 = vsel %vm3407, %v2503, -3.3895314e+38
          %v3484 = vsel %vm3408, %v2505, -3.3895314e+38
          %v3485 = vsel %vm3409, %v2508, -3.3895314e+38
          %v3486 = vsel %vm3410, %v2510, -3.3895314e+38
          %v3487 = vsel %vm3411, %v2513, -3.3895314e+38
          %v3488 = vsel %vm3412, %v2515, -3.3895314e+38
          %v3489 = vsel %vm3413, %v2518, -3.3895314e+38
          %v3490 = vsel %vm3414, %v2520, -3.3895314e+38
          %v3491 = vsel %vm3415, %v2523, -3.3895314e+38
          %v3492 = vsel %vm3416, %v2525, -3.3895314e+38
          %v3493 = vsel %vm3417, %v2528, -3.3895314e+38
          %v3494 = vsel %vm3418, %v2530, -3.3895314e+38
          %v3495 = vsel %vm3419, %v2533, -3.3895314e+38
          %v3496 = vsel %vm3420, %v2535, -3.3895314e+38
          %v3497 = vsel %vm3421, %v2538, -3.3895314e+38
          %v3498 = vsel %vm3422, %v2540, -3.3895314e+38
          %v3499 = vsel %vm3423, %v2543, -3.3895314e+38
          %v3500 = vsel %vm3424, %v2545, -3.3895314e+38
          %v3501 = vsel %vm3425, %v2548, -3.3895314e+38
          %v3502 = vsel %vm3426, %v2550, -3.3895314e+38
          %v3503 = vsel %vm3427, %v2553, -3.3895314e+38
          %v3504 = vsel %vm3428, %v2555, -3.3895314e+38
          %v3505 = vsel %vm3429, %v2558, -3.3895314e+38
          %v3506 = vsel %vm3430, %v2560, -3.3895314e+38
          %v3507 = vsel %vm3431, %v2563, -3.3895314e+38
          %v3508 = vsel %vm3432, %v2565, -3.3895314e+38
          %v3509 = vsel %vm3433, %v2568, -3.3895314e+38
          %v3510 = vsel %vm3434, %v2570, -3.3895314e+38
          %v3511 = vsel %vm3435, %v2573, -3.3895314e+38
          %v3512 = vsel %vm3436, %v2575, -3.3895314e+38
          %v3513 = vsel %vm3437, %v2578, -3.3895314e+38
          %v3514 = vsel %vm3438, %v2580, -3.3895314e+38
          %v3515 = vsel %vm3439, %v2583, -3.3895314e+38
          %v3516 = vsel %vm3440, %v2585, -3.3895314e+38
          %v3517 = vsel %vm3441, %v2588, -3.3895314e+38
          %v3518 = vsel %vm3442, %v2590, -3.3895314e+38
          %v3519 = vsel %vm3443, %v2593, -3.3895314e+38
          %v3520 = vsel %vm3444, %v2595, -3.3895314e+38
          %v3521 = vsel %vm3445, %v2598, -3.3895314e+38
          %v3522 = vsel %vm3446, %v2600, -3.3895314e+38
          %v3523 = vsel %vm3447, %v2603, -3.3895314e+38
          %v3524 = vsel %vm3448, %v2605, -3.3895314e+38
          %v3525 = vmax.f32 %v3449, %v3453
          %v3526 = vmax.f32 %v3450, %v3454
          %v3527 = vmax.f32 %v3451, %v3455
          %v3528 = vmax.f32 %v3452, %v3456
          %v3529 = vmax.f32 %v3525, %v3457
          %v3530 = vmax.f32 %v3526, %v3458
          %v3531 = vmax.f32 %v3527, %v3459
          %v3532 = vmax.f32 %v3528, %v3460
          %v3533 = vmax.f32 %v3529, %v3461
          %v3534 = vmax.f32 %v3530, %v3462
          %v3535 = vmax.f32 %v3531, %v3463
          %v3536 = vmax.f32 %v3532, %v3464
          %v3537 = vmax.f32 %v3533, %v3465
          %v3538 = vmax.f32 %v3534, %v3466
          %v3539 = vmax.f32 %v3535, %v3467
          %v3540 = vmax.f32 %v3536, %v3468
          %v3541 = vmax.f32 %v3537, %v3469
          %v3542 = vmax.f32 %v3538, %v3470
          %v3543 = vmax.f32 %v3539, %v3471
          %v3544 = vmax.f32 %v3540, %v3472
          %v3545 = vmax.f32 %v3541, %v3473
          %v3546 = vmax.f32 %v3542, %v3474
          %v3547 = vmax.f32 %v3543, %v3475
          %v3548 = vmax.f32 %v3544, %v3476
          %v3549 = vmax.f32 %v3545, %v3477
          %v3550 = vmax.f32 %v3546, %v3478
          %v3551 = vmax.f32 %v3547, %v3479
          %v3552 = vmax.f32 %v3548, %v3480
          %v3553 = vmax.f32 %v3549, %v3481
          %v3554 = vmax.f32 %v3550, %v3482
          %v3555 = vmax.f32 %v3551, %v3483
          %v3556 = vmax.f32 %v3552, %v3484
          %v3557 = vmax.f32 %v3553, %v3485
          %v3558 = vmax.f32 %v3554, %v3486
          %v3559 = vmax.f32 %v3555, %v3487
          %v3560 = vmax.f32 %v3556, %v3488
          %v3561 = vmax.f32 %v3557, %v3489
          %v3562 = vmax.f32 %v3558, %v3490
          %v3563 = vmax.f32 %v3559, %v3491
          %v3564 = vmax.f32 %v3560, %v3492
          %v3565 = vmax.f32 %v3561, %v3493
          %v3566 = vmax.f32 %v3562, %v3494
          %v3567 = vmax.f32 %v3563, %v3495
          %v3568 = vmax.f32 %v3564, %v3496
          %v3569 = vmax.f32 %v3565, %v3497
          %v3570 = vmax.f32 %v3566, %v3498
          %v3571 = vmax.f32 %v3567, %v3499
          %v3572 = vmax.f32 %v3568, %v3500
          %v3573 = vmax.f32 %v3569, %v3501
          %v3574 = vmax.f32 %v3570, %v3502
          %v3575 = vmax.f32 %v3571, %v3503
          %v3576 = vmax.f32 %v3572, %v3504
          %v3577 = vmax.f32 %v3573, %v3505
          %v3578 = vmax.f32 %v3574, %v3506
          %v3579 = vmax.f32 %v3575, %v3507
          %v3580 = vmax.f32 %v3576, %v3508
          %v3581 = vmax.f32 %v3577, %v3509
          %v3582 = vmax.f32 %v3578, %v3510
          %v3583 = vmax.f32 %v3579, %v3511
          %v3584 = vmax.f32 %v3580, %v3512
          %v3585 = vmax.f32 %v3581, %v3513
          %v3586 = vmax.f32 %v3582, %v3514
          %v3587 = vmax.f32 %v3583, %v3515
          %v3588 = vmax.f32 %v3584, %v3516
          %v3589 = vmax.f32 %v3585, %v3517
          %v3590 = vmax.f32 %v3586, %v3518
          %v3591 = vmax.f32 %v3587, %v3519
          %v3592 = vmax.f32 %v3588, %v3520
          %v3593 = vmax.f32 %v3589, %v3521
          %v3594 = vmax.f32 %v3590, %v3522
          %v3595 = vmax.f32 %v3591, %v3523
          %v3596 = vmax.f32 %v3592, %v3524
          %v3597 = vmax.f32 %v3593, %v3594
          %v3598 = vmax.f32 %v3595, %v3596
          %v3599 = vmax.f32 %v3597, %v3598
          %v3600 = vrot.slane %v3599, 4
          %v3601 = vmax.f32 %v3599, %v3600
          %v3602 = vrot.slane %v3601, 2
          %v3603 = vmax.f32 %v3601, %v3602
          %v3604 = vrot.slane %v3603, 1
          %v3605 = vmax.f32 %v3603, %v3604
          %3606 = vset.pattern.permute.xlu0 2
          %3607 = vperm.xlu0 %3606, %v2608
          %v3608 = vpop.permute.xlu0 %3607
          %3609 = vset.pattern.permute.xlu0 2
          %3610 = vperm.xlu0 %3609, %v2609
          %v3611 = vpop.permute.xlu0 %3610
          %3612 = vset.pattern.permute.xlu0 2
          %3613 = vperm.xlu0 %3612, %v2610
          %v3614 = vpop.permute.xlu0 %3613
          %3615 = vset.pattern.permute.xlu0 2
          %3616 = vperm.xlu0 %3615, %v2611
          %v3617 = vpop.permute.xlu0 %3616
          %3618 = vset.pattern.permute.xlu0 2
          %3619 = vperm.xlu0 %3618, %v2612
          %v3620 = vpop.permute.xlu0 %3619
          %3621 = vset.pattern.permute.xlu0 2
          %3622 = vperm.xlu0 %3621, %v2613
          %v3623 = vpop.permute.xlu0 %3622
          %3624 = vset.pattern.permute.xlu0 2
          %3625 = vperm.xlu0 %3624, %v2614
          %v3626 = vpop.permute.xlu0 %3625
          %3627 = vset.pattern.permute.xlu0 2
          %3628 = vperm.xlu0 %3627, %v2615
          %v3629 = vpop.permute.xlu0 %3628
          %3630 = vset.pattern.permute.xlu0 2
          %3631 = vperm.xlu0 %3630, %v2616
          %v3632 = vpop.permute.xlu0 %3631
          %3633 = vset.pattern.permute.xlu0 2
          %3634 = vperm.xlu0 %3633, %v2617
          %v3635 = vpop.permute.xlu0 %3634
          %3636 = vset.pattern.permute.xlu0 2
          %3637 = vperm.xlu0 %3636, %v2618
          %v3638 = vpop.permute.xlu0 %3637
          %3639 = vset.pattern.permute.xlu0 2
          %3640 = vperm.xlu0 %3639, %v2619
          %v3641 = vpop.permute.xlu0 %3640
          %3642 = vset.pattern.permute.xlu0 2
          %3643 = vperm.xlu0 %3642, %v2620
          %v3644 = vpop.permute.xlu0 %3643
          %3645 = vset.pattern.permute.xlu0 2
          %3646 = vperm.xlu0 %3645, %v2621
          %v3647 = vpop.permute.xlu0 %3646
          %3648 = vset.pattern.permute.xlu0 2
          %3649 = vperm.xlu0 %3648, %v2622
          %v3650 = vpop.permute.xlu0 %3649
          %3651 = vset.pattern.permute.xlu0 2
          %3652 = vperm.xlu0 %3651, %v2623
          %v3653 = vpop.permute.xlu0 %3652
          %3654 = vset.pattern.permute.xlu0 2
          %3655 = vperm.xlu0 %3654, %v2624
          %v3656 = vpop.permute.xlu0 %3655
          %3657 = vset.pattern.permute.xlu0 2
          %3658 = vperm.xlu0 %3657, %v2625
          %v3659 = vpop.permute.xlu0 %3658
          %3660 = vset.pattern.permute.xlu0 2
          %3661 = vperm.xlu0 %3660, %v2626
          %v3662 = vpop.permute.xlu0 %3661
          %3663 = vset.pattern.permute.xlu0 2
          %3664 = vperm.xlu0 %3663, %v2627
          %v3665 = vpop.permute.xlu0 %3664
          %3666 = vset.pattern.permute.xlu0 2
          %3667 = vperm.xlu0 %3666, %v2628
          %v3668 = vpop.permute.xlu0 %3667
          %3669 = vset.pattern.permute.xlu0 2
          %3670 = vperm.xlu0 %3669, %v2629
          %v3671 = vpop.permute.xlu0 %3670
          %3672 = vset.pattern.permute.xlu0 2
          %3673 = vperm.xlu0 %3672, %v2630
          %v3674 = vpop.permute.xlu0 %3673
          %3675 = vset.pattern.permute.xlu0 2
          %3676 = vperm.xlu0 %3675, %v2631
          %v3677 = vpop.permute.xlu0 %3676
          %3678 = vset.pattern.permute.xlu0 2
          %3679 = vperm.xlu0 %3678, %v2632
          %v3680 = vpop.permute.xlu0 %3679
          %3681 = vset.pattern.permute.xlu0 2
          %3682 = vperm.xlu0 %3681, %v2633
          %v3683 = vpop.permute.xlu0 %3682
          %3684 = vset.pattern.permute.xlu0 2
          %3685 = vperm.xlu0 %3684, %v2634
          %v3686 = vpop.permute.xlu0 %3685
          %3687 = vset.pattern.permute.xlu0 2
          %3688 = vperm.xlu0 %3687, %v2635
          %v3689 = vpop.permute.xlu0 %3688
          %3690 = vset.pattern.permute.xlu0 2
          %3691 = vperm.xlu0 %3690, %v2636
          %v3692 = vpop.permute.xlu0 %3691
          %3693 = vset.pattern.permute.xlu0 2
          %3694 = vperm.xlu0 %3693, %v2637
          %v3695 = vpop.permute.xlu0 %3694
          %3696 = vset.pattern.permute.xlu0 2
          %3697 = vperm.xlu0 %3696, %v2638
          %v3698 = vpop.permute.xlu0 %3697
          %3699 = vset.pattern.permute.xlu0 2
          %3700 = vperm.xlu0 %3699, %v2639
          %v3701 = vpop.permute.xlu0 %3700
          %3702 = vset.pattern.permute.xlu0 2
          %3703 = vperm.xlu0 %3702, %v2640
          %v3704 = vpop.permute.xlu0 %3703
          %3705 = vset.pattern.permute.xlu0 2
          %3706 = vperm.xlu0 %3705, %v2641
          %v3707 = vpop.permute.xlu0 %3706
          %3708 = vset.pattern.permute.xlu0 2
          %3709 = vperm.xlu0 %3708, %v2642
          %v3710 = vpop.permute.xlu0 %3709
          %3711 = vset.pattern.permute.xlu0 2
          %3712 = vperm.xlu0 %3711, %v2643
          %v3713 = vpop.permute.xlu0 %3712
          %3714 = vset.pattern.permute.xlu0 2
          %3715 = vperm.xlu0 %3714, %v2644
          %v3716 = vpop.permute.xlu0 %3715
          %3717 = vset.pattern.permute.xlu0 2
          %3718 = vperm.xlu0 %3717, %v2645
          %v3719 = vpop.permute.xlu0 %3718
          %3720 = vset.pattern.permute.xlu0 2
          %3721 = vperm.xlu0 %3720, %v2646
          %v3722 = vpop.permute.xlu0 %3721
          %3723 = vset.pattern.permute.xlu0 2
          %3724 = vperm.xlu0 %3723, %v2647
          %v3725 = vpop.permute.xlu0 %3724
          %3726 = vset.pattern.permute.xlu0 2
          %3727 = vperm.xlu0 %3726, %v2648
          %v3728 = vpop.permute.xlu0 %3727
          %3729 = vset.pattern.permute.xlu0 2
          %3730 = vperm.xlu0 %3729, %v2649
          %v3731 = vpop.permute.xlu0 %3730
          %3732 = vset.pattern.permute.xlu0 2
          %3733 = vperm.xlu0 %3732, %v2650
          %v3734 = vpop.permute.xlu0 %3733
          %3735 = vset.pattern.permute.xlu0 2
          %3736 = vperm.xlu0 %3735, %v2651
          %v3737 = vpop.permute.xlu0 %3736
          %3738 = vset.pattern.permute.xlu0 2
          %3739 = vperm.xlu0 %3738, %v2652
          %v3740 = vpop.permute.xlu0 %3739
          %3741 = vset.pattern.permute.xlu0 2
          %3742 = vperm.xlu0 %3741, %v2653
          %v3743 = vpop.permute.xlu0 %3742
          %3744 = vset.pattern.permute.xlu0 2
          %3745 = vperm.xlu0 %3744, %v2654
          %v3746 = vpop.permute.xlu0 %3745
          %3747 = vset.pattern.permute.xlu0 2
          %3748 = vperm.xlu0 %3747, %v2655
          %v3749 = vpop.permute.xlu0 %3748
          %3750 = vset.pattern.permute.xlu0 2
          %3751 = vperm.xlu0 %3750, %v2656
          %v3752 = vpop.permute.xlu0 %3751
          %3753 = vset.pattern.permute.xlu0 2
          %3754 = vperm.xlu0 %3753, %v2657
          %v3755 = vpop.permute.xlu0 %3754
          %3756 = vset.pattern.permute.xlu0 2
          %3757 = vperm.xlu0 %3756, %v2658
          %v3758 = vpop.permute.xlu0 %3757
          %3759 = vset.pattern.permute.xlu0 2
          %3760 = vperm.xlu0 %3759, %v2659
          %v3761 = vpop.permute.xlu0 %3760
          %3762 = vset.pattern.permute.xlu0 2
          %3763 = vperm.xlu0 %3762, %v2660
          %v3764 = vpop.permute.xlu0 %3763
          %3765 = vset.pattern.permute.xlu0 2
          %3766 = vperm.xlu0 %3765, %v2661
          %v3767 = vpop.permute.xlu0 %3766
          %3768 = vset.pattern.permute.xlu0 2
          %3769 = vperm.xlu0 %3768, %v2662
          %v3770 = vpop.permute.xlu0 %3769
          %3771 = vset.pattern.permute.xlu0 2
          %3772 = vperm.xlu0 %3771, %v2663
          %v3773 = vpop.permute.xlu0 %3772
          %3774 = vset.pattern.permute.xlu0 2
          %3775 = vperm.xlu0 %3774, %v2664
          %v3776 = vpop.permute.xlu0 %3775
          %3777 = vset.pattern.permute.xlu0 2
          %3778 = vperm.xlu0 %3777, %v2665
          %v3779 = vpop.permute.xlu0 %3778
          %3780 = vset.pattern.permute.xlu0 2
          %3781 = vperm.xlu0 %3780, %v2666
          %v3782 = vpop.permute.xlu0 %3781
          %3783 = vset.pattern.permute.xlu0 2
          %3784 = vperm.xlu0 %3783, %v2667
          %v3785 = vpop.permute.xlu0 %3784
          %3786 = vset.pattern.permute.xlu0 2
          %3787 = vperm.xlu0 %3786, %v2668
          %v3788 = vpop.permute.xlu0 %3787
          %3789 = vset.pattern.permute.xlu0 2
          %3790 = vperm.xlu0 %3789, %v2669
          %v3791 = vpop.permute.xlu0 %3790
          %3792 = vset.pattern.permute.xlu0 2
          %3793 = vperm.xlu0 %3792, %v2670
          %v3794 = vpop.permute.xlu0 %3793
          %3795 = vset.pattern.permute.xlu0 2
          %3796 = vperm.xlu0 %3795, %v2671
          %v3797 = vpop.permute.xlu0 %3796
          %3798 = vset.pattern.permute.xlu0 2
          %3799 = vperm.xlu0 %3798, %v2672
          %v3800 = vpop.permute.xlu0 %3799
          %3801 = vset.pattern.permute.xlu0 2
          %3802 = vperm.xlu0 %3801, %v2673
          %v3803 = vpop.permute.xlu0 %3802
          %3804 = vset.pattern.permute.xlu0 2
          %3805 = vperm.xlu0 %3804, %v2674
          %v3806 = vpop.permute.xlu0 %3805
          %3807 = vset.pattern.permute.xlu0 2
          %3808 = vperm.xlu0 %3807, %v2675
          %v3809 = vpop.permute.xlu0 %3808
          %3810 = vset.pattern.permute.xlu0 2
          %3811 = vperm.xlu0 %3810, %v2676
          %v3812 = vpop.permute.xlu0 %3811
          %3813 = vset.pattern.permute.xlu0 2
          %3814 = vperm.xlu0 %3813, %v2677
          %v3815 = vpop.permute.xlu0 %3814
          %3816 = vset.pattern.permute.xlu0 2
          %3817 = vperm.xlu0 %3816, %v2678
          %v3818 = vpop.permute.xlu0 %3817
          %3819 = vset.pattern.permute.xlu0 2
          %3820 = vperm.xlu0 %3819, %v2679
          %v3821 = vpop.permute.xlu0 %3820
          %3822 = vset.pattern.permute.xlu0 2
          %3823 = vperm.xlu0 %3822, %v2680
          %v3824 = vpop.permute.xlu0 %3823
          %3825 = vset.pattern.permute.xlu0 2
          %3826 = vperm.xlu0 %3825, %v2681
          %v3827 = vpop.permute.xlu0 %3826
          %3828 = vset.pattern.permute.xlu0 2
          %3829 = vperm.xlu0 %3828, %v2682
          %v3830 = vpop.permute.xlu0 %3829
          %3831 = vset.pattern.permute.xlu0 2
          %3832 = vperm.xlu0 %3831, %v2683
          %v3833 = vpop.permute.xlu0 %3832
          %vm3834 = vcmp.eq.s32.totalorder %v3608, 1
          %vm3835 = vcmp.eq.s32.totalorder %v3611, 1
          %vm3836 = vcmp.eq.s32.totalorder %v3614, 1
          %vm3837 = vcmp.eq.s32.totalorder %v3617, 1
          %vm3838 = vcmp.eq.s32.totalorder %v3620, 1
          %vm3839 = vcmp.eq.s32.totalorder %v3623, 1
          %vm3840 = vcmp.eq.s32.totalorder %v3626, 1
          %vm3841 = vcmp.eq.s32.totalorder %v3629, 1
          %vm3842 = vcmp.eq.s32.totalorder %v3632, 1
          %vm3843 = vcmp.eq.s32.totalorder %v3635, 1
          %vm3844 = vcmp.eq.s32.totalorder %v3638, 1
          %vm3845 = vcmp.eq.s32.totalorder %v3641, 1
          %vm3846 = vcmp.eq.s32.totalorder %v3644, 1
          %vm3847 = vcmp.eq.s32.totalorder %v3647, 1
          %vm3848 = vcmp.eq.s32.totalorder %v3650, 1
          %vm3849 = vcmp.eq.s32.totalorder %v3653, 1
          %vm3850 = vcmp.eq.s32.totalorder %v3656, 1
          %vm3851 = vcmp.eq.s32.totalorder %v3659, 1
          %vm3852 = vcmp.eq.s32.totalorder %v3662, 1
          %vm3853 = vcmp.eq.s32.totalorder %v3665, 1
          %vm3854 = vcmp.eq.s32.totalorder %v3668, 1
          %vm3855 = vcmp.eq.s32.totalorder %v3671, 1
          %vm3856 = vcmp.eq.s32.totalorder %v3674, 1
          %vm3857 = vcmp.eq.s32.totalorder %v3677, 1
          %vm3858 = vcmp.eq.s32.totalorder %v3680, 1
          %vm3859 = vcmp.eq.s32.totalorder %v3683, 1
          %vm3860 = vcmp.eq.s32.totalorder %v3686, 1
          %vm3861 = vcmp.eq.s32.totalorder %v3689, 1
          %vm3862 = vcmp.eq.s32.totalorder %v3692, 1
          %vm3863 = vcmp.eq.s32.totalorder %v3695, 1
          %vm3864 = vcmp.eq.s32.totalorder %v3698, 1
          %vm3865 = vcmp.eq.s32.totalorder %v3701, 1
          %vm3866 = vcmp.eq.s32.totalorder %v3704, 1
          %vm3867 = vcmp.eq.s32.totalorder %v3707, 1
          %vm3868 = vcmp.eq.s32.totalorder %v3710, 1
          %vm3869 = vcmp.eq.s32.totalorder %v3713, 1
          %vm3870 = vcmp.eq.s32.totalorder %v3716, 1
          %vm3871 = vcmp.eq.s32.totalorder %v3719, 1
          %vm3872 = vcmp.eq.s32.totalorder %v3722, 1
          %vm3873 = vcmp.eq.s32.totalorder %v3725, 1
          %vm3874 = vcmp.eq.s32.totalorder %v3728, 1
          %vm3875 = vcmp.eq.s32.totalorder %v3731, 1
          %vm3876 = vcmp.eq.s32.totalorder %v3734, 1
          %vm3877 = vcmp.eq.s32.totalorder %v3737, 1
          %vm3878 = vcmp.eq.s32.totalorder %v3740, 1
          %vm3879 = vcmp.eq.s32.totalorder %v3743, 1
          %vm3880 = vcmp.eq.s32.totalorder %v3746, 1
          %vm3881 = vcmp.eq.s32.totalorder %v3749, 1
          %vm3882 = vcmp.eq.s32.totalorder %v3752, 1
          %vm3883 = vcmp.eq.s32.totalorder %v3755, 1
          %vm3884 = vcmp.eq.s32.totalorder %v3758, 1
          %vm3885 = vcmp.eq.s32.totalorder %v3761, 1
          %vm3886 = vcmp.eq.s32.totalorder %v3764, 1
          %vm3887 = vcmp.eq.s32.totalorder %v3767, 1
          %vm3888 = vcmp.eq.s32.totalorder %v3770, 1
          %vm3889 = vcmp.eq.s32.totalorder %v3773, 1
          %vm3890 = vcmp.eq.s32.totalorder %v3776, 1
          %vm3891 = vcmp.eq.s32.totalorder %v3779, 1
          %vm3892 = vcmp.eq.s32.totalorder %v3782, 1
          %vm3893 = vcmp.eq.s32.totalorder %v3785, 1
          %vm3894 = vcmp.eq.s32.totalorder %v3788, 1
          %vm3895 = vcmp.eq.s32.totalorder %v3791, 1
          %vm3896 = vcmp.eq.s32.totalorder %v3794, 1
          %vm3897 = vcmp.eq.s32.totalorder %v3797, 1
          %vm3898 = vcmp.eq.s32.totalorder %v3800, 1
          %vm3899 = vcmp.eq.s32.totalorder %v3803, 1
          %vm3900 = vcmp.eq.s32.totalorder %v3806, 1
          %vm3901 = vcmp.eq.s32.totalorder %v3809, 1
          %vm3902 = vcmp.eq.s32.totalorder %v3812, 1
          %vm3903 = vcmp.eq.s32.totalorder %v3815, 1
          %vm3904 = vcmp.eq.s32.totalorder %v3818, 1
          %vm3905 = vcmp.eq.s32.totalorder %v3821, 1
          %vm3906 = vcmp.eq.s32.totalorder %v3824, 1
          %vm3907 = vcmp.eq.s32.totalorder %v3827, 1
          %vm3908 = vcmp.eq.s32.totalorder %v3830, 1
          %vm3909 = vcmp.eq.s32.totalorder %v3833, 1
          %v3910 = vsel %vm3834, %v2418, -3.3895314e+38
          %v3911 = vsel %vm3835, %v2420, -3.3895314e+38
          %v3912 = vsel %vm3836, %v2423, -3.3895314e+38
          %v3913 = vsel %vm3837, %v2425, -3.3895314e+38
          %v3914 = vsel %vm3838, %v2428, -3.3895314e+38
          %v3915 = vsel %vm3839, %v2430, -3.3895314e+38
          %v3916 = vsel %vm3840, %v2433, -3.3895314e+38
          %v3917 = vsel %vm3841, %v2435, -3.3895314e+38
          %v3918 = vsel %vm3842, %v2438, -3.3895314e+38
          %v3919 = vsel %vm3843, %v2440, -3.3895314e+38
          %v3920 = vsel %vm3844, %v2443, -3.3895314e+38
          %v3921 = vsel %vm3845, %v2445, -3.3895314e+38
          %v3922 = vsel %vm3846, %v2448, -3.3895314e+38
          %v3923 = vsel %vm3847, %v2450, -3.3895314e+38
          %v3924 = vsel %vm3848, %v2453, -3.3895314e+38
          %v3925 = vsel %vm3849, %v2455, -3.3895314e+38
          %v3926 = vsel %vm3850, %v2458, -3.3895314e+38
          %v3927 = vsel %vm3851, %v2460, -3.3895314e+38
          %v3928 = vsel %vm3852, %v2463, -3.3895314e+38
          %v3929 = vsel %vm3853, %v2465, -3.3895314e+38
          %v3930 = vsel %vm3854, %v2468, -3.3895314e+38
          %v3931 = vsel %vm3855, %v2470, -3.3895314e+38
          %v3932 = vsel %vm3856, %v2473, -3.3895314e+38
          %v3933 = vsel %vm3857, %v2475, -3.3895314e+38
          %v3934 = vsel %vm3858, %v2478, -3.3895314e+38
          %v3935 = vsel %vm3859, %v2480, -3.3895314e+38
          %v3936 = vsel %vm3860, %v2483, -3.3895314e+38
          %v3937 = vsel %vm3861, %v2485, -3.3895314e+38
          %v3938 = vsel %vm3862, %v2488, -3.3895314e+38
          %v3939 = vsel %vm3863, %v2490, -3.3895314e+38
          %v3940 = vsel %vm3864, %v2493, -3.3895314e+38
          %v3941 = vsel %vm3865, %v2495, -3.3895314e+38
          %v3942 = vsel %vm3866, %v2498, -3.3895314e+38
          %v3943 = vsel %vm3867, %v2500, -3.3895314e+38
          %v3944 = vsel %vm3868, %v2503, -3.3895314e+38
          %v3945 = vsel %vm3869, %v2505, -3.3895314e+38
          %v3946 = vsel %vm3870, %v2508, -3.3895314e+38
          %v3947 = vsel %vm3871, %v2510, -3.3895314e+38
          %v3948 = vsel %vm3872, %v2513, -3.3895314e+38
          %v3949 = vsel %vm3873, %v2515, -3.3895314e+38
          %v3950 = vsel %vm3874, %v2518, -3.3895314e+38
          %v3951 = vsel %vm3875, %v2520, -3.3895314e+38
          %v3952 = vsel %vm3876, %v2523, -3.3895314e+38
          %v3953 = vsel %vm3877, %v2525, -3.3895314e+38
          %v3954 = vsel %vm3878, %v2528, -3.3895314e+38
          %v3955 = vsel %vm3879, %v2530, -3.3895314e+38
          %v3956 = vsel %vm3880, %v2533, -3.3895314e+38
          %v3957 = vsel %vm3881, %v2535, -3.3895314e+38
          %v3958 = vsel %vm3882, %v2538, -3.3895314e+38
          %v3959 = vsel %vm3883, %v2540, -3.3895314e+38
          %v3960 = vsel %vm3884, %v2543, -3.3895314e+38
          %v3961 = vsel %vm3885, %v2545, -3.3895314e+38
          %v3962 = vsel %vm3886, %v2548, -3.3895314e+38
          %v3963 = vsel %vm3887, %v2550, -3.3895314e+38
          %v3964 = vsel %vm3888, %v2553, -3.3895314e+38
          %v3965 = vsel %vm3889, %v2555, -3.3895314e+38
          %v3966 = vsel %vm3890, %v2558, -3.3895314e+38
          %v3967 = vsel %vm3891, %v2560, -3.3895314e+38
          %v3968 = vsel %vm3892, %v2563, -3.3895314e+38
          %v3969 = vsel %vm3893, %v2565, -3.3895314e+38
          %v3970 = vsel %vm3894, %v2568, -3.3895314e+38
          %v3971 = vsel %vm3895, %v2570, -3.3895314e+38
          %v3972 = vsel %vm3896, %v2573, -3.3895314e+38
          %v3973 = vsel %vm3897, %v2575, -3.3895314e+38
          %v3974 = vsel %vm3898, %v2578, -3.3895314e+38
          %v3975 = vsel %vm3899, %v2580, -3.3895314e+38
          %v3976 = vsel %vm3900, %v2583, -3.3895314e+38
          %v3977 = vsel %vm3901, %v2585, -3.3895314e+38
          %v3978 = vsel %vm3902, %v2588, -3.3895314e+38
          %v3979 = vsel %vm3903, %v2590, -3.3895314e+38
          %v3980 = vsel %vm3904, %v2593, -3.3895314e+38
          %v3981 = vsel %vm3905, %v2595, -3.3895314e+38
          %v3982 = vsel %vm3906, %v2598, -3.3895314e+38
          %v3983 = vsel %vm3907, %v2600, -3.3895314e+38
          %v3984 = vsel %vm3908, %v2603, -3.3895314e+38
          %v3985 = vsel %vm3909, %v2605, -3.3895314e+38
          %v3986 = vmax.f32 %v3910, %v3914
          %v3987 = vmax.f32 %v3911, %v3915
          %v3988 = vmax.f32 %v3912, %v3916
          %v3989 = vmax.f32 %v3913, %v3917
          %v3990 = vmax.f32 %v3986, %v3918
          %v3991 = vmax.f32 %v3987, %v3919
          %v3992 = vmax.f32 %v3988, %v3920
          %v3993 = vmax.f32 %v3989, %v3921
          %v3994 = vmax.f32 %v3990, %v3922
          %v3995 = vmax.f32 %v3991, %v3923
          %v3996 = vmax.f32 %v3992, %v3924
          %v3997 = vmax.f32 %v3993, %v3925
          %v3998 = vmax.f32 %v3994, %v3926
          %v3999 = vmax.f32 %v3995, %v3927
          %v4000 = vmax.f32 %v3996, %v3928
          %v4001 = vmax.f32 %v3997, %v3929
          %v4002 = vmax.f32 %v3998, %v3930
          %v4003 = vmax.f32 %v3999, %v3931
          %v4004 = vmax.f32 %v4000, %v3932
          %v4005 = vmax.f32 %v4001, %v3933
          %v4006 = vmax.f32 %v4002, %v3934
          %v4007 = vmax.f32 %v4003, %v3935
          %v4008 = vmax.f32 %v4004, %v3936
          %v4009 = vmax.f32 %v4005, %v3937
          %v4010 = vmax.f32 %v4006, %v3938
          %v4011 = vmax.f32 %v4007, %v3939
          %v4012 = vmax.f32 %v4008, %v3940
          %v4013 = vmax.f32 %v4009, %v3941
          %v4014 = vmax.f32 %v4010, %v3942
          %v4015 = vmax.f32 %v4011, %v3943
          %v4016 = vmax.f32 %v4012, %v3944
          %v4017 = vmax.f32 %v4013, %v3945
          %v4018 = vmax.f32 %v4014, %v3946
          %v4019 = vmax.f32 %v4015, %v3947
          %v4020 = vmax.f32 %v4016, %v3948
          %v4021 = vmax.f32 %v4017, %v3949
          %v4022 = vmax.f32 %v4018, %v3950
          %v4023 = vmax.f32 %v4019, %v3951
          %v4024 = vmax.f32 %v4020, %v3952
          %v4025 = vmax.f32 %v4021, %v3953
          %v4026 = vmax.f32 %v4022, %v3954
          %v4027 = vmax.f32 %v4023, %v3955
          %v4028 = vmax.f32 %v4024, %v3956
          %v4029 = vmax.f32 %v4025, %v3957
          %v4030 = vmax.f32 %v4026, %v3958
          %v4031 = vmax.f32 %v4027, %v3959
          %v4032 = vmax.f32 %v4028, %v3960
          %v4033 = vmax.f32 %v4029, %v3961
          %v4034 = vmax.f32 %v4030, %v3962
          %v4035 = vmax.f32 %v4031, %v3963
          %v4036 = vmax.f32 %v4032, %v3964
          %v4037 = vmax.f32 %v4033, %v3965
          %v4038 = vmax.f32 %v4034, %v3966
          %v4039 = vmax.f32 %v4035, %v3967
          %v4040 = vmax.f32 %v4036, %v3968
          %v4041 = vmax.f32 %v4037, %v3969
          %v4042 = vmax.f32 %v4038, %v3970
          %v4043 = vmax.f32 %v4039, %v3971
          %v4044 = vmax.f32 %v4040, %v3972
          %v4045 = vmax.f32 %v4041, %v3973
          %v4046 = vmax.f32 %v4042, %v3974
          %v4047 = vmax.f32 %v4043, %v3975
          %v4048 = vmax.f32 %v4044, %v3976
          %v4049 = vmax.f32 %v4045, %v3977
          %v4050 = vmax.f32 %v4046, %v3978
          %v4051 = vmax.f32 %v4047, %v3979
          %v4052 = vmax.f32 %v4048, %v3980
          %v4053 = vmax.f32 %v4049, %v3981
          %v4054 = vmax.f32 %v4050, %v3982
          %v4055 = vmax.f32 %v4051, %v3983
          %v4056 = vmax.f32 %v4052, %v3984
          %v4057 = vmax.f32 %v4053, %v3985
          %v4058 = vmax.f32 %v4054, %v4055
          %v4059 = vmax.f32 %v4056, %v4057
          %v4060 = vmax.f32 %v4058, %v4059
          %v4061 = vrot.slane %v4060, 4
          %v4062 = vmax.f32 %v4060, %v4061
          %v4063 = vrot.slane %v4062, 2
          %v4064 = vmax.f32 %v4062, %v4063
          %v4065 = vrot.slane %v4064, 1
          %v4066 = vmax.f32 %v4064, %v4065
          %vm4067 = vcmask 1040384
          %v4068 = vsel %vm4067, %v3144, %v3605
          %vm4069 = vcmask 1041408
          %v4070 = vsel %vm4069, %v4068, %v4066
          %vm4071 = vcmask 1042432
          %v4072 = vsel %vm4071, %v4070, -3.3895314e+38
          %v4073 = vmax.f32 %v2607, %v4072
          %4074 = vst [vmem:[#allocation2] sm:$0xff] %v4073
        $region76: #{tpu_custom_call.1} parent=71 // pred_fallthru
          _
        %p4075 = scmp.eq.s32.totalorder %s29, 1
        // Predicated region
        $region81: #{tpu_custom_call.1} parent=71 // pred_check
          %p4076 = pneg %p4075
        $region82: #{tpu_custom_call.1} parent=71 // pred_check_branch
          %4078 = sbr.rel (%p4076) target = $region84
        $region83: #{tpu_custom_call.1} parent=71 // pred_region
          %p4079 = scmp.eq.s32.totalorder %s30, 0
          // Predicated region
          $region85: #{tpu_custom_call.1} parent=83 // pred_check
            %p4080 = pneg %p4079
          $region86: #{tpu_custom_call.1} parent=83 // pred_check_branch
            %4082 = sbr.rel (%p4080) target = $region88
          $region87: #{tpu_custom_call.1} parent=83 // pred_region
            %4083 = vst [vmem:[#allocation3] sm:$0x7] -inf
          $region88: #{tpu_custom_call.1} parent=83 // pred_fallthru
            _
          %v4084 = vsel %vm1343, 1, 0
          %v4085 = vsel %vm1344, 1, 0
          %v4086 = vsel %vm1345, 1, 0
          %v4087 = vsel %vm1346, 1, 0
          %v4088 = vsel %vm1347, 1, 0
          %v4089 = vsel %vm1348, 1, 0
          %v4090 = vsel %vm1349, 1, 0
          %v4091 = vsel %vm1350, 1, 0
          %v4092 = vsel %vm1351, 1, 0
          %v4093 = vsel %vm1352, 1, 0
          %v4094 = vsel %vm1353, 1, 0
          %v4095 = vsel %vm1354, 1, 0
          %v4096 = vsel %vm1355, 1, 0
          %v4097 = vsel %vm1356, 1, 0
          %v4098 = vsel %vm1357, 1, 0
          %v4099 = vsel %vm1358, 1, 0
          %v4100 = vsel %vm1359, 1, 0
          %v4101 = vsel %vm1360, 1, 0
          %v4102 = vsel %vm1361, 1, 0
          %v4103 = vsel %vm1362, 1, 0
          %v4104 = vsel %vm1363, 1, 0
          %v4105 = vsel %vm1364, 1, 0
          %v4106 = vsel %vm1365, 1, 0
          %v4107 = vsel %vm1366, 1, 0
          %v4108 = vsel %vm1367, 1, 0
          %v4109 = vsel %vm1368, 1, 0
          %v4110 = vsel %vm1369, 1, 0
          %v4111 = vsel %vm1370, 1, 0
          %v4112 = vsel %vm1371, 1, 0
          %v4113 = vsel %vm1372, 1, 0
          %v4114 = vsel %vm1373, 1, 0
          %v4115 = vsel %vm1374, 1, 0
          %v4116 = vsel %vm1375, 1, 0
          %v4117 = vsel %vm1376, 1, 0
          %v4118 = vsel %vm1377, 1, 0
          %v4119 = vsel %vm1378, 1, 0
          %v4120 = vsel %vm1379, 1, 0
          %v4121 = vsel %vm1380, 1, 0
          %v4122 = vsel %vm1381, 1, 0
          %v4123 = vsel %vm1382, 1, 0
          %v4124 = vsel %vm1383, 1, 0
          %v4125 = vsel %vm1384, 1, 0
          %v4126 = vsel %vm1385, 1, 0
          %v4127 = vsel %vm1386, 1, 0
          %v4128 = vsel %vm1387, 1, 0
          %v4129 = vsel %vm1388, 1, 0
          %v4130 = vsel %vm1389, 1, 0
          %v4131 = vsel %vm1390, 1, 0
          %v4132 = vsel %vm1391, 1, 0
          %v4133 = vsel %vm1392, 1, 0
          %v4134 = vsel %vm1393, 1, 0
          %v4135 = vsel %vm1394, 1, 0
          %v4136 = vsel %vm1395, 1, 0
          %v4137 = vsel %vm1396, 1, 0
          %v4138 = vsel %vm1397, 1, 0
          %v4139 = vsel %vm1398, 1, 0
          %v4140 = vsel %vm1399, 1, 0
          %v4141 = vsel %vm1400, 1, 0
          %v4142 = vsel %vm1401, 1, 0
          %v4143 = vsel %vm1402, 1, 0
          %v4144 = vsel %vm1403, 1, 0
          %v4145 = vsel %vm1404, 1, 0
          %v4146 = vsel %vm1405, 1, 0
          %v4147 = vsel %vm1406, 1, 0
          %v4148 = vsel %vm1407, 1, 0
          %v4149 = vsel %vm1408, 1, 0
          %v4150 = vsel %vm1409, 1, 0
          %v4151 = vsel %vm1410, 1, 0
          %v4152 = vsel %vm1411, 1, 0
          %v4153 = vsel %vm1412, 1, 0
          %v4154 = vsel %vm1413, 1, 0
          %v4155 = vsel %vm1414, 1, 0
          %v4156 = vsel %vm1415, 1, 0
          %v4157 = vsel %vm1416, 1, 0
          %v4158 = vsel %vm1417, 1, 0
          %v4159 = vsel %vm1418, 1, 0
          %v4160 = vcvt.s32.f32 %v4084
          %v4161 = vcvt.s32.f32 %v4085
          %v4162 = vcvt.s32.f32 %v4086
          %v4163 = vcvt.s32.f32 %v4087
          %v4164 = vcvt.s32.f32 %v4088
          %v4165 = vcvt.s32.f32 %v4089
          %v4166 = vcvt.s32.f32 %v4090
          %v4167 = vcvt.s32.f32 %v4091
          %v4168 = vcvt.s32.f32 %v4092
          %v4169 = vcvt.s32.f32 %v4093
          %v4170 = vcvt.s32.f32 %v4094
          %v4171 = vcvt.s32.f32 %v4095
          %v4172 = vcvt.s32.f32 %v4096
          %v4173 = vcvt.s32.f32 %v4097
          %v4174 = vcvt.s32.f32 %v4098
          %v4175 = vcvt.s32.f32 %v4099
          %v4176 = vcvt.s32.f32 %v4100
          %v4177 = vcvt.s32.f32 %v4101
          %v4178 = vcvt.s32.f32 %v4102
          %v4179 = vcvt.s32.f32 %v4103
          %v4180 = vcvt.s32.f32 %v4104
          %v4181 = vcvt.s32.f32 %v4105
          %v4182 = vcvt.s32.f32 %v4106
          %v4183 = vcvt.s32.f32 %v4107
          %v4184 = vcvt.s32.f32 %v4108
          %v4185 = vcvt.s32.f32 %v4109
          %v4186 = vcvt.s32.f32 %v4110
          %v4187 = vcvt.s32.f32 %v4111
          %v4188 = vcvt.s32.f32 %v4112
          %v4189 = vcvt.s32.f32 %v4113
          %v4190 = vcvt.s32.f32 %v4114
          %v4191 = vcvt.s32.f32 %v4115
          %v4192 = vcvt.s32.f32 %v4116
          %v4193 = vcvt.s32.f32 %v4117
          %v4194 = vcvt.s32.f32 %v4118
          %v4195 = vcvt.s32.f32 %v4119
          %v4196 = vcvt.s32.f32 %v4120
          %v4197 = vcvt.s32.f32 %v4121
          %v4198 = vcvt.s32.f32 %v4122
          %v4199 = vcvt.s32.f32 %v4123
          %v4200 = vcvt.s32.f32 %v4124
          %v4201 = vcvt.s32.f32 %v4125
          %v4202 = vcvt.s32.f32 %v4126
          %v4203 = vcvt.s32.f32 %v4127
          %v4204 = vcvt.s32.f32 %v4128
          %v4205 = vcvt.s32.f32 %v4129
          %v4206 = vcvt.s32.f32 %v4130
          %v4207 = vcvt.s32.f32 %v4131
          %v4208 = vcvt.s32.f32 %v4132
          %v4209 = vcvt.s32.f32 %v4133
          %v4210 = vcvt.s32.f32 %v4134
          %v4211 = vcvt.s32.f32 %v4135
          %v4212 = vcvt.s32.f32 %v4136
          %v4213 = vcvt.s32.f32 %v4137
          %v4214 = vcvt.s32.f32 %v4138
          %v4215 = vcvt.s32.f32 %v4139
          %v4216 = vcvt.s32.f32 %v4140
          %v4217 = vcvt.s32.f32 %v4141
          %v4218 = vcvt.s32.f32 %v4142
          %v4219 = vcvt.s32.f32 %v4143
          %v4220 = vcvt.s32.f32 %v4144
          %v4221 = vcvt.s32.f32 %v4145
          %v4222 = vcvt.s32.f32 %v4146
          %v4223 = vcvt.s32.f32 %v4147
          %v4224 = vcvt.s32.f32 %v4148
          %v4225 = vcvt.s32.f32 %v4149
          %v4226 = vcvt.s32.f32 %v4150
          %v4227 = vcvt.s32.f32 %v4151
          %v4228 = vcvt.s32.f32 %v4152
          %v4229 = vcvt.s32.f32 %v4153
          %v4230 = vcvt.s32.f32 %v4154
          %v4231 = vcvt.s32.f32 %v4155
          %v4232 = vcvt.s32.f32 %v4156
          %v4233 = vcvt.s32.f32 %v4157
          %v4234 = vcvt.s32.f32 %v4158
          %v4235 = vcvt.s32.f32 %v4159
          %v4236 = vpack.c.bf16 %v4161, %v4160
          %v4237 = vpack.c.bf16 %v4163, %v4162
          %v4238 = vpack.c.bf16 %v4165, %v4164
          %v4239 = vpack.c.bf16 %v4167, %v4166
          %v4240 = vpack.c.bf16 %v4169, %v4168
          %v4241 = vpack.c.bf16 %v4171, %v4170
          %v4242 = vpack.c.bf16 %v4173, %v4172
          %v4243 = vpack.c.bf16 %v4175, %v4174
          %v4244 = vpack.c.bf16 %v4177, %v4176
          %v4245 = vpack.c.bf16 %v4179, %v4178
          %v4246 = vpack.c.bf16 %v4181, %v4180
          %v4247 = vpack.c.bf16 %v4183, %v4182
          %v4248 = vpack.c.bf16 %v4185, %v4184
          %v4249 = vpack.c.bf16 %v4187, %v4186
          %v4250 = vpack.c.bf16 %v4189, %v4188
          %v4251 = vpack.c.bf16 %v4191, %v4190
          %v4252 = vpack.c.bf16 %v4193, %v4192
          %v4253 = vpack.c.bf16 %v4195, %v4194
          %v4254 = vpack.c.bf16 %v4197, %v4196
          %v4255 = vpack.c.bf16 %v4199, %v4198
          %v4256 = vpack.c.bf16 %v4201, %v4200
          %v4257 = vpack.c.bf16 %v4203, %v4202
          %v4258 = vpack.c.bf16 %v4205, %v4204
          %v4259 = vpack.c.bf16 %v4207, %v4206
          %v4260 = vpack.c.bf16 %v4209, %v4208
          %v4261 = vpack.c.bf16 %v4211, %v4210
          %v4262 = vpack.c.bf16 %v4213, %v4212
          %v4263 = vpack.c.bf16 %v4215, %v4214
          %v4264 = vpack.c.bf16 %v4217, %v4216
          %v4265 = vpack.c.bf16 %v4219, %v4218
          %v4266 = vpack.c.bf16 %v4221, %v4220
          %v4267 = vpack.c.bf16 %v4223, %v4222
          %v4268 = vpack.c.bf16 %v4225, %v4224
          %v4269 = vpack.c.bf16 %v4227, %v4226
          %v4270 = vpack.c.bf16 %v4229, %v4228
          %v4271 = vpack.c.bf16 %v4231, %v4230
          %v4272 = vpack.c.bf16 %v4233, %v4232
          %v4273 = vpack.c.bf16 %v4235, %v4234
          %v4274 = vld [vmem:[#allocation2] sm:$0xff]
          %v4275 = vpack.c.bf16 %v4274, %v4274
          %vm4276 = vcmask 64512
          %v4278 = vsel %vm4276, %v4236, 0
          %v4281 = vsel %vm4276, %v4237, 0
          %v4284 = vsel %vm4276, %v4238, 0
          %v4287 = vsel %vm4276, %v4239, 0
          %v4290 = vsel %vm4276, %v4240, 0
          %v4293 = vsel %vm4276, %v4241, 0
          %v4296 = vsel %vm4276, %v4242, 0
          %v4299 = vsel %vm4276, %v4243, 0
          %v4302 = vsel %vm4276, %v4244, 0
          %v4305 = vsel %vm4276, %v4245, 0
          %v4308 = vsel %vm4276, %v4246, 0
          %v4311 = vsel %vm4276, %v4247, 0
          %v4314 = vsel %vm4276, %v4248, 0
          %v4317 = vsel %vm4276, %v4249, 0
          %v4320 = vsel %vm4276, %v4250, 0
          %v4323 = vsel %vm4276, %v4251, 0
          %v4326 = vsel %vm4276, %v4252, 0
          %v4329 = vsel %vm4276, %v4253, 0
          %v4332 = vsel %vm4276, %v4254, 0
          %v4335 = vsel %vm4276, %v4255, 0
          %v4338 = vsel %vm4276, %v4256, 0
          %v4341 = vsel %vm4276, %v4257, 0
          %v4344 = vsel %vm4276, %v4258, 0
          %v4347 = vsel %vm4276, %v4259, 0
          %v4350 = vsel %vm4276, %v4260, 0
          %v4353 = vsel %vm4276, %v4261, 0
          %v4356 = vsel %vm4276, %v4262, 0
          %v4359 = vsel %vm4276, %v4263, 0
          %v4362 = vsel %vm4276, %v4264, 0
          %v4365 = vsel %vm4276, %v4265, 0
          %v4368 = vsel %vm4276, %v4266, 0
          %v4371 = vsel %vm4276, %v4267, 0
          %v4374 = vsel %vm4276, %v4268, 0
          %v4377 = vsel %vm4276, %v4269, 0
          %v4380 = vsel %vm4276, %v4270, 0
          %v4383 = vsel %vm4276, %v4271, 0
          %v4386 = vsel %vm4276, %v4272, 0
          %v4389 = vsel %vm4276, %v4273, 0
          %vm4391 = vcmask 1043456
          %v4393 = vsel %vm4391, %v4275, 0
          %4395 = vmatpush.bf16.msra.mxu0 0
          %4396 = vmatpush.bf16.msra.mxu0 0
          %4397 = vmatpush.bf16.msra.mxu0 0
          %4398 = vmatpush.bf16.msra.mxu0 0
          %4399 = vmatpush.bf16.msra.mxu0 0
          %4400 = vmatpush.bf16.msra.mxu0 0
          %4401 = vmatpush.bf16.msra.mxu0 0
          %4402 = vmatpush.bf16.msra.mxu0 %v4393
          %4403 = vmatmul.bf16.gmra.mxu0 %v4278
          %v4404 = vpop.f32.mrf.mxu0
          %v4405 = vadd.f32 0.0, %v4404
          %v4406 = vpop.f32.mrf.mxu0
          %v4407 = vadd.f32 0.0, %v4406
          %4408 = vmatmul.bf16.gmra.mxu0 %v4281
          %v4409 = vpop.f32.mrf.mxu0
          %v4410 = vadd.f32 0.0, %v4409
          %v4411 = vpop.f32.mrf.mxu0
          %v4412 = vadd.f32 0.0, %v4411
          %4413 = vmatmul.bf16.gmra.mxu0 %v4284
          %v4414 = vpop.f32.mrf.mxu0
          %v4415 = vadd.f32 0.0, %v4414
          %v4416 = vpop.f32.mrf.mxu0
          %v4417 = vadd.f32 0.0, %v4416
          %4418 = vmatmul.bf16.gmra.mxu0 %v4287
          %v4419 = vpop.f32.mrf.mxu0
          %v4420 = vadd.f32 0.0, %v4419
          %v4421 = vpop.f32.mrf.mxu0
          %v4422 = vadd.f32 0.0, %v4421
          %4423 = vmatmul.bf16.gmra.mxu0 %v4290
          %v4424 = vpop.f32.mrf.mxu0
          %v4425 = vadd.f32 0.0, %v4424
          %v4426 = vpop.f32.mrf.mxu0
          %v4427 = vadd.f32 0.0, %v4426
          %4428 = vmatmul.bf16.gmra.mxu0 %v4293
          %v4429 = vpop.f32.mrf.mxu0
          %v4430 = vadd.f32 0.0, %v4429
          %v4431 = vpop.f32.mrf.mxu0
          %v4432 = vadd.f32 0.0, %v4431
          %4433 = vmatmul.bf16.gmra.mxu0 %v4296
          %v4434 = vpop.f32.mrf.mxu0
          %v4435 = vadd.f32 0.0, %v4434
          %v4436 = vpop.f32.mrf.mxu0
          %v4437 = vadd.f32 0.0, %v4436
          %4438 = vmatmul.bf16.gmra.mxu0 %v4299
          %v4439 = vpop.f32.mrf.mxu0
          %v4440 = vadd.f32 0.0, %v4439
          %v4441 = vpop.f32.mrf.mxu0
          %v4442 = vadd.f32 0.0, %v4441
          %4443 = vmatmul.bf16.gmra.mxu0 %v4302
          %v4444 = vpop.f32.mrf.mxu0
          %v4445 = vadd.f32 0.0, %v4444
          %v4446 = vpop.f32.mrf.mxu0
          %v4447 = vadd.f32 0.0, %v4446
          %4448 = vmatmul.bf16.gmra.mxu0 %v4305
          %v4449 = vpop.f32.mrf.mxu0
          %v4450 = vadd.f32 0.0, %v4449
          %v4451 = vpop.f32.mrf.mxu0
          %v4452 = vadd.f32 0.0, %v4451
          %4453 = vmatmul.bf16.gmra.mxu0 %v4308
          %v4454 = vpop.f32.mrf.mxu0
          %v4455 = vadd.f32 0.0, %v4454
          %v4456 = vpop.f32.mrf.mxu0
          %v4457 = vadd.f32 0.0, %v4456
          %4458 = vmatmul.bf16.gmra.mxu0 %v4311
          %v4459 = vpop.f32.mrf.mxu0
          %v4460 = vadd.f32 0.0, %v4459
          %v4461 = vpop.f32.mrf.mxu0
          %v4462 = vadd.f32 0.0, %v4461
          %4463 = vmatmul.bf16.gmra.mxu0 %v4314
          %v4464 = vpop.f32.mrf.mxu0
          %v4465 = vadd.f32 0.0, %v4464
          %v4466 = vpop.f32.mrf.mxu0
          %v4467 = vadd.f32 0.0, %v4466
          %4468 = vmatmul.bf16.gmra.mxu0 %v4317
          %v4469 = vpop.f32.mrf.mxu0
          %v4470 = vadd.f32 0.0, %v4469
          %v4471 = vpop.f32.mrf.mxu0
          %v4472 = vadd.f32 0.0, %v4471
          %4473 = vmatmul.bf16.gmra.mxu0 %v4320
          %v4474 = vpop.f32.mrf.mxu0
          %v4475 = vadd.f32 0.0, %v4474
          %v4476 = vpop.f32.mrf.mxu0
          %v4477 = vadd.f32 0.0, %v4476
          %4478 = vmatmul.bf16.gmra.mxu0 %v4323
          %v4479 = vpop.f32.mrf.mxu0
          %v4480 = vadd.f32 0.0, %v4479
          %v4481 = vpop.f32.mrf.mxu0
          %v4482 = vadd.f32 0.0, %v4481
          %4483 = vmatmul.bf16.gmra.mxu0 %v4326
          %v4484 = vpop.f32.mrf.mxu0
          %v4485 = vadd.f32 0.0, %v4484
          %v4486 = vpop.f32.mrf.mxu0
          %v4487 = vadd.f32 0.0, %v4486
          %4488 = vmatmul.bf16.gmra.mxu0 %v4329
          %v4489 = vpop.f32.mrf.mxu0
          %v4490 = vadd.f32 0.0, %v4489
          %v4491 = vpop.f32.mrf.mxu0
          %v4492 = vadd.f32 0.0, %v4491
          %4493 = vmatmul.bf16.gmra.mxu0 %v4332
          %v4494 = vpop.f32.mrf.mxu0
          %v4495 = vadd.f32 0.0, %v4494
          %v4496 = vpop.f32.mrf.mxu0
          %v4497 = vadd.f32 0.0, %v4496
          %4498 = vmatmul.bf16.gmra.mxu0 %v4335
          %v4499 = vpop.f32.mrf.mxu0
          %v4500 = vadd.f32 0.0, %v4499
          %v4501 = vpop.f32.mrf.mxu0
          %v4502 = vadd.f32 0.0, %v4501
          %4503 = vmatmul.bf16.gmra.mxu0 %v4338
          %v4504 = vpop.f32.mrf.mxu0
          %v4505 = vadd.f32 0.0, %v4504
          %v4506 = vpop.f32.mrf.mxu0
          %v4507 = vadd.f32 0.0, %v4506
          %4508 = vmatmul.bf16.gmra.mxu0 %v4341
          %v4509 = vpop.f32.mrf.mxu0
          %v4510 = vadd.f32 0.0, %v4509
          %v4511 = vpop.f32.mrf.mxu0
          %v4512 = vadd.f32 0.0, %v4511
          %4513 = vmatmul.bf16.gmra.mxu0 %v4344
          %v4514 = vpop.f32.mrf.mxu0
          %v4515 = vadd.f32 0.0, %v4514
          %v4516 = vpop.f32.mrf.mxu0
          %v4517 = vadd.f32 0.0, %v4516
          %4518 = vmatmul.bf16.gmra.mxu0 %v4347
          %v4519 = vpop.f32.mrf.mxu0
          %v4520 = vadd.f32 0.0, %v4519
          %v4521 = vpop.f32.mrf.mxu0
          %v4522 = vadd.f32 0.0, %v4521
          %4523 = vmatmul.bf16.gmra.mxu0 %v4350
          %v4524 = vpop.f32.mrf.mxu0
          %v4525 = vadd.f32 0.0, %v4524
          %v4526 = vpop.f32.mrf.mxu0
          %v4527 = vadd.f32 0.0, %v4526
          %4528 = vmatmul.bf16.gmra.mxu0 %v4353
          %v4529 = vpop.f32.mrf.mxu0
          %v4530 = vadd.f32 0.0, %v4529
          %v4531 = vpop.f32.mrf.mxu0
          %v4532 = vadd.f32 0.0, %v4531
          %4533 = vmatmul.bf16.gmra.mxu0 %v4356
          %v4534 = vpop.f32.mrf.mxu0
          %v4535 = vadd.f32 0.0, %v4534
          %v4536 = vpop.f32.mrf.mxu0
          %v4537 = vadd.f32 0.0, %v4536
          %4538 = vmatmul.bf16.gmra.mxu0 %v4359
          %v4539 = vpop.f32.mrf.mxu0
          %v4540 = vadd.f32 0.0, %v4539
          %v4541 = vpop.f32.mrf.mxu0
          %v4542 = vadd.f32 0.0, %v4541
          %4543 = vmatmul.bf16.gmra.mxu0 %v4362
          %v4544 = vpop.f32.mrf.mxu0
          %v4545 = vadd.f32 0.0, %v4544
          %v4546 = vpop.f32.mrf.mxu0
          %v4547 = vadd.f32 0.0, %v4546
          %4548 = vmatmul.bf16.gmra.mxu0 %v4365
          %v4549 = vpop.f32.mrf.mxu0
          %v4550 = vadd.f32 0.0, %v4549
          %v4551 = vpop.f32.mrf.mxu0
          %v4552 = vadd.f32 0.0, %v4551
          %4553 = vmatmul.bf16.gmra.mxu0 %v4368
          %v4554 = vpop.f32.mrf.mxu0
          %v4555 = vadd.f32 0.0, %v4554
          %v4556 = vpop.f32.mrf.mxu0
          %v4557 = vadd.f32 0.0, %v4556
          %4558 = vmatmul.bf16.gmra.mxu0 %v4371
          %v4559 = vpop.f32.mrf.mxu0
          %v4560 = vadd.f32 0.0, %v4559
          %v4561 = vpop.f32.mrf.mxu0
          %v4562 = vadd.f32 0.0, %v4561
          %4563 = vmatmul.bf16.gmra.mxu0 %v4374
          %v4564 = vpop.f32.mrf.mxu0
          %v4565 = vadd.f32 0.0, %v4564
          %v4566 = vpop.f32.mrf.mxu0
          %v4567 = vadd.f32 0.0, %v4566
          %4568 = vmatmul.bf16.gmra.mxu0 %v4377
          %v4569 = vpop.f32.mrf.mxu0
          %v4570 = vadd.f32 0.0, %v4569
          %v4571 = vpop.f32.mrf.mxu0
          %v4572 = vadd.f32 0.0, %v4571
          %4573 = vmatmul.bf16.gmra.mxu0 %v4380
          %v4574 = vpop.f32.mrf.mxu0
          %v4575 = vadd.f32 0.0, %v4574
          %v4576 = vpop.f32.mrf.mxu0
          %v4577 = vadd.f32 0.0, %v4576
          %4578 = vmatmul.bf16.gmra.mxu0 %v4383
          %v4579 = vpop.f32.mrf.mxu0
          %v4580 = vadd.f32 0.0, %v4579
          %v4581 = vpop.f32.mrf.mxu0
          %v4582 = vadd.f32 0.0, %v4581
          %4583 = vmatmul.bf16.gmra.mxu0 %v4386
          %v4584 = vpop.f32.mrf.mxu0
          %v4585 = vadd.f32 0.0, %v4584
          %v4586 = vpop.f32.mrf.mxu0
          %v4587 = vadd.f32 0.0, %v4586
          %4588 = vmatmul.bf16.gmra.mxu0 %v4389
          %v4589 = vpop.f32.mrf.mxu0
          %v4590 = vadd.f32 0.0, %v4589
          %v4591 = vpop.f32.mrf.mxu0
          %v4592 = vadd.f32 0.0, %v4591
          %4593 = vdwg.mxu0
          %v4594 = vld [vmem:[%s8] sm:$0xf]
          %v4595 = vld [vmem:[%s8 + $0x4] sm:$0xf]
          %v4596 = vld [vmem:[%s8 + $0x8] sm:$0xf]
          %v4597 = vld [vmem:[%s8 + $0xc] sm:$0xf]
          %v4598 = vpack.c.bf16 %v4407, %v4405
          %v4599 = vpack.c.bf16 %v4412, %v4410
          %v4600 = vpack.c.bf16 %v4417, %v4415
          %v4601 = vpack.c.bf16 %v4422, %v4420
          %v4602 = vpack.c.bf16 %v4427, %v4425
          %v4603 = vpack.c.bf16 %v4432, %v4430
          %v4604 = vpack.c.bf16 %v4437, %v4435
          %v4605 = vpack.c.bf16 %v4442, %v4440
          %v4606 = vpack.c.bf16 %v4447, %v4445
          %v4607 = vpack.c.bf16 %v4452, %v4450
          %v4608 = vpack.c.bf16 %v4457, %v4455
          %v4609 = vpack.c.bf16 %v4462, %v4460
          %v4610 = vpack.c.bf16 %v4467, %v4465
          %v4611 = vpack.c.bf16 %v4472, %v4470
          %v4612 = vpack.c.bf16 %v4477, %v4475
          %v4613 = vpack.c.bf16 %v4482, %v4480
          %v4614 = vpack.c.bf16 %v4487, %v4485
          %v4615 = vpack.c.bf16 %v4492, %v4490
          %v4616 = vpack.c.bf16 %v4497, %v4495
          %v4617 = vpack.c.bf16 %v4502, %v4500
          %v4618 = vpack.c.bf16 %v4507, %v4505
          %v4619 = vpack.c.bf16 %v4512, %v4510
          %v4620 = vpack.c.bf16 %v4517, %v4515
          %v4621 = vpack.c.bf16 %v4522, %v4520
          %v4622 = vpack.c.bf16 %v4527, %v4525
          %v4623 = vpack.c.bf16 %v4532, %v4530
          %v4624 = vpack.c.bf16 %v4537, %v4535
          %v4625 = vpack.c.bf16 %v4542, %v4540
          %v4626 = vpack.c.bf16 %v4547, %v4545
          %v4627 = vpack.c.bf16 %v4552, %v4550
          %v4628 = vpack.c.bf16 %v4557, %v4555
          %v4629 = vpack.c.bf16 %v4562, %v4560
          %v4630 = vpack.c.bf16 %v4567, %v4565
          %v4631 = vpack.c.bf16 %v4572, %v4570
          %v4632 = vpack.c.bf16 %v4577, %v4575
          %v4633 = vpack.c.bf16 %v4582, %v4580
          %v4634 = vpack.c.bf16 %v4587, %v4585
          %v4635 = vpack.c.bf16 %v4592, %v4590
          %v4636 = vld [vmem:[%s9] sm:$0xf]
          %v4637 = vld [vmem:[%s9 + $0x4] sm:$0xf]
          %v4638 = vld [vmem:[%s9 + $0x8] sm:$0xf]
          %v4639 = vld [vmem:[%s9 + $0xc] sm:$0xf]
          %v4640 = vld [vmem:[%s9 + $0x10] sm:$0xf]
          %v4641 = vld [vmem:[%s9 + $0x14] sm:$0xf]
          %v4642 = vld [vmem:[%s9 + $0x18] sm:$0xf]
          %v4643 = vld [vmem:[%s9 + $0x1c] sm:$0xf]
          %v4644 = vld [vmem:[%s9 + $0x20] sm:$0xf]
          %v4645 = vld [vmem:[%s9 + $0x24] sm:$0xf]
          %v4646 = vld [vmem:[%s9 + $0x28] sm:$0xf]
          %v4647 = vld [vmem:[%s9 + $0x2c] sm:$0xf]
          %v4648 = vld [vmem:[%s9 + $0x30] sm:$0xf]
          %v4649 = vld [vmem:[%s9 + $0x34] sm:$0xf]
          %v4650 = vld [vmem:[%s9 + $0x38] sm:$0xf]
          %v4651 = vld [vmem:[%s9 + $0x3c] sm:$0xf]
          %v4668 = vunpack.c.l.b16 %v4636
          %v4669 = vunpack.c.l.b16 %v4637
          %v4670 = vunpack.c.l.b16 %v4638
          %v4671 = vunpack.c.l.b16 %v4639
          %v4672 = vunpack.c.l.b16 %v4640
          %v4673 = vunpack.c.l.b16 %v4641
          %v4674 = vunpack.c.l.b16 %v4642
          %v4675 = vunpack.c.l.b16 %v4643
          %v4676 = vunpack.c.l.b16 %v4644
          %v4677 = vunpack.c.l.b16 %v4645
          %v4678 = vunpack.c.l.b16 %v4646
          %v4679 = vunpack.c.l.b16 %v4647
          %v4680 = vunpack.c.l.b16 %v4648
          %v4681 = vunpack.c.l.b16 %v4649
          %v4682 = vunpack.c.l.b16 %v4650
          %v4683 = vunpack.c.l.b16 %v4651
          %v4684 = vpack.c.b16 %v4669, %v4668
          %v4685 = vpack.c.b16 %v4671, %v4670
          %v4686 = vpack.c.b16 %v4673, %v4672
          %v4687 = vpack.c.b16 %v4675, %v4674
          %v4688 = vpack.c.b16 %v4677, %v4676
          %v4689 = vpack.c.b16 %v4679, %v4678
          %v4690 = vpack.c.b16 %v4681, %v4680
          %v4691 = vpack.c.b16 %v4683, %v4682
          %4700 = vmatpush.bf16.msra.mxu0 %v4691
          %4701 = vmatpush.bf16.msra.mxu0 %v4690
          %4702 = vmatpush.bf16.msra.mxu0 %v4689
          %4703 = vmatpush.bf16.msra.mxu0 %v4688
          %4704 = vmatpush.bf16.msra.mxu0 %v4687
          %4705 = vmatpush.bf16.msra.mxu0 %v4686
          %4706 = vmatpush.bf16.msra.mxu0 %v4685
          %4707 = vmatpush.bf16.msra.mxu0 %v4684
          %4708 = vmatmul.bf16.gmra.mxu0 %v4598
          %v4709 = vpop.f32.mrf.mxu0
          %v4710 = vadd.f32 0.0, %v4709
          %v4711 = vpop.f32.mrf.mxu0
          %v4712 = vadd.f32 0.0, %v4711
          %4713 = vmatmul.bf16.gmra.mxu0 %v4599
          %v4714 = vpop.f32.mrf.mxu0
          %v4715 = vadd.f32 0.0, %v4714
          %v4716 = vpop.f32.mrf.mxu0
          %v4717 = vadd.f32 0.0, %v4716
          %4718 = vmatmul.bf16.gmra.mxu0 %v4600
          %v4719 = vpop.f32.mrf.mxu0
          %v4720 = vadd.f32 0.0, %v4719
          %v4721 = vpop.f32.mrf.mxu0
          %v4722 = vadd.f32 0.0, %v4721
          %4723 = vmatmul.bf16.gmra.mxu0 %v4601
          %v4724 = vpop.f32.mrf.mxu0
          %v4725 = vadd.f32 0.0, %v4724
          %v4726 = vpop.f32.mrf.mxu0
          %v4727 = vadd.f32 0.0, %v4726
          %4728 = vmatmul.bf16.gmra.mxu0 %v4602
          %v4729 = vpop.f32.mrf.mxu0
          %v4730 = vadd.f32 0.0, %v4729
          %v4731 = vpop.f32.mrf.mxu0
          %v4732 = vadd.f32 0.0, %v4731
          %4733 = vmatmul.bf16.gmra.mxu0 %v4603
          %v4734 = vpop.f32.mrf.mxu0
          %v4735 = vadd.f32 0.0, %v4734
          %v4736 = vpop.f32.mrf.mxu0
          %v4737 = vadd.f32 0.0, %v4736
          %4738 = vmatmul.bf16.gmra.mxu0 %v4604
          %v4739 = vpop.f32.mrf.mxu0
          %v4740 = vadd.f32 0.0, %v4739
          %v4741 = vpop.f32.mrf.mxu0
          %v4742 = vadd.f32 0.0, %v4741
          %4743 = vmatmul.bf16.gmra.mxu0 %v4605
          %v4744 = vpop.f32.mrf.mxu0
          %v4745 = vadd.f32 0.0, %v4744
          %v4746 = vpop.f32.mrf.mxu0
          %v4747 = vadd.f32 0.0, %v4746
          %4748 = vmatmul.bf16.gmra.mxu0 %v4606
          %v4749 = vpop.f32.mrf.mxu0
          %v4750 = vadd.f32 0.0, %v4749
          %v4751 = vpop.f32.mrf.mxu0
          %v4752 = vadd.f32 0.0, %v4751
          %4753 = vmatmul.bf16.gmra.mxu0 %v4607
          %v4754 = vpop.f32.mrf.mxu0
          %v4755 = vadd.f32 0.0, %v4754
          %v4756 = vpop.f32.mrf.mxu0
          %v4757 = vadd.f32 0.0, %v4756
          %4758 = vmatmul.bf16.gmra.mxu0 %v4608
          %v4759 = vpop.f32.mrf.mxu0
          %v4760 = vadd.f32 0.0, %v4759
          %v4761 = vpop.f32.mrf.mxu0
          %v4762 = vadd.f32 0.0, %v4761
          %4763 = vmatmul.bf16.gmra.mxu0 %v4609
          %v4764 = vpop.f32.mrf.mxu0
          %v4765 = vadd.f32 0.0, %v4764
          %v4766 = vpop.f32.mrf.mxu0
          %v4767 = vadd.f32 0.0, %v4766
          %4768 = vmatmul.bf16.gmra.mxu0 %v4610
          %v4769 = vpop.f32.mrf.mxu0
          %v4770 = vadd.f32 0.0, %v4769
          %v4771 = vpop.f32.mrf.mxu0
          %v4772 = vadd.f32 0.0, %v4771
          %4773 = vmatmul.bf16.gmra.mxu0 %v4611
          %v4774 = vpop.f32.mrf.mxu0
          %v4775 = vadd.f32 0.0, %v4774
          %v4776 = vpop.f32.mrf.mxu0
          %v4777 = vadd.f32 0.0, %v4776
          %4778 = vmatmul.bf16.gmra.mxu0 %v4612
          %v4779 = vpop.f32.mrf.mxu0
          %v4780 = vadd.f32 0.0, %v4779
          %v4781 = vpop.f32.mrf.mxu0
          %v4782 = vadd.f32 0.0, %v4781
          %4783 = vmatmul.bf16.gmra.mxu0 %v4613
          %v4784 = vpop.f32.mrf.mxu0
          %v4785 = vadd.f32 0.0, %v4784
          %v4786 = vpop.f32.mrf.mxu0
          %v4787 = vadd.f32 0.0, %v4786
          %4788 = vmatmul.bf16.gmra.mxu0 %v4614
          %v4789 = vpop.f32.mrf.mxu0
          %v4790 = vadd.f32 0.0, %v4789
          %v4791 = vpop.f32.mrf.mxu0
          %v4792 = vadd.f32 0.0, %v4791
          %4793 = vmatmul.bf16.gmra.mxu0 %v4615
          %v4794 = vpop.f32.mrf.mxu0
          %v4795 = vadd.f32 0.0, %v4794
          %v4796 = vpop.f32.mrf.mxu0
          %v4797 = vadd.f32 0.0, %v4796
          %4798 = vmatmul.bf16.gmra.mxu0 %v4616
          %v4799 = vpop.f32.mrf.mxu0
          %v4800 = vadd.f32 0.0, %v4799
          %v4801 = vpop.f32.mrf.mxu0
          %v4802 = vadd.f32 0.0, %v4801
          %4803 = vmatmul.bf16.gmra.mxu0 %v4617
          %v4804 = vpop.f32.mrf.mxu0
          %v4805 = vadd.f32 0.0, %v4804
          %v4806 = vpop.f32.mrf.mxu0
          %v4807 = vadd.f32 0.0, %v4806
          %4808 = vmatmul.bf16.gmra.mxu0 %v4618
          %v4809 = vpop.f32.mrf.mxu0
          %v4810 = vadd.f32 0.0, %v4809
          %v4811 = vpop.f32.mrf.mxu0
          %v4812 = vadd.f32 0.0, %v4811
          %4813 = vmatmul.bf16.gmra.mxu0 %v4619
          %v4814 = vpop.f32.mrf.mxu0
          %v4815 = vadd.f32 0.0, %v4814
          %v4816 = vpop.f32.mrf.mxu0
          %v4817 = vadd.f32 0.0, %v4816
          %4818 = vmatmul.bf16.gmra.mxu0 %v4620
          %v4819 = vpop.f32.mrf.mxu0
          %v4820 = vadd.f32 0.0, %v4819
          %v4821 = vpop.f32.mrf.mxu0
          %v4822 = vadd.f32 0.0, %v4821
          %4823 = vmatmul.bf16.gmra.mxu0 %v4621
          %v4824 = vpop.f32.mrf.mxu0
          %v4825 = vadd.f32 0.0, %v4824
          %v4826 = vpop.f32.mrf.mxu0
          %v4827 = vadd.f32 0.0, %v4826
          %4828 = vmatmul.bf16.gmra.mxu0 %v4622
          %v4829 = vpop.f32.mrf.mxu0
          %v4830 = vadd.f32 0.0, %v4829
          %v4831 = vpop.f32.mrf.mxu0
          %v4832 = vadd.f32 0.0, %v4831
          %4833 = vmatmul.bf16.gmra.mxu0 %v4623
          %v4834 = vpop.f32.mrf.mxu0
          %v4835 = vadd.f32 0.0, %v4834
          %v4836 = vpop.f32.mrf.mxu0
          %v4837 = vadd.f32 0.0, %v4836
          %4838 = vmatmul.bf16.gmra.mxu0 %v4624
          %v4839 = vpop.f32.mrf.mxu0
          %v4840 = vadd.f32 0.0, %v4839
          %v4841 = vpop.f32.mrf.mxu0
          %v4842 = vadd.f32 0.0, %v4841
          %4843 = vmatmul.bf16.gmra.mxu0 %v4625
          %v4844 = vpop.f32.mrf.mxu0
          %v4845 = vadd.f32 0.0, %v4844
          %v4846 = vpop.f32.mrf.mxu0
          %v4847 = vadd.f32 0.0, %v4846
          %4848 = vmatmul.bf16.gmra.mxu0 %v4626
          %v4849 = vpop.f32.mrf.mxu0
          %v4850 = vadd.f32 0.0, %v4849
          %v4851 = vpop.f32.mrf.mxu0
          %v4852 = vadd.f32 0.0, %v4851
          %4853 = vmatmul.bf16.gmra.mxu0 %v4627
          %v4854 = vpop.f32.mrf.mxu0
          %v4855 = vadd.f32 0.0, %v4854
          %v4856 = vpop.f32.mrf.mxu0
          %v4857 = vadd.f32 0.0, %v4856
          %4858 = vmatmul.bf16.gmra.mxu0 %v4628
          %v4859 = vpop.f32.mrf.mxu0
          %v4860 = vadd.f32 0.0, %v4859
          %v4861 = vpop.f32.mrf.mxu0
          %v4862 = vadd.f32 0.0, %v4861
          %4863 = vmatmul.bf16.gmra.mxu0 %v4629
          %v4864 = vpop.f32.mrf.mxu0
          %v4865 = vadd.f32 0.0, %v4864
          %v4866 = vpop.f32.mrf.mxu0
          %v4867 = vadd.f32 0.0, %v4866
          %4868 = vmatmul.bf16.gmra.mxu0 %v4630
          %v4869 = vpop.f32.mrf.mxu0
          %v4870 = vadd.f32 0.0, %v4869
          %v4871 = vpop.f32.mrf.mxu0
          %v4872 = vadd.f32 0.0, %v4871
          %4873 = vmatmul.bf16.gmra.mxu0 %v4631
          %v4874 = vpop.f32.mrf.mxu0
          %v4875 = vadd.f32 0.0, %v4874
          %v4876 = vpop.f32.mrf.mxu0
          %v4877 = vadd.f32 0.0, %v4876
          %4878 = vmatmul.bf16.gmra.mxu0 %v4632
          %v4879 = vpop.f32.mrf.mxu0
          %v4880 = vadd.f32 0.0, %v4879
          %v4881 = vpop.f32.mrf.mxu0
          %v4882 = vadd.f32 0.0, %v4881
          %4883 = vmatmul.bf16.gmra.mxu0 %v4633
          %v4884 = vpop.f32.mrf.mxu0
          %v4885 = vadd.f32 0.0, %v4884
          %v4886 = vpop.f32.mrf.mxu0
          %v4887 = vadd.f32 0.0, %v4886
          %4888 = vmatmul.bf16.gmra.mxu0 %v4634
          %v4889 = vpop.f32.mrf.mxu0
          %v4890 = vadd.f32 0.0, %v4889
          %v4891 = vpop.f32.mrf.mxu0
          %v4892 = vadd.f32 0.0, %v4891
          %4893 = vmatmul.bf16.gmra.mxu0 %v4635
          %v4894 = vpop.f32.mrf.mxu0
          %v4895 = vadd.f32 0.0, %v4894
          %v4896 = vpop.f32.mrf.mxu0
          %v4897 = vadd.f32 0.0, %v4896
          %4898 = vdwg.mxu0
          %v4903 = vunpack.c.l.b16 %v4594
          %v4904 = vunpack.c.l.b16 %v4595
          %v4905 = vunpack.c.l.b16 %v4596
          %v4906 = vunpack.c.l.b16 %v4597
          %v4907 = vpack.c.b16 %v4904, %v4903
          %v4908 = vpack.c.b16 %v4906, %v4905
          %vm4911 = vcmask 261120
          %v4913 = vsel %vm4911, %v540, 0
          %v4916 = vsel %vm4911, %v541, 0
          %v4919 = vsel %vm4911, %v542, 0
          %v4922 = vsel %vm4911, %v543, 0
          %v4925 = vsel %vm4911, %v544, 0
          %v4928 = vsel %vm4911, %v545, 0
          %v4931 = vsel %vm4911, %v546, 0
          %v4934 = vsel %vm4911, %v547, 0
          %v4937 = vsel %vm4911, %v548, 0
          %v4940 = vsel %vm4911, %v549, 0
          %v4943 = vsel %vm4911, %v550, 0
          %v4946 = vsel %vm4911, %v551, 0
          %v4949 = vsel %vm4911, %v552, 0
          %v4952 = vsel %vm4911, %v553, 0
          %v4955 = vsel %vm4911, %v554, 0
          %v4958 = vsel %vm4911, %v555, 0
          %v4961 = vsel %vm4911, %v556, 0
          %v4964 = vsel %vm4911, %v557, 0
          %v4967 = vsel %vm4911, %v558, 0
          %v4970 = vsel %vm4911, %v559, 0
          %v4973 = vsel %vm4911, %v560, 0
          %v4976 = vsel %vm4911, %v561, 0
          %v4979 = vsel %vm4911, %v562, 0
          %v4982 = vsel %vm4911, %v563, 0
          %v4985 = vsel %vm4911, %v564, 0
          %v4988 = vsel %vm4911, %v565, 0
          %v4991 = vsel %vm4911, %v566, 0
          %v4994 = vsel %vm4911, %v567, 0
          %v4997 = vsel %vm4911, %v568, 0
          %v5000 = vsel %vm4911, %v569, 0
          %v5003 = vsel %vm4911, %v570, 0
          %v5006 = vsel %vm4911, %v571, 0
          %v5009 = vsel %vm4911, %v572, 0
          %v5012 = vsel %vm4911, %v573, 0
          %v5015 = vsel %vm4911, %v574, 0
          %v5018 = vsel %vm4911, %v575, 0
          %v5021 = vsel %vm4911, %v576, 0
          %v5024 = vsel %vm4911, %v577, 0
          %5026 = vmatpush.bf16.msra.mxu0 0
          %5027 = vmatpush.bf16.msra.mxu0 0
          %5028 = vmatpush.bf16.msra.mxu0 0
          %5029 = vmatpush.bf16.msra.mxu0 0
          %5030 = vmatpush.bf16.msra.mxu0 0
          %5031 = vmatpush.bf16.msra.mxu0 0
          %5032 = vmatpush.bf16.msra.mxu0 %v4908
          %5033 = vmatpush.bf16.msra.mxu0 %v4907
          %5034 = vmatmul.bf16.gmra.mxu0 %v4913
          %v5035 = vpop.f32.mrf.mxu0
          %v5036 = vadd.f32 %v4710, %v5035
          %v5037 = vpop.f32.mrf.mxu0
          %v5038 = vadd.f32 %v4712, %v5037
          %5039 = vmatmul.bf16.gmra.mxu0 %v4916
          %v5040 = vpop.f32.mrf.mxu0
          %v5041 = vadd.f32 %v4715, %v5040
          %v5042 = vpop.f32.mrf.mxu0
          %v5043 = vadd.f32 %v4717, %v5042
          %5044 = vmatmul.bf16.gmra.mxu0 %v4919
          %v5045 = vpop.f32.mrf.mxu0
          %v5046 = vadd.f32 %v4720, %v5045
          %v5047 = vpop.f32.mrf.mxu0
          %v5048 = vadd.f32 %v4722, %v5047
          %5049 = vmatmul.bf16.gmra.mxu0 %v4922
          %v5050 = vpop.f32.mrf.mxu0
          %v5051 = vadd.f32 %v4725, %v5050
          %v5052 = vpop.f32.mrf.mxu0
          %v5053 = vadd.f32 %v4727, %v5052
          %5054 = vmatmul.bf16.gmra.mxu0 %v4925
          %v5055 = vpop.f32.mrf.mxu0
          %v5056 = vadd.f32 %v4730, %v5055
          %v5057 = vpop.f32.mrf.mxu0
          %v5058 = vadd.f32 %v4732, %v5057
          %5059 = vmatmul.bf16.gmra.mxu0 %v4928
          %v5060 = vpop.f32.mrf.mxu0
          %v5061 = vadd.f32 %v4735, %v5060
          %v5062 = vpop.f32.mrf.mxu0
          %v5063 = vadd.f32 %v4737, %v5062
          %5064 = vmatmul.bf16.gmra.mxu0 %v4931
          %v5065 = vpop.f32.mrf.mxu0
          %v5066 = vadd.f32 %v4740, %v5065
          %v5067 = vpop.f32.mrf.mxu0
          %v5068 = vadd.f32 %v4742, %v5067
          %5069 = vmatmul.bf16.gmra.mxu0 %v4934
          %v5070 = vpop.f32.mrf.mxu0
          %v5071 = vadd.f32 %v4745, %v5070
          %v5072 = vpop.f32.mrf.mxu0
          %v5073 = vadd.f32 %v4747, %v5072
          %5074 = vmatmul.bf16.gmra.mxu0 %v4937
          %v5075 = vpop.f32.mrf.mxu0
          %v5076 = vadd.f32 %v4750, %v5075
          %v5077 = vpop.f32.mrf.mxu0
          %v5078 = vadd.f32 %v4752, %v5077
          %5079 = vmatmul.bf16.gmra.mxu0 %v4940
          %v5080 = vpop.f32.mrf.mxu0
          %v5081 = vadd.f32 %v4755, %v5080
          %v5082 = vpop.f32.mrf.mxu0
          %v5083 = vadd.f32 %v4757, %v5082
          %5084 = vmatmul.bf16.gmra.mxu0 %v4943
          %v5085 = vpop.f32.mrf.mxu0
          %v5086 = vadd.f32 %v4760, %v5085
          %v5087 = vpop.f32.mrf.mxu0
          %v5088 = vadd.f32 %v4762, %v5087
          %5089 = vmatmul.bf16.gmra.mxu0 %v4946
          %v5090 = vpop.f32.mrf.mxu0
          %v5091 = vadd.f32 %v4765, %v5090
          %v5092 = vpop.f32.mrf.mxu0
          %v5093 = vadd.f32 %v4767, %v5092
          %5094 = vmatmul.bf16.gmra.mxu0 %v4949
          %v5095 = vpop.f32.mrf.mxu0
          %v5096 = vadd.f32 %v4770, %v5095
          %v5097 = vpop.f32.mrf.mxu0
          %v5098 = vadd.f32 %v4772, %v5097
          %5099 = vmatmul.bf16.gmra.mxu0 %v4952
          %v5100 = vpop.f32.mrf.mxu0
          %v5101 = vadd.f32 %v4775, %v5100
          %v5102 = vpop.f32.mrf.mxu0
          %v5103 = vadd.f32 %v4777, %v5102
          %5104 = vmatmul.bf16.gmra.mxu0 %v4955
          %v5105 = vpop.f32.mrf.mxu0
          %v5106 = vadd.f32 %v4780, %v5105
          %v5107 = vpop.f32.mrf.mxu0
          %v5108 = vadd.f32 %v4782, %v5107
          %5109 = vmatmul.bf16.gmra.mxu0 %v4958
          %v5110 = vpop.f32.mrf.mxu0
          %v5111 = vadd.f32 %v4785, %v5110
          %v5112 = vpop.f32.mrf.mxu0
          %v5113 = vadd.f32 %v4787, %v5112
          %5114 = vmatmul.bf16.gmra.mxu0 %v4961
          %v5115 = vpop.f32.mrf.mxu0
          %v5116 = vadd.f32 %v4790, %v5115
          %v5117 = vpop.f32.mrf.mxu0
          %v5118 = vadd.f32 %v4792, %v5117
          %5119 = vmatmul.bf16.gmra.mxu0 %v4964
          %v5120 = vpop.f32.mrf.mxu0
          %v5121 = vadd.f32 %v4795, %v5120
          %v5122 = vpop.f32.mrf.mxu0
          %v5123 = vadd.f32 %v4797, %v5122
          %5124 = vmatmul.bf16.gmra.mxu0 %v4967
          %v5125 = vpop.f32.mrf.mxu0
          %v5126 = vadd.f32 %v4800, %v5125
          %v5127 = vpop.f32.mrf.mxu0
          %v5128 = vadd.f32 %v4802, %v5127
          %5129 = vmatmul.bf16.gmra.mxu0 %v4970
          %v5130 = vpop.f32.mrf.mxu0
          %v5131 = vadd.f32 %v4805, %v5130
          %v5132 = vpop.f32.mrf.mxu0
          %v5133 = vadd.f32 %v4807, %v5132
          %5134 = vmatmul.bf16.gmra.mxu0 %v4973
          %v5135 = vpop.f32.mrf.mxu0
          %v5136 = vadd.f32 %v4810, %v5135
          %v5137 = vpop.f32.mrf.mxu0
          %v5138 = vadd.f32 %v4812, %v5137
          %5139 = vmatmul.bf16.gmra.mxu0 %v4976
          %v5140 = vpop.f32.mrf.mxu0
          %v5141 = vadd.f32 %v4815, %v5140
          %v5142 = vpop.f32.mrf.mxu0
          %v5143 = vadd.f32 %v4817, %v5142
          %5144 = vmatmul.bf16.gmra.mxu0 %v4979
          %v5145 = vpop.f32.mrf.mxu0
          %v5146 = vadd.f32 %v4820, %v5145
          %v5147 = vpop.f32.mrf.mxu0
          %v5148 = vadd.f32 %v4822, %v5147
          %5149 = vmatmul.bf16.gmra.mxu0 %v4982
          %v5150 = vpop.f32.mrf.mxu0
          %v5151 = vadd.f32 %v4825, %v5150
          %v5152 = vpop.f32.mrf.mxu0
          %v5153 = vadd.f32 %v4827, %v5152
          %5154 = vmatmul.bf16.gmra.mxu0 %v4985
          %v5155 = vpop.f32.mrf.mxu0
          %v5156 = vadd.f32 %v4830, %v5155
          %v5157 = vpop.f32.mrf.mxu0
          %v5158 = vadd.f32 %v4832, %v5157
          %5159 = vmatmul.bf16.gmra.mxu0 %v4988
          %v5160 = vpop.f32.mrf.mxu0
          %v5161 = vadd.f32 %v4835, %v5160
          %v5162 = vpop.f32.mrf.mxu0
          %v5163 = vadd.f32 %v4837, %v5162
          %5164 = vmatmul.bf16.gmra.mxu0 %v4991
          %v5165 = vpop.f32.mrf.mxu0
          %v5166 = vadd.f32 %v4840, %v5165
          %v5167 = vpop.f32.mrf.mxu0
          %v5168 = vadd.f32 %v4842, %v5167
          %5169 = vmatmul.bf16.gmra.mxu0 %v4994
          %v5170 = vpop.f32.mrf.mxu0
          %v5171 = vadd.f32 %v4845, %v5170
          %v5172 = vpop.f32.mrf.mxu0
          %v5173 = vadd.f32 %v4847, %v5172
          %5174 = vmatmul.bf16.gmra.mxu0 %v4997
          %v5175 = vpop.f32.mrf.mxu0
          %v5176 = vadd.f32 %v4850, %v5175
          %v5177 = vpop.f32.mrf.mxu0
          %v5178 = vadd.f32 %v4852, %v5177
          %5179 = vmatmul.bf16.gmra.mxu0 %v5000
          %v5180 = vpop.f32.mrf.mxu0
          %v5181 = vadd.f32 %v4855, %v5180
          %v5182 = vpop.f32.mrf.mxu0
          %v5183 = vadd.f32 %v4857, %v5182
          %5184 = vmatmul.bf16.gmra.mxu0 %v5003
          %v5185 = vpop.f32.mrf.mxu0
          %v5186 = vadd.f32 %v4860, %v5185
          %v5187 = vpop.f32.mrf.mxu0
          %v5188 = vadd.f32 %v4862, %v5187
          %5189 = vmatmul.bf16.gmra.mxu0 %v5006
          %v5190 = vpop.f32.mrf.mxu0
          %v5191 = vadd.f32 %v4865, %v5190
          %v5192 = vpop.f32.mrf.mxu0
          %v5193 = vadd.f32 %v4867, %v5192
          %5194 = vmatmul.bf16.gmra.mxu0 %v5009
          %v5195 = vpop.f32.mrf.mxu0
          %v5196 = vadd.f32 %v4870, %v5195
          %v5197 = vpop.f32.mrf.mxu0
          %v5198 = vadd.f32 %v4872, %v5197
          %5199 = vmatmul.bf16.gmra.mxu0 %v5012
          %v5200 = vpop.f32.mrf.mxu0
          %v5201 = vadd.f32 %v4875, %v5200
          %v5202 = vpop.f32.mrf.mxu0
          %v5203 = vadd.f32 %v4877, %v5202
          %5204 = vmatmul.bf16.gmra.mxu0 %v5015
          %v5205 = vpop.f32.mrf.mxu0
          %v5206 = vadd.f32 %v4880, %v5205
          %v5207 = vpop.f32.mrf.mxu0
          %v5208 = vadd.f32 %v4882, %v5207
          %5209 = vmatmul.bf16.gmra.mxu0 %v5018
          %v5210 = vpop.f32.mrf.mxu0
          %v5211 = vadd.f32 %v4885, %v5210
          %v5212 = vpop.f32.mrf.mxu0
          %v5213 = vadd.f32 %v4887, %v5212
          %5214 = vmatmul.bf16.gmra.mxu0 %v5021
          %v5215 = vpop.f32.mrf.mxu0
          %v5216 = vadd.f32 %v4890, %v5215
          %v5217 = vpop.f32.mrf.mxu0
          %v5218 = vadd.f32 %v4892, %v5217
          %5219 = vmatmul.bf16.gmra.mxu0 %v5024
          %v5220 = vpop.f32.mrf.mxu0
          %v5221 = vadd.f32 %v4895, %v5220
          %v5222 = vpop.f32.mrf.mxu0
          %v5223 = vadd.f32 %v4897, %v5222
          %5224 = vdwg.mxu0
          %v5225 = vld [vmem:[%s10] sm:$0x1]
          %v5227 = vperm.slane %v5225, 0
          %v5229 = vadd.f32 %v5036, %v5227
          %v5230 = vadd.f32 %v5038, %v5227
          %v5231 = vadd.f32 %v5041, %v5227
          %v5232 = vadd.f32 %v5043, %v5227
          %v5233 = vadd.f32 %v5046, %v5227
          %v5234 = vadd.f32 %v5048, %v5227
          %v5235 = vadd.f32 %v5051, %v5227
          %v5236 = vadd.f32 %v5053, %v5227
          %v5237 = vadd.f32 %v5056, %v5227
          %v5238 = vadd.f32 %v5058, %v5227
          %v5239 = vadd.f32 %v5061, %v5227
          %v5240 = vadd.f32 %v5063, %v5227
          %v5241 = vadd.f32 %v5066, %v5227
          %v5242 = vadd.f32 %v5068, %v5227
          %v5243 = vadd.f32 %v5071, %v5227
          %v5244 = vadd.f32 %v5073, %v5227
          %v5245 = vadd.f32 %v5076, %v5227
          %v5246 = vadd.f32 %v5078, %v5227
          %v5247 = vadd.f32 %v5081, %v5227
          %v5248 = vadd.f32 %v5083, %v5227
          %v5249 = vadd.f32 %v5086, %v5227
          %v5250 = vadd.f32 %v5088, %v5227
          %v5251 = vadd.f32 %v5091, %v5227
          %v5252 = vadd.f32 %v5093, %v5227
          %v5253 = vadd.f32 %v5096, %v5227
          %v5254 = vadd.f32 %v5098, %v5227
          %v5255 = vadd.f32 %v5101, %v5227
          %v5256 = vadd.f32 %v5103, %v5227
          %v5257 = vadd.f32 %v5106, %v5227
          %v5258 = vadd.f32 %v5108, %v5227
          %v5259 = vadd.f32 %v5111, %v5227
          %v5260 = vadd.f32 %v5113, %v5227
          %v5261 = vadd.f32 %v5116, %v5227
          %v5262 = vadd.f32 %v5118, %v5227
          %v5263 = vadd.f32 %v5121, %v5227
          %v5264 = vadd.f32 %v5123, %v5227
          %v5265 = vadd.f32 %v5126, %v5227
          %v5266 = vadd.f32 %v5128, %v5227
          %v5267 = vadd.f32 %v5131, %v5227
          %v5268 = vadd.f32 %v5133, %v5227
          %v5269 = vadd.f32 %v5136, %v5227
          %v5270 = vadd.f32 %v5138, %v5227
          %v5271 = vadd.f32 %v5141, %v5227
          %v5272 = vadd.f32 %v5143, %v5227
          %v5273 = vadd.f32 %v5146, %v5227
          %v5274 = vadd.f32 %v5148, %v5227
          %v5275 = vadd.f32 %v5151, %v5227
          %v5276 = vadd.f32 %v5153, %v5227
          %v5277 = vadd.f32 %v5156, %v5227
          %v5278 = vadd.f32 %v5158, %v5227
          %v5279 = vadd.f32 %v5161, %v5227
          %v5280 = vadd.f32 %v5163, %v5227
          %v5281 = vadd.f32 %v5166, %v5227
          %v5282 = vadd.f32 %v5168, %v5227
          %v5283 = vadd.f32 %v5171, %v5227
          %v5284 = vadd.f32 %v5173, %v5227
          %v5285 = vadd.f32 %v5176, %v5227
          %v5286 = vadd.f32 %v5178, %v5227
          %v5287 = vadd.f32 %v5181, %v5227
          %v5288 = vadd.f32 %v5183, %v5227
          %v5289 = vadd.f32 %v5186, %v5227
          %v5290 = vadd.f32 %v5188, %v5227
          %v5291 = vadd.f32 %v5191, %v5227
          %v5292 = vadd.f32 %v5193, %v5227
          %v5293 = vadd.f32 %v5196, %v5227
          %v5294 = vadd.f32 %v5198, %v5227
          %v5295 = vadd.f32 %v5201, %v5227
          %v5296 = vadd.f32 %v5203, %v5227
          %v5297 = vadd.f32 %v5206, %v5227
          %v5298 = vadd.f32 %v5208, %v5227
          %v5299 = vadd.f32 %v5211, %v5227
          %v5300 = vadd.f32 %v5213, %v5227
          %v5301 = vadd.f32 %v5216, %v5227
          %v5302 = vadd.f32 %v5218, %v5227
          %v5303 = vadd.f32 %v5221, %v5227
          %v5304 = vadd.f32 %v5223, %v5227
          %v5305 = vmax.f32 %v5229, 0.0
          %v5306 = vmax.f32 %v5230, 0.0
          %v5307 = vmax.f32 %v5231, 0.0
          %v5308 = vmax.f32 %v5232, 0.0
          %v5309 = vmax.f32 %v5233, 0.0
          %v5310 = vmax.f32 %v5234, 0.0
          %v5311 = vmax.f32 %v5235, 0.0
          %v5312 = vmax.f32 %v5236, 0.0
          %v5313 = vmax.f32 %v5237, 0.0
          %v5314 = vmax.f32 %v5238, 0.0
          %v5315 = vmax.f32 %v5239, 0.0
          %v5316 = vmax.f32 %v5240, 0.0
          %v5317 = vmax.f32 %v5241, 0.0
          %v5318 = vmax.f32 %v5242, 0.0
          %v5319 = vmax.f32 %v5243, 0.0
          %v5320 = vmax.f32 %v5244, 0.0
          %v5321 = vmax.f32 %v5245, 0.0
          %v5322 = vmax.f32 %v5246, 0.0
          %v5323 = vmax.f32 %v5247, 0.0
          %v5324 = vmax.f32 %v5248, 0.0
          %v5325 = vmax.f32 %v5249, 0.0
          %v5326 = vmax.f32 %v5250, 0.0
          %v5327 = vmax.f32 %v5251, 0.0
          %v5328 = vmax.f32 %v5252, 0.0
          %v5329 = vmax.f32 %v5253, 0.0
          %v5330 = vmax.f32 %v5254, 0.0
          %v5331 = vmax.f32 %v5255, 0.0
          %v5332 = vmax.f32 %v5256, 0.0
          %v5333 = vmax.f32 %v5257, 0.0
          %v5334 = vmax.f32 %v5258, 0.0
          %v5335 = vmax.f32 %v5259, 0.0
          %v5336 = vmax.f32 %v5260, 0.0
          %v5337 = vmax.f32 %v5261, 0.0
          %v5338 = vmax.f32 %v5262, 0.0
          %v5339 = vmax.f32 %v5263, 0.0
          %v5340 = vmax.f32 %v5264, 0.0
          %v5341 = vmax.f32 %v5265, 0.0
          %v5342 = vmax.f32 %v5266, 0.0
          %v5343 = vmax.f32 %v5267, 0.0
          %v5344 = vmax.f32 %v5268, 0.0
          %v5345 = vmax.f32 %v5269, 0.0
          %v5346 = vmax.f32 %v5270, 0.0
          %v5347 = vmax.f32 %v5271, 0.0
          %v5348 = vmax.f32 %v5272, 0.0
          %v5349 = vmax.f32 %v5273, 0.0
          %v5350 = vmax.f32 %v5274, 0.0
          %v5351 = vmax.f32 %v5275, 0.0
          %v5352 = vmax.f32 %v5276, 0.0
          %v5353 = vmax.f32 %v5277, 0.0
          %v5354 = vmax.f32 %v5278, 0.0
          %v5355 = vmax.f32 %v5279, 0.0
          %v5356 = vmax.f32 %v5280, 0.0
          %v5357 = vmax.f32 %v5281, 0.0
          %v5358 = vmax.f32 %v5282, 0.0
          %v5359 = vmax.f32 %v5283, 0.0
          %v5360 = vmax.f32 %v5284, 0.0
          %v5361 = vmax.f32 %v5285, 0.0
          %v5362 = vmax.f32 %v5286, 0.0
          %v5363 = vmax.f32 %v5287, 0.0
          %v5364 = vmax.f32 %v5288, 0.0
          %v5365 = vmax.f32 %v5289, 0.0
          %v5366 = vmax.f32 %v5290, 0.0
          %v5367 = vmax.f32 %v5291, 0.0
          %v5368 = vmax.f32 %v5292, 0.0
          %v5369 = vmax.f32 %v5293, 0.0
          %v5370 = vmax.f32 %v5294, 0.0
          %v5371 = vmax.f32 %v5295, 0.0
          %v5372 = vmax.f32 %v5296, 0.0
          %v5373 = vmax.f32 %v5297, 0.0
          %v5374 = vmax.f32 %v5298, 0.0
          %v5375 = vmax.f32 %v5299, 0.0
          %v5376 = vmax.f32 %v5300, 0.0
          %v5377 = vmax.f32 %v5301, 0.0
          %v5378 = vmax.f32 %v5302, 0.0
          %v5379 = vmax.f32 %v5303, 0.0
          %v5380 = vmax.f32 %v5304, 0.0
          %v5381 = vpack.c.bf16 %v5306, %v5305
          %v5382 = vpack.c.bf16 %v5308, %v5307
          %v5383 = vpack.c.bf16 %v5310, %v5309
          %v5384 = vpack.c.bf16 %v5312, %v5311
          %v5385 = vpack.c.bf16 %v5314, %v5313
          %v5386 = vpack.c.bf16 %v5316, %v5315
          %v5387 = vpack.c.bf16 %v5318, %v5317
          %v5388 = vpack.c.bf16 %v5320, %v5319
          %v5389 = vpack.c.bf16 %v5322, %v5321
          %v5390 = vpack.c.bf16 %v5324, %v5323
          %v5391 = vpack.c.bf16 %v5326, %v5325
          %v5392 = vpack.c.bf16 %v5328, %v5327
          %v5393 = vpack.c.bf16 %v5330, %v5329
          %v5394 = vpack.c.bf16 %v5332, %v5331
          %v5395 = vpack.c.bf16 %v5334, %v5333
          %v5396 = vpack.c.bf16 %v5336, %v5335
          %v5397 = vpack.c.bf16 %v5338, %v5337
          %v5398 = vpack.c.bf16 %v5340, %v5339
          %v5399 = vpack.c.bf16 %v5342, %v5341
          %v5400 = vpack.c.bf16 %v5344, %v5343
          %v5401 = vpack.c.bf16 %v5346, %v5345
          %v5402 = vpack.c.bf16 %v5348, %v5347
          %v5403 = vpack.c.bf16 %v5350, %v5349
          %v5404 = vpack.c.bf16 %v5352, %v5351
          %v5405 = vpack.c.bf16 %v5354, %v5353
          %v5406 = vpack.c.bf16 %v5356, %v5355
          %v5407 = vpack.c.bf16 %v5358, %v5357
          %v5408 = vpack.c.bf16 %v5360, %v5359
          %v5409 = vpack.c.bf16 %v5362, %v5361
          %v5410 = vpack.c.bf16 %v5364, %v5363
          %v5411 = vpack.c.bf16 %v5366, %v5365
          %v5412 = vpack.c.bf16 %v5368, %v5367
          %v5413 = vpack.c.bf16 %v5370, %v5369
          %v5414 = vpack.c.bf16 %v5372, %v5371
          %v5415 = vpack.c.bf16 %v5374, %v5373
          %v5416 = vpack.c.bf16 %v5376, %v5375
          %v5417 = vpack.c.bf16 %v5378, %v5377
          %v5418 = vpack.c.bf16 %v5380, %v5379
          %v5419 = vld [vmem:[%s11] sm:$0xf]
          %v5420 = vld [vmem:[%s11 + $0x4] sm:$0xf]
          %v5421 = vld [vmem:[%s11 + $0x8] sm:$0xf]
          %v5422 = vld [vmem:[%s11 + $0xc] sm:$0xf]
          %v5423 = vld [vmem:[%s11 + $0x10] sm:$0xf]
          %v5424 = vld [vmem:[%s11 + $0x14] sm:$0xf]
          %v5425 = vld [vmem:[%s11 + $0x18] sm:$0xf]
          %v5426 = vld [vmem:[%s11 + $0x1c] sm:$0xf]
          %v5427 = vld [vmem:[%s11 + $0x20] sm:$0xf]
          %v5428 = vld [vmem:[%s11 + $0x24] sm:$0xf]
          %v5429 = vld [vmem:[%s11 + $0x28] sm:$0xf]
          %v5430 = vld [vmem:[%s11 + $0x2c] sm:$0xf]
          %v5431 = vld [vmem:[%s11 + $0x30] sm:$0xf]
          %v5432 = vld [vmem:[%s11 + $0x34] sm:$0xf]
          %v5433 = vld [vmem:[%s11 + $0x38] sm:$0xf]
          %v5434 = vld [vmem:[%s11 + $0x3c] sm:$0xf]
          %v5435 = vld [vmem:[%s12] sm:$0x1]
          %v5437 = vperm.slane %v5435, 0
          %v5455 = vunpack.c.l.b16 %v5419
          %v5456 = vunpack.c.l.b16 %v5420
          %v5457 = vunpack.c.l.b16 %v5421
          %v5458 = vunpack.c.l.b16 %v5422
          %v5459 = vunpack.c.l.b16 %v5423
          %v5460 = vunpack.c.l.b16 %v5424
          %v5461 = vunpack.c.l.b16 %v5425
          %v5462 = vunpack.c.l.b16 %v5426
          %v5463 = vunpack.c.l.b16 %v5427
          %v5464 = vunpack.c.l.b16 %v5428
          %v5465 = vunpack.c.l.b16 %v5429
          %v5466 = vunpack.c.l.b16 %v5430
          %v5467 = vunpack.c.l.b16 %v5431
          %v5468 = vunpack.c.l.b16 %v5432
          %v5469 = vunpack.c.l.b16 %v5433
          %v5470 = vunpack.c.l.b16 %v5434
          %v5471 = vpack.c.b16 %v5456, %v5455
          %v5472 = vpack.c.b16 %v5458, %v5457
          %v5473 = vpack.c.b16 %v5460, %v5459
          %v5474 = vpack.c.b16 %v5462, %v5461
          %v5475 = vpack.c.b16 %v5464, %v5463
          %v5476 = vpack.c.b16 %v5466, %v5465
          %v5477 = vpack.c.b16 %v5468, %v5467
          %v5478 = vpack.c.b16 %v5470, %v5469
          %5487 = vmatpush.bf16.msra.mxu0 %v5478
          %5488 = vmatpush.bf16.msra.mxu0 %v5477
          %5489 = vmatpush.bf16.msra.mxu0 %v5476
          %5490 = vmatpush.bf16.msra.mxu0 %v5475
          %5491 = vmatpush.bf16.msra.mxu0 %v5474
          %5492 = vmatpush.bf16.msra.mxu0 %v5473
          %5493 = vmatpush.bf16.msra.mxu0 %v5472
          %5494 = vmatpush.bf16.msra.mxu0 %v5471
          %5495 = vmatmul.bf16.gmra.mxu0 %v5381
          %v5496 = vpop.f32.mrf.mxu0
          %v5497 = vadd.f32 %v5437, %v5496
          %v5498 = vpop.f32.mrf.mxu0
          %v5499 = vadd.f32 %v5437, %v5498
          %5500 = vmatmul.bf16.gmra.mxu0 %v5382
          %v5501 = vpop.f32.mrf.mxu0
          %v5502 = vadd.f32 %v5437, %v5501
          %v5503 = vpop.f32.mrf.mxu0
          %v5504 = vadd.f32 %v5437, %v5503
          %5505 = vmatmul.bf16.gmra.mxu0 %v5383
          %v5506 = vpop.f32.mrf.mxu0
          %v5507 = vadd.f32 %v5437, %v5506
          %v5508 = vpop.f32.mrf.mxu0
          %v5509 = vadd.f32 %v5437, %v5508
          %5510 = vmatmul.bf16.gmra.mxu0 %v5384
          %v5511 = vpop.f32.mrf.mxu0
          %v5512 = vadd.f32 %v5437, %v5511
          %v5513 = vpop.f32.mrf.mxu0
          %v5514 = vadd.f32 %v5437, %v5513
          %5515 = vmatmul.bf16.gmra.mxu0 %v5385
          %v5516 = vpop.f32.mrf.mxu0
          %v5517 = vadd.f32 %v5437, %v5516
          %v5518 = vpop.f32.mrf.mxu0
          %v5519 = vadd.f32 %v5437, %v5518
          %5520 = vmatmul.bf16.gmra.mxu0 %v5386
          %v5521 = vpop.f32.mrf.mxu0
          %v5522 = vadd.f32 %v5437, %v5521
          %v5523 = vpop.f32.mrf.mxu0
          %v5524 = vadd.f32 %v5437, %v5523
          %5525 = vmatmul.bf16.gmra.mxu0 %v5387
          %v5526 = vpop.f32.mrf.mxu0
          %v5527 = vadd.f32 %v5437, %v5526
          %v5528 = vpop.f32.mrf.mxu0
          %v5529 = vadd.f32 %v5437, %v5528
          %5530 = vmatmul.bf16.gmra.mxu0 %v5388
          %v5531 = vpop.f32.mrf.mxu0
          %v5532 = vadd.f32 %v5437, %v5531
          %v5533 = vpop.f32.mrf.mxu0
          %v5534 = vadd.f32 %v5437, %v5533
          %5535 = vmatmul.bf16.gmra.mxu0 %v5389
          %v5536 = vpop.f32.mrf.mxu0
          %v5537 = vadd.f32 %v5437, %v5536
          %v5538 = vpop.f32.mrf.mxu0
          %v5539 = vadd.f32 %v5437, %v5538
          %5540 = vmatmul.bf16.gmra.mxu0 %v5390
          %v5541 = vpop.f32.mrf.mxu0
          %v5542 = vadd.f32 %v5437, %v5541
          %v5543 = vpop.f32.mrf.mxu0
          %v5544 = vadd.f32 %v5437, %v5543
          %5545 = vmatmul.bf16.gmra.mxu0 %v5391
          %v5546 = vpop.f32.mrf.mxu0
          %v5547 = vadd.f32 %v5437, %v5546
          %v5548 = vpop.f32.mrf.mxu0
          %v5549 = vadd.f32 %v5437, %v5548
          %5550 = vmatmul.bf16.gmra.mxu0 %v5392
          %v5551 = vpop.f32.mrf.mxu0
          %v5552 = vadd.f32 %v5437, %v5551
          %v5553 = vpop.f32.mrf.mxu0
          %v5554 = vadd.f32 %v5437, %v5553
          %5555 = vmatmul.bf16.gmra.mxu0 %v5393
          %v5556 = vpop.f32.mrf.mxu0
          %v5557 = vadd.f32 %v5437, %v5556
          %v5558 = vpop.f32.mrf.mxu0
          %v5559 = vadd.f32 %v5437, %v5558
          %5560 = vmatmul.bf16.gmra.mxu0 %v5394
          %v5561 = vpop.f32.mrf.mxu0
          %v5562 = vadd.f32 %v5437, %v5561
          %v5563 = vpop.f32.mrf.mxu0
          %v5564 = vadd.f32 %v5437, %v5563
          %5565 = vmatmul.bf16.gmra.mxu0 %v5395
          %v5566 = vpop.f32.mrf.mxu0
          %v5567 = vadd.f32 %v5437, %v5566
          %v5568 = vpop.f32.mrf.mxu0
          %v5569 = vadd.f32 %v5437, %v5568
          %5570 = vmatmul.bf16.gmra.mxu0 %v5396
          %v5571 = vpop.f32.mrf.mxu0
          %v5572 = vadd.f32 %v5437, %v5571
          %v5573 = vpop.f32.mrf.mxu0
          %v5574 = vadd.f32 %v5437, %v5573
          %5575 = vmatmul.bf16.gmra.mxu0 %v5397
          %v5576 = vpop.f32.mrf.mxu0
          %v5577 = vadd.f32 %v5437, %v5576
          %v5578 = vpop.f32.mrf.mxu0
          %v5579 = vadd.f32 %v5437, %v5578
          %5580 = vmatmul.bf16.gmra.mxu0 %v5398
          %v5581 = vpop.f32.mrf.mxu0
          %v5582 = vadd.f32 %v5437, %v5581
          %v5583 = vpop.f32.mrf.mxu0
          %v5584 = vadd.f32 %v5437, %v5583
          %5585 = vmatmul.bf16.gmra.mxu0 %v5399
          %v5586 = vpop.f32.mrf.mxu0
          %v5587 = vadd.f32 %v5437, %v5586
          %v5588 = vpop.f32.mrf.mxu0
          %v5589 = vadd.f32 %v5437, %v5588
          %5590 = vmatmul.bf16.gmra.mxu0 %v5400
          %v5591 = vpop.f32.mrf.mxu0
          %v5592 = vadd.f32 %v5437, %v5591
          %v5593 = vpop.f32.mrf.mxu0
          %v5594 = vadd.f32 %v5437, %v5593
          %5595 = vmatmul.bf16.gmra.mxu0 %v5401
          %v5596 = vpop.f32.mrf.mxu0
          %v5597 = vadd.f32 %v5437, %v5596
          %v5598 = vpop.f32.mrf.mxu0
          %v5599 = vadd.f32 %v5437, %v5598
          %5600 = vmatmul.bf16.gmra.mxu0 %v5402
          %v5601 = vpop.f32.mrf.mxu0
          %v5602 = vadd.f32 %v5437, %v5601
          %v5603 = vpop.f32.mrf.mxu0
          %v5604 = vadd.f32 %v5437, %v5603
          %5605 = vmatmul.bf16.gmra.mxu0 %v5403
          %v5606 = vpop.f32.mrf.mxu0
          %v5607 = vadd.f32 %v5437, %v5606
          %v5608 = vpop.f32.mrf.mxu0
          %v5609 = vadd.f32 %v5437, %v5608
          %5610 = vmatmul.bf16.gmra.mxu0 %v5404
          %v5611 = vpop.f32.mrf.mxu0
          %v5612 = vadd.f32 %v5437, %v5611
          %v5613 = vpop.f32.mrf.mxu0
          %v5614 = vadd.f32 %v5437, %v5613
          %5615 = vmatmul.bf16.gmra.mxu0 %v5405
          %v5616 = vpop.f32.mrf.mxu0
          %v5617 = vadd.f32 %v5437, %v5616
          %v5618 = vpop.f32.mrf.mxu0
          %v5619 = vadd.f32 %v5437, %v5618
          %5620 = vmatmul.bf16.gmra.mxu0 %v5406
          %v5621 = vpop.f32.mrf.mxu0
          %v5622 = vadd.f32 %v5437, %v5621
          %v5623 = vpop.f32.mrf.mxu0
          %v5624 = vadd.f32 %v5437, %v5623
          %5625 = vmatmul.bf16.gmra.mxu0 %v5407
          %v5626 = vpop.f32.mrf.mxu0
          %v5627 = vadd.f32 %v5437, %v5626
          %v5628 = vpop.f32.mrf.mxu0
          %v5629 = vadd.f32 %v5437, %v5628
          %5630 = vmatmul.bf16.gmra.mxu0 %v5408
          %v5631 = vpop.f32.mrf.mxu0
          %v5632 = vadd.f32 %v5437, %v5631
          %v5633 = vpop.f32.mrf.mxu0
          %v5634 = vadd.f32 %v5437, %v5633
          %5635 = vmatmul.bf16.gmra.mxu0 %v5409
          %v5636 = vpop.f32.mrf.mxu0
          %v5637 = vadd.f32 %v5437, %v5636
          %v5638 = vpop.f32.mrf.mxu0
          %v5639 = vadd.f32 %v5437, %v5638
          %5640 = vmatmul.bf16.gmra.mxu0 %v5410
          %v5641 = vpop.f32.mrf.mxu0
          %v5642 = vadd.f32 %v5437, %v5641
          %v5643 = vpop.f32.mrf.mxu0
          %v5644 = vadd.f32 %v5437, %v5643
          %5645 = vmatmul.bf16.gmra.mxu0 %v5411
          %v5646 = vpop.f32.mrf.mxu0
          %v5647 = vadd.f32 %v5437, %v5646
          %v5648 = vpop.f32.mrf.mxu0
          %v5649 = vadd.f32 %v5437, %v5648
          %5650 = vmatmul.bf16.gmra.mxu0 %v5412
          %v5651 = vpop.f32.mrf.mxu0
          %v5652 = vadd.f32 %v5437, %v5651
          %v5653 = vpop.f32.mrf.mxu0
          %v5654 = vadd.f32 %v5437, %v5653
          %5655 = vmatmul.bf16.gmra.mxu0 %v5413
          %v5656 = vpop.f32.mrf.mxu0
          %v5657 = vadd.f32 %v5437, %v5656
          %v5658 = vpop.f32.mrf.mxu0
          %v5659 = vadd.f32 %v5437, %v5658
          %5660 = vmatmul.bf16.gmra.mxu0 %v5414
          %v5661 = vpop.f32.mrf.mxu0
          %v5662 = vadd.f32 %v5437, %v5661
          %v5663 = vpop.f32.mrf.mxu0
          %v5664 = vadd.f32 %v5437, %v5663
          %5665 = vmatmul.bf16.gmra.mxu0 %v5415
          %v5666 = vpop.f32.mrf.mxu0
          %v5667 = vadd.f32 %v5437, %v5666
          %v5668 = vpop.f32.mrf.mxu0
          %v5669 = vadd.f32 %v5437, %v5668
          %5670 = vmatmul.bf16.gmra.mxu0 %v5416
          %v5671 = vpop.f32.mrf.mxu0
          %v5672 = vadd.f32 %v5437, %v5671
          %v5673 = vpop.f32.mrf.mxu0
          %v5674 = vadd.f32 %v5437, %v5673
          %5675 = vmatmul.bf16.gmra.mxu0 %v5417
          %v5676 = vpop.f32.mrf.mxu0
          %v5677 = vadd.f32 %v5437, %v5676
          %v5678 = vpop.f32.mrf.mxu0
          %v5679 = vadd.f32 %v5437, %v5678
          %5680 = vmatmul.bf16.gmra.mxu0 %v5418
          %v5681 = vpop.f32.mrf.mxu0
          %v5682 = vadd.f32 %v5437, %v5681
          %v5683 = vpop.f32.mrf.mxu0
          %v5684 = vadd.f32 %v5437, %v5683
          %5685 = vdwg.mxu0
          %v5686 = vld [vmem:[#allocation3] sm:$0x7]
          %5687 = vset.pattern.permute.xlu0 0
          %5688 = vperm.xlu0 %5687, %v4084
          %v5689 = vpop.permute.xlu0 %5688
          %5690 = vset.pattern.permute.xlu0 0
          %5691 = vperm.xlu0 %5690, %v4085
          %v5692 = vpop.permute.xlu0 %5691
          %5693 = vset.pattern.permute.xlu0 0
          %5694 = vperm.xlu0 %5693, %v4086
          %v5695 = vpop.permute.xlu0 %5694
          %5696 = vset.pattern.permute.xlu0 0
          %5697 = vperm.xlu0 %5696, %v4087
          %v5698 = vpop.permute.xlu0 %5697
          %5699 = vset.pattern.permute.xlu0 0
          %5700 = vperm.xlu0 %5699, %v4088
          %v5701 = vpop.permute.xlu0 %5700
          %5702 = vset.pattern.permute.xlu0 0
          %5703 = vperm.xlu0 %5702, %v4089
          %v5704 = vpop.permute.xlu0 %5703
          %5705 = vset.pattern.permute.xlu0 0
          %5706 = vperm.xlu0 %5705, %v4090
          %v5707 = vpop.permute.xlu0 %5706
          %5708 = vset.pattern.permute.xlu0 0
          %5709 = vperm.xlu0 %5708, %v4091
          %v5710 = vpop.permute.xlu0 %5709
          %5711 = vset.pattern.permute.xlu0 0
          %5712 = vperm.xlu0 %5711, %v4092
          %v5713 = vpop.permute.xlu0 %5712
          %5714 = vset.pattern.permute.xlu0 0
          %5715 = vperm.xlu0 %5714, %v4093
          %v5716 = vpop.permute.xlu0 %5715
          %5717 = vset.pattern.permute.xlu0 0
          %5718 = vperm.xlu0 %5717, %v4094
          %v5719 = vpop.permute.xlu0 %5718
          %5720 = vset.pattern.permute.xlu0 0
          %5721 = vperm.xlu0 %5720, %v4095
          %v5722 = vpop.permute.xlu0 %5721
          %5723 = vset.pattern.permute.xlu0 0
          %5724 = vperm.xlu0 %5723, %v4096
          %v5725 = vpop.permute.xlu0 %5724
          %5726 = vset.pattern.permute.xlu0 0
          %5727 = vperm.xlu0 %5726, %v4097
          %v5728 = vpop.permute.xlu0 %5727
          %5729 = vset.pattern.permute.xlu0 0
          %5730 = vperm.xlu0 %5729, %v4098
          %v5731 = vpop.permute.xlu0 %5730
          %5732 = vset.pattern.permute.xlu0 0
          %5733 = vperm.xlu0 %5732, %v4099
          %v5734 = vpop.permute.xlu0 %5733
          %5735 = vset.pattern.permute.xlu0 0
          %5736 = vperm.xlu0 %5735, %v4100
          %v5737 = vpop.permute.xlu0 %5736
          %5738 = vset.pattern.permute.xlu0 0
          %5739 = vperm.xlu0 %5738, %v4101
          %v5740 = vpop.permute.xlu0 %5739
          %5741 = vset.pattern.permute.xlu0 0
          %5742 = vperm.xlu0 %5741, %v4102
          %v5743 = vpop.permute.xlu0 %5742
          %5744 = vset.pattern.permute.xlu0 0
          %5745 = vperm.xlu0 %5744, %v4103
          %v5746 = vpop.permute.xlu0 %5745
          %5747 = vset.pattern.permute.xlu0 0
          %5748 = vperm.xlu0 %5747, %v4104
          %v5749 = vpop.permute.xlu0 %5748
          %5750 = vset.pattern.permute.xlu0 0
          %5751 = vperm.xlu0 %5750, %v4105
          %v5752 = vpop.permute.xlu0 %5751
          %5753 = vset.pattern.permute.xlu0 0
          %5754 = vperm.xlu0 %5753, %v4106
          %v5755 = vpop.permute.xlu0 %5754
          %5756 = vset.pattern.permute.xlu0 0
          %5757 = vperm.xlu0 %5756, %v4107
          %v5758 = vpop.permute.xlu0 %5757
          %5759 = vset.pattern.permute.xlu0 0
          %5760 = vperm.xlu0 %5759, %v4108
          %v5761 = vpop.permute.xlu0 %5760
          %5762 = vset.pattern.permute.xlu0 0
          %5763 = vperm.xlu0 %5762, %v4109
          %v5764 = vpop.permute.xlu0 %5763
          %5765 = vset.pattern.permute.xlu0 0
          %5766 = vperm.xlu0 %5765, %v4110
          %v5767 = vpop.permute.xlu0 %5766
          %5768 = vset.pattern.permute.xlu0 0
          %5769 = vperm.xlu0 %5768, %v4111
          %v5770 = vpop.permute.xlu0 %5769
          %5771 = vset.pattern.permute.xlu0 0
          %5772 = vperm.xlu0 %5771, %v4112
          %v5773 = vpop.permute.xlu0 %5772
          %5774 = vset.pattern.permute.xlu0 0
          %5775 = vperm.xlu0 %5774, %v4113
          %v5776 = vpop.permute.xlu0 %5775
          %5777 = vset.pattern.permute.xlu0 0
          %5778 = vperm.xlu0 %5777, %v4114
          %v5779 = vpop.permute.xlu0 %5778
          %5780 = vset.pattern.permute.xlu0 0
          %5781 = vperm.xlu0 %5780, %v4115
          %v5782 = vpop.permute.xlu0 %5781
          %5783 = vset.pattern.permute.xlu0 0
          %5784 = vperm.xlu0 %5783, %v4116
          %v5785 = vpop.permute.xlu0 %5784
          %5786 = vset.pattern.permute.xlu0 0
          %5787 = vperm.xlu0 %5786, %v4117
          %v5788 = vpop.permute.xlu0 %5787
          %5789 = vset.pattern.permute.xlu0 0
          %5790 = vperm.xlu0 %5789, %v4118
          %v5791 = vpop.permute.xlu0 %5790
          %5792 = vset.pattern.permute.xlu0 0
          %5793 = vperm.xlu0 %5792, %v4119
          %v5794 = vpop.permute.xlu0 %5793
          %5795 = vset.pattern.permute.xlu0 0
          %5796 = vperm.xlu0 %5795, %v4120
          %v5797 = vpop.permute.xlu0 %5796
          %5798 = vset.pattern.permute.xlu0 0
          %5799 = vperm.xlu0 %5798, %v4121
          %v5800 = vpop.permute.xlu0 %5799
          %5801 = vset.pattern.permute.xlu0 0
          %5802 = vperm.xlu0 %5801, %v4122
          %v5803 = vpop.permute.xlu0 %5802
          %5804 = vset.pattern.permute.xlu0 0
          %5805 = vperm.xlu0 %5804, %v4123
          %v5806 = vpop.permute.xlu0 %5805
          %5807 = vset.pattern.permute.xlu0 0
          %5808 = vperm.xlu0 %5807, %v4124
          %v5809 = vpop.permute.xlu0 %5808
          %5810 = vset.pattern.permute.xlu0 0
          %5811 = vperm.xlu0 %5810, %v4125
          %v5812 = vpop.permute.xlu0 %5811
          %5813 = vset.pattern.permute.xlu0 0
          %5814 = vperm.xlu0 %5813, %v4126
          %v5815 = vpop.permute.xlu0 %5814
          %5816 = vset.pattern.permute.xlu0 0
          %5817 = vperm.xlu0 %5816, %v4127
          %v5818 = vpop.permute.xlu0 %5817
          %5819 = vset.pattern.permute.xlu0 0
          %5820 = vperm.xlu0 %5819, %v4128
          %v5821 = vpop.permute.xlu0 %5820
          %5822 = vset.pattern.permute.xlu0 0
          %5823 = vperm.xlu0 %5822, %v4129
          %v5824 = vpop.permute.xlu0 %5823
          %5825 = vset.pattern.permute.xlu0 0
          %5826 = vperm.xlu0 %5825, %v4130
          %v5827 = vpop.permute.xlu0 %5826
          %5828 = vset.pattern.permute.xlu0 0
          %5829 = vperm.xlu0 %5828, %v4131
          %v5830 = vpop.permute.xlu0 %5829
          %5831 = vset.pattern.permute.xlu0 0
          %5832 = vperm.xlu0 %5831, %v4132
          %v5833 = vpop.permute.xlu0 %5832
          %5834 = vset.pattern.permute.xlu0 0
          %5835 = vperm.xlu0 %5834, %v4133
          %v5836 = vpop.permute.xlu0 %5835
          %5837 = vset.pattern.permute.xlu0 0
          %5838 = vperm.xlu0 %5837, %v4134
          %v5839 = vpop.permute.xlu0 %5838
          %5840 = vset.pattern.permute.xlu0 0
          %5841 = vperm.xlu0 %5840, %v4135
          %v5842 = vpop.permute.xlu0 %5841
          %5843 = vset.pattern.permute.xlu0 0
          %5844 = vperm.xlu0 %5843, %v4136
          %v5845 = vpop.permute.xlu0 %5844
          %5846 = vset.pattern.permute.xlu0 0
          %5847 = vperm.xlu0 %5846, %v4137
          %v5848 = vpop.permute.xlu0 %5847
          %5849 = vset.pattern.permute.xlu0 0
          %5850 = vperm.xlu0 %5849, %v4138
          %v5851 = vpop.permute.xlu0 %5850
          %5852 = vset.pattern.permute.xlu0 0
          %5853 = vperm.xlu0 %5852, %v4139
          %v5854 = vpop.permute.xlu0 %5853
          %5855 = vset.pattern.permute.xlu0 0
          %5856 = vperm.xlu0 %5855, %v4140
          %v5857 = vpop.permute.xlu0 %5856
          %5858 = vset.pattern.permute.xlu0 0
          %5859 = vperm.xlu0 %5858, %v4141
          %v5860 = vpop.permute.xlu0 %5859
          %5861 = vset.pattern.permute.xlu0 0
          %5862 = vperm.xlu0 %5861, %v4142
          %v5863 = vpop.permute.xlu0 %5862
          %5864 = vset.pattern.permute.xlu0 0
          %5865 = vperm.xlu0 %5864, %v4143
          %v5866 = vpop.permute.xlu0 %5865
          %5867 = vset.pattern.permute.xlu0 0
          %5868 = vperm.xlu0 %5867, %v4144
          %v5869 = vpop.permute.xlu0 %5868
          %5870 = vset.pattern.permute.xlu0 0
          %5871 = vperm.xlu0 %5870, %v4145
          %v5872 = vpop.permute.xlu0 %5871
          %5873 = vset.pattern.permute.xlu0 0
          %5874 = vperm.xlu0 %5873, %v4146
          %v5875 = vpop.permute.xlu0 %5874
          %5876 = vset.pattern.permute.xlu0 0
          %5877 = vperm.xlu0 %5876, %v4147
          %v5878 = vpop.permute.xlu0 %5877
          %5879 = vset.pattern.permute.xlu0 0
          %5880 = vperm.xlu0 %5879, %v4148
          %v5881 = vpop.permute.xlu0 %5880
          %5882 = vset.pattern.permute.xlu0 0
          %5883 = vperm.xlu0 %5882, %v4149
          %v5884 = vpop.permute.xlu0 %5883
          %5885 = vset.pattern.permute.xlu0 0
          %5886 = vperm.xlu0 %5885, %v4150
          %v5887 = vpop.permute.xlu0 %5886
          %5888 = vset.pattern.permute.xlu0 0
          %5889 = vperm.xlu0 %5888, %v4151
          %v5890 = vpop.permute.xlu0 %5889
          %5891 = vset.pattern.permute.xlu0 0
          %5892 = vperm.xlu0 %5891, %v4152
          %v5893 = vpop.permute.xlu0 %5892
          %5894 = vset.pattern.permute.xlu0 0
          %5895 = vperm.xlu0 %5894, %v4153
          %v5896 = vpop.permute.xlu0 %5895
          %5897 = vset.pattern.permute.xlu0 0
          %5898 = vperm.xlu0 %5897, %v4154
          %v5899 = vpop.permute.xlu0 %5898
          %5900 = vset.pattern.permute.xlu0 0
          %5901 = vperm.xlu0 %5900, %v4155
          %v5902 = vpop.permute.xlu0 %5901
          %5903 = vset.pattern.permute.xlu0 0
          %5904 = vperm.xlu0 %5903, %v4156
          %v5905 = vpop.permute.xlu0 %5904
          %5906 = vset.pattern.permute.xlu0 0
          %5907 = vperm.xlu0 %5906, %v4157
          %v5908 = vpop.permute.xlu0 %5907
          %5909 = vset.pattern.permute.xlu0 0
          %5910 = vperm.xlu0 %5909, %v4158
          %v5911 = vpop.permute.xlu0 %5910
          %5912 = vset.pattern.permute.xlu0 0
          %5913 = vperm.xlu0 %5912, %v4159
          %v5914 = vpop.permute.xlu0 %5913
          %vm5915 = vcmp.eq.s32.totalorder %v5689, 1
          %vm5916 = vcmp.eq.s32.totalorder %v5692, 1
          %vm5917 = vcmp.eq.s32.totalorder %v5695, 1
          %vm5918 = vcmp.eq.s32.totalorder %v5698, 1
          %vm5919 = vcmp.eq.s32.totalorder %v5701, 1
          %vm5920 = vcmp.eq.s32.totalorder %v5704, 1
          %vm5921 = vcmp.eq.s32.totalorder %v5707, 1
          %vm5922 = vcmp.eq.s32.totalorder %v5710, 1
          %vm5923 = vcmp.eq.s32.totalorder %v5713, 1
          %vm5924 = vcmp.eq.s32.totalorder %v5716, 1
          %vm5925 = vcmp.eq.s32.totalorder %v5719, 1
          %vm5926 = vcmp.eq.s32.totalorder %v5722, 1
          %vm5927 = vcmp.eq.s32.totalorder %v5725, 1
          %vm5928 = vcmp.eq.s32.totalorder %v5728, 1
          %vm5929 = vcmp.eq.s32.totalorder %v5731, 1
          %vm5930 = vcmp.eq.s32.totalorder %v5734, 1
          %vm5931 = vcmp.eq.s32.totalorder %v5737, 1
          %vm5932 = vcmp.eq.s32.totalorder %v5740, 1
          %vm5933 = vcmp.eq.s32.totalorder %v5743, 1
          %vm5934 = vcmp.eq.s32.totalorder %v5746, 1
          %vm5935 = vcmp.eq.s32.totalorder %v5749, 1
          %vm5936 = vcmp.eq.s32.totalorder %v5752, 1
          %vm5937 = vcmp.eq.s32.totalorder %v5755, 1
          %vm5938 = vcmp.eq.s32.totalorder %v5758, 1
          %vm5939 = vcmp.eq.s32.totalorder %v5761, 1
          %vm5940 = vcmp.eq.s32.totalorder %v5764, 1
          %vm5941 = vcmp.eq.s32.totalorder %v5767, 1
          %vm5942 = vcmp.eq.s32.totalorder %v5770, 1
          %vm5943 = vcmp.eq.s32.totalorder %v5773, 1
          %vm5944 = vcmp.eq.s32.totalorder %v5776, 1
          %vm5945 = vcmp.eq.s32.totalorder %v5779, 1
          %vm5946 = vcmp.eq.s32.totalorder %v5782, 1
          %vm5947 = vcmp.eq.s32.totalorder %v5785, 1
          %vm5948 = vcmp.eq.s32.totalorder %v5788, 1
          %vm5949 = vcmp.eq.s32.totalorder %v5791, 1
          %vm5950 = vcmp.eq.s32.totalorder %v5794, 1
          %vm5951 = vcmp.eq.s32.totalorder %v5797, 1
          %vm5952 = vcmp.eq.s32.totalorder %v5800, 1
          %vm5953 = vcmp.eq.s32.totalorder %v5803, 1
          %vm5954 = vcmp.eq.s32.totalorder %v5806, 1
          %vm5955 = vcmp.eq.s32.totalorder %v5809, 1
          %vm5956 = vcmp.eq.s32.totalorder %v5812, 1
          %vm5957 = vcmp.eq.s32.totalorder %v5815, 1
          %vm5958 = vcmp.eq.s32.totalorder %v5818, 1
          %vm5959 = vcmp.eq.s32.totalorder %v5821, 1
          %vm5960 = vcmp.eq.s32.totalorder %v5824, 1
          %vm5961 = vcmp.eq.s32.totalorder %v5827, 1
          %vm5962 = vcmp.eq.s32.totalorder %v5830, 1
          %vm5963 = vcmp.eq.s32.totalorder %v5833, 1
          %vm5964 = vcmp.eq.s32.totalorder %v5836, 1
          %vm5965 = vcmp.eq.s32.totalorder %v5839, 1
          %vm5966 = vcmp.eq.s32.totalorder %v5842, 1
          %vm5967 = vcmp.eq.s32.totalorder %v5845, 1
          %vm5968 = vcmp.eq.s32.totalorder %v5848, 1
          %vm5969 = vcmp.eq.s32.totalorder %v5851, 1
          %vm5970 = vcmp.eq.s32.totalorder %v5854, 1
          %vm5971 = vcmp.eq.s32.totalorder %v5857, 1
          %vm5972 = vcmp.eq.s32.totalorder %v5860, 1
          %vm5973 = vcmp.eq.s32.totalorder %v5863, 1
          %vm5974 = vcmp.eq.s32.totalorder %v5866, 1
          %vm5975 = vcmp.eq.s32.totalorder %v5869, 1
          %vm5976 = vcmp.eq.s32.totalorder %v5872, 1
          %vm5977 = vcmp.eq.s32.totalorder %v5875, 1
          %vm5978 = vcmp.eq.s32.totalorder %v5878, 1
          %vm5979 = vcmp.eq.s32.totalorder %v5881, 1
          %vm5980 = vcmp.eq.s32.totalorder %v5884, 1
          %vm5981 = vcmp.eq.s32.totalorder %v5887, 1
          %vm5982 = vcmp.eq.s32.totalorder %v5890, 1
          %vm5983 = vcmp.eq.s32.totalorder %v5893, 1
          %vm5984 = vcmp.eq.s32.totalorder %v5896, 1
          %vm5985 = vcmp.eq.s32.totalorder %v5899, 1
          %vm5986 = vcmp.eq.s32.totalorder %v5902, 1
          %vm5987 = vcmp.eq.s32.totalorder %v5905, 1
          %vm5988 = vcmp.eq.s32.totalorder %v5908, 1
          %vm5989 = vcmp.eq.s32.totalorder %v5911, 1
          %vm5990 = vcmp.eq.s32.totalorder %v5914, 1
          %v5991 = vsel %vm5915, %v5497, -inf
          %v5992 = vsel %vm5916, %v5499, -inf
          %v5993 = vsel %vm5917, %v5502, -inf
          %v5994 = vsel %vm5918, %v5504, -inf
          %v5995 = vsel %vm5919, %v5507, -inf
          %v5996 = vsel %vm5920, %v5509, -inf
          %v5997 = vsel %vm5921, %v5512, -inf
          %v5998 = vsel %vm5922, %v5514, -inf
          %v5999 = vsel %vm5923, %v5517, -inf
          %v6000 = vsel %vm5924, %v5519, -inf
          %v6001 = vsel %vm5925, %v5522, -inf
          %v6002 = vsel %vm5926, %v5524, -inf
          %v6003 = vsel %vm5927, %v5527, -inf
          %v6004 = vsel %vm5928, %v5529, -inf
          %v6005 = vsel %vm5929, %v5532, -inf
          %v6006 = vsel %vm5930, %v5534, -inf
          %v6007 = vsel %vm5931, %v5537, -inf
          %v6008 = vsel %vm5932, %v5539, -inf
          %v6009 = vsel %vm5933, %v5542, -inf
          %v6010 = vsel %vm5934, %v5544, -inf
          %v6011 = vsel %vm5935, %v5547, -inf
          %v6012 = vsel %vm5936, %v5549, -inf
          %v6013 = vsel %vm5937, %v5552, -inf
          %v6014 = vsel %vm5938, %v5554, -inf
          %v6015 = vsel %vm5939, %v5557, -inf
          %v6016 = vsel %vm5940, %v5559, -inf
          %v6017 = vsel %vm5941, %v5562, -inf
          %v6018 = vsel %vm5942, %v5564, -inf
          %v6019 = vsel %vm5943, %v5567, -inf
          %v6020 = vsel %vm5944, %v5569, -inf
          %v6021 = vsel %vm5945, %v5572, -inf
          %v6022 = vsel %vm5946, %v5574, -inf
          %v6023 = vsel %vm5947, %v5577, -inf
          %v6024 = vsel %vm5948, %v5579, -inf
          %v6025 = vsel %vm5949, %v5582, -inf
          %v6026 = vsel %vm5950, %v5584, -inf
          %v6027 = vsel %vm5951, %v5587, -inf
          %v6028 = vsel %vm5952, %v5589, -inf
          %v6029 = vsel %vm5953, %v5592, -inf
          %v6030 = vsel %vm5954, %v5594, -inf
          %v6031 = vsel %vm5955, %v5597, -inf
          %v6032 = vsel %vm5956, %v5599, -inf
          %v6033 = vsel %vm5957, %v5602, -inf
          %v6034 = vsel %vm5958, %v5604, -inf
          %v6035 = vsel %vm5959, %v5607, -inf
          %v6036 = vsel %vm5960, %v5609, -inf
          %v6037 = vsel %vm5961, %v5612, -inf
          %v6038 = vsel %vm5962, %v5614, -inf
          %v6039 = vsel %vm5963, %v5617, -inf
          %v6040 = vsel %vm5964, %v5619, -inf
          %v6041 = vsel %vm5965, %v5622, -inf
          %v6042 = vsel %vm5966, %v5624, -inf
          %v6043 = vsel %vm5967, %v5627, -inf
          %v6044 = vsel %vm5968, %v5629, -inf
          %v6045 = vsel %vm5969, %v5632, -inf
          %v6046 = vsel %vm5970, %v5634, -inf
          %v6047 = vsel %vm5971, %v5637, -inf
          %v6048 = vsel %vm5972, %v5639, -inf
          %v6049 = vsel %vm5973, %v5642, -inf
          %v6050 = vsel %vm5974, %v5644, -inf
          %v6051 = vsel %vm5975, %v5647, -inf
          %v6052 = vsel %vm5976, %v5649, -inf
          %v6053 = vsel %vm5977, %v5652, -inf
          %v6054 = vsel %vm5978, %v5654, -inf
          %v6055 = vsel %vm5979, %v5657, -inf
          %v6056 = vsel %vm5980, %v5659, -inf
          %v6057 = vsel %vm5981, %v5662, -inf
          %v6058 = vsel %vm5982, %v5664, -inf
          %v6059 = vsel %vm5983, %v5667, -inf
          %v6060 = vsel %vm5984, %v5669, -inf
          %v6061 = vsel %vm5985, %v5672, -inf
          %v6062 = vsel %vm5986, %v5674, -inf
          %v6063 = vsel %vm5987, %v5677, -inf
          %v6064 = vsel %vm5988, %v5679, -inf
          %v6065 = vsel %vm5989, %v5682, -inf
          %v6066 = vsel %vm5990, %v5684, -inf
          %v6067 = vmax.f32 %v5991, %v5995
          %v6068 = vmax.f32 %v5992, %v5996
          %v6069 = vmax.f32 %v5993, %v5997
          %v6070 = vmax.f32 %v5994, %v5998
          %v6071 = vmax.f32 %v6067, %v5999
          %v6072 = vmax.f32 %v6068, %v6000
          %v6073 = vmax.f32 %v6069, %v6001
          %v6074 = vmax.f32 %v6070, %v6002
          %v6075 = vmax.f32 %v6071, %v6003
          %v6076 = vmax.f32 %v6072, %v6004
          %v6077 = vmax.f32 %v6073, %v6005
          %v6078 = vmax.f32 %v6074, %v6006
          %v6079 = vmax.f32 %v6075, %v6007
          %v6080 = vmax.f32 %v6076, %v6008
          %v6081 = vmax.f32 %v6077, %v6009
          %v6082 = vmax.f32 %v6078, %v6010
          %v6083 = vmax.f32 %v6079, %v6011
          %v6084 = vmax.f32 %v6080, %v6012
          %v6085 = vmax.f32 %v6081, %v6013
          %v6086 = vmax.f32 %v6082, %v6014
          %v6087 = vmax.f32 %v6083, %v6015
          %v6088 = vmax.f32 %v6084, %v6016
          %v6089 = vmax.f32 %v6085, %v6017
          %v6090 = vmax.f32 %v6086, %v6018
          %v6091 = vmax.f32 %v6087, %v6019
          %v6092 = vmax.f32 %v6088, %v6020
          %v6093 = vmax.f32 %v6089, %v6021
          %v6094 = vmax.f32 %v6090, %v6022
          %v6095 = vmax.f32 %v6091, %v6023
          %v6096 = vmax.f32 %v6092, %v6024
          %v6097 = vmax.f32 %v6093, %v6025
          %v6098 = vmax.f32 %v6094, %v6026
          %v6099 = vmax.f32 %v6095, %v6027
          %v6100 = vmax.f32 %v6096, %v6028
          %v6101 = vmax.f32 %v6097, %v6029
          %v6102 = vmax.f32 %v6098, %v6030
          %v6103 = vmax.f32 %v6099, %v6031
          %v6104 = vmax.f32 %v6100, %v6032
          %v6105 = vmax.f32 %v6101, %v6033
          %v6106 = vmax.f32 %v6102, %v6034
          %v6107 = vmax.f32 %v6103, %v6035
          %v6108 = vmax.f32 %v6104, %v6036
          %v6109 = vmax.f32 %v6105, %v6037
          %v6110 = vmax.f32 %v6106, %v6038
          %v6111 = vmax.f32 %v6107, %v6039
          %v6112 = vmax.f32 %v6108, %v6040
          %v6113 = vmax.f32 %v6109, %v6041
          %v6114 = vmax.f32 %v6110, %v6042
          %v6115 = vmax.f32 %v6111, %v6043
          %v6116 = vmax.f32 %v6112, %v6044
          %v6117 = vmax.f32 %v6113, %v6045
          %v6118 = vmax.f32 %v6114, %v6046
          %v6119 = vmax.f32 %v6115, %v6047
          %v6120 = vmax.f32 %v6116, %v6048
          %v6121 = vmax.f32 %v6117, %v6049
          %v6122 = vmax.f32 %v6118, %v6050
          %v6123 = vmax.f32 %v6119, %v6051
          %v6124 = vmax.f32 %v6120, %v6052
          %v6125 = vmax.f32 %v6121, %v6053
          %v6126 = vmax.f32 %v6122, %v6054
          %v6127 = vmax.f32 %v6123, %v6055
          %v6128 = vmax.f32 %v6124, %v6056
          %v6129 = vmax.f32 %v6125, %v6057
          %v6130 = vmax.f32 %v6126, %v6058
          %v6131 = vmax.f32 %v6127, %v6059
          %v6132 = vmax.f32 %v6128, %v6060
          %v6133 = vmax.f32 %v6129, %v6061
          %v6134 = vmax.f32 %v6130, %v6062
          %v6135 = vmax.f32 %v6131, %v6063
          %v6136 = vmax.f32 %v6132, %v6064
          %v6137 = vmax.f32 %v6133, %v6065
          %v6138 = vmax.f32 %v6134, %v6066
          %v6139 = vmax.f32 %v6135, %v6136
          %v6140 = vmax.f32 %v6137, %v6138
          %v6141 = vmax.f32 %v6139, %v6140
          %v6142 = vrot.slane %v6141, 4
          %v6143 = vmax.f32 %v6141, %v6142
          %v6144 = vrot.slane %v6143, 2
          %v6145 = vmax.f32 %v6143, %v6144
          %v6146 = vrot.slane %v6145, 1
          %v6147 = vmax.f32 %v6145, %v6146
          %6148 = vset.pattern.permute.xlu0 1
          %6149 = vperm.xlu0 %6148, %v4084
          %v6150 = vpop.permute.xlu0 %6149
          %6151 = vset.pattern.permute.xlu0 1
          %6152 = vperm.xlu0 %6151, %v4085
          %v6153 = vpop.permute.xlu0 %6152
          %6154 = vset.pattern.permute.xlu0 1
          %6155 = vperm.xlu0 %6154, %v4086
          %v6156 = vpop.permute.xlu0 %6155
          %6157 = vset.pattern.permute.xlu0 1
          %6158 = vperm.xlu0 %6157, %v4087
          %v6159 = vpop.permute.xlu0 %6158
          %6160 = vset.pattern.permute.xlu0 1
          %6161 = vperm.xlu0 %6160, %v4088
          %v6162 = vpop.permute.xlu0 %6161
          %6163 = vset.pattern.permute.xlu0 1
          %6164 = vperm.xlu0 %6163, %v4089
          %v6165 = vpop.permute.xlu0 %6164
          %6166 = vset.pattern.permute.xlu0 1
          %6167 = vperm.xlu0 %6166, %v4090
          %v6168 = vpop.permute.xlu0 %6167
          %6169 = vset.pattern.permute.xlu0 1
          %6170 = vperm.xlu0 %6169, %v4091
          %v6171 = vpop.permute.xlu0 %6170
          %6172 = vset.pattern.permute.xlu0 1
          %6173 = vperm.xlu0 %6172, %v4092
          %v6174 = vpop.permute.xlu0 %6173
          %6175 = vset.pattern.permute.xlu0 1
          %6176 = vperm.xlu0 %6175, %v4093
          %v6177 = vpop.permute.xlu0 %6176
          %6178 = vset.pattern.permute.xlu0 1
          %6179 = vperm.xlu0 %6178, %v4094
          %v6180 = vpop.permute.xlu0 %6179
          %6181 = vset.pattern.permute.xlu0 1
          %6182 = vperm.xlu0 %6181, %v4095
          %v6183 = vpop.permute.xlu0 %6182
          %6184 = vset.pattern.permute.xlu0 1
          %6185 = vperm.xlu0 %6184, %v4096
          %v6186 = vpop.permute.xlu0 %6185
          %6187 = vset.pattern.permute.xlu0 1
          %6188 = vperm.xlu0 %6187, %v4097
          %v6189 = vpop.permute.xlu0 %6188
          %6190 = vset.pattern.permute.xlu0 1
          %6191 = vperm.xlu0 %6190, %v4098
          %v6192 = vpop.permute.xlu0 %6191
          %6193 = vset.pattern.permute.xlu0 1
          %6194 = vperm.xlu0 %6193, %v4099
          %v6195 = vpop.permute.xlu0 %6194
          %6196 = vset.pattern.permute.xlu0 1
          %6197 = vperm.xlu0 %6196, %v4100
          %v6198 = vpop.permute.xlu0 %6197
          %6199 = vset.pattern.permute.xlu0 1
          %6200 = vperm.xlu0 %6199, %v4101
          %v6201 = vpop.permute.xlu0 %6200
          %6202 = vset.pattern.permute.xlu0 1
          %6203 = vperm.xlu0 %6202, %v4102
          %v6204 = vpop.permute.xlu0 %6203
          %6205 = vset.pattern.permute.xlu0 1
          %6206 = vperm.xlu0 %6205, %v4103
          %v6207 = vpop.permute.xlu0 %6206
          %6208 = vset.pattern.permute.xlu0 1
          %6209 = vperm.xlu0 %6208, %v4104
          %v6210 = vpop.permute.xlu0 %6209
          %6211 = vset.pattern.permute.xlu0 1
          %6212 = vperm.xlu0 %6211, %v4105
          %v6213 = vpop.permute.xlu0 %6212
          %6214 = vset.pattern.permute.xlu0 1
          %6215 = vperm.xlu0 %6214, %v4106
          %v6216 = vpop.permute.xlu0 %6215
          %6217 = vset.pattern.permute.xlu0 1
          %6218 = vperm.xlu0 %6217, %v4107
          %v6219 = vpop.permute.xlu0 %6218
          %6220 = vset.pattern.permute.xlu0 1
          %6221 = vperm.xlu0 %6220, %v4108
          %v6222 = vpop.permute.xlu0 %6221
          %6223 = vset.pattern.permute.xlu0 1
          %6224 = vperm.xlu0 %6223, %v4109
          %v6225 = vpop.permute.xlu0 %6224
          %6226 = vset.pattern.permute.xlu0 1
          %6227 = vperm.xlu0 %6226, %v4110
          %v6228 = vpop.permute.xlu0 %6227
          %6229 = vset.pattern.permute.xlu0 1
          %6230 = vperm.xlu0 %6229, %v4111
          %v6231 = vpop.permute.xlu0 %6230
          %6232 = vset.pattern.permute.xlu0 1
          %6233 = vperm.xlu0 %6232, %v4112
          %v6234 = vpop.permute.xlu0 %6233
          %6235 = vset.pattern.permute.xlu0 1
          %6236 = vperm.xlu0 %6235, %v4113
          %v6237 = vpop.permute.xlu0 %6236
          %6238 = vset.pattern.permute.xlu0 1
          %6239 = vperm.xlu0 %6238, %v4114
          %v6240 = vpop.permute.xlu0 %6239
          %6241 = vset.pattern.permute.xlu0 1
          %6242 = vperm.xlu0 %6241, %v4115
          %v6243 = vpop.permute.xlu0 %6242
          %6244 = vset.pattern.permute.xlu0 1
          %6245 = vperm.xlu0 %6244, %v4116
          %v6246 = vpop.permute.xlu0 %6245
          %6247 = vset.pattern.permute.xlu0 1
          %6248 = vperm.xlu0 %6247, %v4117
          %v6249 = vpop.permute.xlu0 %6248
          %6250 = vset.pattern.permute.xlu0 1
          %6251 = vperm.xlu0 %6250, %v4118
          %v6252 = vpop.permute.xlu0 %6251
          %6253 = vset.pattern.permute.xlu0 1
          %6254 = vperm.xlu0 %6253, %v4119
          %v6255 = vpop.permute.xlu0 %6254
          %6256 = vset.pattern.permute.xlu0 1
          %6257 = vperm.xlu0 %6256, %v4120
          %v6258 = vpop.permute.xlu0 %6257
          %6259 = vset.pattern.permute.xlu0 1
          %6260 = vperm.xlu0 %6259, %v4121
          %v6261 = vpop.permute.xlu0 %6260
          %6262 = vset.pattern.permute.xlu0 1
          %6263 = vperm.xlu0 %6262, %v4122
          %v6264 = vpop.permute.xlu0 %6263
          %6265 = vset.pattern.permute.xlu0 1
          %6266 = vperm.xlu0 %6265, %v4123
          %v6267 = vpop.permute.xlu0 %6266
          %6268 = vset.pattern.permute.xlu0 1
          %6269 = vperm.xlu0 %6268, %v4124
          %v6270 = vpop.permute.xlu0 %6269
          %6271 = vset.pattern.permute.xlu0 1
          %6272 = vperm.xlu0 %6271, %v4125
          %v6273 = vpop.permute.xlu0 %6272
          %6274 = vset.pattern.permute.xlu0 1
          %6275 = vperm.xlu0 %6274, %v4126
          %v6276 = vpop.permute.xlu0 %6275
          %6277 = vset.pattern.permute.xlu0 1
          %6278 = vperm.xlu0 %6277, %v4127
          %v6279 = vpop.permute.xlu0 %6278
          %6280 = vset.pattern.permute.xlu0 1
          %6281 = vperm.xlu0 %6280, %v4128
          %v6282 = vpop.permute.xlu0 %6281
          %6283 = vset.pattern.permute.xlu0 1
          %6284 = vperm.xlu0 %6283, %v4129
          %v6285 = vpop.permute.xlu0 %6284
          %6286 = vset.pattern.permute.xlu0 1
          %6287 = vperm.xlu0 %6286, %v4130
          %v6288 = vpop.permute.xlu0 %6287
          %6289 = vset.pattern.permute.xlu0 1
          %6290 = vperm.xlu0 %6289, %v4131
          %v6291 = vpop.permute.xlu0 %6290
          %6292 = vset.pattern.permute.xlu0 1
          %6293 = vperm.xlu0 %6292, %v4132
          %v6294 = vpop.permute.xlu0 %6293
          %6295 = vset.pattern.permute.xlu0 1
          %6296 = vperm.xlu0 %6295, %v4133
          %v6297 = vpop.permute.xlu0 %6296
          %6298 = vset.pattern.permute.xlu0 1
          %6299 = vperm.xlu0 %6298, %v4134
          %v6300 = vpop.permute.xlu0 %6299
          %6301 = vset.pattern.permute.xlu0 1
          %6302 = vperm.xlu0 %6301, %v4135
          %v6303 = vpop.permute.xlu0 %6302
          %6304 = vset.pattern.permute.xlu0 1
          %6305 = vperm.xlu0 %6304, %v4136
          %v6306 = vpop.permute.xlu0 %6305
          %6307 = vset.pattern.permute.xlu0 1
          %6308 = vperm.xlu0 %6307, %v4137
          %v6309 = vpop.permute.xlu0 %6308
          %6310 = vset.pattern.permute.xlu0 1
          %6311 = vperm.xlu0 %6310, %v4138
          %v6312 = vpop.permute.xlu0 %6311
          %6313 = vset.pattern.permute.xlu0 1
          %6314 = vperm.xlu0 %6313, %v4139
          %v6315 = vpop.permute.xlu0 %6314
          %6316 = vset.pattern.permute.xlu0 1
          %6317 = vperm.xlu0 %6316, %v4140
          %v6318 = vpop.permute.xlu0 %6317
          %6319 = vset.pattern.permute.xlu0 1
          %6320 = vperm.xlu0 %6319, %v4141
          %v6321 = vpop.permute.xlu0 %6320
          %6322 = vset.pattern.permute.xlu0 1
          %6323 = vperm.xlu0 %6322, %v4142
          %v6324 = vpop.permute.xlu0 %6323
          %6325 = vset.pattern.permute.xlu0 1
          %6326 = vperm.xlu0 %6325, %v4143
          %v6327 = vpop.permute.xlu0 %6326
          %6328 = vset.pattern.permute.xlu0 1
          %6329 = vperm.xlu0 %6328, %v4144
          %v6330 = vpop.permute.xlu0 %6329
          %6331 = vset.pattern.permute.xlu0 1
          %6332 = vperm.xlu0 %6331, %v4145
          %v6333 = vpop.permute.xlu0 %6332
          %6334 = vset.pattern.permute.xlu0 1
          %6335 = vperm.xlu0 %6334, %v4146
          %v6336 = vpop.permute.xlu0 %6335
          %6337 = vset.pattern.permute.xlu0 1
          %6338 = vperm.xlu0 %6337, %v4147
          %v6339 = vpop.permute.xlu0 %6338
          %6340 = vset.pattern.permute.xlu0 1
          %6341 = vperm.xlu0 %6340, %v4148
          %v6342 = vpop.permute.xlu0 %6341
          %6343 = vset.pattern.permute.xlu0 1
          %6344 = vperm.xlu0 %6343, %v4149
          %v6345 = vpop.permute.xlu0 %6344
          %6346 = vset.pattern.permute.xlu0 1
          %6347 = vperm.xlu0 %6346, %v4150
          %v6348 = vpop.permute.xlu0 %6347
          %6349 = vset.pattern.permute.xlu0 1
          %6350 = vperm.xlu0 %6349, %v4151
          %v6351 = vpop.permute.xlu0 %6350
          %6352 = vset.pattern.permute.xlu0 1
          %6353 = vperm.xlu0 %6352, %v4152
          %v6354 = vpop.permute.xlu0 %6353
          %6355 = vset.pattern.permute.xlu0 1
          %6356 = vperm.xlu0 %6355, %v4153
          %v6357 = vpop.permute.xlu0 %6356
          %6358 = vset.pattern.permute.xlu0 1
          %6359 = vperm.xlu0 %6358, %v4154
          %v6360 = vpop.permute.xlu0 %6359
          %6361 = vset.pattern.permute.xlu0 1
          %6362 = vperm.xlu0 %6361, %v4155
          %v6363 = vpop.permute.xlu0 %6362
          %6364 = vset.pattern.permute.xlu0 1
          %6365 = vperm.xlu0 %6364, %v4156
          %v6366 = vpop.permute.xlu0 %6365
          %6367 = vset.pattern.permute.xlu0 1
          %6368 = vperm.xlu0 %6367, %v4157
          %v6369 = vpop.permute.xlu0 %6368
          %6370 = vset.pattern.permute.xlu0 1
          %6371 = vperm.xlu0 %6370, %v4158
          %v6372 = vpop.permute.xlu0 %6371
          %6373 = vset.pattern.permute.xlu0 1
          %6374 = vperm.xlu0 %6373, %v4159
          %v6375 = vpop.permute.xlu0 %6374
          %vm6376 = vcmp.eq.s32.totalorder %v6150, 1
          %vm6377 = vcmp.eq.s32.totalorder %v6153, 1
          %vm6378 = vcmp.eq.s32.totalorder %v6156, 1
          %vm6379 = vcmp.eq.s32.totalorder %v6159, 1
          %vm6380 = vcmp.eq.s32.totalorder %v6162, 1
          %vm6381 = vcmp.eq.s32.totalorder %v6165, 1
          %vm6382 = vcmp.eq.s32.totalorder %v6168, 1
          %vm6383 = vcmp.eq.s32.totalorder %v6171, 1
          %vm6384 = vcmp.eq.s32.totalorder %v6174, 1
          %vm6385 = vcmp.eq.s32.totalorder %v6177, 1
          %vm6386 = vcmp.eq.s32.totalorder %v6180, 1
          %vm6387 = vcmp.eq.s32.totalorder %v6183, 1
          %vm6388 = vcmp.eq.s32.totalorder %v6186, 1
          %vm6389 = vcmp.eq.s32.totalorder %v6189, 1
          %vm6390 = vcmp.eq.s32.totalorder %v6192, 1
          %vm6391 = vcmp.eq.s32.totalorder %v6195, 1
          %vm6392 = vcmp.eq.s32.totalorder %v6198, 1
          %vm6393 = vcmp.eq.s32.totalorder %v6201, 1
          %vm6394 = vcmp.eq.s32.totalorder %v6204, 1
          %vm6395 = vcmp.eq.s32.totalorder %v6207, 1
          %vm6396 = vcmp.eq.s32.totalorder %v6210, 1
          %vm6397 = vcmp.eq.s32.totalorder %v6213, 1
          %vm6398 = vcmp.eq.s32.totalorder %v6216, 1
          %vm6399 = vcmp.eq.s32.totalorder %v6219, 1
          %vm6400 = vcmp.eq.s32.totalorder %v6222, 1
          %vm6401 = vcmp.eq.s32.totalorder %v6225, 1
          %vm6402 = vcmp.eq.s32.totalorder %v6228, 1
          %vm6403 = vcmp.eq.s32.totalorder %v6231, 1
          %vm6404 = vcmp.eq.s32.totalorder %v6234, 1
          %vm6405 = vcmp.eq.s32.totalorder %v6237, 1
          %vm6406 = vcmp.eq.s32.totalorder %v6240, 1
          %vm6407 = vcmp.eq.s32.totalorder %v6243, 1
          %vm6408 = vcmp.eq.s32.totalorder %v6246, 1
          %vm6409 = vcmp.eq.s32.totalorder %v6249, 1
          %vm6410 = vcmp.eq.s32.totalorder %v6252, 1
          %vm6411 = vcmp.eq.s32.totalorder %v6255, 1
          %vm6412 = vcmp.eq.s32.totalorder %v6258, 1
          %vm6413 = vcmp.eq.s32.totalorder %v6261, 1
          %vm6414 = vcmp.eq.s32.totalorder %v6264, 1
          %vm6415 = vcmp.eq.s32.totalorder %v6267, 1
          %vm6416 = vcmp.eq.s32.totalorder %v6270, 1
          %vm6417 = vcmp.eq.s32.totalorder %v6273, 1
          %vm6418 = vcmp.eq.s32.totalorder %v6276, 1
          %vm6419 = vcmp.eq.s32.totalorder %v6279, 1
          %vm6420 = vcmp.eq.s32.totalorder %v6282, 1
          %vm6421 = vcmp.eq.s32.totalorder %v6285, 1
          %vm6422 = vcmp.eq.s32.totalorder %v6288, 1
          %vm6423 = vcmp.eq.s32.totalorder %v6291, 1
          %vm6424 = vcmp.eq.s32.totalorder %v6294, 1
          %vm6425 = vcmp.eq.s32.totalorder %v6297, 1
          %vm6426 = vcmp.eq.s32.totalorder %v6300, 1
          %vm6427 = vcmp.eq.s32.totalorder %v6303, 1
          %vm6428 = vcmp.eq.s32.totalorder %v6306, 1
          %vm6429 = vcmp.eq.s32.totalorder %v6309, 1
          %vm6430 = vcmp.eq.s32.totalorder %v6312, 1
          %vm6431 = vcmp.eq.s32.totalorder %v6315, 1
          %vm6432 = vcmp.eq.s32.totalorder %v6318, 1
          %vm6433 = vcmp.eq.s32.totalorder %v6321, 1
          %vm6434 = vcmp.eq.s32.totalorder %v6324, 1
          %vm6435 = vcmp.eq.s32.totalorder %v6327, 1
          %vm6436 = vcmp.eq.s32.totalorder %v6330, 1
          %vm6437 = vcmp.eq.s32.totalorder %v6333, 1
          %vm6438 = vcmp.eq.s32.totalorder %v6336, 1
          %vm6439 = vcmp.eq.s32.totalorder %v6339, 1
          %vm6440 = vcmp.eq.s32.totalorder %v6342, 1
          %vm6441 = vcmp.eq.s32.totalorder %v6345, 1
          %vm6442 = vcmp.eq.s32.totalorder %v6348, 1
          %vm6443 = vcmp.eq.s32.totalorder %v6351, 1
          %vm6444 = vcmp.eq.s32.totalorder %v6354, 1
          %vm6445 = vcmp.eq.s32.totalorder %v6357, 1
          %vm6446 = vcmp.eq.s32.totalorder %v6360, 1
          %vm6447 = vcmp.eq.s32.totalorder %v6363, 1
          %vm6448 = vcmp.eq.s32.totalorder %v6366, 1
          %vm6449 = vcmp.eq.s32.totalorder %v6369, 1
          %vm6450 = vcmp.eq.s32.totalorder %v6372, 1
          %vm6451 = vcmp.eq.s32.totalorder %v6375, 1
          %v6452 = vsel %vm6376, %v5497, -inf
          %v6453 = vsel %vm6377, %v5499, -inf
          %v6454 = vsel %vm6378, %v5502, -inf
          %v6455 = vsel %vm6379, %v5504, -inf
          %v6456 = vsel %vm6380, %v5507, -inf
          %v6457 = vsel %vm6381, %v5509, -inf
          %v6458 = vsel %vm6382, %v5512, -inf
          %v6459 = vsel %vm6383, %v5514, -inf
          %v6460 = vsel %vm6384, %v5517, -inf
          %v6461 = vsel %vm6385, %v5519, -inf
          %v6462 = vsel %vm6386, %v5522, -inf
          %v6463 = vsel %vm6387, %v5524, -inf
          %v6464 = vsel %vm6388, %v5527, -inf
          %v6465 = vsel %vm6389, %v5529, -inf
          %v6466 = vsel %vm6390, %v5532, -inf
          %v6467 = vsel %vm6391, %v5534, -inf
          %v6468 = vsel %vm6392, %v5537, -inf
          %v6469 = vsel %vm6393, %v5539, -inf
          %v6470 = vsel %vm6394, %v5542, -inf
          %v6471 = vsel %vm6395, %v5544, -inf
          %v6472 = vsel %vm6396, %v5547, -inf
          %v6473 = vsel %vm6397, %v5549, -inf
          %v6474 = vsel %vm6398, %v5552, -inf
          %v6475 = vsel %vm6399, %v5554, -inf
          %v6476 = vsel %vm6400, %v5557, -inf
          %v6477 = vsel %vm6401, %v5559, -inf
          %v6478 = vsel %vm6402, %v5562, -inf
          %v6479 = vsel %vm6403, %v5564, -inf
          %v6480 = vsel %vm6404, %v5567, -inf
          %v6481 = vsel %vm6405, %v5569, -inf
          %v6482 = vsel %vm6406, %v5572, -inf
          %v6483 = vsel %vm6407, %v5574, -inf
          %v6484 = vsel %vm6408, %v5577, -inf
          %v6485 = vsel %vm6409, %v5579, -inf
          %v6486 = vsel %vm6410, %v5582, -inf
          %v6487 = vsel %vm6411, %v5584, -inf
          %v6488 = vsel %vm6412, %v5587, -inf
          %v6489 = vsel %vm6413, %v5589, -inf
          %v6490 = vsel %vm6414, %v5592, -inf
          %v6491 = vsel %vm6415, %v5594, -inf
          %v6492 = vsel %vm6416, %v5597, -inf
          %v6493 = vsel %vm6417, %v5599, -inf
          %v6494 = vsel %vm6418, %v5602, -inf
          %v6495 = vsel %vm6419, %v5604, -inf
          %v6496 = vsel %vm6420, %v5607, -inf
          %v6497 = vsel %vm6421, %v5609, -inf
          %v6498 = vsel %vm6422, %v5612, -inf
          %v6499 = vsel %vm6423, %v5614, -inf
          %v6500 = vsel %vm6424, %v5617, -inf
          %v6501 = vsel %vm6425, %v5619, -inf
          %v6502 = vsel %vm6426, %v5622, -inf
          %v6503 = vsel %vm6427, %v5624, -inf
          %v6504 = vsel %vm6428, %v5627, -inf
          %v6505 = vsel %vm6429, %v5629, -inf
          %v6506 = vsel %vm6430, %v5632, -inf
          %v6507 = vsel %vm6431, %v5634, -inf
          %v6508 = vsel %vm6432, %v5637, -inf
          %v6509 = vsel %vm6433, %v5639, -inf
          %v6510 = vsel %vm6434, %v5642, -inf
          %v6511 = vsel %vm6435, %v5644, -inf
          %v6512 = vsel %vm6436, %v5647, -inf
          %v6513 = vsel %vm6437, %v5649, -inf
          %v6514 = vsel %vm6438, %v5652, -inf
          %v6515 = vsel %vm6439, %v5654, -inf
          %v6516 = vsel %vm6440, %v5657, -inf
          %v6517 = vsel %vm6441, %v5659, -inf
          %v6518 = vsel %vm6442, %v5662, -inf
          %v6519 = vsel %vm6443, %v5664, -inf
          %v6520 = vsel %vm6444, %v5667, -inf
          %v6521 = vsel %vm6445, %v5669, -inf
          %v6522 = vsel %vm6446, %v5672, -inf
          %v6523 = vsel %vm6447, %v5674, -inf
          %v6524 = vsel %vm6448, %v5677, -inf
          %v6525 = vsel %vm6449, %v5679, -inf
          %v6526 = vsel %vm6450, %v5682, -inf
          %v6527 = vsel %vm6451, %v5684, -inf
          %v6528 = vmax.f32 %v6452, %v6456
          %v6529 = vmax.f32 %v6453, %v6457
          %v6530 = vmax.f32 %v6454, %v6458
          %v6531 = vmax.f32 %v6455, %v6459
          %v6532 = vmax.f32 %v6528, %v6460
          %v6533 = vmax.f32 %v6529, %v6461
          %v6534 = vmax.f32 %v6530, %v6462
          %v6535 = vmax.f32 %v6531, %v6463
          %v6536 = vmax.f32 %v6532, %v6464
          %v6537 = vmax.f32 %v6533, %v6465
          %v6538 = vmax.f32 %v6534, %v6466
          %v6539 = vmax.f32 %v6535, %v6467
          %v6540 = vmax.f32 %v6536, %v6468
          %v6541 = vmax.f32 %v6537, %v6469
          %v6542 = vmax.f32 %v6538, %v6470
          %v6543 = vmax.f32 %v6539, %v6471
          %v6544 = vmax.f32 %v6540, %v6472
          %v6545 = vmax.f32 %v6541, %v6473
          %v6546 = vmax.f32 %v6542, %v6474
          %v6547 = vmax.f32 %v6543, %v6475
          %v6548 = vmax.f32 %v6544, %v6476
          %v6549 = vmax.f32 %v6545, %v6477
          %v6550 = vmax.f32 %v6546, %v6478
          %v6551 = vmax.f32 %v6547, %v6479
          %v6552 = vmax.f32 %v6548, %v6480
          %v6553 = vmax.f32 %v6549, %v6481
          %v6554 = vmax.f32 %v6550, %v6482
          %v6555 = vmax.f32 %v6551, %v6483
          %v6556 = vmax.f32 %v6552, %v6484
          %v6557 = vmax.f32 %v6553, %v6485
          %v6558 = vmax.f32 %v6554, %v6486
          %v6559 = vmax.f32 %v6555, %v6487
          %v6560 = vmax.f32 %v6556, %v6488
          %v6561 = vmax.f32 %v6557, %v6489
          %v6562 = vmax.f32 %v6558, %v6490
          %v6563 = vmax.f32 %v6559, %v6491
          %v6564 = vmax.f32 %v6560, %v6492
          %v6565 = vmax.f32 %v6561, %v6493
          %v6566 = vmax.f32 %v6562, %v6494
          %v6567 = vmax.f32 %v6563, %v6495
          %v6568 = vmax.f32 %v6564, %v6496
          %v6569 = vmax.f32 %v6565, %v6497
          %v6570 = vmax.f32 %v6566, %v6498
          %v6571 = vmax.f32 %v6567, %v6499
          %v6572 = vmax.f32 %v6568, %v6500
          %v6573 = vmax.f32 %v6569, %v6501
          %v6574 = vmax.f32 %v6570, %v6502
          %v6575 = vmax.f32 %v6571, %v6503
          %v6576 = vmax.f32 %v6572, %v6504
          %v6577 = vmax.f32 %v6573, %v6505
          %v6578 = vmax.f32 %v6574, %v6506
          %v6579 = vmax.f32 %v6575, %v6507
          %v6580 = vmax.f32 %v6576, %v6508
          %v6581 = vmax.f32 %v6577, %v6509
          %v6582 = vmax.f32 %v6578, %v6510
          %v6583 = vmax.f32 %v6579, %v6511
          %v6584 = vmax.f32 %v6580, %v6512
          %v6585 = vmax.f32 %v6581, %v6513
          %v6586 = vmax.f32 %v6582, %v6514
          %v6587 = vmax.f32 %v6583, %v6515
          %v6588 = vmax.f32 %v6584, %v6516
          %v6589 = vmax.f32 %v6585, %v6517
          %v6590 = vmax.f32 %v6586, %v6518
          %v6591 = vmax.f32 %v6587, %v6519
          %v6592 = vmax.f32 %v6588, %v6520
          %v6593 = vmax.f32 %v6589, %v6521
          %v6594 = vmax.f32 %v6590, %v6522
          %v6595 = vmax.f32 %v6591, %v6523
          %v6596 = vmax.f32 %v6592, %v6524
          %v6597 = vmax.f32 %v6593, %v6525
          %v6598 = vmax.f32 %v6594, %v6526
          %v6599 = vmax.f32 %v6595, %v6527
          %v6600 = vmax.f32 %v6596, %v6597
          %v6601 = vmax.f32 %v6598, %v6599
          %v6602 = vmax.f32 %v6600, %v6601
          %v6603 = vrot.slane %v6602, 4
          %v6604 = vmax.f32 %v6602, %v6603
          %v6605 = vrot.slane %v6604, 2
          %v6606 = vmax.f32 %v6604, %v6605
          %v6607 = vrot.slane %v6606, 1
          %v6608 = vmax.f32 %v6606, %v6607
          %6609 = vset.pattern.permute.xlu0 2
          %6610 = vperm.xlu0 %6609, %v4084
          %v6611 = vpop.permute.xlu0 %6610
          %6612 = vset.pattern.permute.xlu0 2
          %6613 = vperm.xlu0 %6612, %v4085
          %v6614 = vpop.permute.xlu0 %6613
          %6615 = vset.pattern.permute.xlu0 2
          %6616 = vperm.xlu0 %6615, %v4086
          %v6617 = vpop.permute.xlu0 %6616
          %6618 = vset.pattern.permute.xlu0 2
          %6619 = vperm.xlu0 %6618, %v4087
          %v6620 = vpop.permute.xlu0 %6619
          %6621 = vset.pattern.permute.xlu0 2
          %6622 = vperm.xlu0 %6621, %v4088
          %v6623 = vpop.permute.xlu0 %6622
          %6624 = vset.pattern.permute.xlu0 2
          %6625 = vperm.xlu0 %6624, %v4089
          %v6626 = vpop.permute.xlu0 %6625
          %6627 = vset.pattern.permute.xlu0 2
          %6628 = vperm.xlu0 %6627, %v4090
          %v6629 = vpop.permute.xlu0 %6628
          %6630 = vset.pattern.permute.xlu0 2
          %6631 = vperm.xlu0 %6630, %v4091
          %v6632 = vpop.permute.xlu0 %6631
          %6633 = vset.pattern.permute.xlu0 2
          %6634 = vperm.xlu0 %6633, %v4092
          %v6635 = vpop.permute.xlu0 %6634
          %6636 = vset.pattern.permute.xlu0 2
          %6637 = vperm.xlu0 %6636, %v4093
          %v6638 = vpop.permute.xlu0 %6637
          %6639 = vset.pattern.permute.xlu0 2
          %6640 = vperm.xlu0 %6639, %v4094
          %v6641 = vpop.permute.xlu0 %6640
          %6642 = vset.pattern.permute.xlu0 2
          %6643 = vperm.xlu0 %6642, %v4095
          %v6644 = vpop.permute.xlu0 %6643
          %6645 = vset.pattern.permute.xlu0 2
          %6646 = vperm.xlu0 %6645, %v4096
          %v6647 = vpop.permute.xlu0 %6646
          %6648 = vset.pattern.permute.xlu0 2
          %6649 = vperm.xlu0 %6648, %v4097
          %v6650 = vpop.permute.xlu0 %6649
          %6651 = vset.pattern.permute.xlu0 2
          %6652 = vperm.xlu0 %6651, %v4098
          %v6653 = vpop.permute.xlu0 %6652
          %6654 = vset.pattern.permute.xlu0 2
          %6655 = vperm.xlu0 %6654, %v4099
          %v6656 = vpop.permute.xlu0 %6655
          %6657 = vset.pattern.permute.xlu0 2
          %6658 = vperm.xlu0 %6657, %v4100
          %v6659 = vpop.permute.xlu0 %6658
          %6660 = vset.pattern.permute.xlu0 2
          %6661 = vperm.xlu0 %6660, %v4101
          %v6662 = vpop.permute.xlu0 %6661
          %6663 = vset.pattern.permute.xlu0 2
          %6664 = vperm.xlu0 %6663, %v4102
          %v6665 = vpop.permute.xlu0 %6664
          %6666 = vset.pattern.permute.xlu0 2
          %6667 = vperm.xlu0 %6666, %v4103
          %v6668 = vpop.permute.xlu0 %6667
          %6669 = vset.pattern.permute.xlu0 2
          %6670 = vperm.xlu0 %6669, %v4104
          %v6671 = vpop.permute.xlu0 %6670
          %6672 = vset.pattern.permute.xlu0 2
          %6673 = vperm.xlu0 %6672, %v4105
          %v6674 = vpop.permute.xlu0 %6673
          %6675 = vset.pattern.permute.xlu0 2
          %6676 = vperm.xlu0 %6675, %v4106
          %v6677 = vpop.permute.xlu0 %6676
          %6678 = vset.pattern.permute.xlu0 2
          %6679 = vperm.xlu0 %6678, %v4107
          %v6680 = vpop.permute.xlu0 %6679
          %6681 = vset.pattern.permute.xlu0 2
          %6682 = vperm.xlu0 %6681, %v4108
          %v6683 = vpop.permute.xlu0 %6682
          %6684 = vset.pattern.permute.xlu0 2
          %6685 = vperm.xlu0 %6684, %v4109
          %v6686 = vpop.permute.xlu0 %6685
          %6687 = vset.pattern.permute.xlu0 2
          %6688 = vperm.xlu0 %6687, %v4110
          %v6689 = vpop.permute.xlu0 %6688
          %6690 = vset.pattern.permute.xlu0 2
          %6691 = vperm.xlu0 %6690, %v4111
          %v6692 = vpop.permute.xlu0 %6691
          %6693 = vset.pattern.permute.xlu0 2
          %6694 = vperm.xlu0 %6693, %v4112
          %v6695 = vpop.permute.xlu0 %6694
          %6696 = vset.pattern.permute.xlu0 2
          %6697 = vperm.xlu0 %6696, %v4113
          %v6698 = vpop.permute.xlu0 %6697
          %6699 = vset.pattern.permute.xlu0 2
          %6700 = vperm.xlu0 %6699, %v4114
          %v6701 = vpop.permute.xlu0 %6700
          %6702 = vset.pattern.permute.xlu0 2
          %6703 = vperm.xlu0 %6702, %v4115
          %v6704 = vpop.permute.xlu0 %6703
          %6705 = vset.pattern.permute.xlu0 2
          %6706 = vperm.xlu0 %6705, %v4116
          %v6707 = vpop.permute.xlu0 %6706
          %6708 = vset.pattern.permute.xlu0 2
          %6709 = vperm.xlu0 %6708, %v4117
          %v6710 = vpop.permute.xlu0 %6709
          %6711 = vset.pattern.permute.xlu0 2
          %6712 = vperm.xlu0 %6711, %v4118
          %v6713 = vpop.permute.xlu0 %6712
          %6714 = vset.pattern.permute.xlu0 2
          %6715 = vperm.xlu0 %6714, %v4119
          %v6716 = vpop.permute.xlu0 %6715
          %6717 = vset.pattern.permute.xlu0 2
          %6718 = vperm.xlu0 %6717, %v4120
          %v6719 = vpop.permute.xlu0 %6718
          %6720 = vset.pattern.permute.xlu0 2
          %6721 = vperm.xlu0 %6720, %v4121
          %v6722 = vpop.permute.xlu0 %6721
          %6723 = vset.pattern.permute.xlu0 2
          %6724 = vperm.xlu0 %6723, %v4122
          %v6725 = vpop.permute.xlu0 %6724
          %6726 = vset.pattern.permute.xlu0 2
          %6727 = vperm.xlu0 %6726, %v4123
          %v6728 = vpop.permute.xlu0 %6727
          %6729 = vset.pattern.permute.xlu0 2
          %6730 = vperm.xlu0 %6729, %v4124
          %v6731 = vpop.permute.xlu0 %6730
          %6732 = vset.pattern.permute.xlu0 2
          %6733 = vperm.xlu0 %6732, %v4125
          %v6734 = vpop.permute.xlu0 %6733
          %6735 = vset.pattern.permute.xlu0 2
          %6736 = vperm.xlu0 %6735, %v4126
          %v6737 = vpop.permute.xlu0 %6736
          %6738 = vset.pattern.permute.xlu0 2
          %6739 = vperm.xlu0 %6738, %v4127
          %v6740 = vpop.permute.xlu0 %6739
          %6741 = vset.pattern.permute.xlu0 2
          %6742 = vperm.xlu0 %6741, %v4128
          %v6743 = vpop.permute.xlu0 %6742
          %6744 = vset.pattern.permute.xlu0 2
          %6745 = vperm.xlu0 %6744, %v4129
          %v6746 = vpop.permute.xlu0 %6745
          %6747 = vset.pattern.permute.xlu0 2
          %6748 = vperm.xlu0 %6747, %v4130
          %v6749 = vpop.permute.xlu0 %6748
          %6750 = vset.pattern.permute.xlu0 2
          %6751 = vperm.xlu0 %6750, %v4131
          %v6752 = vpop.permute.xlu0 %6751
          %6753 = vset.pattern.permute.xlu0 2
          %6754 = vperm.xlu0 %6753, %v4132
          %v6755 = vpop.permute.xlu0 %6754
          %6756 = vset.pattern.permute.xlu0 2
          %6757 = vperm.xlu0 %6756, %v4133
          %v6758 = vpop.permute.xlu0 %6757
          %6759 = vset.pattern.permute.xlu0 2
          %6760 = vperm.xlu0 %6759, %v4134
          %v6761 = vpop.permute.xlu0 %6760
          %6762 = vset.pattern.permute.xlu0 2
          %6763 = vperm.xlu0 %6762, %v4135
          %v6764 = vpop.permute.xlu0 %6763
          %6765 = vset.pattern.permute.xlu0 2
          %6766 = vperm.xlu0 %6765, %v4136
          %v6767 = vpop.permute.xlu0 %6766
          %6768 = vset.pattern.permute.xlu0 2
          %6769 = vperm.xlu0 %6768, %v4137
          %v6770 = vpop.permute.xlu0 %6769
          %6771 = vset.pattern.permute.xlu0 2
          %6772 = vperm.xlu0 %6771, %v4138
          %v6773 = vpop.permute.xlu0 %6772
          %6774 = vset.pattern.permute.xlu0 2
          %6775 = vperm.xlu0 %6774, %v4139
          %v6776 = vpop.permute.xlu0 %6775
          %6777 = vset.pattern.permute.xlu0 2
          %6778 = vperm.xlu0 %6777, %v4140
          %v6779 = vpop.permute.xlu0 %6778
          %6780 = vset.pattern.permute.xlu0 2
          %6781 = vperm.xlu0 %6780, %v4141
          %v6782 = vpop.permute.xlu0 %6781
          %6783 = vset.pattern.permute.xlu0 2
          %6784 = vperm.xlu0 %6783, %v4142
          %v6785 = vpop.permute.xlu0 %6784
          %6786 = vset.pattern.permute.xlu0 2
          %6787 = vperm.xlu0 %6786, %v4143
          %v6788 = vpop.permute.xlu0 %6787
          %6789 = vset.pattern.permute.xlu0 2
          %6790 = vperm.xlu0 %6789, %v4144
          %v6791 = vpop.permute.xlu0 %6790
          %6792 = vset.pattern.permute.xlu0 2
          %6793 = vperm.xlu0 %6792, %v4145
          %v6794 = vpop.permute.xlu0 %6793
          %6795 = vset.pattern.permute.xlu0 2
          %6796 = vperm.xlu0 %6795, %v4146
          %v6797 = vpop.permute.xlu0 %6796
          %6798 = vset.pattern.permute.xlu0 2
          %6799 = vperm.xlu0 %6798, %v4147
          %v6800 = vpop.permute.xlu0 %6799
          %6801 = vset.pattern.permute.xlu0 2
          %6802 = vperm.xlu0 %6801, %v4148
          %v6803 = vpop.permute.xlu0 %6802
          %6804 = vset.pattern.permute.xlu0 2
          %6805 = vperm.xlu0 %6804, %v4149
          %v6806 = vpop.permute.xlu0 %6805
          %6807 = vset.pattern.permute.xlu0 2
          %6808 = vperm.xlu0 %6807, %v4150
          %v6809 = vpop.permute.xlu0 %6808
          %6810 = vset.pattern.permute.xlu0 2
          %6811 = vperm.xlu0 %6810, %v4151
          %v6812 = vpop.permute.xlu0 %6811
          %6813 = vset.pattern.permute.xlu0 2
          %6814 = vperm.xlu0 %6813, %v4152
          %v6815 = vpop.permute.xlu0 %6814
          %6816 = vset.pattern.permute.xlu0 2
          %6817 = vperm.xlu0 %6816, %v4153
          %v6818 = vpop.permute.xlu0 %6817
          %6819 = vset.pattern.permute.xlu0 2
          %6820 = vperm.xlu0 %6819, %v4154
          %v6821 = vpop.permute.xlu0 %6820
          %6822 = vset.pattern.permute.xlu0 2
          %6823 = vperm.xlu0 %6822, %v4155
          %v6824 = vpop.permute.xlu0 %6823
          %6825 = vset.pattern.permute.xlu0 2
          %6826 = vperm.xlu0 %6825, %v4156
          %v6827 = vpop.permute.xlu0 %6826
          %6828 = vset.pattern.permute.xlu0 2
          %6829 = vperm.xlu0 %6828, %v4157
          %v6830 = vpop.permute.xlu0 %6829
          %6831 = vset.pattern.permute.xlu0 2
          %6832 = vperm.xlu0 %6831, %v4158
          %v6833 = vpop.permute.xlu0 %6832
          %6834 = vset.pattern.permute.xlu0 2
          %6835 = vperm.xlu0 %6834, %v4159
          %v6836 = vpop.permute.xlu0 %6835
          %vm6837 = vcmp.eq.s32.totalorder %v6611, 1
          %vm6838 = vcmp.eq.s32.totalorder %v6614, 1
          %vm6839 = vcmp.eq.s32.totalorder %v6617, 1
          %vm6840 = vcmp.eq.s32.totalorder %v6620, 1
          %vm6841 = vcmp.eq.s32.totalorder %v6623, 1
          %vm6842 = vcmp.eq.s32.totalorder %v6626, 1
          %vm6843 = vcmp.eq.s32.totalorder %v6629, 1
          %vm6844 = vcmp.eq.s32.totalorder %v6632, 1
          %vm6845 = vcmp.eq.s32.totalorder %v6635, 1
          %vm6846 = vcmp.eq.s32.totalorder %v6638, 1
          %vm6847 = vcmp.eq.s32.totalorder %v6641, 1
          %vm6848 = vcmp.eq.s32.totalorder %v6644, 1
          %vm6849 = vcmp.eq.s32.totalorder %v6647, 1
          %vm6850 = vcmp.eq.s32.totalorder %v6650, 1
          %vm6851 = vcmp.eq.s32.totalorder %v6653, 1
          %vm6852 = vcmp.eq.s32.totalorder %v6656, 1
          %vm6853 = vcmp.eq.s32.totalorder %v6659, 1
          %vm6854 = vcmp.eq.s32.totalorder %v6662, 1
          %vm6855 = vcmp.eq.s32.totalorder %v6665, 1
          %vm6856 = vcmp.eq.s32.totalorder %v6668, 1
          %vm6857 = vcmp.eq.s32.totalorder %v6671, 1
          %vm6858 = vcmp.eq.s32.totalorder %v6674, 1
          %vm6859 = vcmp.eq.s32.totalorder %v6677, 1
          %vm6860 = vcmp.eq.s32.totalorder %v6680, 1
          %vm6861 = vcmp.eq.s32.totalorder %v6683, 1
          %vm6862 = vcmp.eq.s32.totalorder %v6686, 1
          %vm6863 = vcmp.eq.s32.totalorder %v6689, 1
          %vm6864 = vcmp.eq.s32.totalorder %v6692, 1
          %vm6865 = vcmp.eq.s32.totalorder %v6695, 1
          %vm6866 = vcmp.eq.s32.totalorder %v6698, 1
          %vm6867 = vcmp.eq.s32.totalorder %v6701, 1
          %vm6868 = vcmp.eq.s32.totalorder %v6704, 1
          %vm6869 = vcmp.eq.s32.totalorder %v6707, 1
          %vm6870 = vcmp.eq.s32.totalorder %v6710, 1
          %vm6871 = vcmp.eq.s32.totalorder %v6713, 1
          %vm6872 = vcmp.eq.s32.totalorder %v6716, 1
          %vm6873 = vcmp.eq.s32.totalorder %v6719, 1
          %vm6874 = vcmp.eq.s32.totalorder %v6722, 1
          %vm6875 = vcmp.eq.s32.totalorder %v6725, 1
          %vm6876 = vcmp.eq.s32.totalorder %v6728, 1
          %vm6877 = vcmp.eq.s32.totalorder %v6731, 1
          %vm6878 = vcmp.eq.s32.totalorder %v6734, 1
          %vm6879 = vcmp.eq.s32.totalorder %v6737, 1
          %vm6880 = vcmp.eq.s32.totalorder %v6740, 1
          %vm6881 = vcmp.eq.s32.totalorder %v6743, 1
          %vm6882 = vcmp.eq.s32.totalorder %v6746, 1
          %vm6883 = vcmp.eq.s32.totalorder %v6749, 1
          %vm6884 = vcmp.eq.s32.totalorder %v6752, 1
          %vm6885 = vcmp.eq.s32.totalorder %v6755, 1
          %vm6886 = vcmp.eq.s32.totalorder %v6758, 1
          %vm6887 = vcmp.eq.s32.totalorder %v6761, 1
          %vm6888 = vcmp.eq.s32.totalorder %v6764, 1
          %vm6889 = vcmp.eq.s32.totalorder %v6767, 1
          %vm6890 = vcmp.eq.s32.totalorder %v6770, 1
          %vm6891 = vcmp.eq.s32.totalorder %v6773, 1
          %vm6892 = vcmp.eq.s32.totalorder %v6776, 1
          %vm6893 = vcmp.eq.s32.totalorder %v6779, 1
          %vm6894 = vcmp.eq.s32.totalorder %v6782, 1
          %vm6895 = vcmp.eq.s32.totalorder %v6785, 1
          %vm6896 = vcmp.eq.s32.totalorder %v6788, 1
          %vm6897 = vcmp.eq.s32.totalorder %v6791, 1
          %vm6898 = vcmp.eq.s32.totalorder %v6794, 1
          %vm6899 = vcmp.eq.s32.totalorder %v6797, 1
          %vm6900 = vcmp.eq.s32.totalorder %v6800, 1
          %vm6901 = vcmp.eq.s32.totalorder %v6803, 1
          %vm6902 = vcmp.eq.s32.totalorder %v6806, 1
          %vm6903 = vcmp.eq.s32.totalorder %v6809, 1
          %vm6904 = vcmp.eq.s32.totalorder %v6812, 1
          %vm6905 = vcmp.eq.s32.totalorder %v6815, 1
          %vm6906 = vcmp.eq.s32.totalorder %v6818, 1
          %vm6907 = vcmp.eq.s32.totalorder %v6821, 1
          %vm6908 = vcmp.eq.s32.totalorder %v6824, 1
          %vm6909 = vcmp.eq.s32.totalorder %v6827, 1
          %vm6910 = vcmp.eq.s32.totalorder %v6830, 1
          %vm6911 = vcmp.eq.s32.totalorder %v6833, 1
          %vm6912 = vcmp.eq.s32.totalorder %v6836, 1
          %v6913 = vsel %vm6837, %v5497, -inf
          %v6914 = vsel %vm6838, %v5499, -inf
          %v6915 = vsel %vm6839, %v5502, -inf
          %v6916 = vsel %vm6840, %v5504, -inf
          %v6917 = vsel %vm6841, %v5507, -inf
          %v6918 = vsel %vm6842, %v5509, -inf
          %v6919 = vsel %vm6843, %v5512, -inf
          %v6920 = vsel %vm6844, %v5514, -inf
          %v6921 = vsel %vm6845, %v5517, -inf
          %v6922 = vsel %vm6846, %v5519, -inf
          %v6923 = vsel %vm6847, %v5522, -inf
          %v6924 = vsel %vm6848, %v5524, -inf
          %v6925 = vsel %vm6849, %v5527, -inf
          %v6926 = vsel %vm6850, %v5529, -inf
          %v6927 = vsel %vm6851, %v5532, -inf
          %v6928 = vsel %vm6852, %v5534, -inf
          %v6929 = vsel %vm6853, %v5537, -inf
          %v6930 = vsel %vm6854, %v5539, -inf
          %v6931 = vsel %vm6855, %v5542, -inf
          %v6932 = vsel %vm6856, %v5544, -inf
          %v6933 = vsel %vm6857, %v5547, -inf
          %v6934 = vsel %vm6858, %v5549, -inf
          %v6935 = vsel %vm6859, %v5552, -inf
          %v6936 = vsel %vm6860, %v5554, -inf
          %v6937 = vsel %vm6861, %v5557, -inf
          %v6938 = vsel %vm6862, %v5559, -inf
          %v6939 = vsel %vm6863, %v5562, -inf
          %v6940 = vsel %vm6864, %v5564, -inf
          %v6941 = vsel %vm6865, %v5567, -inf
          %v6942 = vsel %vm6866, %v5569, -inf
          %v6943 = vsel %vm6867, %v5572, -inf
          %v6944 = vsel %vm6868, %v5574, -inf
          %v6945 = vsel %vm6869, %v5577, -inf
          %v6946 = vsel %vm6870, %v5579, -inf
          %v6947 = vsel %vm6871, %v5582, -inf
          %v6948 = vsel %vm6872, %v5584, -inf
          %v6949 = vsel %vm6873, %v5587, -inf
          %v6950 = vsel %vm6874, %v5589, -inf
          %v6951 = vsel %vm6875, %v5592, -inf
          %v6952 = vsel %vm6876, %v5594, -inf
          %v6953 = vsel %vm6877, %v5597, -inf
          %v6954 = vsel %vm6878, %v5599, -inf
          %v6955 = vsel %vm6879, %v5602, -inf
          %v6956 = vsel %vm6880, %v5604, -inf
          %v6957 = vsel %vm6881, %v5607, -inf
          %v6958 = vsel %vm6882, %v5609, -inf
          %v6959 = vsel %vm6883, %v5612, -inf
          %v6960 = vsel %vm6884, %v5614, -inf
          %v6961 = vsel %vm6885, %v5617, -inf
          %v6962 = vsel %vm6886, %v5619, -inf
          %v6963 = vsel %vm6887, %v5622, -inf
          %v6964 = vsel %vm6888, %v5624, -inf
          %v6965 = vsel %vm6889, %v5627, -inf
          %v6966 = vsel %vm6890, %v5629, -inf
          %v6967 = vsel %vm6891, %v5632, -inf
          %v6968 = vsel %vm6892, %v5634, -inf
          %v6969 = vsel %vm6893, %v5637, -inf
          %v6970 = vsel %vm6894, %v5639, -inf
          %v6971 = vsel %vm6895, %v5642, -inf
          %v6972 = vsel %vm6896, %v5644, -inf
          %v6973 = vsel %vm6897, %v5647, -inf
          %v6974 = vsel %vm6898, %v5649, -inf
          %v6975 = vsel %vm6899, %v5652, -inf
          %v6976 = vsel %vm6900, %v5654, -inf
          %v6977 = vsel %vm6901, %v5657, -inf
          %v6978 = vsel %vm6902, %v5659, -inf
          %v6979 = vsel %vm6903, %v5662, -inf
          %v6980 = vsel %vm6904, %v5664, -inf
          %v6981 = vsel %vm6905, %v5667, -inf
          %v6982 = vsel %vm6906, %v5669, -inf
          %v6983 = vsel %vm6907, %v5672, -inf
          %v6984 = vsel %vm6908, %v5674, -inf
          %v6985 = vsel %vm6909, %v5677, -inf
          %v6986 = vsel %vm6910, %v5679, -inf
          %v6987 = vsel %vm6911, %v5682, -inf
          %v6988 = vsel %vm6912, %v5684, -inf
          %v6989 = vmax.f32 %v6913, %v6917
          %v6990 = vmax.f32 %v6914, %v6918
          %v6991 = vmax.f32 %v6915, %v6919
          %v6992 = vmax.f32 %v6916, %v6920
          %v6993 = vmax.f32 %v6989, %v6921
          %v6994 = vmax.f32 %v6990, %v6922
          %v6995 = vmax.f32 %v6991, %v6923
          %v6996 = vmax.f32 %v6992, %v6924
          %v6997 = vmax.f32 %v6993, %v6925
          %v6998 = vmax.f32 %v6994, %v6926
          %v6999 = vmax.f32 %v6995, %v6927
          %v7000 = vmax.f32 %v6996, %v6928
          %v7001 = vmax.f32 %v6997, %v6929
          %v7002 = vmax.f32 %v6998, %v6930
          %v7003 = vmax.f32 %v6999, %v6931
          %v7004 = vmax.f32 %v7000, %v6932
          %v7005 = vmax.f32 %v7001, %v6933
          %v7006 = vmax.f32 %v7002, %v6934
          %v7007 = vmax.f32 %v7003, %v6935
          %v7008 = vmax.f32 %v7004, %v6936
          %v7009 = vmax.f32 %v7005, %v6937
          %v7010 = vmax.f32 %v7006, %v6938
          %v7011 = vmax.f32 %v7007, %v6939
          %v7012 = vmax.f32 %v7008, %v6940
          %v7013 = vmax.f32 %v7009, %v6941
          %v7014 = vmax.f32 %v7010, %v6942
          %v7015 = vmax.f32 %v7011, %v6943
          %v7016 = vmax.f32 %v7012, %v6944
          %v7017 = vmax.f32 %v7013, %v6945
          %v7018 = vmax.f32 %v7014, %v6946
          %v7019 = vmax.f32 %v7015, %v6947
          %v7020 = vmax.f32 %v7016, %v6948
          %v7021 = vmax.f32 %v7017, %v6949
          %v7022 = vmax.f32 %v7018, %v6950
          %v7023 = vmax.f32 %v7019, %v6951
          %v7024 = vmax.f32 %v7020, %v6952
          %v7025 = vmax.f32 %v7021, %v6953
          %v7026 = vmax.f32 %v7022, %v6954
          %v7027 = vmax.f32 %v7023, %v6955
          %v7028 = vmax.f32 %v7024, %v6956
          %v7029 = vmax.f32 %v7025, %v6957
          %v7030 = vmax.f32 %v7026, %v6958
          %v7031 = vmax.f32 %v7027, %v6959
          %v7032 = vmax.f32 %v7028, %v6960
          %v7033 = vmax.f32 %v7029, %v6961
          %v7034 = vmax.f32 %v7030, %v6962
          %v7035 = vmax.f32 %v7031, %v6963
          %v7036 = vmax.f32 %v7032, %v6964
          %v7037 = vmax.f32 %v7033, %v6965
          %v7038 = vmax.f32 %v7034, %v6966
          %v7039 = vmax.f32 %v7035, %v6967
          %v7040 = vmax.f32 %v7036, %v6968
          %v7041 = vmax.f32 %v7037, %v6969
          %v7042 = vmax.f32 %v7038, %v6970
          %v7043 = vmax.f32 %v7039, %v6971
          %v7044 = vmax.f32 %v7040, %v6972
          %v7045 = vmax.f32 %v7041, %v6973
          %v7046 = vmax.f32 %v7042, %v6974
          %v7047 = vmax.f32 %v7043, %v6975
          %v7048 = vmax.f32 %v7044, %v6976
          %v7049 = vmax.f32 %v7045, %v6977
          %v7050 = vmax.f32 %v7046, %v6978
          %v7051 = vmax.f32 %v7047, %v6979
          %v7052 = vmax.f32 %v7048, %v6980
          %v7053 = vmax.f32 %v7049, %v6981
          %v7054 = vmax.f32 %v7050, %v6982
          %v7055 = vmax.f32 %v7051, %v6983
          %v7056 = vmax.f32 %v7052, %v6984
          %v7057 = vmax.f32 %v7053, %v6985
          %v7058 = vmax.f32 %v7054, %v6986
          %v7059 = vmax.f32 %v7055, %v6987
          %v7060 = vmax.f32 %v7056, %v6988
          %v7061 = vmax.f32 %v7057, %v7058
          %v7062 = vmax.f32 %v7059, %v7060
          %v7063 = vmax.f32 %v7061, %v7062
          %v7064 = vrot.slane %v7063, 4
          %v7065 = vmax.f32 %v7063, %v7064
          %v7066 = vrot.slane %v7065, 2
          %v7067 = vmax.f32 %v7065, %v7066
          %v7068 = vrot.slane %v7067, 1
          %v7069 = vmax.f32 %v7067, %v7068
          %vm7070 = vcmask 1040384
          %v7071 = vsel %vm7070, %v6147, %v6608
          %vm7072 = vcmask 1041408
          %v7073 = vsel %vm7072, %v7071, %v7069
          %v7074 = vmax.f32 %v5686, %v7073
          %7075 = vst [vmem:[#allocation3] sm:$0x7] %v7074
        $region84: #{tpu_custom_call.1} parent=71 // pred_fallthru
          _
        // Predicated region
        $region89: #{tpu_custom_call.1} parent=71 // pred_check
          %p7076 = pneg %p333
        $region90: #{tpu_custom_call.1} parent=71 // pred_check_branch
          %7078 = sbr.rel (%p7076) target = $region92
        $region91: #{tpu_custom_call.1} parent=71 // pred_region
          %7080 = vsyncadd [#allocation4], 0
          %s7082 = sshll.u32 [#allocation3], 4
          %s7083 = int_to_ptr.vmem [resolvable:$true] %s7082
          %s7084 = sshll.u32 %s13, 4
          %s7085 = int_to_ptr.hbm [resolvable:$true] %s7084
          %7087 = dma.vmem_to_hbm [thread:$0]  %s7083, 64, %s7085, [#allocation4]
        $region92: #{tpu_custom_call.1} parent=71 // pred_fallthru
          _
        // Predicated region
        $region93: #{tpu_custom_call.1} parent=71 // pred_check
          %p7088 = pneg %p333
        $region94: #{tpu_custom_call.1} parent=71 // pred_check_branch
          %7090 = sbr.rel (%p7088) target = $region96
        $region95: #{tpu_custom_call.1} parent=71 // pred_region
          %7092 = dma.done [#allocation4], 64
        $region96: #{tpu_custom_call.1} parent=71 // pred_fallthru
          _
      $region72: #{tpu_custom_call.1} parent=5 // pred_fallthru
        _
      %p7093 = scmp.le.s32.totalorder 2, %s20
      // Predicated region
      $region97: #{tpu_custom_call.1} parent=5 // pred_check
        %p7094 = pneg %p7093
      $region98: #{tpu_custom_call.1} parent=5 // pred_check_branch
        %7096 = sbr.rel (%p7094) target = $region100
      $region99: #{tpu_custom_call.1} parent=5 // pred_region
        %s7097 = ssub.s32 %s20, 2
      $region100: #{tpu_custom_call.1} parent=5 // pred_fallthru
        _
    $region6: #{tpu_custom_call.1} parent=1 // loop_footer
      %s24 = sadd.s32 1, %s20
    $region7: #{tpu_custom_call.1} parent=1 // loop_footer_branch
      %19 = sbr.rel target = $region3
    $region8: #{tpu_custom_call.1} parent=1 // loop_exit
      _
    %7098 = vsyncpa [#allocation4], 1
    %s7099 = scalar_lea.sflag [#allocation4], 1
    %7100 = vsyncpa %s7099, 1

</llo_original>
